<compile_context>
chip_gen: v7x
topology: tpu7x:2x2x1
jax: 0.10.0
libtpu: 0.0.40
codegen_flags: <defaults>
</compile_context>

<pallas_src>
import jax
import jax.numpy as jnp
from jax.experimental import pallas as pl
from jax.experimental.pallas import tpu as pltpu

LANES = 128


# ---------------------------------------------------------------------------
# Pallas kernels
# ---------------------------------------------------------------------------
def _conv_relu_pool_kernel(x_ref, w_ref, b_ref, o_ref):
    """Fused conv (+bias, ReLU) + max-pool, stacked-window matmul.

    x_ref: (n_win * P, K)  bf16 im2col patches, window-major rows (pad rows/cols
                           are zeros).
    w_ref: (K, Cout)       bf16 fused tap weights (zero rows/cols for padding).
    b_ref: (1, Cout)       f32 bias (zero in padded columns).
    o_ref: (P, Cout)       f32 pooled, ReLU'd activations.

    Uses max_w relu(z_w + b) == relu(max_w z_w + b) (ReLU/+b are monotone).
    One 128-lane output column tile is finished per iteration so the live set
    (z chunk + running max) stays well under 64 vregs.
    """
    p_pad, cout = o_ref.shape
    n_win = x_ref.shape[0] // p_pad
    for c in range(cout // LANES):
        sl = slice(c * LANES, (c + 1) * LANES)
        z = jnp.dot(x_ref[...], w_ref[:, sl],
                    preferred_element_type=jnp.float32)          # (n_win*P, 128)
        m = z[0:p_pad]
        for widx in range(1, n_win):
            m = jnp.maximum(m, z[widx * p_pad:(widx + 1) * p_pad])
        o_ref[:, sl] = jnp.maximum(m + b_ref[:, sl], 0.0)


def _grouped_conv_pool_decode_kernel(x_ref, w_ref, b_ref, wd_ref, o_ref):
    """Per-group: grouped conv3x3 (+bias, ReLU) + max-pool(2) + decoder partial.

    Grid axis 0 = group g ("parallel": bf16 weights stream per group and on v7x
    the two TensorCores split the groups instead of duplicating the weight DMA).

    x_ref : (1, n_win*P, K_pad)  bf16 patches for this group (K_pad = 2432)
    w_ref : (1, K_pad, Cout_g)   bf16 weights (zero K-pad rows)
    b_ref : (1, 1, Cout_g)       f32 bias
    wd_ref: (1, 1, Cout_g)       f32 decoder (1x1, 786->1) slice for this group
    o_ref : (1, P, 128)          f32 per-group decoder partial, lane-broadcast
    """
    p_pad = o_ref.shape[1]
    n_win = x_ref.shape[1] // p_pad
    z = jnp.dot(x_ref[0], w_ref[0], preferred_element_type=jnp.float32)
    m = z[0:p_pad]
    for widx in range(1, n_win):
        m = jnp.maximum(m, z[widx * p_pad:(widx + 1) * p_pad])
    feat = jnp.maximum(m + b_ref[0], 0.0)                         # (P, Cout_g)
    # Decoder fold-in: VPU multiply + lane reduction (avoids a Cout=1 matmul).
    partial = jnp.sum(feat * wd_ref[0], axis=-1, keepdims=True)   # (P, 1)
    o_ref[0] = jnp.broadcast_to(partial, (p_pad, o_ref.shape[2]))
    # TODO(synk): int8 (v5e/v6e) / fp8 (v7x) weight quantization with
    # per-channel scales would halve the dominant weight stream; kept bf16 here
    # to stay within the f32-reference accuracy budget on all generations.


# ---------------------------------------------------------------------------
# pallas_call wrappers
# ---------------------------------------------------------------------------
def conv_relu_pool(patches, w, b, n_pix):
    """patches: (n_win*n_pix, K) bf16; w: (K, Cout) bf16; b: (1, Cout) f32."""
    cout = w.shape[-1]
    return pl.pallas_call(
        _conv_relu_pool_kernel,
        out_shape=jax.ShapeDtypeStruct((n_pix, cout), jnp.float32),
    )(patches, w, b)


def grouped_conv_pool_decode(patches, w, b, wdec, n_pix):
    """patches: (G, n_win*n_pix, K_pad) bf16; w: (G, K_pad, Cout_g) bf16."""
    g, rows, kpad = patches.shape
    cout_g = w.shape[-1]
    return pl.pallas_call(
        _grouped_conv_pool_decode_kernel,
        out_shape=jax.ShapeDtypeStruct((g, n_pix, LANES), jnp.float32),
        grid=(g,),
        in_specs=[
            pl.BlockSpec((1, rows, kpad), lambda i: (i, 0, 0)),
            pl.BlockSpec((1, kpad, cout_g), lambda i: (i, 0, 0)),
            pl.BlockSpec((1, 1, cout_g), lambda i: (i, 0, 0)),
            pl.BlockSpec((1, 1, cout_g), lambda i: (i, 0, 0)),
        ],
        out_specs=pl.BlockSpec((1, n_pix, LANES), lambda i: (i, 0, 0)),
        compiler_params=pltpu.CompilerParams(dimension_semantics=("parallel",)),
    )(patches, w, b, wdec)


# ---------------------------------------------------------------------------
# Parameters (deterministic init; shapes mirror the PyTorch module)
# ---------------------------------------------------------------------------
def init_params(key):
    ks = jax.random.split(key, 8)

    def kaiming(k, shape, fan_in):
        return jax.random.normal(k, shape, jnp.float32) * jnp.sqrt(2.0 / fan_in)

    p = {}
    # features_0: vgg16.features[0] = Conv2d(3, 64, k=3, pad=1) (+ ReLU)
    p["w0"] = kaiming(ks[0], (3, 3, 3, 64), 3 * 3 * 3)
    p["b0"] = jax.random.normal(ks[1], (64,), jnp.float32) * 0.01
    # features_1[1]: Conv2d(64, 786, k=1, pad=1)
    p["w1"] = kaiming(ks[2], (1, 1, 64, 786), 64)
    p["b1"] = jax.random.normal(ks[3], (786,), jnp.float32) * 0.01
    # features_1[4]: Conv2d(786, 786, k=3, groups=3, pad=1)  (per-group 262->262)
    p["w2"] = kaiming(ks[4], (3, 3, 262, 786), 262 * 3 * 3)
    p["b2"] = jax.random.normal(ks[5], (786,), jnp.float32) * 0.01
    # decoder[0]: Conv2d(786, 1, k=1, pad=1)
    p["w3"] = kaiming(ks[6], (1, 1, 786, 1), 786)
    p["b3"] = jax.random.normal(ks[7], (1,), jnp.float32) * 0.01
    return p


def prepare_params(p):
    """Reshape/cast/pad weights once into kernel layouts."""
    q = {}
    # Stem conv: (3,3,3,64) -> fused-tap (27,64); K order=(dy,dx,cin).
    # Pad K 27->32 and Cout 64->128 (lane-dense output); bf16 operands.
    q["w0"] = jnp.pad(p["w0"].reshape(27, 64), ((0, 5), (0, 64))).astype(jnp.bfloat16)
    q["b0"] = jnp.pad(p["b0"], (0, 64)).reshape(1, 128)
    # 1x1 conv: pad Cin 64->128 (zero rows match the zero-padded stage-1 lanes)
    # and Cout 786->896 (7*128) for a lane-dense output slab; bf16 operands.
    q["w1"] = jnp.pad(p["w1"].reshape(64, 786), ((0, 64), (0, 110))).astype(jnp.bfloat16)
    q["b1"] = jnp.pad(p["b1"], (0, 110)).reshape(1, 896)
    # Grouped conv: (3,3,262, 3*262) -> (g, 9*262, 262); K order=(dy,dx,cin_g);
    # K padded 2358 -> 2432 (19*128) so K tiles are lane/sublane aligned; bf16
    # weight streaming, f32 accumulation in-kernel.
    w2 = p["w2"].reshape(3, 3, 262, 3, 262).transpose(3, 0, 1, 2, 4).reshape(3, 2358, 262)
    q["w2"] = jnp.pad(w2, ((0, 0), (0, 74), (0, 0))).astype(jnp.bfloat16)
    q["b2"] = p["b2"].reshape(3, 1, 262)
    # Decoder 1x1 (786->1): split per input-channel group for the fused epilogue.
    q["wdec"] = p["w3"].reshape(3, 1, 262)
    q["bdec"] = p["b3"].reshape(())
    return q


# ---------------------------------------------------------------------------
# Model forward
# ---------------------------------------------------------------------------
def _round_up(x, m):
    return (x + m - 1) // m * m


def model_forward(x_nchw, q):
    # NCHW (PyTorch) -> NHWC (kernel layout)
    x = jnp.transpose(x_nchw, (0, 2, 3, 1)).astype(jnp.float32)    # (N,24,24,3)
    n = x.shape[0]

    # ---- stage 1: Conv3x3(3->64, pad=1) + ReLU + MaxPool(3)  [one kernel] ----
    xp = jnp.pad(x, ((0, 0), (1, 1), (1, 1), (0, 0))).astype(jnp.bfloat16)  # (N,26,26,3)
    taps = jnp.concatenate(
        [xp[:, dy:dy + 24, dx:dx + 24, :] for dy in range(3) for dx in range(3)],
        axis=-1)                                                   # (N,24,24,27)
    p1 = taps.reshape(n, 8, 3, 8, 3, 27).transpose(2, 4, 0, 1, 3, 5)
    p1 = p1.reshape(9 * n * 64, 27)                                # window-major rows
    p1 = jnp.pad(p1, ((0, 0), (0, 5)))                             # K 27 -> 32
    x1 = conv_relu_pool(p1, q["w0"], q["b0"], n_pix=n * 64)        # (n*64, 128)

    # ---- stage 2: Conv1x1(64->786, pad=1) + ReLU + MaxPool(2)  [one kernel] ----
    x1 = x1.reshape(n, 8, 8, 128).astype(jnp.bfloat16)             # padded lanes are 0
    x1p = jnp.pad(x1, ((0, 0), (1, 1), (1, 1), (0, 0)))            # (N,10,10,128)
    pix2 = n * 25
    pix2_pad = _round_up(pix2, 8)
    p2 = jnp.stack([x1p[:, wi::2, wj::2, :]
                    for wi in range(2) for wj in range(2)], axis=0)
    p2 = p2.reshape(4, pix2, 128)
    p2 = jnp.pad(p2, ((0, 0), (0, pix2_pad - pix2), (0, 0)))
    p2 = p2.reshape(4 * pix2_pad, 128)                             # window-major rows
    x2 = conv_relu_pool(p2, q["w1"], q["b1"], n_pix=pix2_pad)      # (pix2_pad, 896)

    # ---- stage 3: grouped Conv3x3(786->786, g=3, pad=1) + ReLU + MaxPool(2)
    #               + decoder Conv1x1(786->1) interior, fused  [one kernel] ----
    x2 = x2[:pix2, :786].reshape(n, 5, 5, 786).astype(jnp.bfloat16)
    x2p = jnp.pad(x2, ((0, 0), (1, 1), (1, 1), (0, 0)))            # (N,7,7,786)
    taps3 = jnp.stack([x2p[:, dy:dy + 4, dx:dx + 4, :]
                       for dy in range(3) for dx in range(3)], axis=3)  # (N,4,4,9,786)
    t = taps3.reshape(n, 2, 2, 2, 2, 9, 3, 262)      # (n,py,wi,px,wj,tap,g,cin_g)
    t = t.transpose(6, 2, 4, 0, 1, 3, 5, 7)          # (g,wi,wj,n,py,px,tap,cin_g)
    pix3 = n * 4
    pix3_pad = _round_up(pix3, 8)
    p3 = t.reshape(3, 4, pix3, 2358)
    p3 = jnp.pad(p3, ((0, 0), (0, 0), (0, pix3_pad - pix3), (0, 2432 - 2358)))
    p3 = p3.reshape(3, 4 * pix3_pad, 2432)
    partial = grouped_conv_pool_decode(p3, q["w2"], q["b2"], q["wdec"],
                                       n_pix=pix3_pad)             # (3, pix3_pad, 128)

    # TODO(synk): nn.Dropout(p=0.3) — eval-mode identity; training RNG mask not reproduced.

    # ---- decoder epilogue (32 scalars: bias, ReLU, pad=1 border) — plain JAX ----
    dec = jnp.maximum(partial[:, :pix3, 0].sum(axis=0) + q["bdec"], 0.0)  # (n*4,)
    border = jnp.maximum(q["bdec"], 0.0)                           # pad pixels: ReLU(bias)
    out = jnp.full((n, 4, 4), border, jnp.float32)
    out = out.at[:, 1:3, 1:3].set(dec.reshape(n, 2, 2))

    # TODO(synk): F.dropout(p=0.3) — PyTorch default training=True; RNG mask not reproduced.

    return out[:, None, :, :]                                      # NCHW (n,1,4,4)


if __name__ == "__main__":
    key = jax.random.PRNGKey(0)
    pkey, xkey = jax.random.split(key)
    params = prepare_params(init_params(pkey))

    # Input follows the PyTorch NCHW convention: (batch=2, channels=3, 24, 24).
    x = jax.random.normal(xkey, (2, 3, 24, 24), jnp.float32)

    fwd = jax.jit(model_forward)
    out = fwd(x, params)
    jax.block_until_ready(out)

    # 24 -> conv(pad1) 24 -> pool3 8 -> 1x1(pad1) 10 -> pool2 5 -> 3x3(pad1) 5
    #    -> pool2 2 -> 1x1(pad1) 4  => (2, 1, 4, 4)
    assert out.shape == (2, 1, 4, 4), out.shape
    assert bool(jnp.all(out >= 0.0))  # final ReLU
    print("KERNEL_OK")
</pallas_src>

<mosaic_0001>
module attributes {stable_mosaic.version = 11 : i64} {
  func.func @_conv_relu_pool_kernel(%arg0: memref<1152x32xbf16, #tpu.memory_space<vmem>>, %arg1: memref<32x128xbf16, #tpu.memory_space<vmem>>, %arg2: memref<1x128xf32, #tpu.memory_space<vmem>>, %arg3: memref<128x128xf32, #tpu.memory_space<vmem>>) attributes {dimension_semantics = [], scalar_prefetch = 0 : i64, scratch_operands = 0 : i64, tpu.core_type = #tpu.core_type<tc>} {
    %c0 = arith.constant 0 : index
    %c0_0 = arith.constant 0 : index
    %0 = vector.load %arg0[%c0, %c0_0] : memref<1152x32xbf16, #tpu.memory_space<vmem>>, vector<1152x32xbf16>
    %c0_1 = arith.constant 0 : index
    %c0_2 = arith.constant 0 : index
    %1 = vector.load %arg1[%c0_1, %c0_2] : memref<32x128xbf16, #tpu.memory_space<vmem>>, vector<32x128xbf16>
    %cst = arith.constant dense<0.000000e+00> : vector<1152x128xf32>
    %2 = tpu.matmul %0, %1, %cst {dimension_numbers = #tpu.dot_dimension_numbers<[1], [0], [0], [1], [0, 0, 1, 1], [], []>} : vector<1152x32xbf16>, vector<32x128xbf16>, vector<1152x128xf32> -> vector<1152x128xf32>
    %3 = vector.extract_strided_slice %2 {offsets = [0, 0], sizes = [128, 128], strides = [1, 1]} : vector<1152x128xf32> to vector<128x128xf32>
    %4 = vector.extract_strided_slice %2 {offsets = [128, 0], sizes = [128, 128], strides = [1, 1]} : vector<1152x128xf32> to vector<128x128xf32>
    %5 = arith.maximumf %3, %4 : vector<128x128xf32>
    %6 = vector.extract_strided_slice %2 {offsets = [256, 0], sizes = [128, 128], strides = [1, 1]} : vector<1152x128xf32> to vector<128x128xf32>
    %7 = arith.maximumf %5, %6 : vector<128x128xf32>
    %8 = vector.extract_strided_slice %2 {offsets = [384, 0], sizes = [128, 128], strides = [1, 1]} : vector<1152x128xf32> to vector<128x128xf32>
    %9 = arith.maximumf %7, %8 : vector<128x128xf32>
    %10 = vector.extract_strided_slice %2 {offsets = [512, 0], sizes = [128, 128], strides = [1, 1]} : vector<1152x128xf32> to vector<128x128xf32>
    %11 = arith.maximumf %9, %10 : vector<128x128xf32>
    %12 = vector.extract_strided_slice %2 {offsets = [640, 0], sizes = [128, 128], strides = [1, 1]} : vector<1152x128xf32> to vector<128x128xf32>
    %13 = arith.maximumf %11, %12 : vector<128x128xf32>
    %14 = vector.extract_strided_slice %2 {offsets = [768, 0], sizes = [128, 128], strides = [1, 1]} : vector<1152x128xf32> to vector<128x128xf32>
    %15 = arith.maximumf %13, %14 : vector<128x128xf32>
    %16 = vector.extract_strided_slice %2 {offsets = [896, 0], sizes = [128, 128], strides = [1, 1]} : vector<1152x128xf32> to vector<128x128xf32>
    %17 = arith.maximumf %15, %16 : vector<128x128xf32>
    %18 = vector.extract_strided_slice %2 {offsets = [1024, 0], sizes = [128, 128], strides = [1, 1]} : vector<1152x128xf32> to vector<128x128xf32>
    %19 = arith.maximumf %17, %18 : vector<128x128xf32>
    %c0_3 = arith.constant 0 : index
    %c0_4 = arith.constant 0 : index
    %20 = vector.load %arg2[%c0_3, %c0_4] : memref<1x128xf32, #tpu.memory_space<vmem>>, vector<1x128xf32>
    %21 = vector.broadcast %20 : vector<1x128xf32> to vector<128x128xf32>
    %22 = arith.addf %19, %21 : vector<128x128xf32>
    %cst_5 = arith.constant 0.000000e+00 : f32
    %23 = vector.broadcast %cst_5 : f32 to vector<128x128xf32>
    %24 = arith.maximumf %22, %23 : vector<128x128xf32>
    %c0_6 = arith.constant 0 : index
    %c0_7 = arith.constant 0 : index
    %25 = vector.load %arg3[%c0_6, %c0_7] : memref<128x128xf32, #tpu.memory_space<vmem>>, vector<128x128xf32>
    tpu.vector_store %arg3[%c0_6, %c0_7], %24 {strides = array<i32>} : memref<128x128xf32, #tpu.memory_space<vmem>>, vector<128x128xf32>,
    return
  }
}

module attributes {stable_mosaic.version = 11 : i64} {
  func.func @_conv_relu_pool_kernel(%arg0: memref<224x128xbf16, #tpu.memory_space<vmem>>, %arg1: memref<128x896xbf16, #tpu.memory_space<vmem>>, %arg2: memref<1x896xf32, #tpu.memory_space<vmem>>, %arg3: memref<56x896xf32, #tpu.memory_space<vmem>>) attributes {dimension_semantics = [], scalar_prefetch = 0 : i64, scratch_operands = 0 : i64, tpu.core_type = #tpu.core_type<tc>} {
    %c0 = arith.constant 0 : index
    %c0_0 = arith.constant 0 : index
    %0 = vector.load %arg0[%c0, %c0_0] : memref<224x128xbf16, #tpu.memory_space<vmem>>, vector<224x128xbf16>
    %c0_1 = arith.constant 0 : index
    %c0_2 = arith.constant 0 : index
    %1 = vector.load %arg1[%c0_1, %c0_2] : memref<128x896xbf16, #tpu.memory_space<vmem>>, vector<128x128xbf16>
    %cst = arith.constant dense<0.000000e+00> : vector<224x128xf32>
    %2 = tpu.matmul %0, %1, %cst {dimension_numbers = #tpu.dot_dimension_numbers<[1], [0], [0], [1], [0, 0, 1, 1], [], []>} : vector<224x128xbf16>, vector<128x128xbf16>, vector<224x128xf32> -> vector<224x128xf32>
    %3 = vector.extract_strided_slice %2 {offsets = [0, 0], sizes = [56, 128], strides = [1, 1]} : vector<224x128xf32> to vector<56x128xf32>
    %4 = vector.extract_strided_slice %2 {offsets = [56, 0], sizes = [56, 128], strides = [1, 1]} : vector<224x128xf32> to vector<56x128xf32>
    %5 = arith.maximumf %3, %4 : vector<56x128xf32>
    %6 = vector.extract_strided_slice %2 {offsets = [112, 0], sizes = [56, 128], strides = [1, 1]} : vector<224x128xf32> to vector<56x128xf32>
    %7 = arith.maximumf %5, %6 : vector<56x128xf32>
    %8 = vector.extract_strided_slice %2 {offsets = [168, 0], sizes = [56, 128], strides = [1, 1]} : vector<224x128xf32> to vector<56x128xf32>
    %9 = arith.maximumf %7, %8 : vector<56x128xf32>
    %c0_3 = arith.constant 0 : index
    %c0_4 = arith.constant 0 : index
    %10 = vector.load %arg2[%c0_3, %c0_4] : memref<1x896xf32, #tpu.memory_space<vmem>>, vector<1x128xf32>
    %11 = vector.broadcast %10 : vector<1x128xf32> to vector<56x128xf32>
    %12 = arith.addf %9, %11 : vector<56x128xf32>
    %cst_5 = arith.constant 0.000000e+00 : f32
    %13 = vector.broadcast %cst_5 : f32 to vector<56x128xf32>
    %14 = arith.maximumf %12, %13 : vector<56x128xf32>
    %c0_6 = arith.constant 0 : index
    %c0_7 = arith.constant 0 : index
    %15 = vector.load %arg3[%c0_6, %c0_7] : memref<56x896xf32, #tpu.memory_space<vmem>>, vector<56x128xf32>
    tpu.vector_store %arg3[%c0_6, %c0_7], %14 {strides = array<i32>} : memref<56x896xf32, #tpu.memory_space<vmem>>, vector<56x128xf32>,
    %c0_8 = arith.constant 0 : index
    %c0_9 = arith.constant 0 : index
    %16 = vector.load %arg0[%c0_8, %c0_9] : memref<224x128xbf16, #tpu.memory_space<vmem>>, vector<224x128xbf16>
    %c0_10 = arith.constant 0 : index
    %c128 = arith.constant 128 : index
    %17 = vector.load %arg1[%c0_10, %c128] : memref<128x896xbf16, #tpu.memory_space<vmem>>, vector<128x128xbf16>
    %cst_11 = arith.constant dense<0.000000e+00> : vector<224x128xf32>
    %18 = tpu.matmul %16, %17, %cst_11 {dimension_numbers = #tpu.dot_dimension_numbers<[1], [0], [0], [1], [0, 0, 1, 1], [], []>} : vector<224x128xbf16>, vector<128x128xbf16>, vector<224x128xf32> -> vector<224x128xf32>
    %19 = vector.extract_strided_slice %18 {offsets = [0, 0], sizes = [56, 128], strides = [1, 1]} : vector<224x128xf32> to vector<56x128xf32>
    %20 = vector.extract_strided_slice %18 {offsets = [56, 0], sizes = [56, 128], strides = [1, 1]} : vector<224x128xf32> to vector<56x128xf32>
    %21 = arith.maximumf %19, %20 : vector<56x128xf32>
    %22 = vector.extract_strided_slice %18 {offsets = [112, 0], sizes = [56, 128], strides = [1, 1]} : vector<224x128xf32> to vector<56x128xf32>
    %23 = arith.maximumf %21, %22 : vector<56x128xf32>
    %24 = vector.extract_strided_slice %18 {offsets = [168, 0], sizes = [56, 128], strides = [1, 1]} : vector<224x128xf32> to vector<56x128xf32>
    %25 = arith.maximumf %23, %24 : vector<56x128xf32>
    %c0_12 = arith.constant 0 : index
    %c128_13 = arith.constant 128 : index
    %26 = vector.load %arg2[%c0_12, %c128_13] : memref<1x896xf32, #tpu.memory_space<vmem>>, vector<1x128xf32>
    %27 = vector.broadcast %26 : vector<1x128xf32> to vector<56x128xf32>
    %28 = arith.addf %25, %27 : vector<56x128xf32>
    %cst_14 = arith.constant 0.000000e+00 : f32
    %29 = vector.broadcast %cst_14 : f32 to vector<56x128xf32>
    %30 = arith.maximumf %28, %29 : vector<56x128xf32>
    %c0_15 = arith.constant 0 : index
    %c128_16 = arith.constant 128 : index
    %31 = vector.load %arg3[%c0_15, %c128_16] : memref<56x896xf32, #tpu.memory_space<vmem>>, vector<56x128xf32>
    tpu.vector_store %arg3[%c0_15, %c128_16], %30 {strides = array<i32>} : memref<56x896xf32, #tpu.memory_space<vmem>>, vector<56x128xf32>,
    %c0_17 = arith.constant 0 : index
    %c0_18 = arith.constant 0 : index
    %32 = vector.load %arg0[%c0_17, %c0_18] : memref<224x128xbf16, #tpu.memory_space<vmem>>, vector<224x128xbf16>
    %c0_19 = arith.constant 0 : index
    %c256 = arith.constant 256 : index
    %33 = vector.load %arg1[%c0_19, %c256] : memref<128x896xbf16, #tpu.memory_space<vmem>>, vector<128x128xbf16>
    %cst_20 = arith.constant dense<0.000000e+00> : vector<224x128xf32>
    %34 = tpu.matmul %32, %33, %cst_20 {dimension_numbers = #tpu.dot_dimension_numbers<[1], [0], [0], [1], [0, 0, 1, 1], [], []>} : vector<224x128xbf16>, vector<128x128xbf16>, vector<224x128xf32> -> vector<224x128xf32>
    %35 = vector.extract_strided_slice %34 {offsets = [0, 0], sizes = [56, 128], strides = [1, 1]} : vector<224x128xf32> to vector<56x128xf32>
    %36 = vector.extract_strided_slice %34 {offsets = [56, 0], sizes = [56, 128], strides = [1, 1]} : vector<224x128xf32> to vector<56x128xf32>
    %37 = arith.maximumf %35, %36 : vector<56x128xf32>
    %38 = vector.extract_strided_slice %34 {offsets = [112, 0], sizes = [56, 128], strides = [1, 1]} : vector<224x128xf32> to vector<56x128xf32>
    %39 = arith.maximumf %37, %38 : vector<56x128xf32>
    %40 = vector.extract_strided_slice %34 {offsets = [168, 0], sizes = [56, 128], strides = [1, 1]} : vector<224x128xf32> to vector<56x128xf32>
    %41 = arith.maximumf %39, %40 : vector<56x128xf32>
    %c0_21 = arith.constant 0 : index
    %c256_22 = arith.constant 256 : index
    %42 = vector.load %arg2[%c0_21, %c256_22] : memref<1x896xf32, #tpu.memory_space<vmem>>, vector<1x128xf32>
    %43 = vector.broadcast %42 : vector<1x128xf32> to vector<56x128xf32>
    %44 = arith.addf %41, %43 : vector<56x128xf32>
    %cst_23 = arith.constant 0.000000e+00 : f32
    %45 = vector.broadcast %cst_23 : f32 to vector<56x128xf32>
    %46 = arith.maximumf %44, %45 : vector<56x128xf32>
    %c0_24 = arith.constant 0 : index
    %c256_25 = arith.constant 256 : index
    %47 = vector.load %arg3[%c0_24, %c256_25] : memref<56x896xf32, #tpu.memory_space<vmem>>, vector<56x128xf32>
    tpu.vector_store %arg3[%c0_24, %c256_25], %46 {strides = array<i32>} : memref<56x896xf32, #tpu.memory_space<vmem>>, vector<56x128xf32>,
    %c0_26 = arith.constant 0 : index
    %c0_27 = arith.constant 0 : index
    %48 = vector.load %arg0[%c0_26, %c0_27] : memref<224x128xbf16, #tpu.memory_space<vmem>>, vector<224x128xbf16>
    %c0_28 = arith.constant 0 : index
    %c384 = arith.constant 384 : index
    %49 = vector.load %arg1[%c0_28, %c384] : memref<128x896xbf16, #tpu.memory_space<vmem>>, vector<128x128xbf16>
    %cst_29 = arith.constant dense<0.000000e+00> : vector<224x128xf32>
    %50 = tpu.matmul %48, %49, %cst_29 {dimension_numbers = #tpu.dot_dimension_numbers<[1], [0], [0], [1], [0, 0, 1, 1], [], []>} : vector<224x128xbf16>, vector<128x128xbf16>, vector<224x128xf32> -> vector<224x128xf32>
    %51 = vector.extract_strided_slice %50 {offsets = [0, 0], sizes = [56, 128], strides = [1, 1]} : vector<224x128xf32> to vector<56x128xf32>
    %52 = vector.extract_strided_slice %50 {offsets = [56, 0], sizes = [56, 128], strides = [1, 1]} : vector<224x128xf32> to vector<56x128xf32>
    %53 = arith.maximumf %51, %52 : vector<56x128xf32>
    %54 = vector.extract_strided_slice %50 {offsets = [112, 0], sizes = [56, 128], strides = [1, 1]} : vector<224x128xf32> to vector<56x128xf32>
    %55 = arith.maximumf %53, %54 : vector<56x128xf32>
    %56 = vector.extract_strided_slice %50 {offsets = [168, 0], sizes = [56, 128], strides = [1, 1]} : vector<224x128xf32> to vector<56x128xf32>
    %57 = arith.maximumf %55, %56 : vector<56x128xf32>
    %c0_30 = arith.constant 0 : index
    %c384_31 = arith.constant 384 : index
    %58 = vector.load %arg2[%c0_30, %c384_31] : memref<1x896xf32, #tpu.memory_space<vmem>>, vector<1x128xf32>
    %59 = vector.broadcast %58 : vector<1x128xf32> to vector<56x128xf32>
    %60 = arith.addf %57, %59 : vector<56x128xf32>
    %cst_32 = arith.constant 0.000000e+00 : f32
    %61 = vector.broadcast %cst_32 : f32 to vector<56x128xf32>
    %62 = arith.maximumf %60, %61 : vector<56x128xf32>
    %c0_33 = arith.constant 0 : index
    %c384_34 = arith.constant 384 : index
    %63 = vector.load %arg3[%c0_33, %c384_34] : memref<56x896xf32, #tpu.memory_space<vmem>>, vector<56x128xf32>
    tpu.vector_store %arg3[%c0_33, %c384_34], %62 {strides = array<i32>} : memref<56x896xf32, #tpu.memory_space<vmem>>, vector<56x128xf32>,
    %c0_35 = arith.constant 0 : index
    %c0_36 = arith.constant 0 : index
    %64 = vector.load %arg0[%c0_35, %c0_36] : memref<224x128xbf16, #tpu.memory_space<vmem>>, vector<224x128xbf16>
    %c0_37 = arith.constant 0 : index
    %c512 = arith.constant 512 : index
    %65 = vector.load %arg1[%c0_37, %c512] : memref<128x896xbf16, #tpu.memory_space<vmem>>, vector<128x128xbf16>
    %cst_38 = arith.constant dense<0.000000e+00> : vector<224x128xf32>
    %66 = tpu.matmul %64, %65, %cst_38 {dimension_numbers = #tpu.dot_dimension_numbers<[1], [0], [0], [1], [0, 0, 1, 1], [], []>} : vector<224x128xbf16>, vector<128x128xbf16>, vector<224x128xf32> -> vector<224x128xf32>
    %67 = vector.extract_strided_slice %66 {offsets = [0, 0], sizes = [56, 128], strides = [1, 1]} : vector<224x128xf32> to vector<56x128xf32>
    %68 = vector.extract_strided_slice %66 {offsets = [56, 0], sizes = [56, 128], strides = [1, 1]} : vector<224x128xf32> to vector<56x128xf32>
    %69 = arith.maximumf %67, %68 : vector<56x128xf32>
    %70 = vector.extract_strided_slice %66 {offsets = [112, 0], sizes = [56, 128], strides = [1, 1]} : vector<224x128xf32> to vector<56x128xf32>
    %71 = arith.maximumf %69, %70 : vector<56x128xf32>
    %72 = vector.extract_strided_slice %66 {offsets = [168, 0], sizes = [56, 128], strides = [1, 1]} : vector<224x128xf32> to vector<56x128xf32>
    %73 = arith.maximumf %71, %72 : vector<56x128xf32>
    %c0_39 = arith.constant 0 : index
    %c512_40 = arith.constant 512 : index
    %74 = vector.load %arg2[%c0_39, %c512_40] : memref<1x896xf32, #tpu.memory_space<vmem>>, vector<1x128xf32>
    %75 = vector.broadcast %74 : vector<1x128xf32> to vector<56x128xf32>
    %76 = arith.addf %73, %75 : vector<56x128xf32>
    %cst_41 = arith.constant 0.000000e+00 : f32
    %77 = vector.broadcast %cst_41 : f32 to vector<56x128xf32>
    %78 = arith.maximumf %76, %77 : vector<56x128xf32>
    %c0_42 = arith.constant 0 : index
    %c512_43 = arith.constant 512 : index
    %79 = vector.load %arg3[%c0_42, %c512_43] : memref<56x896xf32, #tpu.memory_space<vmem>>, vector<56x128xf32>
    tpu.vector_store %arg3[%c0_42, %c512_43], %78 {strides = array<i32>} : memref<56x896xf32, #tpu.memory_space<vmem>>, vector<56x128xf32>,
    %c0_44 = arith.constant 0 : index
    %c0_45 = arith.constant 0 : index
    %80 = vector.load %arg0[%c0_44, %c0_45] : memref<224x128xbf16, #tpu.memory_space<vmem>>, vector<224x128xbf16>
    %c0_46 = arith.constant 0 : index
    %c640 = arith.constant 640 : index
    %81 = vector.load %arg1[%c0_46, %c640] : memref<128x896xbf16, #tpu.memory_space<vmem>>, vector<128x128xbf16>
    %cst_47 = arith.constant dense<0.000000e+00> : vector<224x128xf32>
    %82 = tpu.matmul %80, %81, %cst_47 {dimension_numbers = #tpu.dot_dimension_numbers<[1], [0], [0], [1], [0, 0, 1, 1], [], []>} : vector<224x128xbf16>, vector<128x128xbf16>, vector<224x128xf32> -> vector<224x128xf32>
    %83 = vector.extract_strided_slice %82 {offsets = [0, 0], sizes = [56, 128], strides = [1, 1]} : vector<224x128xf32> to vector<56x128xf32>
    %84 = vector.extract_strided_slice %82 {offsets = [56, 0], sizes = [56, 128], strides = [1, 1]} : vector<224x128xf32> to vector<56x128xf32>
    %85 = arith.maximumf %83, %84 : vector<56x128xf32>
    %86 = vector.extract_strided_slice %82 {offsets = [112, 0], sizes = [56, 128], strides = [1, 1]} : vector<224x128xf32> to vector<56x128xf32>
    %87 = arith.maximumf %85, %86 : vector<56x128xf32>
    %88 = vector.extract_strided_slice %82 {offsets = [168, 0], sizes = [56, 128], strides = [1, 1]} : vector<224x128xf32> to vector<56x128xf32>
    %89 = arith.maximumf %87, %88 : vector<56x128xf32>
    %c0_48 = arith.constant 0 : index
    %c640_49 = arith.constant 640 : index
    %90 = vector.load %arg2[%c0_48, %c640_49] : memref<1x896xf32, #tpu.memory_space<vmem>>, vector<1x128xf32>
    %91 = vector.broadcast %90 : vector<1x128xf32> to vector<56x128xf32>
    %92 = arith.addf %89, %91 : vector<56x128xf32>
    %cst_50 = arith.constant 0.000000e+00 : f32
    %93 = vector.broadcast %cst_50 : f32 to vector<56x128xf32>
    %94 = arith.maximumf %92, %93 : vector<56x128xf32>
    %c0_51 = arith.constant 0 : index
    %c640_52 = arith.constant 640 : index
    %95 = vector.load %arg3[%c0_51, %c640_52] : memref<56x896xf32, #tpu.memory_space<vmem>>, vector<56x128xf32>
    tpu.vector_store %arg3[%c0_51, %c640_52], %94 {strides = array<i32>} : memref<56x896xf32, #tpu.memory_space<vmem>>, vector<56x128xf32>,
    %c0_53 = arith.constant 0 : index
    %c0_54 = arith.constant 0 : index
    %96 = vector.load %arg0[%c0_53, %c0_54] : memref<224x128xbf16, #tpu.memory_space<vmem>>, vector<224x128xbf16>
    %c0_55 = arith.constant 0 : index
    %c768 = arith.constant 768 : index
    %97 = vector.load %arg1[%c0_55, %c768] : memref<128x896xbf16, #tpu.memory_space<vmem>>, vector<128x128xbf16>
    %cst_56 = arith.constant dense<0.000000e+00> : vector<224x128xf32>
    %98 = tpu.matmul %96, %97, %cst_56 {dimension_numbers = #tpu.dot_dimension_numbers<[1], [0], [0], [1], [0, 0, 1, 1], [], []>} : vector<224x128xbf16>, vector<128x128xbf16>, vector<224x128xf32> -> vector<224x128xf32>
    %99 = vector.extract_strided_slice %98 {offsets = [0, 0], sizes = [56, 128], strides = [1, 1]} : vector<224x128xf32> to vector<56x128xf32>
    %100 = vector.extract_strided_slice %98 {offsets = [56, 0], sizes = [56, 128], strides = [1, 1]} : vector<224x128xf32> to vector<56x128xf32>
    %101 = arith.maximumf %99, %100 : vector<56x128xf32>
    %102 = vector.extract_strided_slice %98 {offsets = [112, 0], sizes = [56, 128], strides = [1, 1]} : vector<224x128xf32> to vector<56x128xf32>
    %103 = arith.maximumf %101, %102 : vector<56x128xf32>
    %104 = vector.extract_strided_slice %98 {offsets = [168, 0], sizes = [56, 128], strides = [1, 1]} : vector<224x128xf32> to vector<56x128xf32>
    %105 = arith.maximumf %103, %104 : vector<56x128xf32>
    %c0_57 = arith.constant 0 : index
    %c768_58 = arith.constant 768 : index
    %106 = vector.load %arg2[%c0_57, %c768_58] : memref<1x896xf32, #tpu.memory_space<vmem>>, vector<1x128xf32>
    %107 = vector.broadcast %106 : vector<1x128xf32> to vector<56x128xf32>
    %108 = arith.addf %105, %107 : vector<56x128xf32>
    %cst_59 = arith.constant 0.000000e+00 : f32
    %109 = vector.broadcast %cst_59 : f32 to vector<56x128xf32>
    %110 = arith.maximumf %108, %109 : vector<56x128xf32>
    %c0_60 = arith.constant 0 : index
    %c768_61 = arith.constant 768 : index
    %111 = vector.load %arg3[%c0_60, %c768_61] : memref<56x896xf32, #tpu.memory_space<vmem>>, vector<56x128xf32>
    tpu.vector_store %arg3[%c0_60, %c768_61], %110 {strides = array<i32>} : memref<56x896xf32, #tpu.memory_space<vmem>>, vector<56x128xf32>,
    return
  }
}

module attributes {stable_mosaic.version = 11 : i64} {
  func.func @_grouped_conv_pool_decode_kernel(%arg0: i32, %arg1: memref<1x32x2432xbf16, #tpu.memory_space<vmem>>, %arg2: memref<1x2432x262xbf16, #tpu.memory_space<vmem>>, %arg3: memref<1x1x262xf32, #tpu.memory_space<vmem>>, %arg4: memref<1x1x262xf32, #tpu.memory_space<vmem>>, %arg5: memref<1x8x128xf32, #tpu.memory_space<vmem>>) attributes {dimension_semantics = [#tpu.dimension_semantics<parallel>], iteration_bounds = array<i64: 3>, scalar_prefetch = 0 : i64, scratch_operands = 0 : i64, tpu.core_type = #tpu.core_type<tc>, window_params = [{transform_indices = @transform_0, window_bounds = array<i64: 1, 32, 2432>}, {transform_indices = @transform_1, window_bounds = array<i64: 1, 2432, 262>}, {transform_indices = @transform_2, window_bounds = array<i64: 1, 1, 262>}, {transform_indices = @transform_3, window_bounds = array<i64: 1, 1, 262>}, {transform_indices = @transform_4, window_bounds = array<i64: 1, 8, 128>}]} {
    %c0 = arith.constant 0 : index
    %c0_0 = arith.constant 0 : index
    %c0_1 = arith.constant 0 : index
    %0 = vector.load %arg1[%c0, %c0_0, %c0_1] : memref<1x32x2432xbf16, #tpu.memory_space<vmem>>, vector<1x32x2432xbf16>
    %1 = vector.shape_cast %0 : vector<1x32x2432xbf16> to vector<32x2432xbf16>
    %c0_2 = arith.constant 0 : index
    %c0_3 = arith.constant 0 : index
    %c0_4 = arith.constant 0 : index
    %2 = vector.load %arg2[%c0_2, %c0_3, %c0_4] : memref<1x2432x262xbf16, #tpu.memory_space<vmem>>, vector<1x2432x262xbf16>
    %3 = vector.shape_cast %2 : vector<1x2432x262xbf16> to vector<2432x262xbf16>
    %cst = arith.constant dense<0.000000e+00> : vector<32x262xf32>
    %4 = tpu.matmul %1, %3, %cst {dimension_numbers = #tpu.dot_dimension_numbers<[1], [0], [0], [1], [0, 0, 1, 1], [], []>} : vector<32x2432xbf16>, vector<2432x262xbf16>, vector<32x262xf32> -> vector<32x262xf32>
    %5 = vector.extract_strided_slice %4 {offsets = [0, 0], sizes = [8, 262], strides = [1, 1]} : vector<32x262xf32> to vector<8x262xf32>
    %6 = vector.extract_strided_slice %4 {offsets = [8, 0], sizes = [8, 262], strides = [1, 1]} : vector<32x262xf32> to vector<8x262xf32>
    %7 = arith.maximumf %5, %6 : vector<8x262xf32>
    %8 = vector.extract_strided_slice %4 {offsets = [16, 0], sizes = [8, 262], strides = [1, 1]} : vector<32x262xf32> to vector<8x262xf32>
    %9 = arith.maximumf %7, %8 : vector<8x262xf32>
    %10 = vector.extract_strided_slice %4 {offsets = [24, 0], sizes = [8, 262], strides = [1, 1]} : vector<32x262xf32> to vector<8x262xf32>
    %11 = arith.maximumf %9, %10 : vector<8x262xf32>
    %c0_5 = arith.constant 0 : index
    %c0_6 = arith.constant 0 : index
    %c0_7 = arith.constant 0 : index
    %12 = vector.load %arg3[%c0_5, %c0_6, %c0_7] : memref<1x1x262xf32, #tpu.memory_space<vmem>>, vector<1x1x262xf32>
    %13 = vector.shape_cast %12 : vector<1x1x262xf32> to vector<1x262xf32>
    %14 = vector.broadcast %13 : vector<1x262xf32> to vector<8x262xf32>
    %15 = arith.addf %11, %14 : vector<8x262xf32>
    %cst_8 = arith.constant 0.000000e+00 : f32
    %16 = vector.broadcast %cst_8 : f32 to vector<8x262xf32>
    %17 = arith.maximumf %15, %16 : vector<8x262xf32>
    %c0_9 = arith.constant 0 : index
    %c0_10 = arith.constant 0 : index
    %c0_11 = arith.constant 0 : index
    %18 = vector.load %arg4[%c0_9, %c0_10, %c0_11] : memref<1x1x262xf32, #tpu.memory_space<vmem>>, vector<1x1x262xf32>
    %19 = vector.shape_cast %18 : vector<1x1x262xf32> to vector<1x262xf32>
    %20 = vector.broadcast %19 : vector<1x262xf32> to vector<8x262xf32>
    %21 = arith.mulf %17, %20 : vector<8x262xf32>
    %cst_12 = arith.constant dense<0.000000e+00> : vector<8xf32>
    %22 = vector.multi_reduction <add>, %21, %cst_12 [1] : vector<8x262xf32> to vector<8xf32>
    %23 = vector.shape_cast %22 : vector<8xf32> to vector<8x1xf32>
    %24 = vector.shape_cast %23 : vector<8x1xf32> to vector<8x1xf32>
    %25 = vector.broadcast %24 : vector<8x1xf32> to vector<8x128xf32>
    %c0_13 = arith.constant 0 : index
    %c0_14 = arith.constant 0 : index
    %c0_15 = arith.constant 0 : index
    %26 = vector.load %arg5[%c0_13, %c0_14, %c0_15] : memref<1x8x128xf32, #tpu.memory_space<vmem>>, vector<1x8x128xf32>
    %27 = vector.shape_cast %26 : vector<1x8x128xf32> to vector<8x128xf32>
    %28 = vector.shape_cast %25 : vector<8x128xf32> to vector<1x8x128xf32>
    tpu.vector_store %arg5[%c0_13, %c0_14, %c0_15], %28 {strides = array<i32>} : memref<1x8x128xf32, #tpu.memory_space<vmem>>, vector<1x8x128xf32>,
    return
  }
  func.func @transform_0(%arg0: i32) -> (i32, i32, i32) {
    %c0_i32 = arith.constant 0 : i32
    %c0_i32_0 = arith.constant 0 : i32
    %c0_i32_1 = arith.constant 0 : i32
    return %arg0, %c0_i32, %c0_i32_0 : i32, i32, i32
  }
  func.func @transform_1(%arg0: i32) -> (i32, i32, i32) {
    %c0_i32 = arith.constant 0 : i32
    %c0_i32_0 = arith.constant 0 : i32
    %c0_i32_1 = arith.constant 0 : i32
    return %arg0, %c0_i32, %c0_i32_0 : i32, i32, i32
  }
  func.func @transform_2(%arg0: i32) -> (i32, i32, i32) {
    %c0_i32 = arith.constant 0 : i32
    %c0_i32_0 = arith.constant 0 : i32
    %c0_i32_1 = arith.constant 0 : i32
    return %arg0, %c0_i32, %c0_i32_0 : i32, i32, i32
  }
  func.func @transform_3(%arg0: i32) -> (i32, i32, i32) {
    %c0_i32 = arith.constant 0 : i32
    %c0_i32_0 = arith.constant 0 : i32
    %c0_i32_1 = arith.constant 0 : i32
    return %arg0, %c0_i32, %c0_i32_0 : i32, i32, i32
  }
  func.func @transform_4(%arg0: i32) -> (i32, i32, i32) {
    %c0_i32 = arith.constant 0 : i32
    %c0_i32_0 = arith.constant 0 : i32
    %c0_i32_1 = arith.constant 0 : i32
    return %arg0, %c0_i32, %c0_i32_0 : i32, i32, i32
  }
}

</mosaic_0001>

<llo_original>
// kernel: model_forward.3
$region0: #{model_forward.3}
  #allocation0 [shape = 'u32[]', space=smem, size = 0x4, offset = 0x4, fixed_abs, tag = 'smem constant byte address 0x4 - core index']
  #allocation1 [shape = 'u32[144,128]{1,0:T(1,128)}', space=vmem, size = 0x12000, scoped, tag = 'internal scratch']
  %s0 = inlined_call_operand.vmem [shape: bf16[1152,32], index: 0, kind: input, shape index: {}]
  %s1 = inlined_call_operand.hbm [shape: bf16[32,128], index: 1, kind: input, shape index: {}]
  %s2 = inlined_call_operand.hbm [shape: f32[1,128], index: 2, kind: input, shape index: {}]
  %s3 = inlined_call_operand.vmem [shape: f32[128,128], index: 3, kind: output, shape index: {}]
  %s4 = sld [smem:[#allocation0]]
  $region30: #{model_forward.3} parent=0
    _
  %s6 = ssub.s32 1, %s4
  %s7 = scalar_select 0, %s6, %s4
  $region1: #{model_forward.3} parent=0
    #allocation2 [shape = 'u8[8192]{0}', space=vmem, size = 0x2000, scoped, tag = 'input window, operand 1, single buffered']
    #allocation3 [shape = 's32[1]{0}', space=sflag, size = 0x4, scoped, tag = 'scoped memory for model_forward.3']
    #allocation4 [shape = 'u8[512]{0}', space=vmem, size = 0x400, scoped, tag = 'input window, operand 2, single buffered']
    #allocation5 [shape = 's32[1]{0}', space=sflag, size = 0x4, scoped, tag = 'scoped memory for model_forward.3']
    %8 = vsyncpa [#allocation3], 0
    %9 = vsyncpa [#allocation5], 0
    // Predicated region
    $region2: #{model_forward.3} parent=1 // pred_check
      _
    $region3: #{model_forward.3} parent=1 // pred_check_branch
      %11 = sbr.rel (0) target = $region5
    $region4: #{model_forward.3} parent=1 // pred_region
      _
    $region5: #{model_forward.3} parent=1 // pred_fallthru
      _
    // Predicated region
    $region6: #{model_forward.3} parent=1 // pred_check
      _
    $region7: #{model_forward.3} parent=1 // pred_check_branch
      %13 = sbr.rel (0) target = $region9
    $region8: #{model_forward.3} parent=1 // pred_region
      %s15 = ssub.s32 256, 256
      %16 = vsyncadd [#allocation3], %s15
      %s17 = sshll.u32 [#allocation2], 4
      %s18 = int_to_ptr.vmem [resolvable:$true] %s17
      %23 = dma.hbm_to_vmem [thread:$0]  %s1, 256, %s18, [#allocation3], 64, 64, 4
    $region9: #{model_forward.3} parent=1 // pred_fallthru
      _
    // Predicated region
    $region10: #{model_forward.3} parent=1 // pred_check
      _
    $region11: #{model_forward.3} parent=1 // pred_check_branch
      %25 = sbr.rel (0) target = $region13
    $region12: #{model_forward.3} parent=1 // pred_region
      %s27 = ssub.s32 16, 16
      %28 = vsyncadd [#allocation5], %s27
      %s30 = sshll.u32 [#allocation4], 4
      %s31 = int_to_ptr.vmem [resolvable:$true] %s30
      %33 = dma.hbm_to_vmem [thread:$0]  %s2, 16, %s31, [#allocation5]
    $region13: #{model_forward.3} parent=1 // pred_fallthru
      _
    // Predicated region
    $region14: #{model_forward.3} parent=1 // pred_check
      _
    $region15: #{model_forward.3} parent=1 // pred_check_branch
      %35 = sbr.rel (0) target = $region17
    $region16: #{model_forward.3} parent=1 // pred_region
      %36 = dma.done [#allocation3], 256
    $region17: #{model_forward.3} parent=1 // pred_fallthru
      _
    // Predicated region
    $region18: #{model_forward.3} parent=1 // pred_check
      _
    $region19: #{model_forward.3} parent=1 // pred_check_branch
      %38 = sbr.rel (0) target = $region21
    $region20: #{model_forward.3} parent=1 // pred_region
      %39 = dma.done [#allocation5], 16
    $region21: #{model_forward.3} parent=1 // pred_fallthru
      _
    %v41 = vld [vmem:[%s0] sm:$0xf]
    %v42 = vld [vmem:[%s0 + $0x4] sm:$0xf]
    %v43 = vld [vmem:[%s0 + $0x8] sm:$0xf]
    %v44 = vld [vmem:[%s0 + $0xc] sm:$0xf]
    %v45 = vld [vmem:[%s0 + $0x10] sm:$0xf]
    %v46 = vld [vmem:[%s0 + $0x14] sm:$0xf]
    %v47 = vld [vmem:[%s0 + $0x18] sm:$0xf]
    %v48 = vld [vmem:[%s0 + $0x1c] sm:$0xf]
    %v49 = vld [vmem:[%s0 + $0x20] sm:$0xf]
    %v50 = vld [vmem:[%s0 + $0x24] sm:$0xf]
    %v51 = vld [vmem:[%s0 + $0x28] sm:$0xf]
    %v52 = vld [vmem:[%s0 + $0x2c] sm:$0xf]
    %v53 = vld [vmem:[%s0 + $0x30] sm:$0xf]
    %v54 = vld [vmem:[%s0 + $0x34] sm:$0xf]
    %v55 = vld [vmem:[%s0 + $0x38] sm:$0xf]
    %v56 = vld [vmem:[%s0 + $0x3c] sm:$0xf]
    %v57 = vld [vmem:[%s0 + $0x40] sm:$0xf]
    %v58 = vld [vmem:[%s0 + $0x44] sm:$0xf]
    %v59 = vld [vmem:[%s0 + $0x48] sm:$0xf]
    %v60 = vld [vmem:[%s0 + $0x4c] sm:$0xf]
    %v61 = vld [vmem:[%s0 + $0x50] sm:$0xf]
    %v62 = vld [vmem:[%s0 + $0x54] sm:$0xf]
    %v63 = vld [vmem:[%s0 + $0x58] sm:$0xf]
    %v64 = vld [vmem:[%s0 + $0x5c] sm:$0xf]
    %v65 = vld [vmem:[%s0 + $0x60] sm:$0xf]
    %v66 = vld [vmem:[%s0 + $0x64] sm:$0xf]
    %v67 = vld [vmem:[%s0 + $0x68] sm:$0xf]
    %v68 = vld [vmem:[%s0 + $0x6c] sm:$0xf]
    %v69 = vld [vmem:[%s0 + $0x70] sm:$0xf]
    %v70 = vld [vmem:[%s0 + $0x74] sm:$0xf]
    %v71 = vld [vmem:[%s0 + $0x78] sm:$0xf]
    %v72 = vld [vmem:[%s0 + $0x7c] sm:$0xf]
    %v73 = vld [vmem:[%s0 + $0x80] sm:$0xf]
    %v74 = vld [vmem:[%s0 + $0x84] sm:$0xf]
    %v75 = vld [vmem:[%s0 + $0x88] sm:$0xf]
    %v76 = vld [vmem:[%s0 + $0x8c] sm:$0xf]
    %v77 = vld [vmem:[%s0 + $0x90] sm:$0xf]
    %v78 = vld [vmem:[%s0 + $0x94] sm:$0xf]
    %v79 = vld [vmem:[%s0 + $0x98] sm:$0xf]
    %v80 = vld [vmem:[%s0 + $0x9c] sm:$0xf]
    %v81 = vld [vmem:[%s0 + $0xa0] sm:$0xf]
    %v82 = vld [vmem:[%s0 + $0xa4] sm:$0xf]
    %v83 = vld [vmem:[%s0 + $0xa8] sm:$0xf]
    %v84 = vld [vmem:[%s0 + $0xac] sm:$0xf]
    %v85 = vld [vmem:[%s0 + $0xb0] sm:$0xf]
    %v86 = vld [vmem:[%s0 + $0xb4] sm:$0xf]
    %v87 = vld [vmem:[%s0 + $0xb8] sm:$0xf]
    %v88 = vld [vmem:[%s0 + $0xbc] sm:$0xf]
    %v89 = vld [vmem:[%s0 + $0xc0] sm:$0xf]
    %v90 = vld [vmem:[%s0 + $0xc4] sm:$0xf]
    %v91 = vld [vmem:[%s0 + $0xc8] sm:$0xf]
    %v92 = vld [vmem:[%s0 + $0xcc] sm:$0xf]
    %v93 = vld [vmem:[%s0 + $0xd0] sm:$0xf]
    %v94 = vld [vmem:[%s0 + $0xd4] sm:$0xf]
    %v95 = vld [vmem:[%s0 + $0xd8] sm:$0xf]
    %v96 = vld [vmem:[%s0 + $0xdc] sm:$0xf]
    %v97 = vld [vmem:[%s0 + $0xe0] sm:$0xf]
    %v98 = vld [vmem:[%s0 + $0xe4] sm:$0xf]
    %v99 = vld [vmem:[%s0 + $0xe8] sm:$0xf]
    %v100 = vld [vmem:[%s0 + $0xec] sm:$0xf]
    %v101 = vld [vmem:[%s0 + $0xf0] sm:$0xf]
    %v102 = vld [vmem:[%s0 + $0xf4] sm:$0xf]
    %v103 = vld [vmem:[%s0 + $0xf8] sm:$0xf]
    %v104 = vld [vmem:[%s0 + $0xfc] sm:$0xf]
    %v105 = vld [vmem:[%s0 + $0x100] sm:$0xf]
    %v106 = vld [vmem:[%s0 + $0x104] sm:$0xf]
    %v107 = vld [vmem:[%s0 + $0x108] sm:$0xf]
    %v108 = vld [vmem:[%s0 + $0x10c] sm:$0xf]
    %v109 = vld [vmem:[%s0 + $0x110] sm:$0xf]
    %v110 = vld [vmem:[%s0 + $0x114] sm:$0xf]
    %v111 = vld [vmem:[%s0 + $0x118] sm:$0xf]
    %v112 = vld [vmem:[%s0 + $0x11c] sm:$0xf]
    %v113 = vld [vmem:[%s0 + $0x120] sm:$0xf]
    %v114 = vld [vmem:[%s0 + $0x124] sm:$0xf]
    %v115 = vld [vmem:[%s0 + $0x128] sm:$0xf]
    %v116 = vld [vmem:[%s0 + $0x12c] sm:$0xf]
    %v117 = vld [vmem:[%s0 + $0x130] sm:$0xf]
    %v118 = vld [vmem:[%s0 + $0x134] sm:$0xf]
    %v119 = vld [vmem:[%s0 + $0x138] sm:$0xf]
    %v120 = vld [vmem:[%s0 + $0x13c] sm:$0xf]
    %v121 = vld [vmem:[%s0 + $0x140] sm:$0xf]
    %v122 = vld [vmem:[%s0 + $0x144] sm:$0xf]
    %v123 = vld [vmem:[%s0 + $0x148] sm:$0xf]
    %v124 = vld [vmem:[%s0 + $0x14c] sm:$0xf]
    %v125 = vld [vmem:[%s0 + $0x150] sm:$0xf]
    %v126 = vld [vmem:[%s0 + $0x154] sm:$0xf]
    %v127 = vld [vmem:[%s0 + $0x158] sm:$0xf]
    %v128 = vld [vmem:[%s0 + $0x15c] sm:$0xf]
    %v129 = vld [vmem:[%s0 + $0x160] sm:$0xf]
    %v130 = vld [vmem:[%s0 + $0x164] sm:$0xf]
    %v131 = vld [vmem:[%s0 + $0x168] sm:$0xf]
    %v132 = vld [vmem:[%s0 + $0x16c] sm:$0xf]
    %v133 = vld [vmem:[%s0 + $0x170] sm:$0xf]
    %v134 = vld [vmem:[%s0 + $0x174] sm:$0xf]
    %v135 = vld [vmem:[%s0 + $0x178] sm:$0xf]
    %v136 = vld [vmem:[%s0 + $0x17c] sm:$0xf]
    %v137 = vld [vmem:[%s0 + $0x180] sm:$0xf]
    %v138 = vld [vmem:[%s0 + $0x184] sm:$0xf]
    %v139 = vld [vmem:[%s0 + $0x188] sm:$0xf]
    %v140 = vld [vmem:[%s0 + $0x18c] sm:$0xf]
    %v141 = vld [vmem:[%s0 + $0x190] sm:$0xf]
    %v142 = vld [vmem:[%s0 + $0x194] sm:$0xf]
    %v143 = vld [vmem:[%s0 + $0x198] sm:$0xf]
    %v144 = vld [vmem:[%s0 + $0x19c] sm:$0xf]
    %v145 = vld [vmem:[%s0 + $0x1a0] sm:$0xf]
    %v146 = vld [vmem:[%s0 + $0x1a4] sm:$0xf]
    %v147 = vld [vmem:[%s0 + $0x1a8] sm:$0xf]
    %v148 = vld [vmem:[%s0 + $0x1ac] sm:$0xf]
    %v149 = vld [vmem:[%s0 + $0x1b0] sm:$0xf]
    %v150 = vld [vmem:[%s0 + $0x1b4] sm:$0xf]
    %v151 = vld [vmem:[%s0 + $0x1b8] sm:$0xf]
    %v152 = vld [vmem:[%s0 + $0x1bc] sm:$0xf]
    %v153 = vld [vmem:[%s0 + $0x1c0] sm:$0xf]
    %v154 = vld [vmem:[%s0 + $0x1c4] sm:$0xf]
    %v155 = vld [vmem:[%s0 + $0x1c8] sm:$0xf]
    %v156 = vld [vmem:[%s0 + $0x1cc] sm:$0xf]
    %v157 = vld [vmem:[%s0 + $0x1d0] sm:$0xf]
    %v158 = vld [vmem:[%s0 + $0x1d4] sm:$0xf]
    %v159 = vld [vmem:[%s0 + $0x1d8] sm:$0xf]
    %v160 = vld [vmem:[%s0 + $0x1dc] sm:$0xf]
    %v161 = vld [vmem:[%s0 + $0x1e0] sm:$0xf]
    %v162 = vld [vmem:[%s0 + $0x1e4] sm:$0xf]
    %v163 = vld [vmem:[%s0 + $0x1e8] sm:$0xf]
    %v164 = vld [vmem:[%s0 + $0x1ec] sm:$0xf]
    %v165 = vld [vmem:[%s0 + $0x1f0] sm:$0xf]
    %v166 = vld [vmem:[%s0 + $0x1f4] sm:$0xf]
    %v167 = vld [vmem:[%s0 + $0x1f8] sm:$0xf]
    %v168 = vld [vmem:[%s0 + $0x1fc] sm:$0xf]
    %v169 = vld [vmem:[%s0 + $0x200] sm:$0xf]
    %v170 = vld [vmem:[%s0 + $0x204] sm:$0xf]
    %v171 = vld [vmem:[%s0 + $0x208] sm:$0xf]
    %v172 = vld [vmem:[%s0 + $0x20c] sm:$0xf]
    %v173 = vld [vmem:[%s0 + $0x210] sm:$0xf]
    %v174 = vld [vmem:[%s0 + $0x214] sm:$0xf]
    %v175 = vld [vmem:[%s0 + $0x218] sm:$0xf]
    %v176 = vld [vmem:[%s0 + $0x21c] sm:$0xf]
    %v177 = vld [vmem:[%s0 + $0x220] sm:$0xf]
    %v178 = vld [vmem:[%s0 + $0x224] sm:$0xf]
    %v179 = vld [vmem:[%s0 + $0x228] sm:$0xf]
    %v180 = vld [vmem:[%s0 + $0x22c] sm:$0xf]
    %v181 = vld [vmem:[%s0 + $0x230] sm:$0xf]
    %v182 = vld [vmem:[%s0 + $0x234] sm:$0xf]
    %v183 = vld [vmem:[%s0 + $0x238] sm:$0xf]
    %v184 = vld [vmem:[%s0 + $0x23c] sm:$0xf]
    %v185 = vld [vmem:[#allocation2] sm:$0xf]
    %v186 = vld [vmem:[#allocation2 + $0x4] sm:$0xf]
    %v187 = vld [vmem:[#allocation2 + $0x8] sm:$0xf]
    %v188 = vld [vmem:[#allocation2 + $0xc] sm:$0xf]
    %v333 = vunpack.c.l.b16 %v41
    %v334 = vunpack.c.l.b16 %v42
    %v335 = vunpack.c.l.b16 %v43
    %v336 = vunpack.c.l.b16 %v44
    %v337 = vunpack.c.l.b16 %v45
    %v338 = vunpack.c.l.b16 %v46
    %v339 = vunpack.c.l.b16 %v47
    %v340 = vunpack.c.l.b16 %v48
    %v341 = vunpack.c.l.b16 %v49
    %v342 = vunpack.c.l.b16 %v50
    %v343 = vunpack.c.l.b16 %v51
    %v344 = vunpack.c.l.b16 %v52
    %v345 = vunpack.c.l.b16 %v53
    %v346 = vunpack.c.l.b16 %v54
    %v347 = vunpack.c.l.b16 %v55
    %v348 = vunpack.c.l.b16 %v56
    %v349 = vunpack.c.l.b16 %v57
    %v350 = vunpack.c.l.b16 %v58
    %v351 = vunpack.c.l.b16 %v59
    %v352 = vunpack.c.l.b16 %v60
    %v353 = vunpack.c.l.b16 %v61
    %v354 = vunpack.c.l.b16 %v62
    %v355 = vunpack.c.l.b16 %v63
    %v356 = vunpack.c.l.b16 %v64
    %v357 = vunpack.c.l.b16 %v65
    %v358 = vunpack.c.l.b16 %v66
    %v359 = vunpack.c.l.b16 %v67
    %v360 = vunpack.c.l.b16 %v68
    %v361 = vunpack.c.l.b16 %v69
    %v362 = vunpack.c.l.b16 %v70
    %v363 = vunpack.c.l.b16 %v71
    %v364 = vunpack.c.l.b16 %v72
    %v365 = vunpack.c.l.b16 %v73
    %v366 = vunpack.c.l.b16 %v74
    %v367 = vunpack.c.l.b16 %v75
    %v368 = vunpack.c.l.b16 %v76
    %v369 = vunpack.c.l.b16 %v77
    %v370 = vunpack.c.l.b16 %v78
    %v371 = vunpack.c.l.b16 %v79
    %v372 = vunpack.c.l.b16 %v80
    %v373 = vunpack.c.l.b16 %v81
    %v374 = vunpack.c.l.b16 %v82
    %v375 = vunpack.c.l.b16 %v83
    %v376 = vunpack.c.l.b16 %v84
    %v377 = vunpack.c.l.b16 %v85
    %v378 = vunpack.c.l.b16 %v86
    %v379 = vunpack.c.l.b16 %v87
    %v380 = vunpack.c.l.b16 %v88
    %v381 = vunpack.c.l.b16 %v89
    %v382 = vunpack.c.l.b16 %v90
    %v383 = vunpack.c.l.b16 %v91
    %v384 = vunpack.c.l.b16 %v92
    %v385 = vunpack.c.l.b16 %v93
    %v386 = vunpack.c.l.b16 %v94
    %v387 = vunpack.c.l.b16 %v95
    %v388 = vunpack.c.l.b16 %v96
    %v389 = vunpack.c.l.b16 %v97
    %v390 = vunpack.c.l.b16 %v98
    %v391 = vunpack.c.l.b16 %v99
    %v392 = vunpack.c.l.b16 %v100
    %v393 = vunpack.c.l.b16 %v101
    %v394 = vunpack.c.l.b16 %v102
    %v395 = vunpack.c.l.b16 %v103
    %v396 = vunpack.c.l.b16 %v104
    %v397 = vunpack.c.l.b16 %v105
    %v398 = vunpack.c.l.b16 %v106
    %v399 = vunpack.c.l.b16 %v107
    %v400 = vunpack.c.l.b16 %v108
    %v401 = vunpack.c.l.b16 %v109
    %v402 = vunpack.c.l.b16 %v110
    %v403 = vunpack.c.l.b16 %v111
    %v404 = vunpack.c.l.b16 %v112
    %v405 = vunpack.c.l.b16 %v113
    %v406 = vunpack.c.l.b16 %v114
    %v407 = vunpack.c.l.b16 %v115
    %v408 = vunpack.c.l.b16 %v116
    %v409 = vunpack.c.l.b16 %v117
    %v410 = vunpack.c.l.b16 %v118
    %v411 = vunpack.c.l.b16 %v119
    %v412 = vunpack.c.l.b16 %v120
    %v413 = vunpack.c.l.b16 %v121
    %v414 = vunpack.c.l.b16 %v122
    %v415 = vunpack.c.l.b16 %v123
    %v416 = vunpack.c.l.b16 %v124
    %v417 = vunpack.c.l.b16 %v125
    %v418 = vunpack.c.l.b16 %v126
    %v419 = vunpack.c.l.b16 %v127
    %v420 = vunpack.c.l.b16 %v128
    %v421 = vunpack.c.l.b16 %v129
    %v422 = vunpack.c.l.b16 %v130
    %v423 = vunpack.c.l.b16 %v131
    %v424 = vunpack.c.l.b16 %v132
    %v425 = vunpack.c.l.b16 %v133
    %v426 = vunpack.c.l.b16 %v134
    %v427 = vunpack.c.l.b16 %v135
    %v428 = vunpack.c.l.b16 %v136
    %v429 = vunpack.c.l.b16 %v137
    %v430 = vunpack.c.l.b16 %v138
    %v431 = vunpack.c.l.b16 %v139
    %v432 = vunpack.c.l.b16 %v140
    %v433 = vunpack.c.l.b16 %v141
    %v434 = vunpack.c.l.b16 %v142
    %v435 = vunpack.c.l.b16 %v143
    %v436 = vunpack.c.l.b16 %v144
    %v437 = vunpack.c.l.b16 %v145
    %v438 = vunpack.c.l.b16 %v146
    %v439 = vunpack.c.l.b16 %v147
    %v440 = vunpack.c.l.b16 %v148
    %v441 = vunpack.c.l.b16 %v149
    %v442 = vunpack.c.l.b16 %v150
    %v443 = vunpack.c.l.b16 %v151
    %v444 = vunpack.c.l.b16 %v152
    %v445 = vunpack.c.l.b16 %v153
    %v446 = vunpack.c.l.b16 %v154
    %v447 = vunpack.c.l.b16 %v155
    %v448 = vunpack.c.l.b16 %v156
    %v449 = vunpack.c.l.b16 %v157
    %v450 = vunpack.c.l.b16 %v158
    %v451 = vunpack.c.l.b16 %v159
    %v452 = vunpack.c.l.b16 %v160
    %v453 = vunpack.c.l.b16 %v161
    %v454 = vunpack.c.l.b16 %v162
    %v455 = vunpack.c.l.b16 %v163
    %v456 = vunpack.c.l.b16 %v164
    %v457 = vunpack.c.l.b16 %v165
    %v458 = vunpack.c.l.b16 %v166
    %v459 = vunpack.c.l.b16 %v167
    %v460 = vunpack.c.l.b16 %v168
    %v461 = vunpack.c.l.b16 %v169
    %v462 = vunpack.c.l.b16 %v170
    %v463 = vunpack.c.l.b16 %v171
    %v464 = vunpack.c.l.b16 %v172
    %v465 = vunpack.c.l.b16 %v173
    %v466 = vunpack.c.l.b16 %v174
    %v467 = vunpack.c.l.b16 %v175
    %v468 = vunpack.c.l.b16 %v176
    %v469 = vunpack.c.l.b16 %v177
    %v470 = vunpack.c.l.b16 %v178
    %v471 = vunpack.c.l.b16 %v179
    %v472 = vunpack.c.l.b16 %v180
    %v473 = vunpack.c.l.b16 %v181
    %v474 = vunpack.c.l.b16 %v182
    %v475 = vunpack.c.l.b16 %v183
    %v476 = vunpack.c.l.b16 %v184
    %v477 = vpack.c.b16 %v334, %v333
    %v478 = vpack.c.b16 %v336, %v335
    %v479 = vpack.c.b16 %v338, %v337
    %v480 = vpack.c.b16 %v340, %v339
    %v481 = vpack.c.b16 %v342, %v341
    %v482 = vpack.c.b16 %v344, %v343
    %v483 = vpack.c.b16 %v346, %v345
    %v484 = vpack.c.b16 %v348, %v347
    %v485 = vpack.c.b16 %v350, %v349
    %v486 = vpack.c.b16 %v352, %v351
    %v487 = vpack.c.b16 %v354, %v353
    %v488 = vpack.c.b16 %v356, %v355
    %v489 = vpack.c.b16 %v358, %v357
    %v490 = vpack.c.b16 %v360, %v359
    %v491 = vpack.c.b16 %v362, %v361
    %v492 = vpack.c.b16 %v364, %v363
    %v493 = vpack.c.b16 %v366, %v365
    %v494 = vpack.c.b16 %v368, %v367
    %v495 = vpack.c.b16 %v370, %v369
    %v496 = vpack.c.b16 %v372, %v371
    %v497 = vpack.c.b16 %v374, %v373
    %v498 = vpack.c.b16 %v376, %v375
    %v499 = vpack.c.b16 %v378, %v377
    %v500 = vpack.c.b16 %v380, %v379
    %v501 = vpack.c.b16 %v382, %v381
    %v502 = vpack.c.b16 %v384, %v383
    %v503 = vpack.c.b16 %v386, %v385
    %v504 = vpack.c.b16 %v388, %v387
    %v505 = vpack.c.b16 %v390, %v389
    %v506 = vpack.c.b16 %v392, %v391
    %v507 = vpack.c.b16 %v394, %v393
    %v508 = vpack.c.b16 %v396, %v395
    %v509 = vpack.c.b16 %v398, %v397
    %v510 = vpack.c.b16 %v400, %v399
    %v511 = vpack.c.b16 %v402, %v401
    %v512 = vpack.c.b16 %v404, %v403
    %v513 = vpack.c.b16 %v406, %v405
    %v514 = vpack.c.b16 %v408, %v407
    %v515 = vpack.c.b16 %v410, %v409
    %v516 = vpack.c.b16 %v412, %v411
    %v517 = vpack.c.b16 %v414, %v413
    %v518 = vpack.c.b16 %v416, %v415
    %v519 = vpack.c.b16 %v418, %v417
    %v520 = vpack.c.b16 %v420, %v419
    %v521 = vpack.c.b16 %v422, %v421
    %v522 = vpack.c.b16 %v424, %v423
    %v523 = vpack.c.b16 %v426, %v425
    %v524 = vpack.c.b16 %v428, %v427
    %v525 = vpack.c.b16 %v430, %v429
    %v526 = vpack.c.b16 %v432, %v431
    %v527 = vpack.c.b16 %v434, %v433
    %v528 = vpack.c.b16 %v436, %v435
    %v529 = vpack.c.b16 %v438, %v437
    %v530 = vpack.c.b16 %v440, %v439
    %v531 = vpack.c.b16 %v442, %v441
    %v532 = vpack.c.b16 %v444, %v443
    %v533 = vpack.c.b16 %v446, %v445
    %v534 = vpack.c.b16 %v448, %v447
    %v535 = vpack.c.b16 %v450, %v449
    %v536 = vpack.c.b16 %v452, %v451
    %v537 = vpack.c.b16 %v454, %v453
    %v538 = vpack.c.b16 %v456, %v455
    %v539 = vpack.c.b16 %v458, %v457
    %v540 = vpack.c.b16 %v460, %v459
    %v541 = vpack.c.b16 %v462, %v461
    %v542 = vpack.c.b16 %v464, %v463
    %v543 = vpack.c.b16 %v466, %v465
    %v544 = vpack.c.b16 %v468, %v467
    %v545 = vpack.c.b16 %v470, %v469
    %v546 = vpack.c.b16 %v472, %v471
    %v547 = vpack.c.b16 %v474, %v473
    %v548 = vpack.c.b16 %v476, %v475
    %v553 = vunpack.c.l.b16 %v185
    %v554 = vunpack.c.l.b16 %v186
    %v555 = vunpack.c.l.b16 %v187
    %v556 = vunpack.c.l.b16 %v188
    %v557 = vpack.c.b16 %v554, %v553
    %v558 = vpack.c.b16 %v556, %v555
    %vm561 = vcmask 261120
    %v563 = vsel %vm561, %v477, 0
    %v566 = vsel %vm561, %v478, 0
    %v569 = vsel %vm561, %v479, 0
    %v572 = vsel %vm561, %v480, 0
    %v575 = vsel %vm561, %v481, 0
    %v578 = vsel %vm561, %v482, 0
    %v581 = vsel %vm561, %v483, 0
    %v584 = vsel %vm561, %v484, 0
    %v587 = vsel %vm561, %v485, 0
    %v590 = vsel %vm561, %v486, 0
    %v593 = vsel %vm561, %v487, 0
    %v596 = vsel %vm561, %v488, 0
    %v599 = vsel %vm561, %v489, 0
    %v602 = vsel %vm561, %v490, 0
    %v605 = vsel %vm561, %v491, 0
    %v608 = vsel %vm561, %v492, 0
    %v611 = vsel %vm561, %v493, 0
    %v614 = vsel %vm561, %v494, 0
    %v617 = vsel %vm561, %v495, 0
    %v620 = vsel %vm561, %v496, 0
    %v623 = vsel %vm561, %v497, 0
    %v626 = vsel %vm561, %v498, 0
    %v629 = vsel %vm561, %v499, 0
    %v632 = vsel %vm561, %v500, 0
    %v635 = vsel %vm561, %v501, 0
    %v638 = vsel %vm561, %v502, 0
    %v641 = vsel %vm561, %v503, 0
    %v644 = vsel %vm561, %v504, 0
    %v647 = vsel %vm561, %v505, 0
    %v650 = vsel %vm561, %v506, 0
    %v653 = vsel %vm561, %v507, 0
    %v656 = vsel %vm561, %v508, 0
    %v659 = vsel %vm561, %v509, 0
    %v662 = vsel %vm561, %v510, 0
    %v665 = vsel %vm561, %v511, 0
    %v668 = vsel %vm561, %v512, 0
    %v671 = vsel %vm561, %v513, 0
    %v674 = vsel %vm561, %v514, 0
    %v677 = vsel %vm561, %v515, 0
    %v680 = vsel %vm561, %v516, 0
    %v683 = vsel %vm561, %v517, 0
    %v686 = vsel %vm561, %v518, 0
    %v689 = vsel %vm561, %v519, 0
    %v692 = vsel %vm561, %v520, 0
    %v695 = vsel %vm561, %v521, 0
    %v698 = vsel %vm561, %v522, 0
    %v701 = vsel %vm561, %v523, 0
    %v704 = vsel %vm561, %v524, 0
    %v707 = vsel %vm561, %v525, 0
    %v710 = vsel %vm561, %v526, 0
    %v713 = vsel %vm561, %v527, 0
    %v716 = vsel %vm561, %v528, 0
    %v719 = vsel %vm561, %v529, 0
    %v722 = vsel %vm561, %v530, 0
    %v725 = vsel %vm561, %v531, 0
    %v728 = vsel %vm561, %v532, 0
    %v731 = vsel %vm561, %v533, 0
    %v734 = vsel %vm561, %v534, 0
    %v737 = vsel %vm561, %v535, 0
    %v740 = vsel %vm561, %v536, 0
    %v743 = vsel %vm561, %v537, 0
    %v746 = vsel %vm561, %v538, 0
    %v749 = vsel %vm561, %v539, 0
    %v752 = vsel %vm561, %v540, 0
    %v755 = vsel %vm561, %v541, 0
    %v758 = vsel %vm561, %v542, 0
    %v761 = vsel %vm561, %v543, 0
    %v764 = vsel %vm561, %v544, 0
    %v767 = vsel %vm561, %v545, 0
    %v770 = vsel %vm561, %v546, 0
    %v773 = vsel %vm561, %v547, 0
    %v776 = vsel %vm561, %v548, 0
    %778 = vmatprep.subr.bf16.mxu0 0
    %779 = vmatpush1.bf16.msra.mxu0 %v557
    %780 = vmatprep.subr.bf16.mxu0 0
    %781 = vmatpush1.bf16.msra.mxu0 %v558
    %782 = vmatprep.subr.bf16.mxu0 0
    %783 = vmatpush1.bf16.msra.mxu0 0
    %784 = vmatprep.subr.bf16.mxu0 0
    %785 = vmatpush1.bf16.msra.mxu0 0
    %786 = vmatprep.subr.bf16.mxu0 0
    %787 = vmatpush1.bf16.msra.mxu0 0
    %788 = vmatprep.subr.bf16.mxu0 0
    %789 = vmatpush1.bf16.msra.mxu0 0
    %790 = vmatprep.subr.bf16.mxu0 0
    %791 = vmatpush1.bf16.msra.mxu0 0
    %792 = vmatprep.subr.bf16.mxu0 0
    %793 = vmatpush1.bf16.msra.mxu0 0
    %794 = vmatprep.subr.bf16.mxu0 0
    %795 = vmatpush1.bf16.msra.mxu0 0
    %796 = vmatprep.subr.bf16.mxu0 0
    %797 = vmatpush1.bf16.msra.mxu0 0
    %798 = vmatprep.subr.bf16.mxu0 0
    %799 = vmatpush1.bf16.msra.mxu0 0
    %800 = vmatprep.subr.bf16.mxu0 0
    %801 = vmatpush1.bf16.msra.mxu0 0
    %802 = vmatprep.subr.bf16.mxu0 0
    %803 = vmatpush1.bf16.msra.mxu0 0
    %804 = vmatprep.subr.bf16.mxu0 0
    %805 = vmatpush1.bf16.msra.mxu0 0
    %806 = vmatprep.subr.bf16.mxu0 0
    %807 = vmatpush1.bf16.msra.mxu0 0
    %808 = vmatprep.subr.bf16.mxu0 0
    %809 = vmatpush1.bf16.msra.mxu0 0
    %810 = vmatprep.mubr.bf16.mxu0 0
    %811 = vmatmul.mubr.bf16.gmra.mrb[0].mxu0 %v563
    %v812 = vpop.f32.mrb[0].mxu0
    %v813 = vadd.f32 0.0, %v812
    %v814 = vpop.f32.mrb[0].mxu0
    %v815 = vpop.f32.mrb[0].mxu0
    %v816 = vadd.f32 0.0, %v815
    %v817 = vpop.f32.mrb[0].mxu0
    %818 = vmatprep.mubr.bf16.mxu0 0
    %819 = vmatmul.mubr.bf16.gmra.mrb[0].mxu0 %v566
    %v820 = vpop.f32.mrb[0].mxu0
    %v821 = vadd.f32 0.0, %v820
    %v822 = vpop.f32.mrb[0].mxu0
    %v823 = vpop.f32.mrb[0].mxu0
    %v824 = vadd.f32 0.0, %v823
    %v825 = vpop.f32.mrb[0].mxu0
    %826 = vmatprep.mubr.bf16.mxu0 0
    %827 = vmatmul.mubr.bf16.gmra.mrb[0].mxu0 %v569
    %v828 = vpop.f32.mrb[0].mxu0
    %v829 = vadd.f32 0.0, %v828
    %v830 = vpop.f32.mrb[0].mxu0
    %v831 = vpop.f32.mrb[0].mxu0
    %v832 = vadd.f32 0.0, %v831
    %v833 = vpop.f32.mrb[0].mxu0
    %834 = vmatprep.mubr.bf16.mxu0 0
    %835 = vmatmul.mubr.bf16.gmra.mrb[0].mxu0 %v572
    %v836 = vpop.f32.mrb[0].mxu0
    %v837 = vadd.f32 0.0, %v836
    %v838 = vpop.f32.mrb[0].mxu0
    %v839 = vpop.f32.mrb[0].mxu0
    %v840 = vadd.f32 0.0, %v839
    %v841 = vpop.f32.mrb[0].mxu0
    %842 = vmatprep.mubr.bf16.mxu0 0
    %843 = vmatmul.mubr.bf16.gmra.mrb[0].mxu0 %v575
    %v844 = vpop.f32.mrb[0].mxu0
    %v845 = vadd.f32 0.0, %v844
    %v846 = vpop.f32.mrb[0].mxu0
    %v847 = vpop.f32.mrb[0].mxu0
    %v848 = vadd.f32 0.0, %v847
    %v849 = vpop.f32.mrb[0].mxu0
    %850 = vmatprep.mubr.bf16.mxu0 0
    %851 = vmatmul.mubr.bf16.gmra.mrb[0].mxu0 %v578
    %v852 = vpop.f32.mrb[0].mxu0
    %v853 = vadd.f32 0.0, %v852
    %v854 = vpop.f32.mrb[0].mxu0
    %v855 = vpop.f32.mrb[0].mxu0
    %v856 = vadd.f32 0.0, %v855
    %v857 = vpop.f32.mrb[0].mxu0
    %858 = vmatprep.mubr.bf16.mxu0 0
    %859 = vmatmul.mubr.bf16.gmra.mrb[0].mxu0 %v581
    %v860 = vpop.f32.mrb[0].mxu0
    %v861 = vadd.f32 0.0, %v860
    %v862 = vpop.f32.mrb[0].mxu0
    %v863 = vpop.f32.mrb[0].mxu0
    %v864 = vadd.f32 0.0, %v863
    %v865 = vpop.f32.mrb[0].mxu0
    %866 = vmatprep.mubr.bf16.mxu0 0
    %867 = vmatmul.mubr.bf16.gmra.mrb[0].mxu0 %v584
    %v868 = vpop.f32.mrb[0].mxu0
    %v869 = vadd.f32 0.0, %v868
    %v870 = vpop.f32.mrb[0].mxu0
    %v871 = vpop.f32.mrb[0].mxu0
    %v872 = vadd.f32 0.0, %v871
    %v873 = vpop.f32.mrb[0].mxu0
    %874 = vmatprep.mubr.bf16.mxu0 0
    %875 = vmatmul.mubr.bf16.gmra.mrb[0].mxu0 %v587
    %v876 = vpop.f32.mrb[0].mxu0
    %v877 = vadd.f32 0.0, %v876
    %v878 = vpop.f32.mrb[0].mxu0
    %v879 = vpop.f32.mrb[0].mxu0
    %v880 = vadd.f32 0.0, %v879
    %v881 = vpop.f32.mrb[0].mxu0
    %882 = vmatprep.mubr.bf16.mxu0 0
    %883 = vmatmul.mubr.bf16.gmra.mrb[0].mxu0 %v590
    %v884 = vpop.f32.mrb[0].mxu0
    %v885 = vadd.f32 0.0, %v884
    %v886 = vpop.f32.mrb[0].mxu0
    %v887 = vpop.f32.mrb[0].mxu0
    %v888 = vadd.f32 0.0, %v887
    %v889 = vpop.f32.mrb[0].mxu0
    %890 = vmatprep.mubr.bf16.mxu0 0
    %891 = vmatmul.mubr.bf16.gmra.mrb[0].mxu0 %v593
    %v892 = vpop.f32.mrb[0].mxu0
    %v893 = vadd.f32 0.0, %v892
    %v894 = vpop.f32.mrb[0].mxu0
    %v895 = vpop.f32.mrb[0].mxu0
    %v896 = vadd.f32 0.0, %v895
    %v897 = vpop.f32.mrb[0].mxu0
    %898 = vmatprep.mubr.bf16.mxu0 0
    %899 = vmatmul.mubr.bf16.gmra.mrb[0].mxu0 %v596
    %v900 = vpop.f32.mrb[0].mxu0
    %v901 = vadd.f32 0.0, %v900
    %v902 = vpop.f32.mrb[0].mxu0
    %v903 = vpop.f32.mrb[0].mxu0
    %v904 = vadd.f32 0.0, %v903
    %v905 = vpop.f32.mrb[0].mxu0
    %906 = vmatprep.mubr.bf16.mxu0 0
    %907 = vmatmul.mubr.bf16.gmra.mrb[0].mxu0 %v599
    %v908 = vpop.f32.mrb[0].mxu0
    %v909 = vadd.f32 0.0, %v908
    %v910 = vpop.f32.mrb[0].mxu0
    %v911 = vpop.f32.mrb[0].mxu0
    %v912 = vadd.f32 0.0, %v911
    %v913 = vpop.f32.mrb[0].mxu0
    %914 = vmatprep.mubr.bf16.mxu0 0
    %915 = vmatmul.mubr.bf16.gmra.mrb[0].mxu0 %v602
    %v916 = vpop.f32.mrb[0].mxu0
    %v917 = vadd.f32 0.0, %v916
    %v918 = vpop.f32.mrb[0].mxu0
    %v919 = vpop.f32.mrb[0].mxu0
    %v920 = vadd.f32 0.0, %v919
    %v921 = vpop.f32.mrb[0].mxu0
    %922 = vmatprep.mubr.bf16.mxu0 0
    %923 = vmatmul.mubr.bf16.gmra.mrb[0].mxu0 %v605
    %v924 = vpop.f32.mrb[0].mxu0
    %v925 = vadd.f32 0.0, %v924
    %v926 = vpop.f32.mrb[0].mxu0
    %v927 = vpop.f32.mrb[0].mxu0
    %v928 = vadd.f32 0.0, %v927
    %v929 = vpop.f32.mrb[0].mxu0
    %930 = vmatprep.mubr.bf16.mxu0 0
    %931 = vmatmul.mubr.bf16.gmra.mrb[0].mxu0 %v608
    %v932 = vpop.f32.mrb[0].mxu0
    %v933 = vadd.f32 0.0, %v932
    %v934 = vpop.f32.mrb[0].mxu0
    %v935 = vpop.f32.mrb[0].mxu0
    %v936 = vadd.f32 0.0, %v935
    %v937 = vpop.f32.mrb[0].mxu0
    %938 = vmatprep.mubr.bf16.mxu0 0
    %939 = vmatmul.mubr.bf16.gmra.mrb[0].mxu0 %v611
    %v940 = vpop.f32.mrb[0].mxu0
    %v941 = vadd.f32 0.0, %v940
    %v942 = vpop.f32.mrb[0].mxu0
    %v943 = vpop.f32.mrb[0].mxu0
    %v944 = vadd.f32 0.0, %v943
    %v945 = vpop.f32.mrb[0].mxu0
    %946 = vmatprep.mubr.bf16.mxu0 0
    %947 = vmatmul.mubr.bf16.gmra.mrb[0].mxu0 %v614
    %v948 = vpop.f32.mrb[0].mxu0
    %v949 = vadd.f32 0.0, %v948
    %v950 = vpop.f32.mrb[0].mxu0
    %v951 = vpop.f32.mrb[0].mxu0
    %v952 = vadd.f32 0.0, %v951
    %v953 = vpop.f32.mrb[0].mxu0
    %954 = vmatprep.mubr.bf16.mxu0 0
    %955 = vmatmul.mubr.bf16.gmra.mrb[0].mxu0 %v617
    %v956 = vpop.f32.mrb[0].mxu0
    %v957 = vadd.f32 0.0, %v956
    %v958 = vpop.f32.mrb[0].mxu0
    %v959 = vpop.f32.mrb[0].mxu0
    %v960 = vadd.f32 0.0, %v959
    %v961 = vpop.f32.mrb[0].mxu0
    %962 = vmatprep.mubr.bf16.mxu0 0
    %963 = vmatmul.mubr.bf16.gmra.mrb[0].mxu0 %v620
    %v964 = vpop.f32.mrb[0].mxu0
    %v965 = vadd.f32 0.0, %v964
    %v966 = vpop.f32.mrb[0].mxu0
    %v967 = vpop.f32.mrb[0].mxu0
    %v968 = vadd.f32 0.0, %v967
    %v969 = vpop.f32.mrb[0].mxu0
    %970 = vmatprep.mubr.bf16.mxu0 0
    %971 = vmatmul.mubr.bf16.gmra.mrb[0].mxu0 %v623
    %v972 = vpop.f32.mrb[0].mxu0
    %v973 = vadd.f32 0.0, %v972
    %v974 = vpop.f32.mrb[0].mxu0
    %v975 = vpop.f32.mrb[0].mxu0
    %v976 = vadd.f32 0.0, %v975
    %v977 = vpop.f32.mrb[0].mxu0
    %978 = vmatprep.mubr.bf16.mxu0 0
    %979 = vmatmul.mubr.bf16.gmra.mrb[0].mxu0 %v626
    %v980 = vpop.f32.mrb[0].mxu0
    %v981 = vadd.f32 0.0, %v980
    %v982 = vpop.f32.mrb[0].mxu0
    %v983 = vpop.f32.mrb[0].mxu0
    %v984 = vadd.f32 0.0, %v983
    %v985 = vpop.f32.mrb[0].mxu0
    %986 = vmatprep.mubr.bf16.mxu0 0
    %987 = vmatmul.mubr.bf16.gmra.mrb[0].mxu0 %v629
    %v988 = vpop.f32.mrb[0].mxu0
    %v989 = vadd.f32 0.0, %v988
    %v990 = vpop.f32.mrb[0].mxu0
    %v991 = vpop.f32.mrb[0].mxu0
    %v992 = vadd.f32 0.0, %v991
    %v993 = vpop.f32.mrb[0].mxu0
    %994 = vmatprep.mubr.bf16.mxu0 0
    %995 = vmatmul.mubr.bf16.gmra.mrb[0].mxu0 %v632
    %v996 = vpop.f32.mrb[0].mxu0
    %v997 = vadd.f32 0.0, %v996
    %v998 = vpop.f32.mrb[0].mxu0
    %v999 = vpop.f32.mrb[0].mxu0
    %v1000 = vadd.f32 0.0, %v999
    %v1001 = vpop.f32.mrb[0].mxu0
    %1002 = vmatprep.mubr.bf16.mxu0 0
    %1003 = vmatmul.mubr.bf16.gmra.mrb[0].mxu0 %v635
    %v1004 = vpop.f32.mrb[0].mxu0
    %v1005 = vadd.f32 0.0, %v1004
    %v1006 = vpop.f32.mrb[0].mxu0
    %v1007 = vpop.f32.mrb[0].mxu0
    %v1008 = vadd.f32 0.0, %v1007
    %v1009 = vpop.f32.mrb[0].mxu0
    %1010 = vmatprep.mubr.bf16.mxu0 0
    %1011 = vmatmul.mubr.bf16.gmra.mrb[0].mxu0 %v638
    %v1012 = vpop.f32.mrb[0].mxu0
    %v1013 = vadd.f32 0.0, %v1012
    %v1014 = vpop.f32.mrb[0].mxu0
    %v1015 = vpop.f32.mrb[0].mxu0
    %v1016 = vadd.f32 0.0, %v1015
    %v1017 = vpop.f32.mrb[0].mxu0
    %1018 = vmatprep.mubr.bf16.mxu0 0
    %1019 = vmatmul.mubr.bf16.gmra.mrb[0].mxu0 %v641
    %v1020 = vpop.f32.mrb[0].mxu0
    %v1021 = vadd.f32 0.0, %v1020
    %v1022 = vpop.f32.mrb[0].mxu0
    %v1023 = vpop.f32.mrb[0].mxu0
    %v1024 = vadd.f32 0.0, %v1023
    %v1025 = vpop.f32.mrb[0].mxu0
    %1026 = vmatprep.mubr.bf16.mxu0 0
    %1027 = vmatmul.mubr.bf16.gmra.mrb[0].mxu0 %v644
    %v1028 = vpop.f32.mrb[0].mxu0
    %v1029 = vadd.f32 0.0, %v1028
    %v1030 = vpop.f32.mrb[0].mxu0
    %v1031 = vpop.f32.mrb[0].mxu0
    %v1032 = vadd.f32 0.0, %v1031
    %v1033 = vpop.f32.mrb[0].mxu0
    %1034 = vmatprep.mubr.bf16.mxu0 0
    %1035 = vmatmul.mubr.bf16.gmra.mrb[0].mxu0 %v647
    %v1036 = vpop.f32.mrb[0].mxu0
    %v1037 = vadd.f32 0.0, %v1036
    %v1038 = vpop.f32.mrb[0].mxu0
    %v1039 = vpop.f32.mrb[0].mxu0
    %v1040 = vadd.f32 0.0, %v1039
    %v1041 = vpop.f32.mrb[0].mxu0
    %1042 = vmatprep.mubr.bf16.mxu0 0
    %1043 = vmatmul.mubr.bf16.gmra.mrb[0].mxu0 %v650
    %v1044 = vpop.f32.mrb[0].mxu0
    %v1045 = vadd.f32 0.0, %v1044
    %v1046 = vpop.f32.mrb[0].mxu0
    %v1047 = vpop.f32.mrb[0].mxu0
    %v1048 = vadd.f32 0.0, %v1047
    %v1049 = vpop.f32.mrb[0].mxu0
    %1050 = vmatprep.mubr.bf16.mxu0 0
    %1051 = vmatmul.mubr.bf16.gmra.mrb[0].mxu0 %v653
    %v1052 = vpop.f32.mrb[0].mxu0
    %v1053 = vadd.f32 0.0, %v1052
    %v1054 = vpop.f32.mrb[0].mxu0
    %v1055 = vpop.f32.mrb[0].mxu0
    %v1056 = vadd.f32 0.0, %v1055
    %v1057 = vpop.f32.mrb[0].mxu0
    %1058 = vmatprep.mubr.bf16.mxu0 0
    %1059 = vmatmul.mubr.bf16.gmra.mrb[0].mxu0 %v656
    %v1060 = vpop.f32.mrb[0].mxu0
    %v1061 = vadd.f32 0.0, %v1060
    %v1062 = vpop.f32.mrb[0].mxu0
    %v1063 = vpop.f32.mrb[0].mxu0
    %v1064 = vadd.f32 0.0, %v1063
    %v1065 = vpop.f32.mrb[0].mxu0
    %1066 = vmatprep.mubr.bf16.mxu0 0
    %1067 = vmatmul.mubr.bf16.gmra.mrb[0].mxu0 %v659
    %v1068 = vpop.f32.mrb[0].mxu0
    %v1069 = vadd.f32 0.0, %v1068
    %v1070 = vpop.f32.mrb[0].mxu0
    %v1071 = vpop.f32.mrb[0].mxu0
    %v1072 = vadd.f32 0.0, %v1071
    %v1073 = vpop.f32.mrb[0].mxu0
    %1074 = vmatprep.mubr.bf16.mxu0 0
    %1075 = vmatmul.mubr.bf16.gmra.mrb[0].mxu0 %v662
    %v1076 = vpop.f32.mrb[0].mxu0
    %v1077 = vadd.f32 0.0, %v1076
    %v1078 = vpop.f32.mrb[0].mxu0
    %v1079 = vpop.f32.mrb[0].mxu0
    %v1080 = vadd.f32 0.0, %v1079
    %v1081 = vpop.f32.mrb[0].mxu0
    %1082 = vmatprep.mubr.bf16.mxu0 0
    %1083 = vmatmul.mubr.bf16.gmra.mrb[0].mxu0 %v665
    %v1084 = vpop.f32.mrb[0].mxu0
    %v1085 = vadd.f32 0.0, %v1084
    %v1086 = vpop.f32.mrb[0].mxu0
    %v1087 = vpop.f32.mrb[0].mxu0
    %v1088 = vadd.f32 0.0, %v1087
    %v1089 = vpop.f32.mrb[0].mxu0
    %1090 = vmatprep.mubr.bf16.mxu0 0
    %1091 = vmatmul.mubr.bf16.gmra.mrb[0].mxu0 %v668
    %v1092 = vpop.f32.mrb[0].mxu0
    %v1093 = vadd.f32 0.0, %v1092
    %v1094 = vpop.f32.mrb[0].mxu0
    %v1095 = vpop.f32.mrb[0].mxu0
    %v1096 = vadd.f32 0.0, %v1095
    %v1097 = vpop.f32.mrb[0].mxu0
    %1098 = vmatprep.mubr.bf16.mxu0 0
    %1099 = vmatmul.mubr.bf16.gmra.mrb[0].mxu0 %v671
    %v1100 = vpop.f32.mrb[0].mxu0
    %v1101 = vadd.f32 0.0, %v1100
    %v1102 = vpop.f32.mrb[0].mxu0
    %v1103 = vpop.f32.mrb[0].mxu0
    %v1104 = vadd.f32 0.0, %v1103
    %v1105 = vpop.f32.mrb[0].mxu0
    %1106 = vmatprep.mubr.bf16.mxu0 0
    %1107 = vmatmul.mubr.bf16.gmra.mrb[0].mxu0 %v674
    %v1108 = vpop.f32.mrb[0].mxu0
    %v1109 = vadd.f32 0.0, %v1108
    %v1110 = vpop.f32.mrb[0].mxu0
    %v1111 = vpop.f32.mrb[0].mxu0
    %v1112 = vadd.f32 0.0, %v1111
    %v1113 = vpop.f32.mrb[0].mxu0
    %1114 = vmatprep.mubr.bf16.mxu0 0
    %1115 = vmatmul.mubr.bf16.gmra.mrb[0].mxu0 %v677
    %v1116 = vpop.f32.mrb[0].mxu0
    %v1117 = vadd.f32 0.0, %v1116
    %v1118 = vpop.f32.mrb[0].mxu0
    %v1119 = vpop.f32.mrb[0].mxu0
    %v1120 = vadd.f32 0.0, %v1119
    %v1121 = vpop.f32.mrb[0].mxu0
    %1122 = vmatprep.mubr.bf16.mxu0 0
    %1123 = vmatmul.mubr.bf16.gmra.mrb[0].mxu0 %v680
    %v1124 = vpop.f32.mrb[0].mxu0
    %v1125 = vadd.f32 0.0, %v1124
    %v1126 = vpop.f32.mrb[0].mxu0
    %v1127 = vpop.f32.mrb[0].mxu0
    %v1128 = vadd.f32 0.0, %v1127
    %v1129 = vpop.f32.mrb[0].mxu0
    %1130 = vmatprep.mubr.bf16.mxu0 0
    %1131 = vmatmul.mubr.bf16.gmra.mrb[0].mxu0 %v683
    %v1132 = vpop.f32.mrb[0].mxu0
    %v1133 = vadd.f32 0.0, %v1132
    %v1134 = vpop.f32.mrb[0].mxu0
    %v1135 = vpop.f32.mrb[0].mxu0
    %v1136 = vadd.f32 0.0, %v1135
    %v1137 = vpop.f32.mrb[0].mxu0
    %1138 = vmatprep.mubr.bf16.mxu0 0
    %1139 = vmatmul.mubr.bf16.gmra.mrb[0].mxu0 %v686
    %v1140 = vpop.f32.mrb[0].mxu0
    %v1141 = vadd.f32 0.0, %v1140
    %v1142 = vpop.f32.mrb[0].mxu0
    %v1143 = vpop.f32.mrb[0].mxu0
    %v1144 = vadd.f32 0.0, %v1143
    %v1145 = vpop.f32.mrb[0].mxu0
    %1146 = vmatprep.mubr.bf16.mxu0 0
    %1147 = vmatmul.mubr.bf16.gmra.mrb[0].mxu0 %v689
    %v1148 = vpop.f32.mrb[0].mxu0
    %v1149 = vadd.f32 0.0, %v1148
    %v1150 = vpop.f32.mrb[0].mxu0
    %v1151 = vpop.f32.mrb[0].mxu0
    %v1152 = vadd.f32 0.0, %v1151
    %v1153 = vpop.f32.mrb[0].mxu0
    %1154 = vmatprep.mubr.bf16.mxu0 0
    %1155 = vmatmul.mubr.bf16.gmra.mrb[0].mxu0 %v692
    %v1156 = vpop.f32.mrb[0].mxu0
    %v1157 = vadd.f32 0.0, %v1156
    %v1158 = vpop.f32.mrb[0].mxu0
    %v1159 = vpop.f32.mrb[0].mxu0
    %v1160 = vadd.f32 0.0, %v1159
    %v1161 = vpop.f32.mrb[0].mxu0
    %1162 = vmatprep.mubr.bf16.mxu0 0
    %1163 = vmatmul.mubr.bf16.gmra.mrb[0].mxu0 %v695
    %v1164 = vpop.f32.mrb[0].mxu0
    %v1165 = vadd.f32 0.0, %v1164
    %v1166 = vpop.f32.mrb[0].mxu0
    %v1167 = vpop.f32.mrb[0].mxu0
    %v1168 = vadd.f32 0.0, %v1167
    %v1169 = vpop.f32.mrb[0].mxu0
    %1170 = vmatprep.mubr.bf16.mxu0 0
    %1171 = vmatmul.mubr.bf16.gmra.mrb[0].mxu0 %v698
    %v1172 = vpop.f32.mrb[0].mxu0
    %v1173 = vadd.f32 0.0, %v1172
    %v1174 = vpop.f32.mrb[0].mxu0
    %v1175 = vpop.f32.mrb[0].mxu0
    %v1176 = vadd.f32 0.0, %v1175
    %v1177 = vpop.f32.mrb[0].mxu0
    %1178 = vmatprep.mubr.bf16.mxu0 0
    %1179 = vmatmul.mubr.bf16.gmra.mrb[0].mxu0 %v701
    %v1180 = vpop.f32.mrb[0].mxu0
    %v1181 = vadd.f32 0.0, %v1180
    %v1182 = vpop.f32.mrb[0].mxu0
    %v1183 = vpop.f32.mrb[0].mxu0
    %v1184 = vadd.f32 0.0, %v1183
    %v1185 = vpop.f32.mrb[0].mxu0
    %1186 = vmatprep.mubr.bf16.mxu0 0
    %1187 = vmatmul.mubr.bf16.gmra.mrb[0].mxu0 %v704
    %v1188 = vpop.f32.mrb[0].mxu0
    %v1189 = vadd.f32 0.0, %v1188
    %v1190 = vpop.f32.mrb[0].mxu0
    %v1191 = vpop.f32.mrb[0].mxu0
    %v1192 = vadd.f32 0.0, %v1191
    %v1193 = vpop.f32.mrb[0].mxu0
    %1194 = vmatprep.mubr.bf16.mxu0 0
    %1195 = vmatmul.mubr.bf16.gmra.mrb[0].mxu0 %v707
    %v1196 = vpop.f32.mrb[0].mxu0
    %v1197 = vadd.f32 0.0, %v1196
    %v1198 = vpop.f32.mrb[0].mxu0
    %v1199 = vpop.f32.mrb[0].mxu0
    %v1200 = vadd.f32 0.0, %v1199
    %v1201 = vpop.f32.mrb[0].mxu0
    %1202 = vmatprep.mubr.bf16.mxu0 0
    %1203 = vmatmul.mubr.bf16.gmra.mrb[0].mxu0 %v710
    %v1204 = vpop.f32.mrb[0].mxu0
    %v1205 = vadd.f32 0.0, %v1204
    %v1206 = vpop.f32.mrb[0].mxu0
    %v1207 = vpop.f32.mrb[0].mxu0
    %v1208 = vadd.f32 0.0, %v1207
    %v1209 = vpop.f32.mrb[0].mxu0
    %1210 = vmatprep.mubr.bf16.mxu0 0
    %1211 = vmatmul.mubr.bf16.gmra.mrb[0].mxu0 %v713
    %v1212 = vpop.f32.mrb[0].mxu0
    %v1213 = vadd.f32 0.0, %v1212
    %v1214 = vpop.f32.mrb[0].mxu0
    %v1215 = vpop.f32.mrb[0].mxu0
    %v1216 = vadd.f32 0.0, %v1215
    %v1217 = vpop.f32.mrb[0].mxu0
    %1218 = vmatprep.mubr.bf16.mxu0 0
    %1219 = vmatmul.mubr.bf16.gmra.mrb[0].mxu0 %v716
    %v1220 = vpop.f32.mrb[0].mxu0
    %v1221 = vadd.f32 0.0, %v1220
    %v1222 = vpop.f32.mrb[0].mxu0
    %v1223 = vpop.f32.mrb[0].mxu0
    %v1224 = vadd.f32 0.0, %v1223
    %v1225 = vpop.f32.mrb[0].mxu0
    %1226 = vmatprep.mubr.bf16.mxu0 0
    %1227 = vmatmul.mubr.bf16.gmra.mrb[0].mxu0 %v719
    %v1228 = vpop.f32.mrb[0].mxu0
    %v1229 = vadd.f32 0.0, %v1228
    %v1230 = vpop.f32.mrb[0].mxu0
    %v1231 = vpop.f32.mrb[0].mxu0
    %v1232 = vadd.f32 0.0, %v1231
    %v1233 = vpop.f32.mrb[0].mxu0
    %1234 = vmatprep.mubr.bf16.mxu0 0
    %1235 = vmatmul.mubr.bf16.gmra.mrb[0].mxu0 %v722
    %v1236 = vpop.f32.mrb[0].mxu0
    %v1237 = vadd.f32 0.0, %v1236
    %v1238 = vpop.f32.mrb[0].mxu0
    %v1239 = vpop.f32.mrb[0].mxu0
    %v1240 = vadd.f32 0.0, %v1239
    %v1241 = vpop.f32.mrb[0].mxu0
    %1242 = vmatprep.mubr.bf16.mxu0 0
    %1243 = vmatmul.mubr.bf16.gmra.mrb[0].mxu0 %v725
    %v1244 = vpop.f32.mrb[0].mxu0
    %v1245 = vadd.f32 0.0, %v1244
    %v1246 = vpop.f32.mrb[0].mxu0
    %v1247 = vpop.f32.mrb[0].mxu0
    %v1248 = vadd.f32 0.0, %v1247
    %v1249 = vpop.f32.mrb[0].mxu0
    %1250 = vmatprep.mubr.bf16.mxu0 0
    %1251 = vmatmul.mubr.bf16.gmra.mrb[0].mxu0 %v728
    %v1252 = vpop.f32.mrb[0].mxu0
    %v1253 = vadd.f32 0.0, %v1252
    %v1254 = vpop.f32.mrb[0].mxu0
    %v1255 = vpop.f32.mrb[0].mxu0
    %v1256 = vadd.f32 0.0, %v1255
    %v1257 = vpop.f32.mrb[0].mxu0
    %1258 = vmatprep.mubr.bf16.mxu0 0
    %1259 = vmatmul.mubr.bf16.gmra.mrb[0].mxu0 %v731
    %v1260 = vpop.f32.mrb[0].mxu0
    %v1261 = vadd.f32 0.0, %v1260
    %v1262 = vpop.f32.mrb[0].mxu0
    %v1263 = vpop.f32.mrb[0].mxu0
    %v1264 = vadd.f32 0.0, %v1263
    %v1265 = vpop.f32.mrb[0].mxu0
    %1266 = vmatprep.mubr.bf16.mxu0 0
    %1267 = vmatmul.mubr.bf16.gmra.mrb[0].mxu0 %v734
    %v1268 = vpop.f32.mrb[0].mxu0
    %v1269 = vadd.f32 0.0, %v1268
    %v1270 = vpop.f32.mrb[0].mxu0
    %v1271 = vpop.f32.mrb[0].mxu0
    %v1272 = vadd.f32 0.0, %v1271
    %v1273 = vpop.f32.mrb[0].mxu0
    %1274 = vmatprep.mubr.bf16.mxu0 0
    %1275 = vmatmul.mubr.bf16.gmra.mrb[0].mxu0 %v737
    %v1276 = vpop.f32.mrb[0].mxu0
    %v1277 = vadd.f32 0.0, %v1276
    %v1278 = vpop.f32.mrb[0].mxu0
    %v1279 = vpop.f32.mrb[0].mxu0
    %v1280 = vadd.f32 0.0, %v1279
    %v1281 = vpop.f32.mrb[0].mxu0
    %1282 = vmatprep.mubr.bf16.mxu0 0
    %1283 = vmatmul.mubr.bf16.gmra.mrb[0].mxu0 %v740
    %v1284 = vpop.f32.mrb[0].mxu0
    %v1285 = vadd.f32 0.0, %v1284
    %v1286 = vpop.f32.mrb[0].mxu0
    %v1287 = vpop.f32.mrb[0].mxu0
    %v1288 = vadd.f32 0.0, %v1287
    %v1289 = vpop.f32.mrb[0].mxu0
    %1290 = vmatprep.mubr.bf16.mxu0 0
    %1291 = vmatmul.mubr.bf16.gmra.mrb[0].mxu0 %v743
    %v1292 = vpop.f32.mrb[0].mxu0
    %v1293 = vadd.f32 0.0, %v1292
    %v1294 = vpop.f32.mrb[0].mxu0
    %v1295 = vpop.f32.mrb[0].mxu0
    %v1296 = vadd.f32 0.0, %v1295
    %v1297 = vpop.f32.mrb[0].mxu0
    %1298 = vmatprep.mubr.bf16.mxu0 0
    %1299 = vmatmul.mubr.bf16.gmra.mrb[0].mxu0 %v746
    %v1300 = vpop.f32.mrb[0].mxu0
    %v1301 = vadd.f32 0.0, %v1300
    %v1302 = vpop.f32.mrb[0].mxu0
    %v1303 = vpop.f32.mrb[0].mxu0
    %v1304 = vadd.f32 0.0, %v1303
    %v1305 = vpop.f32.mrb[0].mxu0
    %1306 = vmatprep.mubr.bf16.mxu0 0
    %1307 = vmatmul.mubr.bf16.gmra.mrb[0].mxu0 %v749
    %v1308 = vpop.f32.mrb[0].mxu0
    %v1309 = vadd.f32 0.0, %v1308
    %v1310 = vpop.f32.mrb[0].mxu0
    %v1311 = vpop.f32.mrb[0].mxu0
    %v1312 = vadd.f32 0.0, %v1311
    %v1313 = vpop.f32.mrb[0].mxu0
    %1314 = vmatprep.mubr.bf16.mxu0 0
    %1315 = vmatmul.mubr.bf16.gmra.mrb[0].mxu0 %v752
    %v1316 = vpop.f32.mrb[0].mxu0
    %v1317 = vadd.f32 0.0, %v1316
    %v1318 = vpop.f32.mrb[0].mxu0
    %v1319 = vpop.f32.mrb[0].mxu0
    %v1320 = vadd.f32 0.0, %v1319
    %v1321 = vpop.f32.mrb[0].mxu0
    %1322 = vmatprep.mubr.bf16.mxu0 0
    %1323 = vmatmul.mubr.bf16.gmra.mrb[0].mxu0 %v755
    %v1324 = vpop.f32.mrb[0].mxu0
    %v1325 = vadd.f32 0.0, %v1324
    %v1326 = vpop.f32.mrb[0].mxu0
    %v1327 = vpop.f32.mrb[0].mxu0
    %v1328 = vadd.f32 0.0, %v1327
    %v1329 = vpop.f32.mrb[0].mxu0
    %1330 = vmatprep.mubr.bf16.mxu0 0
    %1331 = vmatmul.mubr.bf16.gmra.mrb[0].mxu0 %v758
    %v1332 = vpop.f32.mrb[0].mxu0
    %v1333 = vadd.f32 0.0, %v1332
    %v1334 = vpop.f32.mrb[0].mxu0
    %v1335 = vpop.f32.mrb[0].mxu0
    %v1336 = vadd.f32 0.0, %v1335
    %v1337 = vpop.f32.mrb[0].mxu0
    %1338 = vmatprep.mubr.bf16.mxu0 0
    %1339 = vmatmul.mubr.bf16.gmra.mrb[0].mxu0 %v761
    %v1340 = vpop.f32.mrb[0].mxu0
    %v1341 = vadd.f32 0.0, %v1340
    %v1342 = vpop.f32.mrb[0].mxu0
    %v1343 = vpop.f32.mrb[0].mxu0
    %v1344 = vadd.f32 0.0, %v1343
    %v1345 = vpop.f32.mrb[0].mxu0
    %1346 = vmatprep.mubr.bf16.mxu0 0
    %1347 = vmatmul.mubr.bf16.gmra.mrb[0].mxu0 %v764
    %v1348 = vpop.f32.mrb[0].mxu0
    %v1349 = vadd.f32 0.0, %v1348
    %v1350 = vpop.f32.mrb[0].mxu0
    %v1351 = vpop.f32.mrb[0].mxu0
    %v1352 = vadd.f32 0.0, %v1351
    %v1353 = vpop.f32.mrb[0].mxu0
    %1354 = vmatprep.mubr.bf16.mxu0 0
    %1355 = vmatmul.mubr.bf16.gmra.mrb[0].mxu0 %v767
    %v1356 = vpop.f32.mrb[0].mxu0
    %v1357 = vadd.f32 0.0, %v1356
    %v1358 = vpop.f32.mrb[0].mxu0
    %v1359 = vpop.f32.mrb[0].mxu0
    %v1360 = vadd.f32 0.0, %v1359
    %v1361 = vpop.f32.mrb[0].mxu0
    %1362 = vmatprep.mubr.bf16.mxu0 0
    %1363 = vmatmul.mubr.bf16.gmra.mrb[0].mxu0 %v770
    %v1364 = vpop.f32.mrb[0].mxu0
    %v1365 = vadd.f32 0.0, %v1364
    %v1366 = vpop.f32.mrb[0].mxu0
    %v1367 = vpop.f32.mrb[0].mxu0
    %v1368 = vadd.f32 0.0, %v1367
    %v1369 = vpop.f32.mrb[0].mxu0
    %1370 = vmatprep.mubr.bf16.mxu0 0
    %1371 = vmatmul.mubr.bf16.gmra.mrb[0].mxu0 %v773
    %v1372 = vpop.f32.mrb[0].mxu0
    %v1373 = vadd.f32 0.0, %v1372
    %v1374 = vpop.f32.mrb[0].mxu0
    %v1375 = vpop.f32.mrb[0].mxu0
    %v1376 = vadd.f32 0.0, %v1375
    %v1377 = vpop.f32.mrb[0].mxu0
    %1378 = vmatprep.mubr.bf16.mxu0 0
    %1379 = vmatmul.mubr.bf16.gmra.mrb[0].mxu0 %v776
    %v1380 = vpop.f32.mrb[0].mxu0
    %v1381 = vadd.f32 0.0, %v1380
    %v1382 = vpop.f32.mrb[0].mxu0
    %v1383 = vpop.f32.mrb[0].mxu0
    %v1384 = vadd.f32 0.0, %v1383
    %v1385 = vpop.f32.mrb[0].mxu0
    %1386 = vdwg.mxu0
    %v1387 = vmax.f32 %v813, %v877
    %v1388 = vmax.f32 %v816, %v880
    %v1389 = vmax.f32 %v821, %v885
    %v1390 = vmax.f32 %v824, %v888
    %v1391 = vmax.f32 %v829, %v893
    %v1392 = vmax.f32 %v832, %v896
    %v1393 = vmax.f32 %v837, %v901
    %v1394 = vmax.f32 %v840, %v904
    %v1395 = vmax.f32 %v845, %v909
    %v1396 = vmax.f32 %v848, %v912
    %v1397 = vmax.f32 %v853, %v917
    %v1398 = vmax.f32 %v856, %v920
    %v1399 = vmax.f32 %v861, %v925
    %v1400 = vmax.f32 %v864, %v928
    %v1401 = vmax.f32 %v869, %v933
    %v1402 = vmax.f32 %v872, %v936
    %v1403 = vmax.f32 %v1387, %v941
    %v1404 = vmax.f32 %v1388, %v944
    %v1405 = vmax.f32 %v1389, %v949
    %v1406 = vmax.f32 %v1390, %v952
    %v1407 = vmax.f32 %v1391, %v957
    %v1408 = vmax.f32 %v1392, %v960
    %v1409 = vmax.f32 %v1393, %v965
    %v1410 = vmax.f32 %v1394, %v968
    %v1411 = vmax.f32 %v1395, %v973
    %v1412 = vmax.f32 %v1396, %v976
    %v1413 = vmax.f32 %v1397, %v981
    %v1414 = vmax.f32 %v1398, %v984
    %v1415 = vmax.f32 %v1399, %v989
    %v1416 = vmax.f32 %v1400, %v992
    %v1417 = vmax.f32 %v1401, %v997
    %v1418 = vmax.f32 %v1402, %v1000
    %v1419 = vmax.f32 %v1403, %v1005
    %v1420 = vmax.f32 %v1404, %v1008
    %v1421 = vmax.f32 %v1405, %v1013
    %v1422 = vmax.f32 %v1406, %v1016
    %v1423 = vmax.f32 %v1407, %v1021
    %v1424 = vmax.f32 %v1408, %v1024
    %v1425 = vmax.f32 %v1409, %v1029
    %v1426 = vmax.f32 %v1410, %v1032
    %v1427 = vmax.f32 %v1411, %v1037
    %v1428 = vmax.f32 %v1412, %v1040
    %v1429 = vmax.f32 %v1413, %v1045
    %v1430 = vmax.f32 %v1414, %v1048
    %v1431 = vmax.f32 %v1415, %v1053
    %v1432 = vmax.f32 %v1416, %v1056
    %v1433 = vmax.f32 %v1417, %v1061
    %v1434 = vmax.f32 %v1418, %v1064
    %v1435 = vmax.f32 %v1419, %v1069
    %v1436 = vmax.f32 %v1420, %v1072
    %v1437 = vmax.f32 %v1421, %v1077
    %v1438 = vmax.f32 %v1422, %v1080
    %v1439 = vmax.f32 %v1423, %v1085
    %v1440 = vmax.f32 %v1424, %v1088
    %v1441 = vmax.f32 %v1425, %v1093
    %v1442 = vmax.f32 %v1426, %v1096
    %v1443 = vmax.f32 %v1427, %v1101
    %v1444 = vmax.f32 %v1428, %v1104
    %v1445 = vmax.f32 %v1429, %v1109
    %v1446 = vmax.f32 %v1430, %v1112
    %v1447 = vmax.f32 %v1431, %v1117
    %v1448 = vmax.f32 %v1432, %v1120
    %v1449 = vmax.f32 %v1433, %v1125
    %v1450 = vmax.f32 %v1434, %v1128
    %v1451 = vmax.f32 %v1435, %v1133
    %v1452 = vmax.f32 %v1436, %v1136
    %v1453 = vmax.f32 %v1437, %v1141
    %v1454 = vmax.f32 %v1438, %v1144
    %v1455 = vmax.f32 %v1439, %v1149
    %v1456 = vmax.f32 %v1440, %v1152
    %v1457 = vmax.f32 %v1441, %v1157
    %v1458 = vmax.f32 %v1442, %v1160
    %v1459 = vmax.f32 %v1443, %v1165
    %v1460 = vmax.f32 %v1444, %v1168
    %v1461 = vmax.f32 %v1445, %v1173
    %v1462 = vmax.f32 %v1446, %v1176
    %v1463 = vmax.f32 %v1447, %v1181
    %v1464 = vmax.f32 %v1448, %v1184
    %v1465 = vmax.f32 %v1449, %v1189
    %v1466 = vmax.f32 %v1450, %v1192
    %v1467 = vmax.f32 %v1451, %v1197
    %v1468 = vmax.f32 %v1452, %v1200
    %v1469 = vmax.f32 %v1453, %v1205
    %v1470 = vmax.f32 %v1454, %v1208
    %v1471 = vmax.f32 %v1455, %v1213
    %v1472 = vmax.f32 %v1456, %v1216
    %v1473 = vmax.f32 %v1457, %v1221
    %v1474 = vmax.f32 %v1458, %v1224
    %v1475 = vmax.f32 %v1459, %v1229
    %v1476 = vmax.f32 %v1460, %v1232
    %v1477 = vmax.f32 %v1461, %v1237
    %v1478 = vmax.f32 %v1462, %v1240
    %v1479 = vmax.f32 %v1463, %v1245
    %v1480 = vmax.f32 %v1464, %v1248
    %v1481 = vmax.f32 %v1465, %v1253
    %v1482 = vmax.f32 %v1466, %v1256
    %v1483 = vmax.f32 %v1467, %v1261
    %v1484 = vmax.f32 %v1468, %v1264
    %v1485 = vmax.f32 %v1469, %v1269
    %v1486 = vmax.f32 %v1470, %v1272
    %v1487 = vmax.f32 %v1471, %v1277
    %v1488 = vmax.f32 %v1472, %v1280
    %v1489 = vmax.f32 %v1473, %v1285
    %v1490 = vmax.f32 %v1474, %v1288
    %v1491 = vmax.f32 %v1475, %v1293
    %v1492 = vmax.f32 %v1476, %v1296
    %v1493 = vmax.f32 %v1477, %v1301
    %v1494 = vmax.f32 %v1478, %v1304
    %v1495 = vmax.f32 %v1479, %v1309
    %v1496 = vmax.f32 %v1480, %v1312
    %v1497 = vmax.f32 %v1481, %v1317
    %v1498 = vmax.f32 %v1482, %v1320
    %v1499 = vmax.f32 %v1483, %v1325
    %v1500 = vmax.f32 %v1484, %v1328
    %v1501 = vmax.f32 %v1485, %v1333
    %v1502 = vmax.f32 %v1486, %v1336
    %v1503 = vmax.f32 %v1487, %v1341
    %v1504 = vmax.f32 %v1488, %v1344
    %v1505 = vmax.f32 %v1489, %v1349
    %v1506 = vmax.f32 %v1490, %v1352
    %v1507 = vmax.f32 %v1491, %v1357
    %v1508 = vmax.f32 %v1492, %v1360
    %v1509 = vmax.f32 %v1493, %v1365
    %v1510 = vmax.f32 %v1494, %v1368
    %v1511 = vmax.f32 %v1495, %v1373
    %v1512 = vmax.f32 %v1496, %v1376
    %v1513 = vmax.f32 %v1497, %v1381
    %v1514 = vmax.f32 %v1498, %v1384
    %v1515 = vld [vmem:[#allocation4] sm:$0x1]
    %v1517 = vlaneseq
    %v1518 = vshrl.u32 %v1517, 7
    %v1519 = vsub.s32 0, %v1518
    %v1520 = vrot.slane %v1515, %v1519
    %v1522 = vadd.f32 %v1499, %v1520
    %v1523 = vadd.f32 %v1500, %v1520
    %v1524 = vadd.f32 %v1501, %v1520
    %v1525 = vadd.f32 %v1502, %v1520
    %v1526 = vadd.f32 %v1503, %v1520
    %v1527 = vadd.f32 %v1504, %v1520
    %v1528 = vadd.f32 %v1505, %v1520
    %v1529 = vadd.f32 %v1506, %v1520
    %v1530 = vadd.f32 %v1507, %v1520
    %v1531 = vadd.f32 %v1508, %v1520
    %v1532 = vadd.f32 %v1509, %v1520
    %v1533 = vadd.f32 %v1510, %v1520
    %v1534 = vadd.f32 %v1511, %v1520
    %v1535 = vadd.f32 %v1512, %v1520
    %v1536 = vadd.f32 %v1513, %v1520
    %v1537 = vadd.f32 %v1514, %v1520
    %v1538 = vmax.f32 %v1522, 0.0
    %v1539 = vmax.f32 %v1523, 0.0
    %v1540 = vmax.f32 %v1524, 0.0
    %v1541 = vmax.f32 %v1525, 0.0
    %v1542 = vmax.f32 %v1526, 0.0
    %v1543 = vmax.f32 %v1527, 0.0
    %v1544 = vmax.f32 %v1528, 0.0
    %v1545 = vmax.f32 %v1529, 0.0
    %v1546 = vmax.f32 %v1530, 0.0
    %v1547 = vmax.f32 %v1531, 0.0
    %v1548 = vmax.f32 %v1532, 0.0
    %v1549 = vmax.f32 %v1533, 0.0
    %v1550 = vmax.f32 %v1534, 0.0
    %v1551 = vmax.f32 %v1535, 0.0
    %v1552 = vmax.f32 %v1536, 0.0
    %v1553 = vmax.f32 %v1537, 0.0
    %1554 = vst [vmem:[%s3] sm:$0xff] %v1538
    %1555 = vst [vmem:[%s3 + $0x8] sm:$0xff] %v1539
    %1556 = vst [vmem:[%s3 + $0x10] sm:$0xff] %v1540
    %1557 = vst [vmem:[%s3 + $0x18] sm:$0xff] %v1541
    %1558 = vst [vmem:[%s3 + $0x20] sm:$0xff] %v1542
    %1559 = vst [vmem:[%s3 + $0x28] sm:$0xff] %v1543
    %1560 = vst [vmem:[%s3 + $0x30] sm:$0xff] %v1544
    %1561 = vst [vmem:[%s3 + $0x38] sm:$0xff] %v1545
    %1562 = vst [vmem:[%s3 + $0x40] sm:$0xff] %v1546
    %1563 = vst [vmem:[%s3 + $0x48] sm:$0xff] %v1547
    %1564 = vst [vmem:[%s3 + $0x50] sm:$0xff] %v1548
    %1565 = vst [vmem:[%s3 + $0x58] sm:$0xff] %v1549
    %1566 = vst [vmem:[%s3 + $0x60] sm:$0xff] %v1550
    %1567 = vst [vmem:[%s3 + $0x68] sm:$0xff] %v1551
    %1568 = vst [vmem:[%s3 + $0x70] sm:$0xff] %v1552
    %1569 = vst [vmem:[%s3 + $0x78] sm:$0xff] %v1553
    // Predicated region
    $region22: #{model_forward.3} parent=1 // pred_check
      _
    $region23: #{model_forward.3} parent=1 // pred_check_branch
      %1571 = sbr.rel (0) target = $region25
    $region24: #{model_forward.3} parent=1 // pred_region
      _
    $region25: #{model_forward.3} parent=1 // pred_fallthru
      _
    // Predicated region
    $region26: #{model_forward.3} parent=1 // pred_check
      _
    $region27: #{model_forward.3} parent=1 // pred_check_branch
      %1573 = sbr.rel (0) target = $region29
    $region28: #{model_forward.3} parent=1 // pred_region
      _
    $region29: #{model_forward.3} parent=1 // pred_fallthru
      _
    %1574 = vsyncpa [#allocation3], 1
    %1575 = vsyncpa [#allocation5], 1

// kernel: model_forward.4
$region0: #{model_forward.4}
  #allocation0 [shape = 'u32[]', space=smem, size = 0x4, offset = 0x4, fixed_abs, tag = 'smem constant byte address 0x4 - core index']
  #allocation1 [shape = 'u32[144,128]{1,0:T(1,128)}', space=vmem, size = 0x12000, scoped, tag = 'internal scratch']
  %s0 = inlined_call_operand.vmem [shape: bf16[224,128], index: 0, kind: input, shape index: {}]
  %s1 = inlined_call_operand.hbm [shape: bf16[128,896], index: 1, kind: input, shape index: {}]
  %s2 = inlined_call_operand.hbm [shape: f32[1,896], index: 2, kind: input, shape index: {}]
  %s3 = inlined_call_operand.vmem [shape: f32[56,896], index: 3, kind: output, shape index: {}]
  %s4 = sld [smem:[#allocation0]]
  $region30: #{model_forward.4} parent=0
    _
  %s6 = ssub.s32 1, %s4
  %s7 = scalar_select 0, %s6, %s4
  $region1: #{model_forward.4} parent=0
    #allocation2 [shape = 'u8[229376]{0}', space=vmem, size = 0x38000, scoped, tag = 'input window, operand 1, single buffered']
    #allocation3 [shape = 's32[1]{0}', space=sflag, size = 0x4, scoped, tag = 'scoped memory for model_forward.4']
    #allocation4 [shape = 'u8[3584]{0}', space=vmem, size = 0x1000, scoped, tag = 'input window, operand 2, single buffered']
    #allocation5 [shape = 's32[1]{0}', space=sflag, size = 0x4, scoped, tag = 'scoped memory for model_forward.4']
    %8 = vsyncpa [#allocation3], 0
    %9 = vsyncpa [#allocation5], 0
    // Predicated region
    $region2: #{model_forward.4} parent=1 // pred_check
      _
    $region3: #{model_forward.4} parent=1 // pred_check_branch
      %11 = sbr.rel (0) target = $region5
    $region4: #{model_forward.4} parent=1 // pred_region
      _
    $region5: #{model_forward.4} parent=1 // pred_fallthru
      _
    // Predicated region
    $region6: #{model_forward.4} parent=1 // pred_check
      _
    $region7: #{model_forward.4} parent=1 // pred_check_branch
      %13 = sbr.rel (0) target = $region9
    $region8: #{model_forward.4} parent=1 // pred_region
      %s15 = ssub.s32 7168, 7168
      %16 = vsyncadd [#allocation3], %s15
      %s17 = sshll.u32 [#allocation2], 4
      %s18 = int_to_ptr.vmem [resolvable:$true] %s17
      %23 = dma.hbm_to_vmem [thread:$0]  %s1, 7168, %s18, [#allocation3], 448, 448, 28
    $region9: #{model_forward.4} parent=1 // pred_fallthru
      _
    // Predicated region
    $region10: #{model_forward.4} parent=1 // pred_check
      _
    $region11: #{model_forward.4} parent=1 // pred_check_branch
      %25 = sbr.rel (0) target = $region13
    $region12: #{model_forward.4} parent=1 // pred_region
      %s27 = ssub.s32 112, 112
      %28 = vsyncadd [#allocation5], %s27
      %s30 = sshll.u32 [#allocation4], 4
      %s31 = int_to_ptr.vmem [resolvable:$true] %s30
      %33 = dma.hbm_to_vmem [thread:$0]  %s2, 112, %s31, [#allocation5]
    $region13: #{model_forward.4} parent=1 // pred_fallthru
      _
    // Predicated region
    $region14: #{model_forward.4} parent=1 // pred_check
      _
    $region15: #{model_forward.4} parent=1 // pred_check_branch
      %35 = sbr.rel (0) target = $region17
    $region16: #{model_forward.4} parent=1 // pred_region
      %36 = dma.done [#allocation3], 7168
    $region17: #{model_forward.4} parent=1 // pred_fallthru
      _
    // Predicated region
    $region18: #{model_forward.4} parent=1 // pred_check
      _
    $region19: #{model_forward.4} parent=1 // pred_check_branch
      %38 = sbr.rel (0) target = $region21
    $region20: #{model_forward.4} parent=1 // pred_region
      %39 = dma.done [#allocation5], 112
    $region21: #{model_forward.4} parent=1 // pred_fallthru
      _
    %v41 = vld [vmem:[%s0] sm:$0xf]
    %v42 = vld [vmem:[%s0 + $0x4] sm:$0xf]
    %v43 = vld [vmem:[%s0 + $0x8] sm:$0xf]
    %v44 = vld [vmem:[%s0 + $0xc] sm:$0xf]
    %v45 = vld [vmem:[%s0 + $0x10] sm:$0xf]
    %v46 = vld [vmem:[%s0 + $0x14] sm:$0xf]
    %v47 = vld [vmem:[%s0 + $0x18] sm:$0xf]
    %v48 = vld [vmem:[%s0 + $0x1c] sm:$0xf]
    %v49 = vld [vmem:[%s0 + $0x20] sm:$0xf]
    %v50 = vld [vmem:[%s0 + $0x24] sm:$0xf]
    %v51 = vld [vmem:[%s0 + $0x28] sm:$0xf]
    %v52 = vld [vmem:[%s0 + $0x2c] sm:$0xf]
    %v53 = vld [vmem:[%s0 + $0x30] sm:$0xf]
    %v54 = vld [vmem:[%s0 + $0x34] sm:$0xf]
    %v55 = vld [vmem:[%s0 + $0x38] sm:$0xf]
    %v56 = vld [vmem:[%s0 + $0x3c] sm:$0xf]
    %v57 = vld [vmem:[%s0 + $0x40] sm:$0xf]
    %v58 = vld [vmem:[%s0 + $0x44] sm:$0xf]
    %v59 = vld [vmem:[%s0 + $0x48] sm:$0xf]
    %v60 = vld [vmem:[%s0 + $0x4c] sm:$0xf]
    %v61 = vld [vmem:[%s0 + $0x50] sm:$0xf]
    %v62 = vld [vmem:[%s0 + $0x54] sm:$0xf]
    %v63 = vld [vmem:[%s0 + $0x58] sm:$0xf]
    %v64 = vld [vmem:[%s0 + $0x5c] sm:$0xf]
    %v65 = vld [vmem:[%s0 + $0x60] sm:$0xf]
    %v66 = vld [vmem:[%s0 + $0x64] sm:$0xf]
    %v67 = vld [vmem:[%s0 + $0x68] sm:$0xf]
    %v68 = vld [vmem:[%s0 + $0x6c] sm:$0xf]
    %v69 = vld [vmem:[#allocation2] sm:$0xf]
    %v70 = vld [vmem:[#allocation2 + $0x1c] sm:$0xf]
    %v71 = vld [vmem:[#allocation2 + $0x38] sm:$0xf]
    %v72 = vld [vmem:[#allocation2 + $0x54] sm:$0xf]
    %v73 = vld [vmem:[#allocation2 + $0x70] sm:$0xf]
    %v74 = vld [vmem:[#allocation2 + $0x8c] sm:$0xf]
    %v75 = vld [vmem:[#allocation2 + $0xa8] sm:$0xf]
    %v76 = vld [vmem:[#allocation2 + $0xc4] sm:$0xf]
    %v77 = vld [vmem:[#allocation2 + $0xe0] sm:$0xf]
    %v78 = vld [vmem:[#allocation2 + $0xfc] sm:$0xf]
    %v79 = vld [vmem:[#allocation2 + $0x118] sm:$0xf]
    %v80 = vld [vmem:[#allocation2 + $0x134] sm:$0xf]
    %v81 = vld [vmem:[#allocation2 + $0x150] sm:$0xf]
    %v82 = vld [vmem:[#allocation2 + $0x16c] sm:$0xf]
    %v83 = vld [vmem:[#allocation2 + $0x188] sm:$0xf]
    %v84 = vld [vmem:[#allocation2 + $0x1a4] sm:$0xf]
    %v113 = vunpack.c.l.b16 %v41
    %v114 = vunpack.c.l.b16 %v42
    %v115 = vunpack.c.l.b16 %v43
    %v116 = vunpack.c.l.b16 %v44
    %v117 = vunpack.c.l.b16 %v45
    %v118 = vunpack.c.l.b16 %v46
    %v119 = vunpack.c.l.b16 %v47
    %v120 = vunpack.c.l.b16 %v48
    %v121 = vunpack.c.l.b16 %v49
    %v122 = vunpack.c.l.b16 %v50
    %v123 = vunpack.c.l.b16 %v51
    %v124 = vunpack.c.l.b16 %v52
    %v125 = vunpack.c.l.b16 %v53
    %v126 = vunpack.c.l.b16 %v54
    %v127 = vunpack.c.l.b16 %v55
    %v128 = vunpack.c.l.b16 %v56
    %v129 = vunpack.c.l.b16 %v57
    %v130 = vunpack.c.l.b16 %v58
    %v131 = vunpack.c.l.b16 %v59
    %v132 = vunpack.c.l.b16 %v60
    %v133 = vunpack.c.l.b16 %v61
    %v134 = vunpack.c.l.b16 %v62
    %v135 = vunpack.c.l.b16 %v63
    %v136 = vunpack.c.l.b16 %v64
    %v137 = vunpack.c.l.b16 %v65
    %v138 = vunpack.c.l.b16 %v66
    %v139 = vunpack.c.l.b16 %v67
    %v140 = vunpack.c.l.b16 %v68
    %v141 = vpack.c.b16 %v114, %v113
    %v142 = vpack.c.b16 %v116, %v115
    %v143 = vpack.c.b16 %v118, %v117
    %v144 = vpack.c.b16 %v120, %v119
    %v145 = vpack.c.b16 %v122, %v121
    %v146 = vpack.c.b16 %v124, %v123
    %v147 = vpack.c.b16 %v126, %v125
    %v148 = vpack.c.b16 %v128, %v127
    %v149 = vpack.c.b16 %v130, %v129
    %v150 = vpack.c.b16 %v132, %v131
    %v151 = vpack.c.b16 %v134, %v133
    %v152 = vpack.c.b16 %v136, %v135
    %v153 = vpack.c.b16 %v138, %v137
    %v154 = vpack.c.b16 %v140, %v139
    %v185 = vunpack.c.l.b16 %v69
    %v186 = vunpack.c.l.b16 %v70
    %v187 = vunpack.c.l.b16 %v71
    %v188 = vunpack.c.l.b16 %v72
    %v189 = vunpack.c.l.b16 %v73
    %v190 = vunpack.c.l.b16 %v74
    %v191 = vunpack.c.l.b16 %v75
    %v192 = vunpack.c.l.b16 %v76
    %v193 = vunpack.c.l.b16 %v77
    %v194 = vunpack.c.l.b16 %v78
    %v195 = vunpack.c.l.b16 %v79
    %v196 = vunpack.c.l.b16 %v80
    %v197 = vunpack.c.l.b16 %v81
    %v198 = vunpack.c.l.b16 %v82
    %v199 = vunpack.c.l.b16 %v83
    %v200 = vunpack.c.l.b16 %v84
    %v201 = vpack.c.b16 %v186, %v185
    %v202 = vpack.c.b16 %v188, %v187
    %v203 = vpack.c.b16 %v190, %v189
    %v204 = vpack.c.b16 %v192, %v191
    %v205 = vpack.c.b16 %v194, %v193
    %v206 = vpack.c.b16 %v196, %v195
    %v207 = vpack.c.b16 %v198, %v197
    %v208 = vpack.c.b16 %v200, %v199
    %217 = vmatprep.subr.bf16.mxu0 0
    %218 = vmatpush1.bf16.msra.mxu0 %v201
    %219 = vmatprep.subr.bf16.mxu0 0
    %220 = vmatpush1.bf16.msra.mxu0 %v202
    %221 = vmatprep.subr.bf16.mxu0 0
    %222 = vmatpush1.bf16.msra.mxu0 %v203
    %223 = vmatprep.subr.bf16.mxu0 0
    %224 = vmatpush1.bf16.msra.mxu0 %v204
    %225 = vmatprep.subr.bf16.mxu0 0
    %226 = vmatpush1.bf16.msra.mxu0 %v205
    %227 = vmatprep.subr.bf16.mxu0 0
    %228 = vmatpush1.bf16.msra.mxu0 %v206
    %229 = vmatprep.subr.bf16.mxu0 0
    %230 = vmatpush1.bf16.msra.mxu0 %v207
    %231 = vmatprep.subr.bf16.mxu0 0
    %232 = vmatpush1.bf16.msra.mxu0 %v208
    %233 = vmatprep.subr.bf16.mxu0 0
    %234 = vmatpush1.bf16.msra.mxu0 0
    %235 = vmatprep.subr.bf16.mxu0 0
    %236 = vmatpush1.bf16.msra.mxu0 0
    %237 = vmatprep.subr.bf16.mxu0 0
    %238 = vmatpush1.bf16.msra.mxu0 0
    %239 = vmatprep.subr.bf16.mxu0 0
    %240 = vmatpush1.bf16.msra.mxu0 0
    %241 = vmatprep.subr.bf16.mxu0 0
    %242 = vmatpush1.bf16.msra.mxu0 0
    %243 = vmatprep.subr.bf16.mxu0 0
    %244 = vmatpush1.bf16.msra.mxu0 0
    %245 = vmatprep.subr.bf16.mxu0 0
    %246 = vmatpush1.bf16.msra.mxu0 0
    %247 = vmatprep.subr.bf16.mxu0 0
    %248 = vmatpush1.bf16.msra.mxu0 0
    %249 = vmatprep.mubr.bf16.mxu0 0
    %250 = vmatmul.mubr.bf16.gmra.mrb[0].mxu0 %v141
    %v251 = vpop.f32.mrb[0].mxu0
    %v252 = vadd.f32 0.0, %v251
    %v253 = vpop.f32.mrb[0].mxu0
    %v254 = vpop.f32.mrb[0].mxu0
    %v255 = vadd.f32 0.0, %v254
    %v256 = vpop.f32.mrb[0].mxu0
    %257 = vmatprep.mubr.bf16.mxu0 0
    %258 = vmatmul.mubr.bf16.gmra.mrb[0].mxu0 %v142
    %v259 = vpop.f32.mrb[0].mxu0
    %v260 = vadd.f32 0.0, %v259
    %v261 = vpop.f32.mrb[0].mxu0
    %v262 = vpop.f32.mrb[0].mxu0
    %v263 = vadd.f32 0.0, %v262
    %v264 = vpop.f32.mrb[0].mxu0
    %265 = vmatprep.mubr.bf16.mxu0 0
    %266 = vmatmul.mubr.bf16.gmra.mrb[0].mxu0 %v143
    %v267 = vpop.f32.mrb[0].mxu0
    %v268 = vadd.f32 0.0, %v267
    %v269 = vpop.f32.mrb[0].mxu0
    %v270 = vpop.f32.mrb[0].mxu0
    %v271 = vadd.f32 0.0, %v270
    %v272 = vpop.f32.mrb[0].mxu0
    %273 = vmatprep.mubr.bf16.mxu0 0
    %274 = vmatmul.mubr.bf16.gmra.mrb[0].mxu0 %v144
    %v275 = vpop.f32.mrb[0].mxu0
    %v276 = vadd.f32 0.0, %v275
    %v277 = vpop.f32.mrb[0].mxu0
    %v278 = vpop.f32.mrb[0].mxu0
    %v279 = vadd.f32 0.0, %v278
    %v280 = vpop.f32.mrb[0].mxu0
    %281 = vmatprep.mubr.bf16.mxu0 0
    %282 = vmatmul.mubr.bf16.gmra.mrb[0].mxu0 %v145
    %v283 = vpop.f32.mrb[0].mxu0
    %v284 = vadd.f32 0.0, %v283
    %v285 = vpop.f32.mrb[0].mxu0
    %v286 = vpop.f32.mrb[0].mxu0
    %v287 = vadd.f32 0.0, %v286
    %v288 = vpop.f32.mrb[0].mxu0
    %289 = vmatprep.mubr.bf16.mxu0 0
    %290 = vmatmul.mubr.bf16.gmra.mrb[0].mxu0 %v146
    %v291 = vpop.f32.mrb[0].mxu0
    %v292 = vadd.f32 0.0, %v291
    %v293 = vpop.f32.mrb[0].mxu0
    %v294 = vpop.f32.mrb[0].mxu0
    %v295 = vadd.f32 0.0, %v294
    %v296 = vpop.f32.mrb[0].mxu0
    %297 = vmatprep.mubr.bf16.mxu0 0
    %298 = vmatmul.mubr.bf16.gmra.mrb[0].mxu0 %v147
    %v299 = vpop.f32.mrb[0].mxu0
    %v300 = vadd.f32 0.0, %v299
    %v301 = vpop.f32.mrb[0].mxu0
    %v302 = vpop.f32.mrb[0].mxu0
    %v303 = vadd.f32 0.0, %v302
    %v304 = vpop.f32.mrb[0].mxu0
    %305 = vmatprep.mubr.bf16.mxu0 0
    %306 = vmatmul.mubr.bf16.gmra.mrb[0].mxu0 %v148
    %v307 = vpop.f32.mrb[0].mxu0
    %v308 = vadd.f32 0.0, %v307
    %v309 = vpop.f32.mrb[0].mxu0
    %v310 = vpop.f32.mrb[0].mxu0
    %v311 = vadd.f32 0.0, %v310
    %v312 = vpop.f32.mrb[0].mxu0
    %313 = vmatprep.mubr.bf16.mxu0 0
    %314 = vmatmul.mubr.bf16.gmra.mrb[0].mxu0 %v149
    %v315 = vpop.f32.mrb[0].mxu0
    %v316 = vadd.f32 0.0, %v315
    %v317 = vpop.f32.mrb[0].mxu0
    %v318 = vpop.f32.mrb[0].mxu0
    %v319 = vadd.f32 0.0, %v318
    %v320 = vpop.f32.mrb[0].mxu0
    %321 = vmatprep.mubr.bf16.mxu0 0
    %322 = vmatmul.mubr.bf16.gmra.mrb[0].mxu0 %v150
    %v323 = vpop.f32.mrb[0].mxu0
    %v324 = vadd.f32 0.0, %v323
    %v325 = vpop.f32.mrb[0].mxu0
    %v326 = vpop.f32.mrb[0].mxu0
    %v327 = vadd.f32 0.0, %v326
    %v328 = vpop.f32.mrb[0].mxu0
    %329 = vmatprep.mubr.bf16.mxu0 0
    %330 = vmatmul.mubr.bf16.gmra.mrb[0].mxu0 %v151
    %v331 = vpop.f32.mrb[0].mxu0
    %v332 = vadd.f32 0.0, %v331
    %v333 = vpop.f32.mrb[0].mxu0
    %v334 = vpop.f32.mrb[0].mxu0
    %v335 = vadd.f32 0.0, %v334
    %v336 = vpop.f32.mrb[0].mxu0
    %337 = vmatprep.mubr.bf16.mxu0 0
    %338 = vmatmul.mubr.bf16.gmra.mrb[0].mxu0 %v152
    %v339 = vpop.f32.mrb[0].mxu0
    %v340 = vadd.f32 0.0, %v339
    %v341 = vpop.f32.mrb[0].mxu0
    %v342 = vpop.f32.mrb[0].mxu0
    %v343 = vadd.f32 0.0, %v342
    %v344 = vpop.f32.mrb[0].mxu0
    %345 = vmatprep.mubr.bf16.mxu0 0
    %346 = vmatmul.mubr.bf16.gmra.mrb[0].mxu0 %v153
    %v347 = vpop.f32.mrb[0].mxu0
    %v348 = vadd.f32 0.0, %v347
    %v349 = vpop.f32.mrb[0].mxu0
    %v350 = vpop.f32.mrb[0].mxu0
    %v351 = vadd.f32 0.0, %v350
    %v352 = vpop.f32.mrb[0].mxu0
    %353 = vmatprep.mubr.bf16.mxu0 0
    %354 = vmatmul.mubr.bf16.gmra.mrb[0].mxu0 %v154
    %v355 = vpop.f32.mrb[0].mxu0
    %v356 = vadd.f32 0.0, %v355
    %v357 = vpop.f32.mrb[0].mxu0
    %v358 = vpop.f32.mrb[0].mxu0
    %v359 = vadd.f32 0.0, %v358
    %v360 = vpop.f32.mrb[0].mxu0
    %361 = vdwg.mxu0
    %v362 = vmax.f32 %v252, %v279
    %v363 = vmax.f32 %v255, %v284
    %v364 = vmax.f32 %v260, %v287
    %v365 = vmax.f32 %v263, %v292
    %v366 = vmax.f32 %v268, %v295
    %v367 = vmax.f32 %v271, %v300
    %v368 = vmax.f32 %v276, %v303
    %v369 = vmax.f32 %v362, %v308
    %v370 = vmax.f32 %v363, %v311
    %v371 = vmax.f32 %v364, %v316
    %v372 = vmax.f32 %v365, %v319
    %v373 = vmax.f32 %v366, %v324
    %v374 = vmax.f32 %v367, %v327
    %v375 = vmax.f32 %v368, %v332
    %v376 = vmax.f32 %v369, %v335
    %v377 = vmax.f32 %v370, %v340
    %v378 = vmax.f32 %v371, %v343
    %v379 = vmax.f32 %v372, %v348
    %v380 = vmax.f32 %v373, %v351
    %v381 = vmax.f32 %v374, %v356
    %v382 = vmax.f32 %v375, %v359
    %v383 = vld [vmem:[#allocation4] sm:$0x1]
    %v385 = vlaneseq
    %v386 = vshrl.u32 %v385, 7
    %v387 = vsub.s32 0, %v386
    %v388 = vrot.slane %v383, %v387
    %v390 = vadd.f32 %v376, %v388
    %v391 = vadd.f32 %v377, %v388
    %v392 = vadd.f32 %v378, %v388
    %v393 = vadd.f32 %v379, %v388
    %v394 = vadd.f32 %v380, %v388
    %v395 = vadd.f32 %v381, %v388
    %v396 = vadd.f32 %v382, %v388
    %v397 = vmax.f32 %v390, 0.0
    %v398 = vmax.f32 %v391, 0.0
    %v399 = vmax.f32 %v392, 0.0
    %v400 = vmax.f32 %v393, 0.0
    %v401 = vmax.f32 %v394, 0.0
    %v402 = vmax.f32 %v395, 0.0
    %v403 = vmax.f32 %v396, 0.0
    %404 = vst [vmem:[%s3] sm:$0xff] %v397
    %405 = vst [vmem:[%s3 + $0x38] sm:$0xff] %v398
    %406 = vst [vmem:[%s3 + $0x70] sm:$0xff] %v399
    %407 = vst [vmem:[%s3 + $0xa8] sm:$0xff] %v400
    %408 = vst [vmem:[%s3 + $0xe0] sm:$0xff] %v401
    %409 = vst [vmem:[%s3 + $0x118] sm:$0xff] %v402
    %410 = vst [vmem:[%s3 + $0x150] sm:$0xff] %v403
    %v411 = vld [vmem:[%s0] sm:$0xf]
    %v412 = vld [vmem:[%s0 + $0x4] sm:$0xf]
    %v413 = vld [vmem:[%s0 + $0x8] sm:$0xf]
    %v414 = vld [vmem:[%s0 + $0xc] sm:$0xf]
    %v415 = vld [vmem:[%s0 + $0x10] sm:$0xf]
    %v416 = vld [vmem:[%s0 + $0x14] sm:$0xf]
    %v417 = vld [vmem:[%s0 + $0x18] sm:$0xf]
    %v418 = vld [vmem:[%s0 + $0x1c] sm:$0xf]
    %v419 = vld [vmem:[%s0 + $0x20] sm:$0xf]
    %v420 = vld [vmem:[%s0 + $0x24] sm:$0xf]
    %v421 = vld [vmem:[%s0 + $0x28] sm:$0xf]
    %v422 = vld [vmem:[%s0 + $0x2c] sm:$0xf]
    %v423 = vld [vmem:[%s0 + $0x30] sm:$0xf]
    %v424 = vld [vmem:[%s0 + $0x34] sm:$0xf]
    %v425 = vld [vmem:[%s0 + $0x38] sm:$0xf]
    %v426 = vld [vmem:[%s0 + $0x3c] sm:$0xf]
    %v427 = vld [vmem:[%s0 + $0x40] sm:$0xf]
    %v428 = vld [vmem:[%s0 + $0x44] sm:$0xf]
    %v429 = vld [vmem:[%s0 + $0x48] sm:$0xf]
    %v430 = vld [vmem:[%s0 + $0x4c] sm:$0xf]
    %v431 = vld [vmem:[%s0 + $0x50] sm:$0xf]
    %v432 = vld [vmem:[%s0 + $0x54] sm:$0xf]
    %v433 = vld [vmem:[%s0 + $0x58] sm:$0xf]
    %v434 = vld [vmem:[%s0 + $0x5c] sm:$0xf]
    %v435 = vld [vmem:[%s0 + $0x60] sm:$0xf]
    %v436 = vld [vmem:[%s0 + $0x64] sm:$0xf]
    %v437 = vld [vmem:[%s0 + $0x68] sm:$0xf]
    %v438 = vld [vmem:[%s0 + $0x6c] sm:$0xf]
    %v439 = vld [vmem:[#allocation2 + $0x4] sm:$0xf]
    %v440 = vld [vmem:[#allocation2 + $0x20] sm:$0xf]
    %v441 = vld [vmem:[#allocation2 + $0x3c] sm:$0xf]
    %v442 = vld [vmem:[#allocation2 + $0x58] sm:$0xf]
    %v443 = vld [vmem:[#allocation2 + $0x74] sm:$0xf]
    %v444 = vld [vmem:[#allocation2 + $0x90] sm:$0xf]
    %v445 = vld [vmem:[#allocation2 + $0xac] sm:$0xf]
    %v446 = vld [vmem:[#allocation2 + $0xc8] sm:$0xf]
    %v447 = vld [vmem:[#allocation2 + $0xe4] sm:$0xf]
    %v448 = vld [vmem:[#allocation2 + $0x100] sm:$0xf]
    %v449 = vld [vmem:[#allocation2 + $0x11c] sm:$0xf]
    %v450 = vld [vmem:[#allocation2 + $0x138] sm:$0xf]
    %v451 = vld [vmem:[#allocation2 + $0x154] sm:$0xf]
    %v452 = vld [vmem:[#allocation2 + $0x170] sm:$0xf]
    %v453 = vld [vmem:[#allocation2 + $0x18c] sm:$0xf]
    %v454 = vld [vmem:[#allocation2 + $0x1a8] sm:$0xf]
    %v483 = vunpack.c.l.b16 %v411
    %v484 = vunpack.c.l.b16 %v412
    %v485 = vunpack.c.l.b16 %v413
    %v486 = vunpack.c.l.b16 %v414
    %v487 = vunpack.c.l.b16 %v415
    %v488 = vunpack.c.l.b16 %v416
    %v489 = vunpack.c.l.b16 %v417
    %v490 = vunpack.c.l.b16 %v418
    %v491 = vunpack.c.l.b16 %v419
    %v492 = vunpack.c.l.b16 %v420
    %v493 = vunpack.c.l.b16 %v421
    %v494 = vunpack.c.l.b16 %v422
    %v495 = vunpack.c.l.b16 %v423
    %v496 = vunpack.c.l.b16 %v424
    %v497 = vunpack.c.l.b16 %v425
    %v498 = vunpack.c.l.b16 %v426
    %v499 = vunpack.c.l.b16 %v427
    %v500 = vunpack.c.l.b16 %v428
    %v501 = vunpack.c.l.b16 %v429
    %v502 = vunpack.c.l.b16 %v430
    %v503 = vunpack.c.l.b16 %v431
    %v504 = vunpack.c.l.b16 %v432
    %v505 = vunpack.c.l.b16 %v433
    %v506 = vunpack.c.l.b16 %v434
    %v507 = vunpack.c.l.b16 %v435
    %v508 = vunpack.c.l.b16 %v436
    %v509 = vunpack.c.l.b16 %v437
    %v510 = vunpack.c.l.b16 %v438
    %v511 = vpack.c.b16 %v484, %v483
    %v512 = vpack.c.b16 %v486, %v485
    %v513 = vpack.c.b16 %v488, %v487
    %v514 = vpack.c.b16 %v490, %v489
    %v515 = vpack.c.b16 %v492, %v491
    %v516 = vpack.c.b16 %v494, %v493
    %v517 = vpack.c.b16 %v496, %v495
    %v518 = vpack.c.b16 %v498, %v497
    %v519 = vpack.c.b16 %v500, %v499
    %v520 = vpack.c.b16 %v502, %v501
    %v521 = vpack.c.b16 %v504, %v503
    %v522 = vpack.c.b16 %v506, %v505
    %v523 = vpack.c.b16 %v508, %v507
    %v524 = vpack.c.b16 %v510, %v509
    %v555 = vunpack.c.l.b16 %v439
    %v556 = vunpack.c.l.b16 %v440
    %v557 = vunpack.c.l.b16 %v441
    %v558 = vunpack.c.l.b16 %v442
    %v559 = vunpack.c.l.b16 %v443
    %v560 = vunpack.c.l.b16 %v444
    %v561 = vunpack.c.l.b16 %v445
    %v562 = vunpack.c.l.b16 %v446
    %v563 = vunpack.c.l.b16 %v447
    %v564 = vunpack.c.l.b16 %v448
    %v565 = vunpack.c.l.b16 %v449
    %v566 = vunpack.c.l.b16 %v450
    %v567 = vunpack.c.l.b16 %v451
    %v568 = vunpack.c.l.b16 %v452
    %v569 = vunpack.c.l.b16 %v453
    %v570 = vunpack.c.l.b16 %v454
    %v571 = vpack.c.b16 %v556, %v555
    %v572 = vpack.c.b16 %v558, %v557
    %v573 = vpack.c.b16 %v560, %v559
    %v574 = vpack.c.b16 %v562, %v561
    %v575 = vpack.c.b16 %v564, %v563
    %v576 = vpack.c.b16 %v566, %v565
    %v577 = vpack.c.b16 %v568, %v567
    %v578 = vpack.c.b16 %v570, %v569
    %587 = vmatprep.subr.bf16.mxu0 0
    %588 = vmatpush1.bf16.msra.mxu0 %v571
    %589 = vmatprep.subr.bf16.mxu0 0
    %590 = vmatpush1.bf16.msra.mxu0 %v572
    %591 = vmatprep.subr.bf16.mxu0 0
    %592 = vmatpush1.bf16.msra.mxu0 %v573
    %593 = vmatprep.subr.bf16.mxu0 0
    %594 = vmatpush1.bf16.msra.mxu0 %v574
    %595 = vmatprep.subr.bf16.mxu0 0
    %596 = vmatpush1.bf16.msra.mxu0 %v575
    %597 = vmatprep.subr.bf16.mxu0 0
    %598 = vmatpush1.bf16.msra.mxu0 %v576
    %599 = vmatprep.subr.bf16.mxu0 0
    %600 = vmatpush1.bf16.msra.mxu0 %v577
    %601 = vmatprep.subr.bf16.mxu0 0
    %602 = vmatpush1.bf16.msra.mxu0 %v578
    %603 = vmatprep.subr.bf16.mxu0 0
    %604 = vmatpush1.bf16.msra.mxu0 0
    %605 = vmatprep.subr.bf16.mxu0 0
    %606 = vmatpush1.bf16.msra.mxu0 0
    %607 = vmatprep.subr.bf16.mxu0 0
    %608 = vmatpush1.bf16.msra.mxu0 0
    %609 = vmatprep.subr.bf16.mxu0 0
    %610 = vmatpush1.bf16.msra.mxu0 0
    %611 = vmatprep.subr.bf16.mxu0 0
    %612 = vmatpush1.bf16.msra.mxu0 0
    %613 = vmatprep.subr.bf16.mxu0 0
    %614 = vmatpush1.bf16.msra.mxu0 0
    %615 = vmatprep.subr.bf16.mxu0 0
    %616 = vmatpush1.bf16.msra.mxu0 0
    %617 = vmatprep.subr.bf16.mxu0 0
    %618 = vmatpush1.bf16.msra.mxu0 0
    %619 = vmatprep.mubr.bf16.mxu0 0
    %620 = vmatmul.mubr.bf16.gmra.mrb[0].mxu0 %v511
    %v621 = vpop.f32.mrb[0].mxu0
    %v622 = vadd.f32 0.0, %v621
    %v623 = vpop.f32.mrb[0].mxu0
    %v624 = vpop.f32.mrb[0].mxu0
    %v625 = vadd.f32 0.0, %v624
    %v626 = vpop.f32.mrb[0].mxu0
    %627 = vmatprep.mubr.bf16.mxu0 0
    %628 = vmatmul.mubr.bf16.gmra.mrb[0].mxu0 %v512
    %v629 = vpop.f32.mrb[0].mxu0
    %v630 = vadd.f32 0.0, %v629
    %v631 = vpop.f32.mrb[0].mxu0
    %v632 = vpop.f32.mrb[0].mxu0
    %v633 = vadd.f32 0.0, %v632
    %v634 = vpop.f32.mrb[0].mxu0
    %635 = vmatprep.mubr.bf16.mxu0 0
    %636 = vmatmul.mubr.bf16.gmra.mrb[0].mxu0 %v513
    %v637 = vpop.f32.mrb[0].mxu0
    %v638 = vadd.f32 0.0, %v637
    %v639 = vpop.f32.mrb[0].mxu0
    %v640 = vpop.f32.mrb[0].mxu0
    %v641 = vadd.f32 0.0, %v640
    %v642 = vpop.f32.mrb[0].mxu0
    %643 = vmatprep.mubr.bf16.mxu0 0
    %644 = vmatmul.mubr.bf16.gmra.mrb[0].mxu0 %v514
    %v645 = vpop.f32.mrb[0].mxu0
    %v646 = vadd.f32 0.0, %v645
    %v647 = vpop.f32.mrb[0].mxu0
    %v648 = vpop.f32.mrb[0].mxu0
    %v649 = vadd.f32 0.0, %v648
    %v650 = vpop.f32.mrb[0].mxu0
    %651 = vmatprep.mubr.bf16.mxu0 0
    %652 = vmatmul.mubr.bf16.gmra.mrb[0].mxu0 %v515
    %v653 = vpop.f32.mrb[0].mxu0
    %v654 = vadd.f32 0.0, %v653
    %v655 = vpop.f32.mrb[0].mxu0
    %v656 = vpop.f32.mrb[0].mxu0
    %v657 = vadd.f32 0.0, %v656
    %v658 = vpop.f32.mrb[0].mxu0
    %659 = vmatprep.mubr.bf16.mxu0 0
    %660 = vmatmul.mubr.bf16.gmra.mrb[0].mxu0 %v516
    %v661 = vpop.f32.mrb[0].mxu0
    %v662 = vadd.f32 0.0, %v661
    %v663 = vpop.f32.mrb[0].mxu0
    %v664 = vpop.f32.mrb[0].mxu0
    %v665 = vadd.f32 0.0, %v664
    %v666 = vpop.f32.mrb[0].mxu0
    %667 = vmatprep.mubr.bf16.mxu0 0
    %668 = vmatmul.mubr.bf16.gmra.mrb[0].mxu0 %v517
    %v669 = vpop.f32.mrb[0].mxu0
    %v670 = vadd.f32 0.0, %v669
    %v671 = vpop.f32.mrb[0].mxu0
    %v672 = vpop.f32.mrb[0].mxu0
    %v673 = vadd.f32 0.0, %v672
    %v674 = vpop.f32.mrb[0].mxu0
    %675 = vmatprep.mubr.bf16.mxu0 0
    %676 = vmatmul.mubr.bf16.gmra.mrb[0].mxu0 %v518
    %v677 = vpop.f32.mrb[0].mxu0
    %v678 = vadd.f32 0.0, %v677
    %v679 = vpop.f32.mrb[0].mxu0
    %v680 = vpop.f32.mrb[0].mxu0
    %v681 = vadd.f32 0.0, %v680
    %v682 = vpop.f32.mrb[0].mxu0
    %683 = vmatprep.mubr.bf16.mxu0 0
    %684 = vmatmul.mubr.bf16.gmra.mrb[0].mxu0 %v519
    %v685 = vpop.f32.mrb[0].mxu0
    %v686 = vadd.f32 0.0, %v685
    %v687 = vpop.f32.mrb[0].mxu0
    %v688 = vpop.f32.mrb[0].mxu0
    %v689 = vadd.f32 0.0, %v688
    %v690 = vpop.f32.mrb[0].mxu0
    %691 = vmatprep.mubr.bf16.mxu0 0
    %692 = vmatmul.mubr.bf16.gmra.mrb[0].mxu0 %v520
    %v693 = vpop.f32.mrb[0].mxu0
    %v694 = vadd.f32 0.0, %v693
    %v695 = vpop.f32.mrb[0].mxu0
    %v696 = vpop.f32.mrb[0].mxu0
    %v697 = vadd.f32 0.0, %v696
    %v698 = vpop.f32.mrb[0].mxu0
    %699 = vmatprep.mubr.bf16.mxu0 0
    %700 = vmatmul.mubr.bf16.gmra.mrb[0].mxu0 %v521
    %v701 = vpop.f32.mrb[0].mxu0
    %v702 = vadd.f32 0.0, %v701
    %v703 = vpop.f32.mrb[0].mxu0
    %v704 = vpop.f32.mrb[0].mxu0
    %v705 = vadd.f32 0.0, %v704
    %v706 = vpop.f32.mrb[0].mxu0
    %707 = vmatprep.mubr.bf16.mxu0 0
    %708 = vmatmul.mubr.bf16.gmra.mrb[0].mxu0 %v522
    %v709 = vpop.f32.mrb[0].mxu0
    %v710 = vadd.f32 0.0, %v709
    %v711 = vpop.f32.mrb[0].mxu0
    %v712 = vpop.f32.mrb[0].mxu0
    %v713 = vadd.f32 0.0, %v712
    %v714 = vpop.f32.mrb[0].mxu0
    %715 = vmatprep.mubr.bf16.mxu0 0
    %716 = vmatmul.mubr.bf16.gmra.mrb[0].mxu0 %v523
    %v717 = vpop.f32.mrb[0].mxu0
    %v718 = vadd.f32 0.0, %v717
    %v719 = vpop.f32.mrb[0].mxu0
    %v720 = vpop.f32.mrb[0].mxu0
    %v721 = vadd.f32 0.0, %v720
    %v722 = vpop.f32.mrb[0].mxu0
    %723 = vmatprep.mubr.bf16.mxu0 0
    %724 = vmatmul.mubr.bf16.gmra.mrb[0].mxu0 %v524
    %v725 = vpop.f32.mrb[0].mxu0
    %v726 = vadd.f32 0.0, %v725
    %v727 = vpop.f32.mrb[0].mxu0
    %v728 = vpop.f32.mrb[0].mxu0
    %v729 = vadd.f32 0.0, %v728
    %v730 = vpop.f32.mrb[0].mxu0
    %731 = vdwg.mxu0
    %v732 = vmax.f32 %v622, %v649
    %v733 = vmax.f32 %v625, %v654
    %v734 = vmax.f32 %v630, %v657
    %v735 = vmax.f32 %v633, %v662
    %v736 = vmax.f32 %v638, %v665
    %v737 = vmax.f32 %v641, %v670
    %v738 = vmax.f32 %v646, %v673
    %v739 = vmax.f32 %v732, %v678
    %v740 = vmax.f32 %v733, %v681
    %v741 = vmax.f32 %v734, %v686
    %v742 = vmax.f32 %v735, %v689
    %v743 = vmax.f32 %v736, %v694
    %v744 = vmax.f32 %v737, %v697
    %v745 = vmax.f32 %v738, %v702
    %v746 = vmax.f32 %v739, %v705
    %v747 = vmax.f32 %v740, %v710
    %v748 = vmax.f32 %v741, %v713
    %v749 = vmax.f32 %v742, %v718
    %v750 = vmax.f32 %v743, %v721
    %v751 = vmax.f32 %v744, %v726
    %v752 = vmax.f32 %v745, %v729
    %v753 = vld [vmem:[#allocation4 + $0x1] sm:$0x1]
    %v755 = vlaneseq
    %v756 = vshrl.u32 %v755, 7
    %v757 = vsub.s32 0, %v756
    %v758 = vrot.slane %v753, %v757
    %v760 = vadd.f32 %v746, %v758
    %v761 = vadd.f32 %v747, %v758
    %v762 = vadd.f32 %v748, %v758
    %v763 = vadd.f32 %v749, %v758
    %v764 = vadd.f32 %v750, %v758
    %v765 = vadd.f32 %v751, %v758
    %v766 = vadd.f32 %v752, %v758
    %v767 = vmax.f32 %v760, 0.0
    %v768 = vmax.f32 %v761, 0.0
    %v769 = vmax.f32 %v762, 0.0
    %v770 = vmax.f32 %v763, 0.0
    %v771 = vmax.f32 %v764, 0.0
    %v772 = vmax.f32 %v765, 0.0
    %v773 = vmax.f32 %v766, 0.0
    %774 = vst [vmem:[%s3 + $0x8] sm:$0xff] %v767
    %775 = vst [vmem:[%s3 + $0x40] sm:$0xff] %v768
    %776 = vst [vmem:[%s3 + $0x78] sm:$0xff] %v769
    %777 = vst [vmem:[%s3 + $0xb0] sm:$0xff] %v770
    %778 = vst [vmem:[%s3 + $0xe8] sm:$0xff] %v771
    %779 = vst [vmem:[%s3 + $0x120] sm:$0xff] %v772
    %780 = vst [vmem:[%s3 + $0x158] sm:$0xff] %v773
    %v781 = vld [vmem:[%s0] sm:$0xf]
    %v782 = vld [vmem:[%s0 + $0x4] sm:$0xf]
    %v783 = vld [vmem:[%s0 + $0x8] sm:$0xf]
    %v784 = vld [vmem:[%s0 + $0xc] sm:$0xf]
    %v785 = vld [vmem:[%s0 + $0x10] sm:$0xf]
    %v786 = vld [vmem:[%s0 + $0x14] sm:$0xf]
    %v787 = vld [vmem:[%s0 + $0x18] sm:$0xf]
    %v788 = vld [vmem:[%s0 + $0x1c] sm:$0xf]
    %v789 = vld [vmem:[%s0 + $0x20] sm:$0xf]
    %v790 = vld [vmem:[%s0 + $0x24] sm:$0xf]
    %v791 = vld [vmem:[%s0 + $0x28] sm:$0xf]
    %v792 = vld [vmem:[%s0 + $0x2c] sm:$0xf]
    %v793 = vld [vmem:[%s0 + $0x30] sm:$0xf]
    %v794 = vld [vmem:[%s0 + $0x34] sm:$0xf]
    %v795 = vld [vmem:[%s0 + $0x38] sm:$0xf]
    %v796 = vld [vmem:[%s0 + $0x3c] sm:$0xf]
    %v797 = vld [vmem:[%s0 + $0x40] sm:$0xf]
    %v798 = vld [vmem:[%s0 + $0x44] sm:$0xf]
    %v799 = vld [vmem:[%s0 + $0x48] sm:$0xf]
    %v800 = vld [vmem:[%s0 + $0x4c] sm:$0xf]
    %v801 = vld [vmem:[%s0 + $0x50] sm:$0xf]
    %v802 = vld [vmem:[%s0 + $0x54] sm:$0xf]
    %v803 = vld [vmem:[%s0 + $0x58] sm:$0xf]
    %v804 = vld [vmem:[%s0 + $0x5c] sm:$0xf]
    %v805 = vld [vmem:[%s0 + $0x60] sm:$0xf]
    %v806 = vld [vmem:[%s0 + $0x64] sm:$0xf]
    %v807 = vld [vmem:[%s0 + $0x68] sm:$0xf]
    %v808 = vld [vmem:[%s0 + $0x6c] sm:$0xf]
    %v809 = vld [vmem:[#allocation2 + $0x8] sm:$0xf]
    %v810 = vld [vmem:[#allocation2 + $0x24] sm:$0xf]
    %v811 = vld [vmem:[#allocation2 + $0x40] sm:$0xf]
    %v812 = vld [vmem:[#allocation2 + $0x5c] sm:$0xf]
    %v813 = vld [vmem:[#allocation2 + $0x78] sm:$0xf]
    %v814 = vld [vmem:[#allocation2 + $0x94] sm:$0xf]
    %v815 = vld [vmem:[#allocation2 + $0xb0] sm:$0xf]
    %v816 = vld [vmem:[#allocation2 + $0xcc] sm:$0xf]
    %v817 = vld [vmem:[#allocation2 + $0xe8] sm:$0xf]
    %v818 = vld [vmem:[#allocation2 + $0x104] sm:$0xf]
    %v819 = vld [vmem:[#allocation2 + $0x120] sm:$0xf]
    %v820 = vld [vmem:[#allocation2 + $0x13c] sm:$0xf]
    %v821 = vld [vmem:[#allocation2 + $0x158] sm:$0xf]
    %v822 = vld [vmem:[#allocation2 + $0x174] sm:$0xf]
    %v823 = vld [vmem:[#allocation2 + $0x190] sm:$0xf]
    %v824 = vld [vmem:[#allocation2 + $0x1ac] sm:$0xf]
    %v853 = vunpack.c.l.b16 %v781
    %v854 = vunpack.c.l.b16 %v782
    %v855 = vunpack.c.l.b16 %v783
    %v856 = vunpack.c.l.b16 %v784
    %v857 = vunpack.c.l.b16 %v785
    %v858 = vunpack.c.l.b16 %v786
    %v859 = vunpack.c.l.b16 %v787
    %v860 = vunpack.c.l.b16 %v788
    %v861 = vunpack.c.l.b16 %v789
    %v862 = vunpack.c.l.b16 %v790
    %v863 = vunpack.c.l.b16 %v791
    %v864 = vunpack.c.l.b16 %v792
    %v865 = vunpack.c.l.b16 %v793
    %v866 = vunpack.c.l.b16 %v794
    %v867 = vunpack.c.l.b16 %v795
    %v868 = vunpack.c.l.b16 %v796
    %v869 = vunpack.c.l.b16 %v797
    %v870 = vunpack.c.l.b16 %v798
    %v871 = vunpack.c.l.b16 %v799
    %v872 = vunpack.c.l.b16 %v800
    %v873 = vunpack.c.l.b16 %v801
    %v874 = vunpack.c.l.b16 %v802
    %v875 = vunpack.c.l.b16 %v803
    %v876 = vunpack.c.l.b16 %v804
    %v877 = vunpack.c.l.b16 %v805
    %v878 = vunpack.c.l.b16 %v806
    %v879 = vunpack.c.l.b16 %v807
    %v880 = vunpack.c.l.b16 %v808
    %v881 = vpack.c.b16 %v854, %v853
    %v882 = vpack.c.b16 %v856, %v855
    %v883 = vpack.c.b16 %v858, %v857
    %v884 = vpack.c.b16 %v860, %v859
    %v885 = vpack.c.b16 %v862, %v861
    %v886 = vpack.c.b16 %v864, %v863
    %v887 = vpack.c.b16 %v866, %v865
    %v888 = vpack.c.b16 %v868, %v867
    %v889 = vpack.c.b16 %v870, %v869
    %v890 = vpack.c.b16 %v872, %v871
    %v891 = vpack.c.b16 %v874, %v873
    %v892 = vpack.c.b16 %v876, %v875
    %v893 = vpack.c.b16 %v878, %v877
    %v894 = vpack.c.b16 %v880, %v879
    %v925 = vunpack.c.l.b16 %v809
    %v926 = vunpack.c.l.b16 %v810
    %v927 = vunpack.c.l.b16 %v811
    %v928 = vunpack.c.l.b16 %v812
    %v929 = vunpack.c.l.b16 %v813
    %v930 = vunpack.c.l.b16 %v814
    %v931 = vunpack.c.l.b16 %v815
    %v932 = vunpack.c.l.b16 %v816
    %v933 = vunpack.c.l.b16 %v817
    %v934 = vunpack.c.l.b16 %v818
    %v935 = vunpack.c.l.b16 %v819
    %v936 = vunpack.c.l.b16 %v820
    %v937 = vunpack.c.l.b16 %v821
    %v938 = vunpack.c.l.b16 %v822
    %v939 = vunpack.c.l.b16 %v823
    %v940 = vunpack.c.l.b16 %v824
    %v941 = vpack.c.b16 %v926, %v925
    %v942 = vpack.c.b16 %v928, %v927
    %v943 = vpack.c.b16 %v930, %v929
    %v944 = vpack.c.b16 %v932, %v931
    %v945 = vpack.c.b16 %v934, %v933
    %v946 = vpack.c.b16 %v936, %v935
    %v947 = vpack.c.b16 %v938, %v937
    %v948 = vpack.c.b16 %v940, %v939
    %957 = vmatprep.subr.bf16.mxu0 0
    %958 = vmatpush1.bf16.msra.mxu0 %v941
    %959 = vmatprep.subr.bf16.mxu0 0
    %960 = vmatpush1.bf16.msra.mxu0 %v942
    %961 = vmatprep.subr.bf16.mxu0 0
    %962 = vmatpush1.bf16.msra.mxu0 %v943
    %963 = vmatprep.subr.bf16.mxu0 0
    %964 = vmatpush1.bf16.msra.mxu0 %v944
    %965 = vmatprep.subr.bf16.mxu0 0
    %966 = vmatpush1.bf16.msra.mxu0 %v945
    %967 = vmatprep.subr.bf16.mxu0 0
    %968 = vmatpush1.bf16.msra.mxu0 %v946
    %969 = vmatprep.subr.bf16.mxu0 0
    %970 = vmatpush1.bf16.msra.mxu0 %v947
    %971 = vmatprep.subr.bf16.mxu0 0
    %972 = vmatpush1.bf16.msra.mxu0 %v948
    %973 = vmatprep.subr.bf16.mxu0 0
    %974 = vmatpush1.bf16.msra.mxu0 0
    %975 = vmatprep.subr.bf16.mxu0 0
    %976 = vmatpush1.bf16.msra.mxu0 0
    %977 = vmatprep.subr.bf16.mxu0 0
    %978 = vmatpush1.bf16.msra.mxu0 0
    %979 = vmatprep.subr.bf16.mxu0 0
    %980 = vmatpush1.bf16.msra.mxu0 0
    %981 = vmatprep.subr.bf16.mxu0 0
    %982 = vmatpush1.bf16.msra.mxu0 0
    %983 = vmatprep.subr.bf16.mxu0 0
    %984 = vmatpush1.bf16.msra.mxu0 0
    %985 = vmatprep.subr.bf16.mxu0 0
    %986 = vmatpush1.bf16.msra.mxu0 0
    %987 = vmatprep.subr.bf16.mxu0 0
    %988 = vmatpush1.bf16.msra.mxu0 0
    %989 = vmatprep.mubr.bf16.mxu0 0
    %990 = vmatmul.mubr.bf16.gmra.mrb[0].mxu0 %v881
    %v991 = vpop.f32.mrb[0].mxu0
    %v992 = vadd.f32 0.0, %v991
    %v993 = vpop.f32.mrb[0].mxu0
    %v994 = vpop.f32.mrb[0].mxu0
    %v995 = vadd.f32 0.0, %v994
    %v996 = vpop.f32.mrb[0].mxu0
    %997 = vmatprep.mubr.bf16.mxu0 0
    %998 = vmatmul.mubr.bf16.gmra.mrb[0].mxu0 %v882
    %v999 = vpop.f32.mrb[0].mxu0
    %v1000 = vadd.f32 0.0, %v999
    %v1001 = vpop.f32.mrb[0].mxu0
    %v1002 = vpop.f32.mrb[0].mxu0
    %v1003 = vadd.f32 0.0, %v1002
    %v1004 = vpop.f32.mrb[0].mxu0
    %1005 = vmatprep.mubr.bf16.mxu0 0
    %1006 = vmatmul.mubr.bf16.gmra.mrb[0].mxu0 %v883
    %v1007 = vpop.f32.mrb[0].mxu0
    %v1008 = vadd.f32 0.0, %v1007
    %v1009 = vpop.f32.mrb[0].mxu0
    %v1010 = vpop.f32.mrb[0].mxu0
    %v1011 = vadd.f32 0.0, %v1010
    %v1012 = vpop.f32.mrb[0].mxu0
    %1013 = vmatprep.mubr.bf16.mxu0 0
    %1014 = vmatmul.mubr.bf16.gmra.mrb[0].mxu0 %v884
    %v1015 = vpop.f32.mrb[0].mxu0
    %v1016 = vadd.f32 0.0, %v1015
    %v1017 = vpop.f32.mrb[0].mxu0
    %v1018 = vpop.f32.mrb[0].mxu0
    %v1019 = vadd.f32 0.0, %v1018
    %v1020 = vpop.f32.mrb[0].mxu0
    %1021 = vmatprep.mubr.bf16.mxu0 0
    %1022 = vmatmul.mubr.bf16.gmra.mrb[0].mxu0 %v885
    %v1023 = vpop.f32.mrb[0].mxu0
    %v1024 = vadd.f32 0.0, %v1023
    %v1025 = vpop.f32.mrb[0].mxu0
    %v1026 = vpop.f32.mrb[0].mxu0
    %v1027 = vadd.f32 0.0, %v1026
    %v1028 = vpop.f32.mrb[0].mxu0
    %1029 = vmatprep.mubr.bf16.mxu0 0
    %1030 = vmatmul.mubr.bf16.gmra.mrb[0].mxu0 %v886
    %v1031 = vpop.f32.mrb[0].mxu0
    %v1032 = vadd.f32 0.0, %v1031
    %v1033 = vpop.f32.mrb[0].mxu0
    %v1034 = vpop.f32.mrb[0].mxu0
    %v1035 = vadd.f32 0.0, %v1034
    %v1036 = vpop.f32.mrb[0].mxu0
    %1037 = vmatprep.mubr.bf16.mxu0 0
    %1038 = vmatmul.mubr.bf16.gmra.mrb[0].mxu0 %v887
    %v1039 = vpop.f32.mrb[0].mxu0
    %v1040 = vadd.f32 0.0, %v1039
    %v1041 = vpop.f32.mrb[0].mxu0
    %v1042 = vpop.f32.mrb[0].mxu0
    %v1043 = vadd.f32 0.0, %v1042
    %v1044 = vpop.f32.mrb[0].mxu0
    %1045 = vmatprep.mubr.bf16.mxu0 0
    %1046 = vmatmul.mubr.bf16.gmra.mrb[0].mxu0 %v888
    %v1047 = vpop.f32.mrb[0].mxu0
    %v1048 = vadd.f32 0.0, %v1047
    %v1049 = vpop.f32.mrb[0].mxu0
    %v1050 = vpop.f32.mrb[0].mxu0
    %v1051 = vadd.f32 0.0, %v1050
    %v1052 = vpop.f32.mrb[0].mxu0
    %1053 = vmatprep.mubr.bf16.mxu0 0
    %1054 = vmatmul.mubr.bf16.gmra.mrb[0].mxu0 %v889
    %v1055 = vpop.f32.mrb[0].mxu0
    %v1056 = vadd.f32 0.0, %v1055
    %v1057 = vpop.f32.mrb[0].mxu0
    %v1058 = vpop.f32.mrb[0].mxu0
    %v1059 = vadd.f32 0.0, %v1058
    %v1060 = vpop.f32.mrb[0].mxu0
    %1061 = vmatprep.mubr.bf16.mxu0 0
    %1062 = vmatmul.mubr.bf16.gmra.mrb[0].mxu0 %v890
    %v1063 = vpop.f32.mrb[0].mxu0
    %v1064 = vadd.f32 0.0, %v1063
    %v1065 = vpop.f32.mrb[0].mxu0
    %v1066 = vpop.f32.mrb[0].mxu0
    %v1067 = vadd.f32 0.0, %v1066
    %v1068 = vpop.f32.mrb[0].mxu0
    %1069 = vmatprep.mubr.bf16.mxu0 0
    %1070 = vmatmul.mubr.bf16.gmra.mrb[0].mxu0 %v891
    %v1071 = vpop.f32.mrb[0].mxu0
    %v1072 = vadd.f32 0.0, %v1071
    %v1073 = vpop.f32.mrb[0].mxu0
    %v1074 = vpop.f32.mrb[0].mxu0
    %v1075 = vadd.f32 0.0, %v1074
    %v1076 = vpop.f32.mrb[0].mxu0
    %1077 = vmatprep.mubr.bf16.mxu0 0
    %1078 = vmatmul.mubr.bf16.gmra.mrb[0].mxu0 %v892
    %v1079 = vpop.f32.mrb[0].mxu0
    %v1080 = vadd.f32 0.0, %v1079
    %v1081 = vpop.f32.mrb[0].mxu0
    %v1082 = vpop.f32.mrb[0].mxu0
    %v1083 = vadd.f32 0.0, %v1082
    %v1084 = vpop.f32.mrb[0].mxu0
    %1085 = vmatprep.mubr.bf16.mxu0 0
    %1086 = vmatmul.mubr.bf16.gmra.mrb[0].mxu0 %v893
    %v1087 = vpop.f32.mrb[0].mxu0
    %v1088 = vadd.f32 0.0, %v1087
    %v1089 = vpop.f32.mrb[0].mxu0
    %v1090 = vpop.f32.mrb[0].mxu0
    %v1091 = vadd.f32 0.0, %v1090
    %v1092 = vpop.f32.mrb[0].mxu0
    %1093 = vmatprep.mubr.bf16.mxu0 0
    %1094 = vmatmul.mubr.bf16.gmra.mrb[0].mxu0 %v894
    %v1095 = vpop.f32.mrb[0].mxu0
    %v1096 = vadd.f32 0.0, %v1095
    %v1097 = vpop.f32.mrb[0].mxu0
    %v1098 = vpop.f32.mrb[0].mxu0
    %v1099 = vadd.f32 0.0, %v1098
    %v1100 = vpop.f32.mrb[0].mxu0
    %1101 = vdwg.mxu0
    %v1102 = vmax.f32 %v992, %v1019
    %v1103 = vmax.f32 %v995, %v1024
    %v1104 = vmax.f32 %v1000, %v1027
    %v1105 = vmax.f32 %v1003, %v1032
    %v1106 = vmax.f32 %v1008, %v1035
    %v1107 = vmax.f32 %v1011, %v1040
    %v1108 = vmax.f32 %v1016, %v1043
    %v1109 = vmax.f32 %v1102, %v1048
    %v1110 = vmax.f32 %v1103, %v1051
    %v1111 = vmax.f32 %v1104, %v1056
    %v1112 = vmax.f32 %v1105, %v1059
    %v1113 = vmax.f32 %v1106, %v1064
    %v1114 = vmax.f32 %v1107, %v1067
    %v1115 = vmax.f32 %v1108, %v1072
    %v1116 = vmax.f32 %v1109, %v1075
    %v1117 = vmax.f32 %v1110, %v1080
    %v1118 = vmax.f32 %v1111, %v1083
    %v1119 = vmax.f32 %v1112, %v1088
    %v1120 = vmax.f32 %v1113, %v1091
    %v1121 = vmax.f32 %v1114, %v1096
    %v1122 = vmax.f32 %v1115, %v1099
    %v1123 = vld [vmem:[#allocation4 + $0x2] sm:$0x1]
    %v1125 = vlaneseq
    %v1126 = vshrl.u32 %v1125, 7
    %v1127 = vsub.s32 0, %v1126
    %v1128 = vrot.slane %v1123, %v1127
    %v1130 = vadd.f32 %v1116, %v1128
    %v1131 = vadd.f32 %v1117, %v1128
    %v1132 = vadd.f32 %v1118, %v1128
    %v1133 = vadd.f32 %v1119, %v1128
    %v1134 = vadd.f32 %v1120, %v1128
    %v1135 = vadd.f32 %v1121, %v1128
    %v1136 = vadd.f32 %v1122, %v1128
    %v1137 = vmax.f32 %v1130, 0.0
    %v1138 = vmax.f32 %v1131, 0.0
    %v1139 = vmax.f32 %v1132, 0.0
    %v1140 = vmax.f32 %v1133, 0.0
    %v1141 = vmax.f32 %v1134, 0.0
    %v1142 = vmax.f32 %v1135, 0.0
    %v1143 = vmax.f32 %v1136, 0.0
    %1144 = vst [vmem:[%s3 + $0x10] sm:$0xff] %v1137
    %1145 = vst [vmem:[%s3 + $0x48] sm:$0xff] %v1138
    %1146 = vst [vmem:[%s3 + $0x80] sm:$0xff] %v1139
    %1147 = vst [vmem:[%s3 + $0xb8] sm:$0xff] %v1140
    %1148 = vst [vmem:[%s3 + $0xf0] sm:$0xff] %v1141
    %1149 = vst [vmem:[%s3 + $0x128] sm:$0xff] %v1142
    %1150 = vst [vmem:[%s3 + $0x160] sm:$0xff] %v1143
    %v1151 = vld [vmem:[%s0] sm:$0xf]
    %v1152 = vld [vmem:[%s0 + $0x4] sm:$0xf]
    %v1153 = vld [vmem:[%s0 + $0x8] sm:$0xf]
    %v1154 = vld [vmem:[%s0 + $0xc] sm:$0xf]
    %v1155 = vld [vmem:[%s0 + $0x10] sm:$0xf]
    %v1156 = vld [vmem:[%s0 + $0x14] sm:$0xf]
    %v1157 = vld [vmem:[%s0 + $0x18] sm:$0xf]
    %v1158 = vld [vmem:[%s0 + $0x1c] sm:$0xf]
    %v1159 = vld [vmem:[%s0 + $0x20] sm:$0xf]
    %v1160 = vld [vmem:[%s0 + $0x24] sm:$0xf]
    %v1161 = vld [vmem:[%s0 + $0x28] sm:$0xf]
    %v1162 = vld [vmem:[%s0 + $0x2c] sm:$0xf]
    %v1163 = vld [vmem:[%s0 + $0x30] sm:$0xf]
    %v1164 = vld [vmem:[%s0 + $0x34] sm:$0xf]
    %v1165 = vld [vmem:[%s0 + $0x38] sm:$0xf]
    %v1166 = vld [vmem:[%s0 + $0x3c] sm:$0xf]
    %v1167 = vld [vmem:[%s0 + $0x40] sm:$0xf]
    %v1168 = vld [vmem:[%s0 + $0x44] sm:$0xf]
    %v1169 = vld [vmem:[%s0 + $0x48] sm:$0xf]
    %v1170 = vld [vmem:[%s0 + $0x4c] sm:$0xf]
    %v1171 = vld [vmem:[%s0 + $0x50] sm:$0xf]
    %v1172 = vld [vmem:[%s0 + $0x54] sm:$0xf]
    %v1173 = vld [vmem:[%s0 + $0x58] sm:$0xf]
    %v1174 = vld [vmem:[%s0 + $0x5c] sm:$0xf]
    %v1175 = vld [vmem:[%s0 + $0x60] sm:$0xf]
    %v1176 = vld [vmem:[%s0 + $0x64] sm:$0xf]
    %v1177 = vld [vmem:[%s0 + $0x68] sm:$0xf]
    %v1178 = vld [vmem:[%s0 + $0x6c] sm:$0xf]
    %v1179 = vld [vmem:[#allocation2 + $0xc] sm:$0xf]
    %v1180 = vld [vmem:[#allocation2 + $0x28] sm:$0xf]
    %v1181 = vld [vmem:[#allocation2 + $0x44] sm:$0xf]
    %v1182 = vld [vmem:[#allocation2 + $0x60] sm:$0xf]
    %v1183 = vld [vmem:[#allocation2 + $0x7c] sm:$0xf]
    %v1184 = vld [vmem:[#allocation2 + $0x98] sm:$0xf]
    %v1185 = vld [vmem:[#allocation2 + $0xb4] sm:$0xf]
    %v1186 = vld [vmem:[#allocation2 + $0xd0] sm:$0xf]
    %v1187 = vld [vmem:[#allocation2 + $0xec] sm:$0xf]
    %v1188 = vld [vmem:[#allocation2 + $0x108] sm:$0xf]
    %v1189 = vld [vmem:[#allocation2 + $0x124] sm:$0xf]
    %v1190 = vld [vmem:[#allocation2 + $0x140] sm:$0xf]
    %v1191 = vld [vmem:[#allocation2 + $0x15c] sm:$0xf]
    %v1192 = vld [vmem:[#allocation2 + $0x178] sm:$0xf]
    %v1193 = vld [vmem:[#allocation2 + $0x194] sm:$0xf]
    %v1194 = vld [vmem:[#allocation2 + $0x1b0] sm:$0xf]
    %v1223 = vunpack.c.l.b16 %v1151
    %v1224 = vunpack.c.l.b16 %v1152
    %v1225 = vunpack.c.l.b16 %v1153
    %v1226 = vunpack.c.l.b16 %v1154
    %v1227 = vunpack.c.l.b16 %v1155
    %v1228 = vunpack.c.l.b16 %v1156
    %v1229 = vunpack.c.l.b16 %v1157
    %v1230 = vunpack.c.l.b16 %v1158
    %v1231 = vunpack.c.l.b16 %v1159
    %v1232 = vunpack.c.l.b16 %v1160
    %v1233 = vunpack.c.l.b16 %v1161
    %v1234 = vunpack.c.l.b16 %v1162
    %v1235 = vunpack.c.l.b16 %v1163
    %v1236 = vunpack.c.l.b16 %v1164
    %v1237 = vunpack.c.l.b16 %v1165
    %v1238 = vunpack.c.l.b16 %v1166
    %v1239 = vunpack.c.l.b16 %v1167
    %v1240 = vunpack.c.l.b16 %v1168
    %v1241 = vunpack.c.l.b16 %v1169
    %v1242 = vunpack.c.l.b16 %v1170
    %v1243 = vunpack.c.l.b16 %v1171
    %v1244 = vunpack.c.l.b16 %v1172
    %v1245 = vunpack.c.l.b16 %v1173
    %v1246 = vunpack.c.l.b16 %v1174
    %v1247 = vunpack.c.l.b16 %v1175
    %v1248 = vunpack.c.l.b16 %v1176
    %v1249 = vunpack.c.l.b16 %v1177
    %v1250 = vunpack.c.l.b16 %v1178
    %v1251 = vpack.c.b16 %v1224, %v1223
    %v1252 = vpack.c.b16 %v1226, %v1225
    %v1253 = vpack.c.b16 %v1228, %v1227
    %v1254 = vpack.c.b16 %v1230, %v1229
    %v1255 = vpack.c.b16 %v1232, %v1231
    %v1256 = vpack.c.b16 %v1234, %v1233
    %v1257 = vpack.c.b16 %v1236, %v1235
    %v1258 = vpack.c.b16 %v1238, %v1237
    %v1259 = vpack.c.b16 %v1240, %v1239
    %v1260 = vpack.c.b16 %v1242, %v1241
    %v1261 = vpack.c.b16 %v1244, %v1243
    %v1262 = vpack.c.b16 %v1246, %v1245
    %v1263 = vpack.c.b16 %v1248, %v1247
    %v1264 = vpack.c.b16 %v1250, %v1249
    %v1295 = vunpack.c.l.b16 %v1179
    %v1296 = vunpack.c.l.b16 %v1180
    %v1297 = vunpack.c.l.b16 %v1181
    %v1298 = vunpack.c.l.b16 %v1182
    %v1299 = vunpack.c.l.b16 %v1183
    %v1300 = vunpack.c.l.b16 %v1184
    %v1301 = vunpack.c.l.b16 %v1185
    %v1302 = vunpack.c.l.b16 %v1186
    %v1303 = vunpack.c.l.b16 %v1187
    %v1304 = vunpack.c.l.b16 %v1188
    %v1305 = vunpack.c.l.b16 %v1189
    %v1306 = vunpack.c.l.b16 %v1190
    %v1307 = vunpack.c.l.b16 %v1191
    %v1308 = vunpack.c.l.b16 %v1192
    %v1309 = vunpack.c.l.b16 %v1193
    %v1310 = vunpack.c.l.b16 %v1194
    %v1311 = vpack.c.b16 %v1296, %v1295
    %v1312 = vpack.c.b16 %v1298, %v1297
    %v1313 = vpack.c.b16 %v1300, %v1299
    %v1314 = vpack.c.b16 %v1302, %v1301
    %v1315 = vpack.c.b16 %v1304, %v1303
    %v1316 = vpack.c.b16 %v1306, %v1305
    %v1317 = vpack.c.b16 %v1308, %v1307
    %v1318 = vpack.c.b16 %v1310, %v1309
    %1327 = vmatprep.subr.bf16.mxu0 0
    %1328 = vmatpush1.bf16.msra.mxu0 %v1311
    %1329 = vmatprep.subr.bf16.mxu0 0
    %1330 = vmatpush1.bf16.msra.mxu0 %v1312
    %1331 = vmatprep.subr.bf16.mxu0 0
    %1332 = vmatpush1.bf16.msra.mxu0 %v1313
    %1333 = vmatprep.subr.bf16.mxu0 0
    %1334 = vmatpush1.bf16.msra.mxu0 %v1314
    %1335 = vmatprep.subr.bf16.mxu0 0
    %1336 = vmatpush1.bf16.msra.mxu0 %v1315
    %1337 = vmatprep.subr.bf16.mxu0 0
    %1338 = vmatpush1.bf16.msra.mxu0 %v1316
    %1339 = vmatprep.subr.bf16.mxu0 0
    %1340 = vmatpush1.bf16.msra.mxu0 %v1317
    %1341 = vmatprep.subr.bf16.mxu0 0
    %1342 = vmatpush1.bf16.msra.mxu0 %v1318
    %1343 = vmatprep.subr.bf16.mxu0 0
    %1344 = vmatpush1.bf16.msra.mxu0 0
    %1345 = vmatprep.subr.bf16.mxu0 0
    %1346 = vmatpush1.bf16.msra.mxu0 0
    %1347 = vmatprep.subr.bf16.mxu0 0
    %1348 = vmatpush1.bf16.msra.mxu0 0
    %1349 = vmatprep.subr.bf16.mxu0 0
    %1350 = vmatpush1.bf16.msra.mxu0 0
    %1351 = vmatprep.subr.bf16.mxu0 0
    %1352 = vmatpush1.bf16.msra.mxu0 0
    %1353 = vmatprep.subr.bf16.mxu0 0
    %1354 = vmatpush1.bf16.msra.mxu0 0
    %1355 = vmatprep.subr.bf16.mxu0 0
    %1356 = vmatpush1.bf16.msra.mxu0 0
    %1357 = vmatprep.subr.bf16.mxu0 0
    %1358 = vmatpush1.bf16.msra.mxu0 0
    %1359 = vmatprep.mubr.bf16.mxu0 0
    %1360 = vmatmul.mubr.bf16.gmra.mrb[0].mxu0 %v1251
    %v1361 = vpop.f32.mrb[0].mxu0
    %v1362 = vadd.f32 0.0, %v1361
    %v1363 = vpop.f32.mrb[0].mxu0
    %v1364 = vpop.f32.mrb[0].mxu0
    %v1365 = vadd.f32 0.0, %v1364
    %v1366 = vpop.f32.mrb[0].mxu0
    %1367 = vmatprep.mubr.bf16.mxu0 0
    %1368 = vmatmul.mubr.bf16.gmra.mrb[0].mxu0 %v1252
    %v1369 = vpop.f32.mrb[0].mxu0
    %v1370 = vadd.f32 0.0, %v1369
    %v1371 = vpop.f32.mrb[0].mxu0
    %v1372 = vpop.f32.mrb[0].mxu0
    %v1373 = vadd.f32 0.0, %v1372
    %v1374 = vpop.f32.mrb[0].mxu0
    %1375 = vmatprep.mubr.bf16.mxu0 0
    %1376 = vmatmul.mubr.bf16.gmra.mrb[0].mxu0 %v1253
    %v1377 = vpop.f32.mrb[0].mxu0
    %v1378 = vadd.f32 0.0, %v1377
    %v1379 = vpop.f32.mrb[0].mxu0
    %v1380 = vpop.f32.mrb[0].mxu0
    %v1381 = vadd.f32 0.0, %v1380
    %v1382 = vpop.f32.mrb[0].mxu0
    %1383 = vmatprep.mubr.bf16.mxu0 0
    %1384 = vmatmul.mubr.bf16.gmra.mrb[0].mxu0 %v1254
    %v1385 = vpop.f32.mrb[0].mxu0
    %v1386 = vadd.f32 0.0, %v1385
    %v1387 = vpop.f32.mrb[0].mxu0
    %v1388 = vpop.f32.mrb[0].mxu0
    %v1389 = vadd.f32 0.0, %v1388
    %v1390 = vpop.f32.mrb[0].mxu0
    %1391 = vmatprep.mubr.bf16.mxu0 0
    %1392 = vmatmul.mubr.bf16.gmra.mrb[0].mxu0 %v1255
    %v1393 = vpop.f32.mrb[0].mxu0
    %v1394 = vadd.f32 0.0, %v1393
    %v1395 = vpop.f32.mrb[0].mxu0
    %v1396 = vpop.f32.mrb[0].mxu0
    %v1397 = vadd.f32 0.0, %v1396
    %v1398 = vpop.f32.mrb[0].mxu0
    %1399 = vmatprep.mubr.bf16.mxu0 0
    %1400 = vmatmul.mubr.bf16.gmra.mrb[0].mxu0 %v1256
    %v1401 = vpop.f32.mrb[0].mxu0
    %v1402 = vadd.f32 0.0, %v1401
    %v1403 = vpop.f32.mrb[0].mxu0
    %v1404 = vpop.f32.mrb[0].mxu0
    %v1405 = vadd.f32 0.0, %v1404
    %v1406 = vpop.f32.mrb[0].mxu0
    %1407 = vmatprep.mubr.bf16.mxu0 0
    %1408 = vmatmul.mubr.bf16.gmra.mrb[0].mxu0 %v1257
    %v1409 = vpop.f32.mrb[0].mxu0
    %v1410 = vadd.f32 0.0, %v1409
    %v1411 = vpop.f32.mrb[0].mxu0
    %v1412 = vpop.f32.mrb[0].mxu0
    %v1413 = vadd.f32 0.0, %v1412
    %v1414 = vpop.f32.mrb[0].mxu0
    %1415 = vmatprep.mubr.bf16.mxu0 0
    %1416 = vmatmul.mubr.bf16.gmra.mrb[0].mxu0 %v1258
    %v1417 = vpop.f32.mrb[0].mxu0
    %v1418 = vadd.f32 0.0, %v1417
    %v1419 = vpop.f32.mrb[0].mxu0
    %v1420 = vpop.f32.mrb[0].mxu0
    %v1421 = vadd.f32 0.0, %v1420
    %v1422 = vpop.f32.mrb[0].mxu0
    %1423 = vmatprep.mubr.bf16.mxu0 0
    %1424 = vmatmul.mubr.bf16.gmra.mrb[0].mxu0 %v1259
    %v1425 = vpop.f32.mrb[0].mxu0
    %v1426 = vadd.f32 0.0, %v1425
    %v1427 = vpop.f32.mrb[0].mxu0
    %v1428 = vpop.f32.mrb[0].mxu0
    %v1429 = vadd.f32 0.0, %v1428
    %v1430 = vpop.f32.mrb[0].mxu0
    %1431 = vmatprep.mubr.bf16.mxu0 0
    %1432 = vmatmul.mubr.bf16.gmra.mrb[0].mxu0 %v1260
    %v1433 = vpop.f32.mrb[0].mxu0
    %v1434 = vadd.f32 0.0, %v1433
    %v1435 = vpop.f32.mrb[0].mxu0
    %v1436 = vpop.f32.mrb[0].mxu0
    %v1437 = vadd.f32 0.0, %v1436
    %v1438 = vpop.f32.mrb[0].mxu0
    %1439 = vmatprep.mubr.bf16.mxu0 0
    %1440 = vmatmul.mubr.bf16.gmra.mrb[0].mxu0 %v1261
    %v1441 = vpop.f32.mrb[0].mxu0
    %v1442 = vadd.f32 0.0, %v1441
    %v1443 = vpop.f32.mrb[0].mxu0
    %v1444 = vpop.f32.mrb[0].mxu0
    %v1445 = vadd.f32 0.0, %v1444
    %v1446 = vpop.f32.mrb[0].mxu0
    %1447 = vmatprep.mubr.bf16.mxu0 0
    %1448 = vmatmul.mubr.bf16.gmra.mrb[0].mxu0 %v1262
    %v1449 = vpop.f32.mrb[0].mxu0
    %v1450 = vadd.f32 0.0, %v1449
    %v1451 = vpop.f32.mrb[0].mxu0
    %v1452 = vpop.f32.mrb[0].mxu0
    %v1453 = vadd.f32 0.0, %v1452
    %v1454 = vpop.f32.mrb[0].mxu0
    %1455 = vmatprep.mubr.bf16.mxu0 0
    %1456 = vmatmul.mubr.bf16.gmra.mrb[0].mxu0 %v1263
    %v1457 = vpop.f32.mrb[0].mxu0
    %v1458 = vadd.f32 0.0, %v1457
    %v1459 = vpop.f32.mrb[0].mxu0
    %v1460 = vpop.f32.mrb[0].mxu0
    %v1461 = vadd.f32 0.0, %v1460
    %v1462 = vpop.f32.mrb[0].mxu0
    %1463 = vmatprep.mubr.bf16.mxu0 0
    %1464 = vmatmul.mubr.bf16.gmra.mrb[0].mxu0 %v1264
    %v1465 = vpop.f32.mrb[0].mxu0
    %v1466 = vadd.f32 0.0, %v1465
    %v1467 = vpop.f32.mrb[0].mxu0
    %v1468 = vpop.f32.mrb[0].mxu0
    %v1469 = vadd.f32 0.0, %v1468
    %v1470 = vpop.f32.mrb[0].mxu0
    %1471 = vdwg.mxu0
    %v1472 = vmax.f32 %v1362, %v1389
    %v1473 = vmax.f32 %v1365, %v1394
    %v1474 = vmax.f32 %v1370, %v1397
    %v1475 = vmax.f32 %v1373, %v1402
    %v1476 = vmax.f32 %v1378, %v1405
    %v1477 = vmax.f32 %v1381, %v1410
    %v1478 = vmax.f32 %v1386, %v1413
    %v1479 = vmax.f32 %v1472, %v1418
    %v1480 = vmax.f32 %v1473, %v1421
    %v1481 = vmax.f32 %v1474, %v1426
    %v1482 = vmax.f32 %v1475, %v1429
    %v1483 = vmax.f32 %v1476, %v1434
    %v1484 = vmax.f32 %v1477, %v1437
    %v1485 = vmax.f32 %v1478, %v1442
    %v1486 = vmax.f32 %v1479, %v1445
    %v1487 = vmax.f32 %v1480, %v1450
    %v1488 = vmax.f32 %v1481, %v1453
    %v1489 = vmax.f32 %v1482, %v1458
    %v1490 = vmax.f32 %v1483, %v1461
    %v1491 = vmax.f32 %v1484, %v1466
    %v1492 = vmax.f32 %v1485, %v1469
    %v1493 = vld [vmem:[#allocation4 + $0x3] sm:$0x1]
    %v1495 = vlaneseq
    %v1496 = vshrl.u32 %v1495, 7
    %v1497 = vsub.s32 0, %v1496
    %v1498 = vrot.slane %v1493, %v1497
    %v1500 = vadd.f32 %v1486, %v1498
    %v1501 = vadd.f32 %v1487, %v1498
    %v1502 = vadd.f32 %v1488, %v1498
    %v1503 = vadd.f32 %v1489, %v1498
    %v1504 = vadd.f32 %v1490, %v1498
    %v1505 = vadd.f32 %v1491, %v1498
    %v1506 = vadd.f32 %v1492, %v1498
    %v1507 = vmax.f32 %v1500, 0.0
    %v1508 = vmax.f32 %v1501, 0.0
    %v1509 = vmax.f32 %v1502, 0.0
    %v1510 = vmax.f32 %v1503, 0.0
    %v1511 = vmax.f32 %v1504, 0.0
    %v1512 = vmax.f32 %v1505, 0.0
    %v1513 = vmax.f32 %v1506, 0.0
    %1514 = vst [vmem:[%s3 + $0x18] sm:$0xff] %v1507
    %1515 = vst [vmem:[%s3 + $0x50] sm:$0xff] %v1508
    %1516 = vst [vmem:[%s3 + $0x88] sm:$0xff] %v1509
    %1517 = vst [vmem:[%s3 + $0xc0] sm:$0xff] %v1510
    %1518 = vst [vmem:[%s3 + $0xf8] sm:$0xff] %v1511
    %1519 = vst [vmem:[%s3 + $0x130] sm:$0xff] %v1512
    %1520 = vst [vmem:[%s3 + $0x168] sm:$0xff] %v1513
    %v1521 = vld [vmem:[%s0] sm:$0xf]
    %v1522 = vld [vmem:[%s0 + $0x4] sm:$0xf]
    %v1523 = vld [vmem:[%s0 + $0x8] sm:$0xf]
    %v1524 = vld [vmem:[%s0 + $0xc] sm:$0xf]
    %v1525 = vld [vmem:[%s0 + $0x10] sm:$0xf]
    %v1526 = vld [vmem:[%s0 + $0x14] sm:$0xf]
    %v1527 = vld [vmem:[%s0 + $0x18] sm:$0xf]
    %v1528 = vld [vmem:[%s0 + $0x1c] sm:$0xf]
    %v1529 = vld [vmem:[%s0 + $0x20] sm:$0xf]
    %v1530 = vld [vmem:[%s0 + $0x24] sm:$0xf]
    %v1531 = vld [vmem:[%s0 + $0x28] sm:$0xf]
    %v1532 = vld [vmem:[%s0 + $0x2c] sm:$0xf]
    %v1533 = vld [vmem:[%s0 + $0x30] sm:$0xf]
    %v1534 = vld [vmem:[%s0 + $0x34] sm:$0xf]
    %v1535 = vld [vmem:[%s0 + $0x38] sm:$0xf]
    %v1536 = vld [vmem:[%s0 + $0x3c] sm:$0xf]
    %v1537 = vld [vmem:[%s0 + $0x40] sm:$0xf]
    %v1538 = vld [vmem:[%s0 + $0x44] sm:$0xf]
    %v1539 = vld [vmem:[%s0 + $0x48] sm:$0xf]
    %v1540 = vld [vmem:[%s0 + $0x4c] sm:$0xf]
    %v1541 = vld [vmem:[%s0 + $0x50] sm:$0xf]
    %v1542 = vld [vmem:[%s0 + $0x54] sm:$0xf]
    %v1543 = vld [vmem:[%s0 + $0x58] sm:$0xf]
    %v1544 = vld [vmem:[%s0 + $0x5c] sm:$0xf]
    %v1545 = vld [vmem:[%s0 + $0x60] sm:$0xf]
    %v1546 = vld [vmem:[%s0 + $0x64] sm:$0xf]
    %v1547 = vld [vmem:[%s0 + $0x68] sm:$0xf]
    %v1548 = vld [vmem:[%s0 + $0x6c] sm:$0xf]
    %v1549 = vld [vmem:[#allocation2 + $0x10] sm:$0xf]
    %v1550 = vld [vmem:[#allocation2 + $0x2c] sm:$0xf]
    %v1551 = vld [vmem:[#allocation2 + $0x48] sm:$0xf]
    %v1552 = vld [vmem:[#allocation2 + $0x64] sm:$0xf]
    %v1553 = vld [vmem:[#allocation2 + $0x80] sm:$0xf]
    %v1554 = vld [vmem:[#allocation2 + $0x9c] sm:$0xf]
    %v1555 = vld [vmem:[#allocation2 + $0xb8] sm:$0xf]
    %v1556 = vld [vmem:[#allocation2 + $0xd4] sm:$0xf]
    %v1557 = vld [vmem:[#allocation2 + $0xf0] sm:$0xf]
    %v1558 = vld [vmem:[#allocation2 + $0x10c] sm:$0xf]
    %v1559 = vld [vmem:[#allocation2 + $0x128] sm:$0xf]
    %v1560 = vld [vmem:[#allocation2 + $0x144] sm:$0xf]
    %v1561 = vld [vmem:[#allocation2 + $0x160] sm:$0xf]
    %v1562 = vld [vmem:[#allocation2 + $0x17c] sm:$0xf]
    %v1563 = vld [vmem:[#allocation2 + $0x198] sm:$0xf]
    %v1564 = vld [vmem:[#allocation2 + $0x1b4] sm:$0xf]
    %v1593 = vunpack.c.l.b16 %v1521
    %v1594 = vunpack.c.l.b16 %v1522
    %v1595 = vunpack.c.l.b16 %v1523
    %v1596 = vunpack.c.l.b16 %v1524
    %v1597 = vunpack.c.l.b16 %v1525
    %v1598 = vunpack.c.l.b16 %v1526
    %v1599 = vunpack.c.l.b16 %v1527
    %v1600 = vunpack.c.l.b16 %v1528
    %v1601 = vunpack.c.l.b16 %v1529
    %v1602 = vunpack.c.l.b16 %v1530
    %v1603 = vunpack.c.l.b16 %v1531
    %v1604 = vunpack.c.l.b16 %v1532
    %v1605 = vunpack.c.l.b16 %v1533
    %v1606 = vunpack.c.l.b16 %v1534
    %v1607 = vunpack.c.l.b16 %v1535
    %v1608 = vunpack.c.l.b16 %v1536
    %v1609 = vunpack.c.l.b16 %v1537
    %v1610 = vunpack.c.l.b16 %v1538
    %v1611 = vunpack.c.l.b16 %v1539
    %v1612 = vunpack.c.l.b16 %v1540
    %v1613 = vunpack.c.l.b16 %v1541
    %v1614 = vunpack.c.l.b16 %v1542
    %v1615 = vunpack.c.l.b16 %v1543
    %v1616 = vunpack.c.l.b16 %v1544
    %v1617 = vunpack.c.l.b16 %v1545
    %v1618 = vunpack.c.l.b16 %v1546
    %v1619 = vunpack.c.l.b16 %v1547
    %v1620 = vunpack.c.l.b16 %v1548
    %v1621 = vpack.c.b16 %v1594, %v1593
    %v1622 = vpack.c.b16 %v1596, %v1595
    %v1623 = vpack.c.b16 %v1598, %v1597
    %v1624 = vpack.c.b16 %v1600, %v1599
    %v1625 = vpack.c.b16 %v1602, %v1601
    %v1626 = vpack.c.b16 %v1604, %v1603
    %v1627 = vpack.c.b16 %v1606, %v1605
    %v1628 = vpack.c.b16 %v1608, %v1607
    %v1629 = vpack.c.b16 %v1610, %v1609
    %v1630 = vpack.c.b16 %v1612, %v1611
    %v1631 = vpack.c.b16 %v1614, %v1613
    %v1632 = vpack.c.b16 %v1616, %v1615
    %v1633 = vpack.c.b16 %v1618, %v1617
    %v1634 = vpack.c.b16 %v1620, %v1619
    %v1665 = vunpack.c.l.b16 %v1549
    %v1666 = vunpack.c.l.b16 %v1550
    %v1667 = vunpack.c.l.b16 %v1551
    %v1668 = vunpack.c.l.b16 %v1552
    %v1669 = vunpack.c.l.b16 %v1553
    %v1670 = vunpack.c.l.b16 %v1554
    %v1671 = vunpack.c.l.b16 %v1555
    %v1672 = vunpack.c.l.b16 %v1556
    %v1673 = vunpack.c.l.b16 %v1557
    %v1674 = vunpack.c.l.b16 %v1558
    %v1675 = vunpack.c.l.b16 %v1559
    %v1676 = vunpack.c.l.b16 %v1560
    %v1677 = vunpack.c.l.b16 %v1561
    %v1678 = vunpack.c.l.b16 %v1562
    %v1679 = vunpack.c.l.b16 %v1563
    %v1680 = vunpack.c.l.b16 %v1564
    %v1681 = vpack.c.b16 %v1666, %v1665
    %v1682 = vpack.c.b16 %v1668, %v1667
    %v1683 = vpack.c.b16 %v1670, %v1669
    %v1684 = vpack.c.b16 %v1672, %v1671
    %v1685 = vpack.c.b16 %v1674, %v1673
    %v1686 = vpack.c.b16 %v1676, %v1675
    %v1687 = vpack.c.b16 %v1678, %v1677
    %v1688 = vpack.c.b16 %v1680, %v1679
    %1697 = vmatprep.subr.bf16.mxu0 0
    %1698 = vmatpush1.bf16.msra.mxu0 %v1681
    %1699 = vmatprep.subr.bf16.mxu0 0
    %1700 = vmatpush1.bf16.msra.mxu0 %v1682
    %1701 = vmatprep.subr.bf16.mxu0 0
    %1702 = vmatpush1.bf16.msra.mxu0 %v1683
    %1703 = vmatprep.subr.bf16.mxu0 0
    %1704 = vmatpush1.bf16.msra.mxu0 %v1684
    %1705 = vmatprep.subr.bf16.mxu0 0
    %1706 = vmatpush1.bf16.msra.mxu0 %v1685
    %1707 = vmatprep.subr.bf16.mxu0 0
    %1708 = vmatpush1.bf16.msra.mxu0 %v1686
    %1709 = vmatprep.subr.bf16.mxu0 0
    %1710 = vmatpush1.bf16.msra.mxu0 %v1687
    %1711 = vmatprep.subr.bf16.mxu0 0
    %1712 = vmatpush1.bf16.msra.mxu0 %v1688
    %1713 = vmatprep.subr.bf16.mxu0 0
    %1714 = vmatpush1.bf16.msra.mxu0 0
    %1715 = vmatprep.subr.bf16.mxu0 0
    %1716 = vmatpush1.bf16.msra.mxu0 0
    %1717 = vmatprep.subr.bf16.mxu0 0
    %1718 = vmatpush1.bf16.msra.mxu0 0
    %1719 = vmatprep.subr.bf16.mxu0 0
    %1720 = vmatpush1.bf16.msra.mxu0 0
    %1721 = vmatprep.subr.bf16.mxu0 0
    %1722 = vmatpush1.bf16.msra.mxu0 0
    %1723 = vmatprep.subr.bf16.mxu0 0
    %1724 = vmatpush1.bf16.msra.mxu0 0
    %1725 = vmatprep.subr.bf16.mxu0 0
    %1726 = vmatpush1.bf16.msra.mxu0 0
    %1727 = vmatprep.subr.bf16.mxu0 0
    %1728 = vmatpush1.bf16.msra.mxu0 0
    %1729 = vmatprep.mubr.bf16.mxu0 0
    %1730 = vmatmul.mubr.bf16.gmra.mrb[0].mxu0 %v1621
    %v1731 = vpop.f32.mrb[0].mxu0
    %v1732 = vadd.f32 0.0, %v1731
    %v1733 = vpop.f32.mrb[0].mxu0
    %v1734 = vpop.f32.mrb[0].mxu0
    %v1735 = vadd.f32 0.0, %v1734
    %v1736 = vpop.f32.mrb[0].mxu0
    %1737 = vmatprep.mubr.bf16.mxu0 0
    %1738 = vmatmul.mubr.bf16.gmra.mrb[0].mxu0 %v1622
    %v1739 = vpop.f32.mrb[0].mxu0
    %v1740 = vadd.f32 0.0, %v1739
    %v1741 = vpop.f32.mrb[0].mxu0
    %v1742 = vpop.f32.mrb[0].mxu0
    %v1743 = vadd.f32 0.0, %v1742
    %v1744 = vpop.f32.mrb[0].mxu0
    %1745 = vmatprep.mubr.bf16.mxu0 0
    %1746 = vmatmul.mubr.bf16.gmra.mrb[0].mxu0 %v1623
    %v1747 = vpop.f32.mrb[0].mxu0
    %v1748 = vadd.f32 0.0, %v1747
    %v1749 = vpop.f32.mrb[0].mxu0
    %v1750 = vpop.f32.mrb[0].mxu0
    %v1751 = vadd.f32 0.0, %v1750
    %v1752 = vpop.f32.mrb[0].mxu0
    %1753 = vmatprep.mubr.bf16.mxu0 0
    %1754 = vmatmul.mubr.bf16.gmra.mrb[0].mxu0 %v1624
    %v1755 = vpop.f32.mrb[0].mxu0
    %v1756 = vadd.f32 0.0, %v1755
    %v1757 = vpop.f32.mrb[0].mxu0
    %v1758 = vpop.f32.mrb[0].mxu0
    %v1759 = vadd.f32 0.0, %v1758
    %v1760 = vpop.f32.mrb[0].mxu0
    %1761 = vmatprep.mubr.bf16.mxu0 0
    %1762 = vmatmul.mubr.bf16.gmra.mrb[0].mxu0 %v1625
    %v1763 = vpop.f32.mrb[0].mxu0
    %v1764 = vadd.f32 0.0, %v1763
    %v1765 = vpop.f32.mrb[0].mxu0
    %v1766 = vpop.f32.mrb[0].mxu0
    %v1767 = vadd.f32 0.0, %v1766
    %v1768 = vpop.f32.mrb[0].mxu0
    %1769 = vmatprep.mubr.bf16.mxu0 0
    %1770 = vmatmul.mubr.bf16.gmra.mrb[0].mxu0 %v1626
    %v1771 = vpop.f32.mrb[0].mxu0
    %v1772 = vadd.f32 0.0, %v1771
    %v1773 = vpop.f32.mrb[0].mxu0
    %v1774 = vpop.f32.mrb[0].mxu0
    %v1775 = vadd.f32 0.0, %v1774
    %v1776 = vpop.f32.mrb[0].mxu0
    %1777 = vmatprep.mubr.bf16.mxu0 0
    %1778 = vmatmul.mubr.bf16.gmra.mrb[0].mxu0 %v1627
    %v1779 = vpop.f32.mrb[0].mxu0
    %v1780 = vadd.f32 0.0, %v1779
    %v1781 = vpop.f32.mrb[0].mxu0
    %v1782 = vpop.f32.mrb[0].mxu0
    %v1783 = vadd.f32 0.0, %v1782
    %v1784 = vpop.f32.mrb[0].mxu0
    %1785 = vmatprep.mubr.bf16.mxu0 0
    %1786 = vmatmul.mubr.bf16.gmra.mrb[0].mxu0 %v1628
    %v1787 = vpop.f32.mrb[0].mxu0
    %v1788 = vadd.f32 0.0, %v1787
    %v1789 = vpop.f32.mrb[0].mxu0
    %v1790 = vpop.f32.mrb[0].mxu0
    %v1791 = vadd.f32 0.0, %v1790
    %v1792 = vpop.f32.mrb[0].mxu0
    %1793 = vmatprep.mubr.bf16.mxu0 0
    %1794 = vmatmul.mubr.bf16.gmra.mrb[0].mxu0 %v1629
    %v1795 = vpop.f32.mrb[0].mxu0
    %v1796 = vadd.f32 0.0, %v1795
    %v1797 = vpop.f32.mrb[0].mxu0
    %v1798 = vpop.f32.mrb[0].mxu0
    %v1799 = vadd.f32 0.0, %v1798
    %v1800 = vpop.f32.mrb[0].mxu0
    %1801 = vmatprep.mubr.bf16.mxu0 0
    %1802 = vmatmul.mubr.bf16.gmra.mrb[0].mxu0 %v1630
    %v1803 = vpop.f32.mrb[0].mxu0
    %v1804 = vadd.f32 0.0, %v1803
    %v1805 = vpop.f32.mrb[0].mxu0
    %v1806 = vpop.f32.mrb[0].mxu0
    %v1807 = vadd.f32 0.0, %v1806
    %v1808 = vpop.f32.mrb[0].mxu0
    %1809 = vmatprep.mubr.bf16.mxu0 0
    %1810 = vmatmul.mubr.bf16.gmra.mrb[0].mxu0 %v1631
    %v1811 = vpop.f32.mrb[0].mxu0
    %v1812 = vadd.f32 0.0, %v1811
    %v1813 = vpop.f32.mrb[0].mxu0
    %v1814 = vpop.f32.mrb[0].mxu0
    %v1815 = vadd.f32 0.0, %v1814
    %v1816 = vpop.f32.mrb[0].mxu0
    %1817 = vmatprep.mubr.bf16.mxu0 0
    %1818 = vmatmul.mubr.bf16.gmra.mrb[0].mxu0 %v1632
    %v1819 = vpop.f32.mrb[0].mxu0
    %v1820 = vadd.f32 0.0, %v1819
    %v1821 = vpop.f32.mrb[0].mxu0
    %v1822 = vpop.f32.mrb[0].mxu0
    %v1823 = vadd.f32 0.0, %v1822
    %v1824 = vpop.f32.mrb[0].mxu0
    %1825 = vmatprep.mubr.bf16.mxu0 0
    %1826 = vmatmul.mubr.bf16.gmra.mrb[0].mxu0 %v1633
    %v1827 = vpop.f32.mrb[0].mxu0
    %v1828 = vadd.f32 0.0, %v1827
    %v1829 = vpop.f32.mrb[0].mxu0
    %v1830 = vpop.f32.mrb[0].mxu0
    %v1831 = vadd.f32 0.0, %v1830
    %v1832 = vpop.f32.mrb[0].mxu0
    %1833 = vmatprep.mubr.bf16.mxu0 0
    %1834 = vmatmul.mubr.bf16.gmra.mrb[0].mxu0 %v1634
    %v1835 = vpop.f32.mrb[0].mxu0
    %v1836 = vadd.f32 0.0, %v1835
    %v1837 = vpop.f32.mrb[0].mxu0
    %v1838 = vpop.f32.mrb[0].mxu0
    %v1839 = vadd.f32 0.0, %v1838
    %v1840 = vpop.f32.mrb[0].mxu0
    %1841 = vdwg.mxu0
    %v1842 = vmax.f32 %v1732, %v1759
    %v1843 = vmax.f32 %v1735, %v1764
    %v1844 = vmax.f32 %v1740, %v1767
    %v1845 = vmax.f32 %v1743, %v1772
    %v1846 = vmax.f32 %v1748, %v1775
    %v1847 = vmax.f32 %v1751, %v1780
    %v1848 = vmax.f32 %v1756, %v1783
    %v1849 = vmax.f32 %v1842, %v1788
    %v1850 = vmax.f32 %v1843, %v1791
    %v1851 = vmax.f32 %v1844, %v1796
    %v1852 = vmax.f32 %v1845, %v1799
    %v1853 = vmax.f32 %v1846, %v1804
    %v1854 = vmax.f32 %v1847, %v1807
    %v1855 = vmax.f32 %v1848, %v1812
    %v1856 = vmax.f32 %v1849, %v1815
    %v1857 = vmax.f32 %v1850, %v1820
    %v1858 = vmax.f32 %v1851, %v1823
    %v1859 = vmax.f32 %v1852, %v1828
    %v1860 = vmax.f32 %v1853, %v1831
    %v1861 = vmax.f32 %v1854, %v1836
    %v1862 = vmax.f32 %v1855, %v1839
    %v1863 = vld [vmem:[#allocation4 + $0x4] sm:$0x1]
    %v1865 = vlaneseq
    %v1866 = vshrl.u32 %v1865, 7
    %v1867 = vsub.s32 0, %v1866
    %v1868 = vrot.slane %v1863, %v1867
    %v1870 = vadd.f32 %v1856, %v1868
    %v1871 = vadd.f32 %v1857, %v1868
    %v1872 = vadd.f32 %v1858, %v1868
    %v1873 = vadd.f32 %v1859, %v1868
    %v1874 = vadd.f32 %v1860, %v1868
    %v1875 = vadd.f32 %v1861, %v1868
    %v1876 = vadd.f32 %v1862, %v1868
    %v1877 = vmax.f32 %v1870, 0.0
    %v1878 = vmax.f32 %v1871, 0.0
    %v1879 = vmax.f32 %v1872, 0.0
    %v1880 = vmax.f32 %v1873, 0.0
    %v1881 = vmax.f32 %v1874, 0.0
    %v1882 = vmax.f32 %v1875, 0.0
    %v1883 = vmax.f32 %v1876, 0.0
    %1884 = vst [vmem:[%s3 + $0x20] sm:$0xff] %v1877
    %1885 = vst [vmem:[%s3 + $0x58] sm:$0xff] %v1878
    %1886 = vst [vmem:[%s3 + $0x90] sm:$0xff] %v1879
    %1887 = vst [vmem:[%s3 + $0xc8] sm:$0xff] %v1880
    %1888 = vst [vmem:[%s3 + $0x100] sm:$0xff] %v1881
    %1889 = vst [vmem:[%s3 + $0x138] sm:$0xff] %v1882
    %1890 = vst [vmem:[%s3 + $0x170] sm:$0xff] %v1883
    %v1891 = vld [vmem:[%s0] sm:$0xf]
    %v1892 = vld [vmem:[%s0 + $0x4] sm:$0xf]
    %v1893 = vld [vmem:[%s0 + $0x8] sm:$0xf]
    %v1894 = vld [vmem:[%s0 + $0xc] sm:$0xf]
    %v1895 = vld [vmem:[%s0 + $0x10] sm:$0xf]
    %v1896 = vld [vmem:[%s0 + $0x14] sm:$0xf]
    %v1897 = vld [vmem:[%s0 + $0x18] sm:$0xf]
    %v1898 = vld [vmem:[%s0 + $0x1c] sm:$0xf]
    %v1899 = vld [vmem:[%s0 + $0x20] sm:$0xf]
    %v1900 = vld [vmem:[%s0 + $0x24] sm:$0xf]
    %v1901 = vld [vmem:[%s0 + $0x28] sm:$0xf]
    %v1902 = vld [vmem:[%s0 + $0x2c] sm:$0xf]
    %v1903 = vld [vmem:[%s0 + $0x30] sm:$0xf]
    %v1904 = vld [vmem:[%s0 + $0x34] sm:$0xf]
    %v1905 = vld [vmem:[%s0 + $0x38] sm:$0xf]
    %v1906 = vld [vmem:[%s0 + $0x3c] sm:$0xf]
    %v1907 = vld [vmem:[%s0 + $0x40] sm:$0xf]
    %v1908 = vld [vmem:[%s0 + $0x44] sm:$0xf]
    %v1909 = vld [vmem:[%s0 + $0x48] sm:$0xf]
    %v1910 = vld [vmem:[%s0 + $0x4c] sm:$0xf]
    %v1911 = vld [vmem:[%s0 + $0x50] sm:$0xf]
    %v1912 = vld [vmem:[%s0 + $0x54] sm:$0xf]
    %v1913 = vld [vmem:[%s0 + $0x58] sm:$0xf]
    %v1914 = vld [vmem:[%s0 + $0x5c] sm:$0xf]
    %v1915 = vld [vmem:[%s0 + $0x60] sm:$0xf]
    %v1916 = vld [vmem:[%s0 + $0x64] sm:$0xf]
    %v1917 = vld [vmem:[%s0 + $0x68] sm:$0xf]
    %v1918 = vld [vmem:[%s0 + $0x6c] sm:$0xf]
    %v1919 = vld [vmem:[#allocation2 + $0x14] sm:$0xf]
    %v1920 = vld [vmem:[#allocation2 + $0x30] sm:$0xf]
    %v1921 = vld [vmem:[#allocation2 + $0x4c] sm:$0xf]
    %v1922 = vld [vmem:[#allocation2 + $0x68] sm:$0xf]
    %v1923 = vld [vmem:[#allocation2 + $0x84] sm:$0xf]
    %v1924 = vld [vmem:[#allocation2 + $0xa0] sm:$0xf]
    %v1925 = vld [vmem:[#allocation2 + $0xbc] sm:$0xf]
    %v1926 = vld [vmem:[#allocation2 + $0xd8] sm:$0xf]
    %v1927 = vld [vmem:[#allocation2 + $0xf4] sm:$0xf]
    %v1928 = vld [vmem:[#allocation2 + $0x110] sm:$0xf]
    %v1929 = vld [vmem:[#allocation2 + $0x12c] sm:$0xf]
    %v1930 = vld [vmem:[#allocation2 + $0x148] sm:$0xf]
    %v1931 = vld [vmem:[#allocation2 + $0x164] sm:$0xf]
    %v1932 = vld [vmem:[#allocation2 + $0x180] sm:$0xf]
    %v1933 = vld [vmem:[#allocation2 + $0x19c] sm:$0xf]
    %v1934 = vld [vmem:[#allocation2 + $0x1b8] sm:$0xf]
    %v1963 = vunpack.c.l.b16 %v1891
    %v1964 = vunpack.c.l.b16 %v1892
    %v1965 = vunpack.c.l.b16 %v1893
    %v1966 = vunpack.c.l.b16 %v1894
    %v1967 = vunpack.c.l.b16 %v1895
    %v1968 = vunpack.c.l.b16 %v1896
    %v1969 = vunpack.c.l.b16 %v1897
    %v1970 = vunpack.c.l.b16 %v1898
    %v1971 = vunpack.c.l.b16 %v1899
    %v1972 = vunpack.c.l.b16 %v1900
    %v1973 = vunpack.c.l.b16 %v1901
    %v1974 = vunpack.c.l.b16 %v1902
    %v1975 = vunpack.c.l.b16 %v1903
    %v1976 = vunpack.c.l.b16 %v1904
    %v1977 = vunpack.c.l.b16 %v1905
    %v1978 = vunpack.c.l.b16 %v1906
    %v1979 = vunpack.c.l.b16 %v1907
    %v1980 = vunpack.c.l.b16 %v1908
    %v1981 = vunpack.c.l.b16 %v1909
    %v1982 = vunpack.c.l.b16 %v1910
    %v1983 = vunpack.c.l.b16 %v1911
    %v1984 = vunpack.c.l.b16 %v1912
    %v1985 = vunpack.c.l.b16 %v1913
    %v1986 = vunpack.c.l.b16 %v1914
    %v1987 = vunpack.c.l.b16 %v1915
    %v1988 = vunpack.c.l.b16 %v1916
    %v1989 = vunpack.c.l.b16 %v1917
    %v1990 = vunpack.c.l.b16 %v1918
    %v1991 = vpack.c.b16 %v1964, %v1963
    %v1992 = vpack.c.b16 %v1966, %v1965
    %v1993 = vpack.c.b16 %v1968, %v1967
    %v1994 = vpack.c.b16 %v1970, %v1969
    %v1995 = vpack.c.b16 %v1972, %v1971
    %v1996 = vpack.c.b16 %v1974, %v1973
    %v1997 = vpack.c.b16 %v1976, %v1975
    %v1998 = vpack.c.b16 %v1978, %v1977
    %v1999 = vpack.c.b16 %v1980, %v1979
    %v2000 = vpack.c.b16 %v1982, %v1981
    %v2001 = vpack.c.b16 %v1984, %v1983
    %v2002 = vpack.c.b16 %v1986, %v1985
    %v2003 = vpack.c.b16 %v1988, %v1987
    %v2004 = vpack.c.b16 %v1990, %v1989
    %v2035 = vunpack.c.l.b16 %v1919
    %v2036 = vunpack.c.l.b16 %v1920
    %v2037 = vunpack.c.l.b16 %v1921
    %v2038 = vunpack.c.l.b16 %v1922
    %v2039 = vunpack.c.l.b16 %v1923
    %v2040 = vunpack.c.l.b16 %v1924
    %v2041 = vunpack.c.l.b16 %v1925
    %v2042 = vunpack.c.l.b16 %v1926
    %v2043 = vunpack.c.l.b16 %v1927
    %v2044 = vunpack.c.l.b16 %v1928
    %v2045 = vunpack.c.l.b16 %v1929
    %v2046 = vunpack.c.l.b16 %v1930
    %v2047 = vunpack.c.l.b16 %v1931
    %v2048 = vunpack.c.l.b16 %v1932
    %v2049 = vunpack.c.l.b16 %v1933
    %v2050 = vunpack.c.l.b16 %v1934
    %v2051 = vpack.c.b16 %v2036, %v2035
    %v2052 = vpack.c.b16 %v2038, %v2037
    %v2053 = vpack.c.b16 %v2040, %v2039
    %v2054 = vpack.c.b16 %v2042, %v2041
    %v2055 = vpack.c.b16 %v2044, %v2043
    %v2056 = vpack.c.b16 %v2046, %v2045
    %v2057 = vpack.c.b16 %v2048, %v2047
    %v2058 = vpack.c.b16 %v2050, %v2049
    %2067 = vmatprep.subr.bf16.mxu0 0
    %2068 = vmatpush1.bf16.msra.mxu0 %v2051
    %2069 = vmatprep.subr.bf16.mxu0 0
    %2070 = vmatpush1.bf16.msra.mxu0 %v2052
    %2071 = vmatprep.subr.bf16.mxu0 0
    %2072 = vmatpush1.bf16.msra.mxu0 %v2053
    %2073 = vmatprep.subr.bf16.mxu0 0
    %2074 = vmatpush1.bf16.msra.mxu0 %v2054
    %2075 = vmatprep.subr.bf16.mxu0 0
    %2076 = vmatpush1.bf16.msra.mxu0 %v2055
    %2077 = vmatprep.subr.bf16.mxu0 0
    %2078 = vmatpush1.bf16.msra.mxu0 %v2056
    %2079 = vmatprep.subr.bf16.mxu0 0
    %2080 = vmatpush1.bf16.msra.mxu0 %v2057
    %2081 = vmatprep.subr.bf16.mxu0 0
    %2082 = vmatpush1.bf16.msra.mxu0 %v2058
    %2083 = vmatprep.subr.bf16.mxu0 0
    %2084 = vmatpush1.bf16.msra.mxu0 0
    %2085 = vmatprep.subr.bf16.mxu0 0
    %2086 = vmatpush1.bf16.msra.mxu0 0
    %2087 = vmatprep.subr.bf16.mxu0 0
    %2088 = vmatpush1.bf16.msra.mxu0 0
    %2089 = vmatprep.subr.bf16.mxu0 0
    %2090 = vmatpush1.bf16.msra.mxu0 0
    %2091 = vmatprep.subr.bf16.mxu0 0
    %2092 = vmatpush1.bf16.msra.mxu0 0
    %2093 = vmatprep.subr.bf16.mxu0 0
    %2094 = vmatpush1.bf16.msra.mxu0 0
    %2095 = vmatprep.subr.bf16.mxu0 0
    %2096 = vmatpush1.bf16.msra.mxu0 0
    %2097 = vmatprep.subr.bf16.mxu0 0
    %2098 = vmatpush1.bf16.msra.mxu0 0
    %2099 = vmatprep.mubr.bf16.mxu0 0
    %2100 = vmatmul.mubr.bf16.gmra.mrb[0].mxu0 %v1991
    %v2101 = vpop.f32.mrb[0].mxu0
    %v2102 = vadd.f32 0.0, %v2101
    %v2103 = vpop.f32.mrb[0].mxu0
    %v2104 = vpop.f32.mrb[0].mxu0
    %v2105 = vadd.f32 0.0, %v2104
    %v2106 = vpop.f32.mrb[0].mxu0
    %2107 = vmatprep.mubr.bf16.mxu0 0
    %2108 = vmatmul.mubr.bf16.gmra.mrb[0].mxu0 %v1992
    %v2109 = vpop.f32.mrb[0].mxu0
    %v2110 = vadd.f32 0.0, %v2109
    %v2111 = vpop.f32.mrb[0].mxu0
    %v2112 = vpop.f32.mrb[0].mxu0
    %v2113 = vadd.f32 0.0, %v2112
    %v2114 = vpop.f32.mrb[0].mxu0
    %2115 = vmatprep.mubr.bf16.mxu0 0
    %2116 = vmatmul.mubr.bf16.gmra.mrb[0].mxu0 %v1993
    %v2117 = vpop.f32.mrb[0].mxu0
    %v2118 = vadd.f32 0.0, %v2117
    %v2119 = vpop.f32.mrb[0].mxu0
    %v2120 = vpop.f32.mrb[0].mxu0
    %v2121 = vadd.f32 0.0, %v2120
    %v2122 = vpop.f32.mrb[0].mxu0
    %2123 = vmatprep.mubr.bf16.mxu0 0
    %2124 = vmatmul.mubr.bf16.gmra.mrb[0].mxu0 %v1994
    %v2125 = vpop.f32.mrb[0].mxu0
    %v2126 = vadd.f32 0.0, %v2125
    %v2127 = vpop.f32.mrb[0].mxu0
    %v2128 = vpop.f32.mrb[0].mxu0
    %v2129 = vadd.f32 0.0, %v2128
    %v2130 = vpop.f32.mrb[0].mxu0
    %2131 = vmatprep.mubr.bf16.mxu0 0
    %2132 = vmatmul.mubr.bf16.gmra.mrb[0].mxu0 %v1995
    %v2133 = vpop.f32.mrb[0].mxu0
    %v2134 = vadd.f32 0.0, %v2133
    %v2135 = vpop.f32.mrb[0].mxu0
    %v2136 = vpop.f32.mrb[0].mxu0
    %v2137 = vadd.f32 0.0, %v2136
    %v2138 = vpop.f32.mrb[0].mxu0
    %2139 = vmatprep.mubr.bf16.mxu0 0
    %2140 = vmatmul.mubr.bf16.gmra.mrb[0].mxu0 %v1996
    %v2141 = vpop.f32.mrb[0].mxu0
    %v2142 = vadd.f32 0.0, %v2141
    %v2143 = vpop.f32.mrb[0].mxu0
    %v2144 = vpop.f32.mrb[0].mxu0
    %v2145 = vadd.f32 0.0, %v2144
    %v2146 = vpop.f32.mrb[0].mxu0
    %2147 = vmatprep.mubr.bf16.mxu0 0
    %2148 = vmatmul.mubr.bf16.gmra.mrb[0].mxu0 %v1997
    %v2149 = vpop.f32.mrb[0].mxu0
    %v2150 = vadd.f32 0.0, %v2149
    %v2151 = vpop.f32.mrb[0].mxu0
    %v2152 = vpop.f32.mrb[0].mxu0
    %v2153 = vadd.f32 0.0, %v2152
    %v2154 = vpop.f32.mrb[0].mxu0
    %2155 = vmatprep.mubr.bf16.mxu0 0
    %2156 = vmatmul.mubr.bf16.gmra.mrb[0].mxu0 %v1998
    %v2157 = vpop.f32.mrb[0].mxu0
    %v2158 = vadd.f32 0.0, %v2157
    %v2159 = vpop.f32.mrb[0].mxu0
    %v2160 = vpop.f32.mrb[0].mxu0
    %v2161 = vadd.f32 0.0, %v2160
    %v2162 = vpop.f32.mrb[0].mxu0
    %2163 = vmatprep.mubr.bf16.mxu0 0
    %2164 = vmatmul.mubr.bf16.gmra.mrb[0].mxu0 %v1999
    %v2165 = vpop.f32.mrb[0].mxu0
    %v2166 = vadd.f32 0.0, %v2165
    %v2167 = vpop.f32.mrb[0].mxu0
    %v2168 = vpop.f32.mrb[0].mxu0
    %v2169 = vadd.f32 0.0, %v2168
    %v2170 = vpop.f32.mrb[0].mxu0
    %2171 = vmatprep.mubr.bf16.mxu0 0
    %2172 = vmatmul.mubr.bf16.gmra.mrb[0].mxu0 %v2000
    %v2173 = vpop.f32.mrb[0].mxu0
    %v2174 = vadd.f32 0.0, %v2173
    %v2175 = vpop.f32.mrb[0].mxu0
    %v2176 = vpop.f32.mrb[0].mxu0
    %v2177 = vadd.f32 0.0, %v2176
    %v2178 = vpop.f32.mrb[0].mxu0
    %2179 = vmatprep.mubr.bf16.mxu0 0
    %2180 = vmatmul.mubr.bf16.gmra.mrb[0].mxu0 %v2001
    %v2181 = vpop.f32.mrb[0].mxu0
    %v2182 = vadd.f32 0.0, %v2181
    %v2183 = vpop.f32.mrb[0].mxu0
    %v2184 = vpop.f32.mrb[0].mxu0
    %v2185 = vadd.f32 0.0, %v2184
    %v2186 = vpop.f32.mrb[0].mxu0
    %2187 = vmatprep.mubr.bf16.mxu0 0
    %2188 = vmatmul.mubr.bf16.gmra.mrb[0].mxu0 %v2002
    %v2189 = vpop.f32.mrb[0].mxu0
    %v2190 = vadd.f32 0.0, %v2189
    %v2191 = vpop.f32.mrb[0].mxu0
    %v2192 = vpop.f32.mrb[0].mxu0
    %v2193 = vadd.f32 0.0, %v2192
    %v2194 = vpop.f32.mrb[0].mxu0
    %2195 = vmatprep.mubr.bf16.mxu0 0
    %2196 = vmatmul.mubr.bf16.gmra.mrb[0].mxu0 %v2003
    %v2197 = vpop.f32.mrb[0].mxu0
    %v2198 = vadd.f32 0.0, %v2197
    %v2199 = vpop.f32.mrb[0].mxu0
    %v2200 = vpop.f32.mrb[0].mxu0
    %v2201 = vadd.f32 0.0, %v2200
    %v2202 = vpop.f32.mrb[0].mxu0
    %2203 = vmatprep.mubr.bf16.mxu0 0
    %2204 = vmatmul.mubr.bf16.gmra.mrb[0].mxu0 %v2004
    %v2205 = vpop.f32.mrb[0].mxu0
    %v2206 = vadd.f32 0.0, %v2205
    %v2207 = vpop.f32.mrb[0].mxu0
    %v2208 = vpop.f32.mrb[0].mxu0
    %v2209 = vadd.f32 0.0, %v2208
    %v2210 = vpop.f32.mrb[0].mxu0
    %2211 = vdwg.mxu0
    %v2212 = vmax.f32 %v2102, %v2129
    %v2213 = vmax.f32 %v2105, %v2134
    %v2214 = vmax.f32 %v2110, %v2137
    %v2215 = vmax.f32 %v2113, %v2142
    %v2216 = vmax.f32 %v2118, %v2145
    %v2217 = vmax.f32 %v2121, %v2150
    %v2218 = vmax.f32 %v2126, %v2153
    %v2219 = vmax.f32 %v2212, %v2158
    %v2220 = vmax.f32 %v2213, %v2161
    %v2221 = vmax.f32 %v2214, %v2166
    %v2222 = vmax.f32 %v2215, %v2169
    %v2223 = vmax.f32 %v2216, %v2174
    %v2224 = vmax.f32 %v2217, %v2177
    %v2225 = vmax.f32 %v2218, %v2182
    %v2226 = vmax.f32 %v2219, %v2185
    %v2227 = vmax.f32 %v2220, %v2190
    %v2228 = vmax.f32 %v2221, %v2193
    %v2229 = vmax.f32 %v2222, %v2198
    %v2230 = vmax.f32 %v2223, %v2201
    %v2231 = vmax.f32 %v2224, %v2206
    %v2232 = vmax.f32 %v2225, %v2209
    %v2233 = vld [vmem:[#allocation4 + $0x5] sm:$0x1]
    %v2235 = vlaneseq
    %v2236 = vshrl.u32 %v2235, 7
    %v2237 = vsub.s32 0, %v2236
    %v2238 = vrot.slane %v2233, %v2237
    %v2240 = vadd.f32 %v2226, %v2238
    %v2241 = vadd.f32 %v2227, %v2238
    %v2242 = vadd.f32 %v2228, %v2238
    %v2243 = vadd.f32 %v2229, %v2238
    %v2244 = vadd.f32 %v2230, %v2238
    %v2245 = vadd.f32 %v2231, %v2238
    %v2246 = vadd.f32 %v2232, %v2238
    %v2247 = vmax.f32 %v2240, 0.0
    %v2248 = vmax.f32 %v2241, 0.0
    %v2249 = vmax.f32 %v2242, 0.0
    %v2250 = vmax.f32 %v2243, 0.0
    %v2251 = vmax.f32 %v2244, 0.0
    %v2252 = vmax.f32 %v2245, 0.0
    %v2253 = vmax.f32 %v2246, 0.0
    %2254 = vst [vmem:[%s3 + $0x28] sm:$0xff] %v2247
    %2255 = vst [vmem:[%s3 + $0x60] sm:$0xff] %v2248
    %2256 = vst [vmem:[%s3 + $0x98] sm:$0xff] %v2249
    %2257 = vst [vmem:[%s3 + $0xd0] sm:$0xff] %v2250
    %2258 = vst [vmem:[%s3 + $0x108] sm:$0xff] %v2251
    %2259 = vst [vmem:[%s3 + $0x140] sm:$0xff] %v2252
    %2260 = vst [vmem:[%s3 + $0x178] sm:$0xff] %v2253
    %v2261 = vld [vmem:[%s0] sm:$0xf]
    %v2262 = vld [vmem:[%s0 + $0x4] sm:$0xf]
    %v2263 = vld [vmem:[%s0 + $0x8] sm:$0xf]
    %v2264 = vld [vmem:[%s0 + $0xc] sm:$0xf]
    %v2265 = vld [vmem:[%s0 + $0x10] sm:$0xf]
    %v2266 = vld [vmem:[%s0 + $0x14] sm:$0xf]
    %v2267 = vld [vmem:[%s0 + $0x18] sm:$0xf]
    %v2268 = vld [vmem:[%s0 + $0x1c] sm:$0xf]
    %v2269 = vld [vmem:[%s0 + $0x20] sm:$0xf]
    %v2270 = vld [vmem:[%s0 + $0x24] sm:$0xf]
    %v2271 = vld [vmem:[%s0 + $0x28] sm:$0xf]
    %v2272 = vld [vmem:[%s0 + $0x2c] sm:$0xf]
    %v2273 = vld [vmem:[%s0 + $0x30] sm:$0xf]
    %v2274 = vld [vmem:[%s0 + $0x34] sm:$0xf]
    %v2275 = vld [vmem:[%s0 + $0x38] sm:$0xf]
    %v2276 = vld [vmem:[%s0 + $0x3c] sm:$0xf]
    %v2277 = vld [vmem:[%s0 + $0x40] sm:$0xf]
    %v2278 = vld [vmem:[%s0 + $0x44] sm:$0xf]
    %v2279 = vld [vmem:[%s0 + $0x48] sm:$0xf]
    %v2280 = vld [vmem:[%s0 + $0x4c] sm:$0xf]
    %v2281 = vld [vmem:[%s0 + $0x50] sm:$0xf]
    %v2282 = vld [vmem:[%s0 + $0x54] sm:$0xf]
    %v2283 = vld [vmem:[%s0 + $0x58] sm:$0xf]
    %v2284 = vld [vmem:[%s0 + $0x5c] sm:$0xf]
    %v2285 = vld [vmem:[%s0 + $0x60] sm:$0xf]
    %v2286 = vld [vmem:[%s0 + $0x64] sm:$0xf]
    %v2287 = vld [vmem:[%s0 + $0x68] sm:$0xf]
    %v2288 = vld [vmem:[%s0 + $0x6c] sm:$0xf]
    %v2289 = vld [vmem:[#allocation2 + $0x18] sm:$0xf]
    %v2290 = vld [vmem:[#allocation2 + $0x34] sm:$0xf]
    %v2291 = vld [vmem:[#allocation2 + $0x50] sm:$0xf]
    %v2292 = vld [vmem:[#allocation2 + $0x6c] sm:$0xf]
    %v2293 = vld [vmem:[#allocation2 + $0x88] sm:$0xf]
    %v2294 = vld [vmem:[#allocation2 + $0xa4] sm:$0xf]
    %v2295 = vld [vmem:[#allocation2 + $0xc0] sm:$0xf]
    %v2296 = vld [vmem:[#allocation2 + $0xdc] sm:$0xf]
    %v2297 = vld [vmem:[#allocation2 + $0xf8] sm:$0xf]
    %v2298 = vld [vmem:[#allocation2 + $0x114] sm:$0xf]
    %v2299 = vld [vmem:[#allocation2 + $0x130] sm:$0xf]
    %v2300 = vld [vmem:[#allocation2 + $0x14c] sm:$0xf]
    %v2301 = vld [vmem:[#allocation2 + $0x168] sm:$0xf]
    %v2302 = vld [vmem:[#allocation2 + $0x184] sm:$0xf]
    %v2303 = vld [vmem:[#allocation2 + $0x1a0] sm:$0xf]
    %v2304 = vld [vmem:[#allocation2 + $0x1bc] sm:$0xf]
    %v2333 = vunpack.c.l.b16 %v2261
    %v2334 = vunpack.c.l.b16 %v2262
    %v2335 = vunpack.c.l.b16 %v2263
    %v2336 = vunpack.c.l.b16 %v2264
    %v2337 = vunpack.c.l.b16 %v2265
    %v2338 = vunpack.c.l.b16 %v2266
    %v2339 = vunpack.c.l.b16 %v2267
    %v2340 = vunpack.c.l.b16 %v2268
    %v2341 = vunpack.c.l.b16 %v2269
    %v2342 = vunpack.c.l.b16 %v2270
    %v2343 = vunpack.c.l.b16 %v2271
    %v2344 = vunpack.c.l.b16 %v2272
    %v2345 = vunpack.c.l.b16 %v2273
    %v2346 = vunpack.c.l.b16 %v2274
    %v2347 = vunpack.c.l.b16 %v2275
    %v2348 = vunpack.c.l.b16 %v2276
    %v2349 = vunpack.c.l.b16 %v2277
    %v2350 = vunpack.c.l.b16 %v2278
    %v2351 = vunpack.c.l.b16 %v2279
    %v2352 = vunpack.c.l.b16 %v2280
    %v2353 = vunpack.c.l.b16 %v2281
    %v2354 = vunpack.c.l.b16 %v2282
    %v2355 = vunpack.c.l.b16 %v2283
    %v2356 = vunpack.c.l.b16 %v2284
    %v2357 = vunpack.c.l.b16 %v2285
    %v2358 = vunpack.c.l.b16 %v2286
    %v2359 = vunpack.c.l.b16 %v2287
    %v2360 = vunpack.c.l.b16 %v2288
    %v2361 = vpack.c.b16 %v2334, %v2333
    %v2362 = vpack.c.b16 %v2336, %v2335
    %v2363 = vpack.c.b16 %v2338, %v2337
    %v2364 = vpack.c.b16 %v2340, %v2339
    %v2365 = vpack.c.b16 %v2342, %v2341
    %v2366 = vpack.c.b16 %v2344, %v2343
    %v2367 = vpack.c.b16 %v2346, %v2345
    %v2368 = vpack.c.b16 %v2348, %v2347
    %v2369 = vpack.c.b16 %v2350, %v2349
    %v2370 = vpack.c.b16 %v2352, %v2351
    %v2371 = vpack.c.b16 %v2354, %v2353
    %v2372 = vpack.c.b16 %v2356, %v2355
    %v2373 = vpack.c.b16 %v2358, %v2357
    %v2374 = vpack.c.b16 %v2360, %v2359
    %v2405 = vunpack.c.l.b16 %v2289
    %v2406 = vunpack.c.l.b16 %v2290
    %v2407 = vunpack.c.l.b16 %v2291
    %v2408 = vunpack.c.l.b16 %v2292
    %v2409 = vunpack.c.l.b16 %v2293
    %v2410 = vunpack.c.l.b16 %v2294
    %v2411 = vunpack.c.l.b16 %v2295
    %v2412 = vunpack.c.l.b16 %v2296
    %v2413 = vunpack.c.l.b16 %v2297
    %v2414 = vunpack.c.l.b16 %v2298
    %v2415 = vunpack.c.l.b16 %v2299
    %v2416 = vunpack.c.l.b16 %v2300
    %v2417 = vunpack.c.l.b16 %v2301
    %v2418 = vunpack.c.l.b16 %v2302
    %v2419 = vunpack.c.l.b16 %v2303
    %v2420 = vunpack.c.l.b16 %v2304
    %v2421 = vpack.c.b16 %v2406, %v2405
    %v2422 = vpack.c.b16 %v2408, %v2407
    %v2423 = vpack.c.b16 %v2410, %v2409
    %v2424 = vpack.c.b16 %v2412, %v2411
    %v2425 = vpack.c.b16 %v2414, %v2413
    %v2426 = vpack.c.b16 %v2416, %v2415
    %v2427 = vpack.c.b16 %v2418, %v2417
    %v2428 = vpack.c.b16 %v2420, %v2419
    %2437 = vmatprep.subr.bf16.mxu0 0
    %2438 = vmatpush1.bf16.msra.mxu0 %v2421
    %2439 = vmatprep.subr.bf16.mxu0 0
    %2440 = vmatpush1.bf16.msra.mxu0 %v2422
    %2441 = vmatprep.subr.bf16.mxu0 0
    %2442 = vmatpush1.bf16.msra.mxu0 %v2423
    %2443 = vmatprep.subr.bf16.mxu0 0
    %2444 = vmatpush1.bf16.msra.mxu0 %v2424
    %2445 = vmatprep.subr.bf16.mxu0 0
    %2446 = vmatpush1.bf16.msra.mxu0 %v2425
    %2447 = vmatprep.subr.bf16.mxu0 0
    %2448 = vmatpush1.bf16.msra.mxu0 %v2426
    %2449 = vmatprep.subr.bf16.mxu0 0
    %2450 = vmatpush1.bf16.msra.mxu0 %v2427
    %2451 = vmatprep.subr.bf16.mxu0 0
    %2452 = vmatpush1.bf16.msra.mxu0 %v2428
    %2453 = vmatprep.subr.bf16.mxu0 0
    %2454 = vmatpush1.bf16.msra.mxu0 0
    %2455 = vmatprep.subr.bf16.mxu0 0
    %2456 = vmatpush1.bf16.msra.mxu0 0
    %2457 = vmatprep.subr.bf16.mxu0 0
    %2458 = vmatpush1.bf16.msra.mxu0 0
    %2459 = vmatprep.subr.bf16.mxu0 0
    %2460 = vmatpush1.bf16.msra.mxu0 0
    %2461 = vmatprep.subr.bf16.mxu0 0
    %2462 = vmatpush1.bf16.msra.mxu0 0
    %2463 = vmatprep.subr.bf16.mxu0 0
    %2464 = vmatpush1.bf16.msra.mxu0 0
    %2465 = vmatprep.subr.bf16.mxu0 0
    %2466 = vmatpush1.bf16.msra.mxu0 0
    %2467 = vmatprep.subr.bf16.mxu0 0
    %2468 = vmatpush1.bf16.msra.mxu0 0
    %2469 = vmatprep.mubr.bf16.mxu0 0
    %2470 = vmatmul.mubr.bf16.gmra.mrb[0].mxu0 %v2361
    %v2471 = vpop.f32.mrb[0].mxu0
    %v2472 = vadd.f32 0.0, %v2471
    %v2473 = vpop.f32.mrb[0].mxu0
    %v2474 = vpop.f32.mrb[0].mxu0
    %v2475 = vadd.f32 0.0, %v2474
    %v2476 = vpop.f32.mrb[0].mxu0
    %2477 = vmatprep.mubr.bf16.mxu0 0
    %2478 = vmatmul.mubr.bf16.gmra.mrb[0].mxu0 %v2362
    %v2479 = vpop.f32.mrb[0].mxu0
    %v2480 = vadd.f32 0.0, %v2479
    %v2481 = vpop.f32.mrb[0].mxu0
    %v2482 = vpop.f32.mrb[0].mxu0
    %v2483 = vadd.f32 0.0, %v2482
    %v2484 = vpop.f32.mrb[0].mxu0
    %2485 = vmatprep.mubr.bf16.mxu0 0
    %2486 = vmatmul.mubr.bf16.gmra.mrb[0].mxu0 %v2363
    %v2487 = vpop.f32.mrb[0].mxu0
    %v2488 = vadd.f32 0.0, %v2487
    %v2489 = vpop.f32.mrb[0].mxu0
    %v2490 = vpop.f32.mrb[0].mxu0
    %v2491 = vadd.f32 0.0, %v2490
    %v2492 = vpop.f32.mrb[0].mxu0
    %2493 = vmatprep.mubr.bf16.mxu0 0
    %2494 = vmatmul.mubr.bf16.gmra.mrb[0].mxu0 %v2364
    %v2495 = vpop.f32.mrb[0].mxu0
    %v2496 = vadd.f32 0.0, %v2495
    %v2497 = vpop.f32.mrb[0].mxu0
    %v2498 = vpop.f32.mrb[0].mxu0
    %v2499 = vadd.f32 0.0, %v2498
    %v2500 = vpop.f32.mrb[0].mxu0
    %2501 = vmatprep.mubr.bf16.mxu0 0
    %2502 = vmatmul.mubr.bf16.gmra.mrb[0].mxu0 %v2365
    %v2503 = vpop.f32.mrb[0].mxu0
    %v2504 = vadd.f32 0.0, %v2503
    %v2505 = vpop.f32.mrb[0].mxu0
    %v2506 = vpop.f32.mrb[0].mxu0
    %v2507 = vadd.f32 0.0, %v2506
    %v2508 = vpop.f32.mrb[0].mxu0
    %2509 = vmatprep.mubr.bf16.mxu0 0
    %2510 = vmatmul.mubr.bf16.gmra.mrb[0].mxu0 %v2366
    %v2511 = vpop.f32.mrb[0].mxu0
    %v2512 = vadd.f32 0.0, %v2511
    %v2513 = vpop.f32.mrb[0].mxu0
    %v2514 = vpop.f32.mrb[0].mxu0
    %v2515 = vadd.f32 0.0, %v2514
    %v2516 = vpop.f32.mrb[0].mxu0
    %2517 = vmatprep.mubr.bf16.mxu0 0
    %2518 = vmatmul.mubr.bf16.gmra.mrb[0].mxu0 %v2367
    %v2519 = vpop.f32.mrb[0].mxu0
    %v2520 = vadd.f32 0.0, %v2519
    %v2521 = vpop.f32.mrb[0].mxu0
    %v2522 = vpop.f32.mrb[0].mxu0
    %v2523 = vadd.f32 0.0, %v2522
    %v2524 = vpop.f32.mrb[0].mxu0
    %2525 = vmatprep.mubr.bf16.mxu0 0
    %2526 = vmatmul.mubr.bf16.gmra.mrb[0].mxu0 %v2368
    %v2527 = vpop.f32.mrb[0].mxu0
    %v2528 = vadd.f32 0.0, %v2527
    %v2529 = vpop.f32.mrb[0].mxu0
    %v2530 = vpop.f32.mrb[0].mxu0
    %v2531 = vadd.f32 0.0, %v2530
    %v2532 = vpop.f32.mrb[0].mxu0
    %2533 = vmatprep.mubr.bf16.mxu0 0
    %2534 = vmatmul.mubr.bf16.gmra.mrb[0].mxu0 %v2369
    %v2535 = vpop.f32.mrb[0].mxu0
    %v2536 = vadd.f32 0.0, %v2535
    %v2537 = vpop.f32.mrb[0].mxu0
    %v2538 = vpop.f32.mrb[0].mxu0
    %v2539 = vadd.f32 0.0, %v2538
    %v2540 = vpop.f32.mrb[0].mxu0
    %2541 = vmatprep.mubr.bf16.mxu0 0
    %2542 = vmatmul.mubr.bf16.gmra.mrb[0].mxu0 %v2370
    %v2543 = vpop.f32.mrb[0].mxu0
    %v2544 = vadd.f32 0.0, %v2543
    %v2545 = vpop.f32.mrb[0].mxu0
    %v2546 = vpop.f32.mrb[0].mxu0
    %v2547 = vadd.f32 0.0, %v2546
    %v2548 = vpop.f32.mrb[0].mxu0
    %2549 = vmatprep.mubr.bf16.mxu0 0
    %2550 = vmatmul.mubr.bf16.gmra.mrb[0].mxu0 %v2371
    %v2551 = vpop.f32.mrb[0].mxu0
    %v2552 = vadd.f32 0.0, %v2551
    %v2553 = vpop.f32.mrb[0].mxu0
    %v2554 = vpop.f32.mrb[0].mxu0
    %v2555 = vadd.f32 0.0, %v2554
    %v2556 = vpop.f32.mrb[0].mxu0
    %2557 = vmatprep.mubr.bf16.mxu0 0
    %2558 = vmatmul.mubr.bf16.gmra.mrb[0].mxu0 %v2372
    %v2559 = vpop.f32.mrb[0].mxu0
    %v2560 = vadd.f32 0.0, %v2559
    %v2561 = vpop.f32.mrb[0].mxu0
    %v2562 = vpop.f32.mrb[0].mxu0
    %v2563 = vadd.f32 0.0, %v2562
    %v2564 = vpop.f32.mrb[0].mxu0
    %2565 = vmatprep.mubr.bf16.mxu0 0
    %2566 = vmatmul.mubr.bf16.gmra.mrb[0].mxu0 %v2373
    %v2567 = vpop.f32.mrb[0].mxu0
    %v2568 = vadd.f32 0.0, %v2567
    %v2569 = vpop.f32.mrb[0].mxu0
    %v2570 = vpop.f32.mrb[0].mxu0
    %v2571 = vadd.f32 0.0, %v2570
    %v2572 = vpop.f32.mrb[0].mxu0
    %2573 = vmatprep.mubr.bf16.mxu0 0
    %2574 = vmatmul.mubr.bf16.gmra.mrb[0].mxu0 %v2374
    %v2575 = vpop.f32.mrb[0].mxu0
    %v2576 = vadd.f32 0.0, %v2575
    %v2577 = vpop.f32.mrb[0].mxu0
    %v2578 = vpop.f32.mrb[0].mxu0
    %v2579 = vadd.f32 0.0, %v2578
    %v2580 = vpop.f32.mrb[0].mxu0
    %2581 = vdwg.mxu0
    %v2582 = vmax.f32 %v2472, %v2499
    %v2583 = vmax.f32 %v2475, %v2504
    %v2584 = vmax.f32 %v2480, %v2507
    %v2585 = vmax.f32 %v2483, %v2512
    %v2586 = vmax.f32 %v2488, %v2515
    %v2587 = vmax.f32 %v2491, %v2520
    %v2588 = vmax.f32 %v2496, %v2523
    %v2589 = vmax.f32 %v2582, %v2528
    %v2590 = vmax.f32 %v2583, %v2531
    %v2591 = vmax.f32 %v2584, %v2536
    %v2592 = vmax.f32 %v2585, %v2539
    %v2593 = vmax.f32 %v2586, %v2544
    %v2594 = vmax.f32 %v2587, %v2547
    %v2595 = vmax.f32 %v2588, %v2552
    %v2596 = vmax.f32 %v2589, %v2555
    %v2597 = vmax.f32 %v2590, %v2560
    %v2598 = vmax.f32 %v2591, %v2563
    %v2599 = vmax.f32 %v2592, %v2568
    %v2600 = vmax.f32 %v2593, %v2571
    %v2601 = vmax.f32 %v2594, %v2576
    %v2602 = vmax.f32 %v2595, %v2579
    %v2603 = vld [vmem:[#allocation4 + $0x6] sm:$0x1]
    %v2605 = vlaneseq
    %v2606 = vshrl.u32 %v2605, 7
    %v2607 = vsub.s32 0, %v2606
    %v2608 = vrot.slane %v2603, %v2607
    %v2610 = vadd.f32 %v2596, %v2608
    %v2611 = vadd.f32 %v2597, %v2608
    %v2612 = vadd.f32 %v2598, %v2608
    %v2613 = vadd.f32 %v2599, %v2608
    %v2614 = vadd.f32 %v2600, %v2608
    %v2615 = vadd.f32 %v2601, %v2608
    %v2616 = vadd.f32 %v2602, %v2608
    %v2617 = vmax.f32 %v2610, 0.0
    %v2618 = vmax.f32 %v2611, 0.0
    %v2619 = vmax.f32 %v2612, 0.0
    %v2620 = vmax.f32 %v2613, 0.0
    %v2621 = vmax.f32 %v2614, 0.0
    %v2622 = vmax.f32 %v2615, 0.0
    %v2623 = vmax.f32 %v2616, 0.0
    %2624 = vst [vmem:[%s3 + $0x30] sm:$0xff] %v2617
    %2625 = vst [vmem:[%s3 + $0x68] sm:$0xff] %v2618
    %2626 = vst [vmem:[%s3 + $0xa0] sm:$0xff] %v2619
    %2627 = vst [vmem:[%s3 + $0xd8] sm:$0xff] %v2620
    %2628 = vst [vmem:[%s3 + $0x110] sm:$0xff] %v2621
    %2629 = vst [vmem:[%s3 + $0x148] sm:$0xff] %v2622
    %2630 = vst [vmem:[%s3 + $0x180] sm:$0xff] %v2623
    // Predicated region
    $region22: #{model_forward.4} parent=1 // pred_check
      _
    $region23: #{model_forward.4} parent=1 // pred_check_branch
      %2632 = sbr.rel (0) target = $region25
    $region24: #{model_forward.4} parent=1 // pred_region
      _
    $region25: #{model_forward.4} parent=1 // pred_fallthru
      _
    // Predicated region
    $region26: #{model_forward.4} parent=1 // pred_check
      _
    $region27: #{model_forward.4} parent=1 // pred_check_branch
      %2634 = sbr.rel (0) target = $region29
    $region28: #{model_forward.4} parent=1 // pred_region
      _
    $region29: #{model_forward.4} parent=1 // pred_fallthru
      _
    %2635 = vsyncpa [#allocation3], 1
    %2636 = vsyncpa [#allocation5], 1

// kernel: model_forward.5
$region0: #{model_forward.5}
  #allocation0 [shape = 'u32[]', space=smem, size = 0x4, offset = 0x4, fixed_abs, tag = 'smem constant byte address 0x4 - core index']
  #allocation1 [shape = 'u32[144,128]{1,0:T(1,128)}', space=vmem, size = 0x12000, scoped, tag = 'internal scratch']
  %s0 = inlined_call_operand.vmem [shape: bf16[3,32,2432], index: 0, kind: input, shape index: {}]
  %s1 = inlined_call_operand.vmem [shape: bf16[3,2432,262], index: 1, kind: input, shape index: {}]
  %s2 = inlined_call_operand.vmem [shape: f32[3,1,262], index: 2, kind: input, shape index: {}]
  %s3 = inlined_call_operand.vmem [shape: f32[3,1,262], index: 3, kind: input, shape index: {}]
  %s4 = inlined_call_operand.vmem [shape: f32[3,8,128], index: 4, kind: output, shape index: {}]
  %s5 = sld [smem:[#allocation0]]
  $region49: #{model_forward.5} parent=0
    _
  %s7 = ssub.s32 1, %s5
  %s8 = scalar_select 0, %s7, %s5
  loop: start=0, step=1, limit=5
  $region2: #{model_forward.5} parent=0 // loop_pre_header
    _
  $region3: #{model_forward.5} parent=0 // loop_header
    %s10 = sphi 0, %s14
    %p11 = scmp.ge.s32.totalorder %s10, 5
    %s20 = sphi 0, %s22
    %s23 = sphi 0, %s20
    %s24 = sphi 0, %s23
    %s40 = sphi 0, %s24
    %s46 = sphi 0, %s48
    %s49 = sphi 0, %s46
    %s50 = sphi 0, %s49
    %s66 = sphi 0, %s50
    %s72 = sphi 0, %s74
    %s75 = sphi 0, %s72
    %s76 = sphi 0, %s75
    %s92 = sphi 0, %s76
    %s98 = sphi 0, %s100
    %s101 = sphi 0, %s98
    %s102 = sphi 0, %s101
    %s118 = sphi 0, %s102
    %s124 = sphi 0, %s126
    %s127 = sphi 0, %s124
    %s128 = sphi 0, %s127
    %s144 = sphi 0, %s128
  $region4: #{model_forward.5} parent=0 // loop_header_branch
    %13 = sbr.rel (%p11) target = $region8
  $region5: #{model_forward.5} parent=0 // loop_body
    %s15 = ssub.s32 %s10, 1
    %s16 = ssub.s32 %s10, 2
    %s17 = sadd.s32 %s10, 1
    %s18 = ssub.s32 %s10, %s17
    %p19 = scmp.eq.s32.totalorder %s18, 0
    %s21 = sadd.s32 %s20, 1
    %s22 = scalar_select %p19, %s20, %s21
    %p25 = pneg %p19
    %p26 = scmp.eq.s32.totalorder %s10, 2
    %p27 = por %p25, %p26
    %p28 = scmp.ne.s32.totalorder %s20, %s23
    %p29 = scmp.eq.s32.totalorder %s10, 0
    %p30 = por %p28, %p29
    %p31 = scmp.ne.s32.totalorder %s20, %s23
    %p32 = scmp.eq.s32.totalorder %s15, 2
    %p33 = por %p31, %p32
    %p34 = scmp.ne.s32.totalorder %s23, %s24
    %p35 = scmp.eq.s32.totalorder %s15, 0
    %p36 = por %p34, %p35
    %p37 = scmp.ne.s32.totalorder %s23, %s24
    %p38 = scmp.eq.s32.totalorder %s16, 2
    %p39 = por %p37, %p38
    %p41 = scmp.ne.s32.totalorder %s24, %s40
    %p42 = scmp.eq.s32.totalorder %s16, 0
    %p43 = por %p41, %p42
    %s44 = ssub.s32 %s10, %s17
    %p45 = scmp.eq.s32.totalorder %s44, 0
    %s47 = sadd.s32 %s46, 1
    %s48 = scalar_select %p45, %s46, %s47
    %p51 = pneg %p45
    %p52 = scmp.eq.s32.totalorder %s10, 2
    %p53 = por %p51, %p52
    %p54 = scmp.ne.s32.totalorder %s46, %s49
    %p55 = scmp.eq.s32.totalorder %s10, 0
    %p56 = por %p54, %p55
    %p57 = scmp.ne.s32.totalorder %s46, %s49
    %p58 = scmp.eq.s32.totalorder %s15, 2
    %p59 = por %p57, %p58
    %p60 = scmp.ne.s32.totalorder %s49, %s50
    %p61 = scmp.eq.s32.totalorder %s15, 0
    %p62 = por %p60, %p61
    %p63 = scmp.ne.s32.totalorder %s49, %s50
    %p64 = scmp.eq.s32.totalorder %s16, 2
    %p65 = por %p63, %p64
    %p67 = scmp.ne.s32.totalorder %s50, %s66
    %p68 = scmp.eq.s32.totalorder %s16, 0
    %p69 = por %p67, %p68
    %s70 = ssub.s32 %s10, %s17
    %p71 = scmp.eq.s32.totalorder %s70, 0
    %s73 = sadd.s32 %s72, 1
    %s74 = scalar_select %p71, %s72, %s73
    %p77 = pneg %p71
    %p78 = scmp.eq.s32.totalorder %s10, 2
    %p79 = por %p77, %p78
    %p80 = scmp.ne.s32.totalorder %s72, %s75
    %p81 = scmp.eq.s32.totalorder %s10, 0
    %p82 = por %p80, %p81
    %p83 = scmp.ne.s32.totalorder %s72, %s75
    %p84 = scmp.eq.s32.totalorder %s15, 2
    %p85 = por %p83, %p84
    %p86 = scmp.ne.s32.totalorder %s75, %s76
    %p87 = scmp.eq.s32.totalorder %s15, 0
    %p88 = por %p86, %p87
    %p89 = scmp.ne.s32.totalorder %s75, %s76
    %p90 = scmp.eq.s32.totalorder %s16, 2
    %p91 = por %p89, %p90
    %p93 = scmp.ne.s32.totalorder %s76, %s92
    %p94 = scmp.eq.s32.totalorder %s16, 0
    %p95 = por %p93, %p94
    %s96 = ssub.s32 %s10, %s17
    %p97 = scmp.eq.s32.totalorder %s96, 0
    %s99 = sadd.s32 %s98, 1
    %s100 = scalar_select %p97, %s98, %s99
    %p103 = pneg %p97
    %p104 = scmp.eq.s32.totalorder %s10, 2
    %p105 = por %p103, %p104
    %p106 = scmp.ne.s32.totalorder %s98, %s101
    %p107 = scmp.eq.s32.totalorder %s10, 0
    %p108 = por %p106, %p107
    %p109 = scmp.ne.s32.totalorder %s98, %s101
    %p110 = scmp.eq.s32.totalorder %s15, 2
    %p111 = por %p109, %p110
    %p112 = scmp.ne.s32.totalorder %s101, %s102
    %p113 = scmp.eq.s32.totalorder %s15, 0
    %p114 = por %p112, %p113
    %p115 = scmp.ne.s32.totalorder %s101, %s102
    %p116 = scmp.eq.s32.totalorder %s16, 2
    %p117 = por %p115, %p116
    %p119 = scmp.ne.s32.totalorder %s102, %s118
    %p120 = scmp.eq.s32.totalorder %s16, 0
    %p121 = por %p119, %p120
    %s122 = ssub.s32 %s10, %s17
    %p123 = scmp.eq.s32.totalorder %s122, 0
    %s125 = sadd.s32 %s124, 1
    %s126 = scalar_select %p123, %s124, %s125
    %p129 = pneg %p123
    %p130 = scmp.eq.s32.totalorder %s10, 2
    %p131 = por %p129, %p130
    %p132 = scmp.ne.s32.totalorder %s124, %s127
    %p133 = scmp.eq.s32.totalorder %s10, 0
    %p134 = por %p132, %p133
    %p135 = scmp.ne.s32.totalorder %s124, %s127
    %p136 = scmp.eq.s32.totalorder %s15, 2
    %p137 = por %p135, %p136
    %p138 = scmp.ne.s32.totalorder %s127, %s128
    %p139 = scmp.eq.s32.totalorder %s15, 0
    %p140 = por %p138, %p139
    %p141 = scmp.ne.s32.totalorder %s127, %s128
    %p142 = scmp.eq.s32.totalorder %s16, 2
    %p143 = por %p141, %p142
    %p145 = scmp.ne.s32.totalorder %s128, %s144
    %p146 = scmp.eq.s32.totalorder %s16, 0
    %p147 = por %p145, %p146
    %p148 = scmp.le.s32.totalorder 1, %s10
    %p149 = scmp.lt.s32.totalorder %s10, 4
    %p150 = pnand %p148, %p149
    %p151 = pneg %p150
    // Predicated region
    $region9: #{model_forward.5} parent=5 // pred_check
      _
    $region10: #{model_forward.5} parent=5 // pred_check_branch
      %153 = sbr.rel (%p150) target = $region12
    $region11: #{model_forward.5} parent=5 // pred_region
      %s154 = ssub.s32 %s10, 1
    $region12: #{model_forward.5} parent=5 // pred_fallthru
      _
    %p155 = scmp.lt.s32.totalorder %s10, 3
    // Predicated region
    $region13: #{model_forward.5} parent=5 // pred_check
      %p156 = pneg %p155
    $region14: #{model_forward.5} parent=5 // pred_check_branch
      %158 = sbr.rel (%p156) target = $region16
    $region15: #{model_forward.5} parent=5 // pred_region
      // Predicated region
      $region17: #{model_forward.5} parent=15 // pred_check
        %p159 = pneg %p30
      $region18: #{model_forward.5} parent=15 // pred_check_branch
        %161 = sbr.rel (%p159) target = $region20
      $region19: #{model_forward.5} parent=15 // pred_region
        %p162 = scmp.lt.s32.totalorder %s10, 2
        %s163 = scalar_select %p162, %s10, 2
        %s164 = smul.addr %s163, 76
        %s165 = smul.addr %s164, 4
        %s166 = scalar_lea.vmem %s0, %s165
      $region20: #{model_forward.5} parent=15 // pred_fallthru
        _
      // Predicated region
      $region21: #{model_forward.5} parent=15 // pred_check
        %p167 = pneg %p56
      $region22: #{model_forward.5} parent=15 // pred_check_branch
        %169 = sbr.rel (%p167) target = $region24
      $region23: #{model_forward.5} parent=15 // pred_region
        %p170 = scmp.lt.s32.totalorder %s10, 2
        %s171 = scalar_select %p170, %s10, 2
        %s172 = smul.addr %s171, 912
        %s173 = smul.addr %s172, 4
        %s174 = scalar_lea.vmem %s1, %s173
      $region24: #{model_forward.5} parent=15 // pred_fallthru
        _
      // Predicated region
      $region25: #{model_forward.5} parent=15 // pred_check
        %p175 = pneg %p82
      $region26: #{model_forward.5} parent=15 // pred_check_branch
        %177 = sbr.rel (%p175) target = $region28
      $region27: #{model_forward.5} parent=15 // pred_region
        %p178 = scmp.lt.s32.totalorder %s10, 2
        %s179 = scalar_select %p178, %s10, 2
        %s180 = smul.addr %s179, 3
        %s181 = scalar_lea.vmem %s2, %s180
      $region28: #{model_forward.5} parent=15 // pred_fallthru
        _
      // Predicated region
      $region29: #{model_forward.5} parent=15 // pred_check
        %p182 = pneg %p108
      $region30: #{model_forward.5} parent=15 // pred_check_branch
        %184 = sbr.rel (%p182) target = $region32
      $region31: #{model_forward.5} parent=15 // pred_region
        %p185 = scmp.lt.s32.totalorder %s10, 2
        %s186 = scalar_select %p185, %s10, 2
        %s187 = smul.addr %s186, 3
        %s188 = scalar_lea.vmem %s3, %s187
      $region32: #{model_forward.5} parent=15 // pred_fallthru
        _
    $region16: #{model_forward.5} parent=5 // pred_fallthru
      _
    %p189 = scmp.le.s32.totalorder 1, %s10
    %p190 = scmp.lt.s32.totalorder %s10, 4
    %p191 = pnand %p189, %p190
    %p192 = pneg %p191
    // Predicated region
    $region33: #{model_forward.5} parent=5 // pred_check
      _
    $region34: #{model_forward.5} parent=5 // pred_check_branch
      %194 = sbr.rel (%p191) target = $region36
    $region35: #{model_forward.5} parent=5 // pred_region
      %s195 = ssub.s32 %s10, 1
      %p196 = scmp.lt.s32.totalorder %s15, 2
      %s197 = scalar_select %p196, %s15, 2
      %s198 = smul.addr %s197, 76
      %s199 = smul.addr %s198, 4
      %s200 = scalar_lea.vmem %s0, %s199
      %p201 = pneg %p36
      %p202 = pneg %p33
      %p203 = scmp.lt.s32.totalorder %s15, 2
      %s204 = scalar_select %p203, %s15, 2
      %s205 = smul.addr %s204, 912
      %s206 = smul.addr %s205, 4
      %s207 = scalar_lea.vmem %s1, %s206
      %p208 = pneg %p62
      %p209 = pneg %p59
      %p210 = scmp.lt.s32.totalorder %s15, 2
      %s211 = scalar_select %p210, %s15, 2
      %s212 = smul.addr %s211, 3
      %s213 = scalar_lea.vmem %s2, %s212
      %p214 = pneg %p88
      %p215 = pneg %p85
      %p216 = scmp.lt.s32.totalorder %s15, 2
      %s217 = scalar_select %p216, %s15, 2
      %s218 = smul.addr %s217, 3
      %s219 = scalar_lea.vmem %s3, %s218
      %p220 = pneg %p114
      %p221 = pneg %p111
      %p222 = pneg %p140
      %p223 = pneg %p137
      %p224 = scmp.lt.s32.totalorder %s15, 2
      %s225 = scalar_select %p224, %s15, 2
      %s226 = smul.addr %s225, 8
      %s227 = scalar_lea.vmem %s4, %s226
      %p228 = scmp.lt.s32.totalorder %s15, 2
      %s229 = scalar_select %p228, %s15, 2
      %s230 = smul.addr %s229, 76
      %s231 = smul.addr %s230, 4
      %s232 = scalar_lea.vmem %s0, %s231
      %p233 = scmp.lt.s32.totalorder %s15, 2
      %s234 = scalar_select %p233, %s15, 2
      %s235 = smul.addr %s234, 912
      %s236 = smul.addr %s235, 4
      %s237 = scalar_lea.vmem %s1, %s236
      %p238 = scmp.lt.s32.totalorder %s15, 2
      %s239 = scalar_select %p238, %s15, 2
      %s240 = smul.addr %s239, 3
      %s241 = scalar_lea.vmem %s2, %s240
      %p242 = scmp.lt.s32.totalorder %s15, 2
      %s243 = scalar_select %p242, %s15, 2
      %s244 = smul.addr %s243, 3
      %s245 = scalar_lea.vmem %s3, %s244
      %p246 = scmp.lt.s32.totalorder %s15, 2
      %s247 = scalar_select %p246, %s15, 2
      %s248 = smul.addr %s247, 8
      %s249 = scalar_lea.vmem %s4, %s248
      %v251 = vld [vmem:[%s232] sm:$0xff]
      %v252 = vld [vmem:[%s232 + $0x8] sm:$0xff]
      %v253 = vld [vmem:[%s232 + $0x10] sm:$0xff]
      %v254 = vld [vmem:[%s232 + $0x18] sm:$0xff]
      %v255 = vld [vmem:[%s232 + $0x20] sm:$0xff]
      %v256 = vld [vmem:[%s232 + $0x28] sm:$0xff]
      %v257 = vld [vmem:[%s232 + $0x30] sm:$0xff]
      %v258 = vld [vmem:[%s232 + $0x38] sm:$0xff]
      %v259 = vld [vmem:[%s232 + $0x40] sm:$0xff]
      %v260 = vld [vmem:[%s232 + $0x48] sm:$0xf]
      %v261 = vld [vmem:[%s232 + $0x4c] sm:$0xff]
      %v262 = vld [vmem:[%s232 + $0x54] sm:$0xff]
      %v263 = vld [vmem:[%s232 + $0x5c] sm:$0xff]
      %v264 = vld [vmem:[%s232 + $0x64] sm:$0xff]
      %v265 = vld [vmem:[%s232 + $0x6c] sm:$0xff]
      %v266 = vld [vmem:[%s232 + $0x74] sm:$0xff]
      %v267 = vld [vmem:[%s232 + $0x7c] sm:$0xff]
      %v268 = vld [vmem:[%s232 + $0x84] sm:$0xff]
      %v269 = vld [vmem:[%s232 + $0x8c] sm:$0xff]
      %v270 = vld [vmem:[%s232 + $0x94] sm:$0xf]
      %v271 = vld [vmem:[%s232 + $0x98] sm:$0xff]
      %v272 = vld [vmem:[%s232 + $0xa0] sm:$0xff]
      %v273 = vld [vmem:[%s232 + $0xa8] sm:$0xff]
      %v274 = vld [vmem:[%s232 + $0xb0] sm:$0xff]
      %v275 = vld [vmem:[%s232 + $0xb8] sm:$0xff]
      %v276 = vld [vmem:[%s232 + $0xc0] sm:$0xff]
      %v277 = vld [vmem:[%s232 + $0xc8] sm:$0xff]
      %v278 = vld [vmem:[%s232 + $0xd0] sm:$0xff]
      %v279 = vld [vmem:[%s232 + $0xd8] sm:$0xff]
      %v280 = vld [vmem:[%s232 + $0xe0] sm:$0xf]
      %v281 = vld [vmem:[%s232 + $0xe4] sm:$0xff]
      %v282 = vld [vmem:[%s232 + $0xec] sm:$0xff]
      %v283 = vld [vmem:[%s232 + $0xf4] sm:$0xff]
      %v284 = vld [vmem:[%s232 + $0xfc] sm:$0xff]
      %v285 = vld [vmem:[%s232 + $0x104] sm:$0xff]
      %v286 = vld [vmem:[%s232 + $0x10c] sm:$0xff]
      %v287 = vld [vmem:[%s232 + $0x114] sm:$0xff]
      %v288 = vld [vmem:[%s232 + $0x11c] sm:$0xff]
      %v289 = vld [vmem:[%s232 + $0x124] sm:$0xff]
      %v290 = vld [vmem:[%s232 + $0x12c] sm:$0xf]
      %v291 = vld [vmem:[%s237] sm:$0xff]
      %v292 = vld [vmem:[%s237 + $0x8] sm:$0xf]
      %v293 = vld [vmem:[%s237 + $0xc] sm:$0xff]
      %v294 = vld [vmem:[%s237 + $0x14] sm:$0xf]
      %v295 = vld [vmem:[%s237 + $0x18] sm:$0xff]
      %v296 = vld [vmem:[%s237 + $0x20] sm:$0xf]
      %v297 = vld [vmem:[%s237 + $0x24] sm:$0xff]
      %v298 = vld [vmem:[%s237 + $0x2c] sm:$0xf]
      %v299 = vld [vmem:[%s237 + $0x30] sm:$0xff]
      %v300 = vld [vmem:[%s237 + $0x38] sm:$0xf]
      %v301 = vld [vmem:[%s237 + $0x3c] sm:$0xff]
      %v302 = vld [vmem:[%s237 + $0x44] sm:$0xf]
      %v303 = vld [vmem:[%s237 + $0x48] sm:$0xff]
      %v304 = vld [vmem:[%s237 + $0x50] sm:$0xf]
      %v305 = vld [vmem:[%s237 + $0x54] sm:$0xff]
      %v306 = vld [vmem:[%s237 + $0x5c] sm:$0xf]
      %v307 = vld [vmem:[%s237 + $0x60] sm:$0xff]
      %v308 = vld [vmem:[%s237 + $0x68] sm:$0xf]
      %v309 = vld [vmem:[%s237 + $0x6c] sm:$0xff]
      %v310 = vld [vmem:[%s237 + $0x74] sm:$0xf]
      %v311 = vld [vmem:[%s237 + $0x78] sm:$0xff]
      %v312 = vld [vmem:[%s237 + $0x80] sm:$0xf]
      %v313 = vld [vmem:[%s237 + $0x84] sm:$0xff]
      %v314 = vld [vmem:[%s237 + $0x8c] sm:$0xf]
      %v315 = vld [vmem:[%s237 + $0x90] sm:$0xff]
      %v316 = vld [vmem:[%s237 + $0x98] sm:$0xf]
      %v317 = vld [vmem:[%s237 + $0x9c] sm:$0xff]
      %v318 = vld [vmem:[%s237 + $0xa4] sm:$0xf]
      %v319 = vld [vmem:[%s237 + $0xa8] sm:$0xff]
      %v320 = vld [vmem:[%s237 + $0xb0] sm:$0xf]
      %v321 = vld [vmem:[%s237 + $0xb4] sm:$0xff]
      %v322 = vld [vmem:[%s237 + $0xbc] sm:$0xf]
      %v323 = vld [vmem:[%s237 + $0xc0] sm:$0xff]
      %v324 = vld [vmem:[%s237 + $0xc8] sm:$0xf]
      %v325 = vld [vmem:[%s237 + $0xcc] sm:$0xff]
      %v326 = vld [vmem:[%s237 + $0xd4] sm:$0xf]
      %v327 = vld [vmem:[%s237 + $0xd8] sm:$0xff]
      %v328 = vld [vmem:[%s237 + $0xe0] sm:$0xf]
      %v329 = vld [vmem:[%s237 + $0xe4] sm:$0xff]
      %v330 = vld [vmem:[%s237 + $0xec] sm:$0xf]
      %v331 = vld [vmem:[%s237 + $0xf0] sm:$0xff]
      %v332 = vld [vmem:[%s237 + $0xf8] sm:$0xf]
      %v333 = vld [vmem:[%s237 + $0xfc] sm:$0xff]
      %v334 = vld [vmem:[%s237 + $0x104] sm:$0xf]
      %v335 = vld [vmem:[%s237 + $0x108] sm:$0xff]
      %v336 = vld [vmem:[%s237 + $0x110] sm:$0xf]
      %v337 = vld [vmem:[%s237 + $0x114] sm:$0xff]
      %v338 = vld [vmem:[%s237 + $0x11c] sm:$0xf]
      %v339 = vld [vmem:[%s237 + $0x120] sm:$0xff]
      %v340 = vld [vmem:[%s237 + $0x128] sm:$0xf]
      %v341 = vld [vmem:[%s237 + $0x12c] sm:$0xff]
      %v342 = vld [vmem:[%s237 + $0x134] sm:$0xf]
      %v343 = vld [vmem:[%s237 + $0x138] sm:$0xff]
      %v344 = vld [vmem:[%s237 + $0x140] sm:$0xf]
      %v345 = vld [vmem:[%s237 + $0x144] sm:$0xff]
      %v346 = vld [vmem:[%s237 + $0x14c] sm:$0xf]
      %v347 = vld [vmem:[%s237 + $0x150] sm:$0xff]
      %v348 = vld [vmem:[%s237 + $0x158] sm:$0xf]
      %v349 = vld [vmem:[%s237 + $0x15c] sm:$0xff]
      %v350 = vld [vmem:[%s237 + $0x164] sm:$0xf]
      %v351 = vld [vmem:[%s237 + $0x168] sm:$0xff]
      %v352 = vld [vmem:[%s237 + $0x170] sm:$0xf]
      %v353 = vld [vmem:[%s237 + $0x174] sm:$0xff]
      %v354 = vld [vmem:[%s237 + $0x17c] sm:$0xf]
      %v355 = vld [vmem:[%s237 + $0x180] sm:$0xff]
      %v356 = vld [vmem:[%s237 + $0x188] sm:$0xf]
      %v357 = vld [vmem:[%s237 + $0x18c] sm:$0xff]
      %v358 = vld [vmem:[%s237 + $0x194] sm:$0xf]
      %v359 = vld [vmem:[%s237 + $0x198] sm:$0xff]
      %v360 = vld [vmem:[%s237 + $0x1a0] sm:$0xf]
      %v361 = vld [vmem:[%s237 + $0x1a4] sm:$0xff]
      %v362 = vld [vmem:[%s237 + $0x1ac] sm:$0xf]
      %v363 = vld [vmem:[%s237 + $0x1b0] sm:$0xff]
      %v364 = vld [vmem:[%s237 + $0x1b8] sm:$0xf]
      %v365 = vld [vmem:[%s237 + $0x1bc] sm:$0xff]
      %v366 = vld [vmem:[%s237 + $0x1c4] sm:$0xf]
      %v367 = vld [vmem:[%s237 + $0x1c8] sm:$0xff]
      %v368 = vld [vmem:[%s237 + $0x1d0] sm:$0xf]
      %v369 = vld [vmem:[%s237 + $0x1d4] sm:$0xff]
      %v370 = vld [vmem:[%s237 + $0x1dc] sm:$0xf]
      %v371 = vld [vmem:[%s237 + $0x1e0] sm:$0xff]
      %v372 = vld [vmem:[%s237 + $0x1e8] sm:$0xf]
      %v373 = vld [vmem:[%s237 + $0x1ec] sm:$0xff]
      %v374 = vld [vmem:[%s237 + $0x1f4] sm:$0xf]
      %v375 = vld [vmem:[%s237 + $0x1f8] sm:$0xff]
      %v376 = vld [vmem:[%s237 + $0x200] sm:$0xf]
      %v377 = vld [vmem:[%s237 + $0x204] sm:$0xff]
      %v378 = vld [vmem:[%s237 + $0x20c] sm:$0xf]
      %v379 = vld [vmem:[%s237 + $0x210] sm:$0xff]
      %v380 = vld [vmem:[%s237 + $0x218] sm:$0xf]
      %v381 = vld [vmem:[%s237 + $0x21c] sm:$0xff]
      %v382 = vld [vmem:[%s237 + $0x224] sm:$0xf]
      %v383 = vld [vmem:[%s237 + $0x228] sm:$0xff]
      %v384 = vld [vmem:[%s237 + $0x230] sm:$0xf]
      %v385 = vld [vmem:[%s237 + $0x234] sm:$0xff]
      %v386 = vld [vmem:[%s237 + $0x23c] sm:$0xf]
      %v387 = vld [vmem:[%s237 + $0x240] sm:$0xff]
      %v388 = vld [vmem:[%s237 + $0x248] sm:$0xf]
      %v389 = vld [vmem:[%s237 + $0x24c] sm:$0xff]
      %v390 = vld [vmem:[%s237 + $0x254] sm:$0xf]
      %v391 = vld [vmem:[%s237 + $0x258] sm:$0xff]
      %v392 = vld [vmem:[%s237 + $0x260] sm:$0xf]
      %v393 = vld [vmem:[%s237 + $0x264] sm:$0xff]
      %v394 = vld [vmem:[%s237 + $0x26c] sm:$0xf]
      %v395 = vld [vmem:[%s237 + $0x270] sm:$0xff]
      %v396 = vld [vmem:[%s237 + $0x278] sm:$0xf]
      %v397 = vld [vmem:[%s237 + $0x27c] sm:$0xff]
      %v398 = vld [vmem:[%s237 + $0x284] sm:$0xf]
      %v399 = vld [vmem:[%s237 + $0x288] sm:$0xff]
      %v400 = vld [vmem:[%s237 + $0x290] sm:$0xf]
      %v401 = vld [vmem:[%s237 + $0x294] sm:$0xff]
      %v402 = vld [vmem:[%s237 + $0x29c] sm:$0xf]
      %v403 = vld [vmem:[%s237 + $0x2a0] sm:$0xff]
      %v404 = vld [vmem:[%s237 + $0x2a8] sm:$0xf]
      %v405 = vld [vmem:[%s237 + $0x2ac] sm:$0xff]
      %v406 = vld [vmem:[%s237 + $0x2b4] sm:$0xf]
      %v407 = vld [vmem:[%s237 + $0x2b8] sm:$0xff]
      %v408 = vld [vmem:[%s237 + $0x2c0] sm:$0xf]
      %v409 = vld [vmem:[%s237 + $0x2c4] sm:$0xff]
      %v410 = vld [vmem:[%s237 + $0x2cc] sm:$0xf]
      %v411 = vld [vmem:[%s237 + $0x2d0] sm:$0xff]
      %v412 = vld [vmem:[%s237 + $0x2d8] sm:$0xf]
      %v413 = vld [vmem:[%s237 + $0x2dc] sm:$0xff]
      %v414 = vld [vmem:[%s237 + $0x2e4] sm:$0xf]
      %v415 = vld [vmem:[%s237 + $0x2e8] sm:$0xff]
      %v416 = vld [vmem:[%s237 + $0x2f0] sm:$0xf]
      %v417 = vld [vmem:[%s237 + $0x2f4] sm:$0xff]
      %v418 = vld [vmem:[%s237 + $0x2fc] sm:$0xf]
      %v419 = vld [vmem:[%s237 + $0x300] sm:$0xff]
      %v420 = vld [vmem:[%s237 + $0x308] sm:$0xf]
      %v421 = vld [vmem:[%s237 + $0x30c] sm:$0xff]
      %v422 = vld [vmem:[%s237 + $0x314] sm:$0xf]
      %v423 = vld [vmem:[%s237 + $0x318] sm:$0xff]
      %v424 = vld [vmem:[%s237 + $0x320] sm:$0xf]
      %v425 = vld [vmem:[%s237 + $0x324] sm:$0xff]
      %v426 = vld [vmem:[%s237 + $0x32c] sm:$0xf]
      %v427 = vld [vmem:[%s237 + $0x330] sm:$0xff]
      %v428 = vld [vmem:[%s237 + $0x338] sm:$0xf]
      %v429 = vld [vmem:[%s237 + $0x33c] sm:$0xff]
      %v430 = vld [vmem:[%s237 + $0x344] sm:$0xf]
      %v431 = vld [vmem:[%s237 + $0x348] sm:$0xff]
      %v432 = vld [vmem:[%s237 + $0x350] sm:$0xf]
      %v433 = vld [vmem:[%s237 + $0x354] sm:$0xff]
      %v434 = vld [vmem:[%s237 + $0x35c] sm:$0xf]
      %v435 = vld [vmem:[%s237 + $0x360] sm:$0xff]
      %v436 = vld [vmem:[%s237 + $0x368] sm:$0xf]
      %v437 = vld [vmem:[%s237 + $0x36c] sm:$0xff]
      %v438 = vld [vmem:[%s237 + $0x374] sm:$0xf]
      %v439 = vld [vmem:[%s237 + $0x378] sm:$0xff]
      %v440 = vld [vmem:[%s237 + $0x380] sm:$0xf]
      %v441 = vld [vmem:[%s237 + $0x384] sm:$0xff]
      %v442 = vld [vmem:[%s237 + $0x38c] sm:$0xf]
      %v443 = vld [vmem:[%s237 + $0x390] sm:$0xff]
      %v444 = vld [vmem:[%s237 + $0x398] sm:$0xf]
      %v445 = vld [vmem:[%s237 + $0x39c] sm:$0xff]
      %v446 = vld [vmem:[%s237 + $0x3a4] sm:$0xf]
      %v447 = vld [vmem:[%s237 + $0x3a8] sm:$0xff]
      %v448 = vld [vmem:[%s237 + $0x3b0] sm:$0xf]
      %v449 = vld [vmem:[%s237 + $0x3b4] sm:$0xff]
      %v450 = vld [vmem:[%s237 + $0x3bc] sm:$0xf]
      %v451 = vld [vmem:[%s237 + $0x3c0] sm:$0xff]
      %v452 = vld [vmem:[%s237 + $0x3c8] sm:$0xf]
      %v453 = vld [vmem:[%s237 + $0x3cc] sm:$0xff]
      %v454 = vld [vmem:[%s237 + $0x3d4] sm:$0xf]
      %v455 = vld [vmem:[%s237 + $0x3d8] sm:$0xff]
      %v456 = vld [vmem:[%s237 + $0x3e0] sm:$0xf]
      %v457 = vld [vmem:[%s237 + $0x3e4] sm:$0xff]
      %v458 = vld [vmem:[%s237 + $0x3ec] sm:$0xf]
      %v459 = vld [vmem:[%s237 + $0x3f0] sm:$0xff]
      %v460 = vld [vmem:[%s237 + $0x3f8] sm:$0xf]
      %v461 = vld [vmem:[%s237 + $0x3fc] sm:$0xff]
      %v462 = vld [vmem:[%s237 + $0x404] sm:$0xf]
      %v463 = vld [vmem:[%s237 + $0x408] sm:$0xff]
      %v464 = vld [vmem:[%s237 + $0x410] sm:$0xf]
      %v465 = vld [vmem:[%s237 + $0x414] sm:$0xff]
      %v466 = vld [vmem:[%s237 + $0x41c] sm:$0xf]
      %v467 = vld [vmem:[%s237 + $0x420] sm:$0xff]
      %v468 = vld [vmem:[%s237 + $0x428] sm:$0xf]
      %v469 = vld [vmem:[%s237 + $0x42c] sm:$0xff]
      %v470 = vld [vmem:[%s237 + $0x434] sm:$0xf]
      %v471 = vld [vmem:[%s237 + $0x438] sm:$0xff]
      %v472 = vld [vmem:[%s237 + $0x440] sm:$0xf]
      %v473 = vld [vmem:[%s237 + $0x444] sm:$0xff]
      %v474 = vld [vmem:[%s237 + $0x44c] sm:$0xf]
      %v475 = vld [vmem:[%s237 + $0x450] sm:$0xff]
      %v476 = vld [vmem:[%s237 + $0x458] sm:$0xf]
      %v477 = vld [vmem:[%s237 + $0x45c] sm:$0xff]
      %v478 = vld [vmem:[%s237 + $0x464] sm:$0xf]
      %v479 = vld [vmem:[%s237 + $0x468] sm:$0xff]
      %v480 = vld [vmem:[%s237 + $0x470] sm:$0xf]
      %v481 = vld [vmem:[%s237 + $0x474] sm:$0xff]
      %v482 = vld [vmem:[%s237 + $0x47c] sm:$0xf]
      %v483 = vld [vmem:[%s237 + $0x480] sm:$0xff]
      %v484 = vld [vmem:[%s237 + $0x488] sm:$0xf]
      %v485 = vld [vmem:[%s237 + $0x48c] sm:$0xff]
      %v486 = vld [vmem:[%s237 + $0x494] sm:$0xf]
      %v487 = vld [vmem:[%s237 + $0x498] sm:$0xff]
      %v488 = vld [vmem:[%s237 + $0x4a0] sm:$0xf]
      %v489 = vld [vmem:[%s237 + $0x4a4] sm:$0xff]
      %v490 = vld [vmem:[%s237 + $0x4ac] sm:$0xf]
      %v491 = vld [vmem:[%s237 + $0x4b0] sm:$0xff]
      %v492 = vld [vmem:[%s237 + $0x4b8] sm:$0xf]
      %v493 = vld [vmem:[%s237 + $0x4bc] sm:$0xff]
      %v494 = vld [vmem:[%s237 + $0x4c4] sm:$0xf]
      %v495 = vld [vmem:[%s237 + $0x4c8] sm:$0xff]
      %v496 = vld [vmem:[%s237 + $0x4d0] sm:$0xf]
      %v497 = vld [vmem:[%s237 + $0x4d4] sm:$0xff]
      %v498 = vld [vmem:[%s237 + $0x4dc] sm:$0xf]
      %v499 = vld [vmem:[%s237 + $0x4e0] sm:$0xff]
      %v500 = vld [vmem:[%s237 + $0x4e8] sm:$0xf]
      %v501 = vld [vmem:[%s237 + $0x4ec] sm:$0xff]
      %v502 = vld [vmem:[%s237 + $0x4f4] sm:$0xf]
      %v503 = vld [vmem:[%s237 + $0x4f8] sm:$0xff]
      %v504 = vld [vmem:[%s237 + $0x500] sm:$0xf]
      %v505 = vld [vmem:[%s237 + $0x504] sm:$0xff]
      %v506 = vld [vmem:[%s237 + $0x50c] sm:$0xf]
      %v507 = vld [vmem:[%s237 + $0x510] sm:$0xff]
      %v508 = vld [vmem:[%s237 + $0x518] sm:$0xf]
      %v509 = vld [vmem:[%s237 + $0x51c] sm:$0xff]
      %v510 = vld [vmem:[%s237 + $0x524] sm:$0xf]
      %v511 = vld [vmem:[%s237 + $0x528] sm:$0xff]
      %v512 = vld [vmem:[%s237 + $0x530] sm:$0xf]
      %v513 = vld [vmem:[%s237 + $0x534] sm:$0xff]
      %v514 = vld [vmem:[%s237 + $0x53c] sm:$0xf]
      %v515 = vld [vmem:[%s237 + $0x540] sm:$0xff]
      %v516 = vld [vmem:[%s237 + $0x548] sm:$0xf]
      %v517 = vld [vmem:[%s237 + $0x54c] sm:$0xff]
      %v518 = vld [vmem:[%s237 + $0x554] sm:$0xf]
      %v519 = vld [vmem:[%s237 + $0x558] sm:$0xff]
      %v520 = vld [vmem:[%s237 + $0x560] sm:$0xf]
      %v521 = vld [vmem:[%s237 + $0x564] sm:$0xff]
      %v522 = vld [vmem:[%s237 + $0x56c] sm:$0xf]
      %v523 = vld [vmem:[%s237 + $0x570] sm:$0xff]
      %v524 = vld [vmem:[%s237 + $0x578] sm:$0xf]
      %v525 = vld [vmem:[%s237 + $0x57c] sm:$0xff]
      %v526 = vld [vmem:[%s237 + $0x584] sm:$0xf]
      %v527 = vld [vmem:[%s237 + $0x588] sm:$0xff]
      %v528 = vld [vmem:[%s237 + $0x590] sm:$0xf]
      %v529 = vld [vmem:[%s237 + $0x594] sm:$0xff]
      %v530 = vld [vmem:[%s237 + $0x59c] sm:$0xf]
      %v531 = vld [vmem:[%s237 + $0x5a0] sm:$0xff]
      %v532 = vld [vmem:[%s237 + $0x5a8] sm:$0xf]
      %v533 = vld [vmem:[%s237 + $0x5ac] sm:$0xff]
      %v534 = vld [vmem:[%s237 + $0x5b4] sm:$0xf]
      %v535 = vld [vmem:[%s237 + $0x5b8] sm:$0xff]
      %v536 = vld [vmem:[%s237 + $0x5c0] sm:$0xf]
      %v537 = vld [vmem:[%s237 + $0x5c4] sm:$0xff]
      %v538 = vld [vmem:[%s237 + $0x5cc] sm:$0xf]
      %v539 = vld [vmem:[%s237 + $0x5d0] sm:$0xff]
      %v540 = vld [vmem:[%s237 + $0x5d8] sm:$0xf]
      %v541 = vld [vmem:[%s237 + $0x5dc] sm:$0xff]
      %v542 = vld [vmem:[%s237 + $0x5e4] sm:$0xf]
      %v543 = vld [vmem:[%s237 + $0x5e8] sm:$0xff]
      %v544 = vld [vmem:[%s237 + $0x5f0] sm:$0xf]
      %v545 = vld [vmem:[%s237 + $0x5f4] sm:$0xff]
      %v546 = vld [vmem:[%s237 + $0x5fc] sm:$0xf]
      %v547 = vld [vmem:[%s237 + $0x600] sm:$0xff]
      %v548 = vld [vmem:[%s237 + $0x608] sm:$0xf]
      %v549 = vld [vmem:[%s237 + $0x60c] sm:$0xff]
      %v550 = vld [vmem:[%s237 + $0x614] sm:$0xf]
      %v551 = vld [vmem:[%s237 + $0x618] sm:$0xff]
      %v552 = vld [vmem:[%s237 + $0x620] sm:$0xf]
      %v553 = vld [vmem:[%s237 + $0x624] sm:$0xff]
      %v554 = vld [vmem:[%s237 + $0x62c] sm:$0xf]
      %v555 = vld [vmem:[%s237 + $0x630] sm:$0xff]
      %v556 = vld [vmem:[%s237 + $0x638] sm:$0xf]
      %v557 = vld [vmem:[%s237 + $0x63c] sm:$0xff]
      %v558 = vld [vmem:[%s237 + $0x644] sm:$0xf]
      %v559 = vld [vmem:[%s237 + $0x648] sm:$0xff]
      %v560 = vld [vmem:[%s237 + $0x650] sm:$0xf]
      %v561 = vld [vmem:[%s237 + $0x654] sm:$0xff]
      %v562 = vld [vmem:[%s237 + $0x65c] sm:$0xf]
      %v563 = vld [vmem:[%s237 + $0x660] sm:$0xff]
      %v564 = vld [vmem:[%s237 + $0x668] sm:$0xf]
      %v565 = vld [vmem:[%s237 + $0x66c] sm:$0xff]
      %v566 = vld [vmem:[%s237 + $0x674] sm:$0xf]
      %v567 = vld [vmem:[%s237 + $0x678] sm:$0xff]
      %v568 = vld [vmem:[%s237 + $0x680] sm:$0xf]
      %v569 = vld [vmem:[%s237 + $0x684] sm:$0xff]
      %v570 = vld [vmem:[%s237 + $0x68c] sm:$0xf]
      %v571 = vld [vmem:[%s237 + $0x690] sm:$0xff]
      %v572 = vld [vmem:[%s237 + $0x698] sm:$0xf]
      %v573 = vld [vmem:[%s237 + $0x69c] sm:$0xff]
      %v574 = vld [vmem:[%s237 + $0x6a4] sm:$0xf]
      %v575 = vld [vmem:[%s237 + $0x6a8] sm:$0xff]
      %v576 = vld [vmem:[%s237 + $0x6b0] sm:$0xf]
      %v577 = vld [vmem:[%s237 + $0x6b4] sm:$0xff]
      %v578 = vld [vmem:[%s237 + $0x6bc] sm:$0xf]
      %v579 = vld [vmem:[%s237 + $0x6c0] sm:$0xff]
      %v580 = vld [vmem:[%s237 + $0x6c8] sm:$0xf]
      %v581 = vld [vmem:[%s237 + $0x6cc] sm:$0xff]
      %v582 = vld [vmem:[%s237 + $0x6d4] sm:$0xf]
      %v583 = vld [vmem:[%s237 + $0x6d8] sm:$0xff]
      %v584 = vld [vmem:[%s237 + $0x6e0] sm:$0xf]
      %v585 = vld [vmem:[%s237 + $0x6e4] sm:$0xff]
      %v586 = vld [vmem:[%s237 + $0x6ec] sm:$0xf]
      %v587 = vld [vmem:[%s237 + $0x6f0] sm:$0xff]
      %v588 = vld [vmem:[%s237 + $0x6f8] sm:$0xf]
      %v589 = vld [vmem:[%s237 + $0x6fc] sm:$0xff]
      %v590 = vld [vmem:[%s237 + $0x704] sm:$0xf]
      %v591 = vld [vmem:[%s237 + $0x708] sm:$0xff]
      %v592 = vld [vmem:[%s237 + $0x710] sm:$0xf]
      %v593 = vld [vmem:[%s237 + $0x714] sm:$0xff]
      %v594 = vld [vmem:[%s237 + $0x71c] sm:$0xf]
      %v595 = vld [vmem:[%s237 + $0x720] sm:$0xff]
      %v596 = vld [vmem:[%s237 + $0x728] sm:$0xf]
      %v597 = vld [vmem:[%s237 + $0x72c] sm:$0xff]
      %v598 = vld [vmem:[%s237 + $0x734] sm:$0xf]
      %v599 = vld [vmem:[%s237 + $0x738] sm:$0xff]
      %v600 = vld [vmem:[%s237 + $0x740] sm:$0xf]
      %v601 = vld [vmem:[%s237 + $0x744] sm:$0xff]
      %v602 = vld [vmem:[%s237 + $0x74c] sm:$0xf]
      %v603 = vld [vmem:[%s237 + $0x750] sm:$0xff]
      %v604 = vld [vmem:[%s237 + $0x758] sm:$0xf]
      %v605 = vld [vmem:[%s237 + $0x75c] sm:$0xff]
      %v606 = vld [vmem:[%s237 + $0x764] sm:$0xf]
      %v607 = vld [vmem:[%s237 + $0x768] sm:$0xff]
      %v608 = vld [vmem:[%s237 + $0x770] sm:$0xf]
      %v609 = vld [vmem:[%s237 + $0x774] sm:$0xff]
      %v610 = vld [vmem:[%s237 + $0x77c] sm:$0xf]
      %v611 = vld [vmem:[%s237 + $0x780] sm:$0xff]
      %v612 = vld [vmem:[%s237 + $0x788] sm:$0xf]
      %v613 = vld [vmem:[%s237 + $0x78c] sm:$0xff]
      %v614 = vld [vmem:[%s237 + $0x794] sm:$0xf]
      %v615 = vld [vmem:[%s237 + $0x798] sm:$0xff]
      %v616 = vld [vmem:[%s237 + $0x7a0] sm:$0xf]
      %v617 = vld [vmem:[%s237 + $0x7a4] sm:$0xff]
      %v618 = vld [vmem:[%s237 + $0x7ac] sm:$0xf]
      %v619 = vld [vmem:[%s237 + $0x7b0] sm:$0xff]
      %v620 = vld [vmem:[%s237 + $0x7b8] sm:$0xf]
      %v621 = vld [vmem:[%s237 + $0x7bc] sm:$0xff]
      %v622 = vld [vmem:[%s237 + $0x7c4] sm:$0xf]
      %v623 = vld [vmem:[%s237 + $0x7c8] sm:$0xff]
      %v624 = vld [vmem:[%s237 + $0x7d0] sm:$0xf]
      %v625 = vld [vmem:[%s237 + $0x7d4] sm:$0xff]
      %v626 = vld [vmem:[%s237 + $0x7dc] sm:$0xf]
      %v627 = vld [vmem:[%s237 + $0x7e0] sm:$0xff]
      %v628 = vld [vmem:[%s237 + $0x7e8] sm:$0xf]
      %v629 = vld [vmem:[%s237 + $0x7ec] sm:$0xff]
      %v630 = vld [vmem:[%s237 + $0x7f4] sm:$0xf]
      %v631 = vld [vmem:[%s237 + $0x7f8] sm:$0xff]
      %v632 = vld [vmem:[%s237 + $0x800] sm:$0xf]
      %v633 = vld [vmem:[%s237 + $0x804] sm:$0xff]
      %v634 = vld [vmem:[%s237 + $0x80c] sm:$0xf]
      %v635 = vld [vmem:[%s237 + $0x810] sm:$0xff]
      %v636 = vld [vmem:[%s237 + $0x818] sm:$0xf]
      %v637 = vld [vmem:[%s237 + $0x81c] sm:$0xff]
      %v638 = vld [vmem:[%s237 + $0x824] sm:$0xf]
      %v639 = vld [vmem:[%s237 + $0x828] sm:$0xff]
      %v640 = vld [vmem:[%s237 + $0x830] sm:$0xf]
      %v641 = vld [vmem:[%s237 + $0x834] sm:$0xff]
      %v642 = vld [vmem:[%s237 + $0x83c] sm:$0xf]
      %v643 = vld [vmem:[%s237 + $0x840] sm:$0xff]
      %v644 = vld [vmem:[%s237 + $0x848] sm:$0xf]
      %v645 = vld [vmem:[%s237 + $0x84c] sm:$0xff]
      %v646 = vld [vmem:[%s237 + $0x854] sm:$0xf]
      %v647 = vld [vmem:[%s237 + $0x858] sm:$0xff]
      %v648 = vld [vmem:[%s237 + $0x860] sm:$0xf]
      %v649 = vld [vmem:[%s237 + $0x864] sm:$0xff]
      %v650 = vld [vmem:[%s237 + $0x86c] sm:$0xf]
      %v651 = vld [vmem:[%s237 + $0x870] sm:$0xff]
      %v652 = vld [vmem:[%s237 + $0x878] sm:$0xf]
      %v653 = vld [vmem:[%s237 + $0x87c] sm:$0xff]
      %v654 = vld [vmem:[%s237 + $0x884] sm:$0xf]
      %v655 = vld [vmem:[%s237 + $0x888] sm:$0xff]
      %v656 = vld [vmem:[%s237 + $0x890] sm:$0xf]
      %v657 = vld [vmem:[%s237 + $0x894] sm:$0xff]
      %v658 = vld [vmem:[%s237 + $0x89c] sm:$0xf]
      %v659 = vld [vmem:[%s237 + $0x8a0] sm:$0xff]
      %v660 = vld [vmem:[%s237 + $0x8a8] sm:$0xf]
      %v661 = vld [vmem:[%s237 + $0x8ac] sm:$0xff]
      %v662 = vld [vmem:[%s237 + $0x8b4] sm:$0xf]
      %v663 = vld [vmem:[%s237 + $0x8b8] sm:$0xff]
      %v664 = vld [vmem:[%s237 + $0x8c0] sm:$0xf]
      %v665 = vld [vmem:[%s237 + $0x8c4] sm:$0xff]
      %v666 = vld [vmem:[%s237 + $0x8cc] sm:$0xf]
      %v667 = vld [vmem:[%s237 + $0x8d0] sm:$0xff]
      %v668 = vld [vmem:[%s237 + $0x8d8] sm:$0xf]
      %v669 = vld [vmem:[%s237 + $0x8dc] sm:$0xff]
      %v670 = vld [vmem:[%s237 + $0x8e4] sm:$0xf]
      %v671 = vld [vmem:[%s237 + $0x8e8] sm:$0xff]
      %v672 = vld [vmem:[%s237 + $0x8f0] sm:$0xf]
      %v673 = vld [vmem:[%s237 + $0x8f4] sm:$0xff]
      %v674 = vld [vmem:[%s237 + $0x8fc] sm:$0xf]
      %v675 = vld [vmem:[%s237 + $0x900] sm:$0xff]
      %v676 = vld [vmem:[%s237 + $0x908] sm:$0xf]
      %v677 = vld [vmem:[%s237 + $0x90c] sm:$0xff]
      %v678 = vld [vmem:[%s237 + $0x914] sm:$0xf]
      %v679 = vld [vmem:[%s237 + $0x918] sm:$0xff]
      %v680 = vld [vmem:[%s237 + $0x920] sm:$0xf]
      %v681 = vld [vmem:[%s237 + $0x924] sm:$0xff]
      %v682 = vld [vmem:[%s237 + $0x92c] sm:$0xf]
      %v683 = vld [vmem:[%s237 + $0x930] sm:$0xff]
      %v684 = vld [vmem:[%s237 + $0x938] sm:$0xf]
      %v685 = vld [vmem:[%s237 + $0x93c] sm:$0xff]
      %v686 = vld [vmem:[%s237 + $0x944] sm:$0xf]
      %v687 = vld [vmem:[%s237 + $0x948] sm:$0xff]
      %v688 = vld [vmem:[%s237 + $0x950] sm:$0xf]
      %v689 = vld [vmem:[%s237 + $0x954] sm:$0xff]
      %v690 = vld [vmem:[%s237 + $0x95c] sm:$0xf]
      %v691 = vld [vmem:[%s237 + $0x960] sm:$0xff]
      %v692 = vld [vmem:[%s237 + $0x968] sm:$0xf]
      %v693 = vld [vmem:[%s237 + $0x96c] sm:$0xff]
      %v694 = vld [vmem:[%s237 + $0x974] sm:$0xf]
      %v695 = vld [vmem:[%s237 + $0x978] sm:$0xff]
      %v696 = vld [vmem:[%s237 + $0x980] sm:$0xf]
      %v697 = vld [vmem:[%s237 + $0x984] sm:$0xff]
      %v698 = vld [vmem:[%s237 + $0x98c] sm:$0xf]
      %v699 = vld [vmem:[%s237 + $0x990] sm:$0xff]
      %v700 = vld [vmem:[%s237 + $0x998] sm:$0xf]
      %v701 = vld [vmem:[%s237 + $0x99c] sm:$0xff]
      %v702 = vld [vmem:[%s237 + $0x9a4] sm:$0xf]
      %v703 = vld [vmem:[%s237 + $0x9a8] sm:$0xff]
      %v704 = vld [vmem:[%s237 + $0x9b0] sm:$0xf]
      %v705 = vld [vmem:[%s237 + $0x9b4] sm:$0xff]
      %v706 = vld [vmem:[%s237 + $0x9bc] sm:$0xf]
      %v707 = vld [vmem:[%s237 + $0x9c0] sm:$0xff]
      %v708 = vld [vmem:[%s237 + $0x9c8] sm:$0xf]
      %v709 = vld [vmem:[%s237 + $0x9cc] sm:$0xff]
      %v710 = vld [vmem:[%s237 + $0x9d4] sm:$0xf]
      %v711 = vld [vmem:[%s237 + $0x9d8] sm:$0xff]
      %v712 = vld [vmem:[%s237 + $0x9e0] sm:$0xf]
      %v713 = vld [vmem:[%s237 + $0x9e4] sm:$0xff]
      %v714 = vld [vmem:[%s237 + $0x9ec] sm:$0xf]
      %v715 = vld [vmem:[%s237 + $0x9f0] sm:$0xff]
      %v716 = vld [vmem:[%s237 + $0x9f8] sm:$0xf]
      %v717 = vld [vmem:[%s237 + $0x9fc] sm:$0xff]
      %v718 = vld [vmem:[%s237 + $0xa04] sm:$0xf]
      %v719 = vld [vmem:[%s237 + $0xa08] sm:$0xff]
      %v720 = vld [vmem:[%s237 + $0xa10] sm:$0xf]
      %v721 = vld [vmem:[%s237 + $0xa14] sm:$0xff]
      %v722 = vld [vmem:[%s237 + $0xa1c] sm:$0xf]
      %v723 = vld [vmem:[%s237 + $0xa20] sm:$0xff]
      %v724 = vld [vmem:[%s237 + $0xa28] sm:$0xf]
      %v725 = vld [vmem:[%s237 + $0xa2c] sm:$0xff]
      %v726 = vld [vmem:[%s237 + $0xa34] sm:$0xf]
      %v727 = vld [vmem:[%s237 + $0xa38] sm:$0xff]
      %v728 = vld [vmem:[%s237 + $0xa40] sm:$0xf]
      %v729 = vld [vmem:[%s237 + $0xa44] sm:$0xff]
      %v730 = vld [vmem:[%s237 + $0xa4c] sm:$0xf]
      %v731 = vld [vmem:[%s237 + $0xa50] sm:$0xff]
      %v732 = vld [vmem:[%s237 + $0xa58] sm:$0xf]
      %v733 = vld [vmem:[%s237 + $0xa5c] sm:$0xff]
      %v734 = vld [vmem:[%s237 + $0xa64] sm:$0xf]
      %v735 = vld [vmem:[%s237 + $0xa68] sm:$0xff]
      %v736 = vld [vmem:[%s237 + $0xa70] sm:$0xf]
      %v737 = vld [vmem:[%s237 + $0xa74] sm:$0xff]
      %v738 = vld [vmem:[%s237 + $0xa7c] sm:$0xf]
      %v739 = vld [vmem:[%s237 + $0xa80] sm:$0xff]
      %v740 = vld [vmem:[%s237 + $0xa88] sm:$0xf]
      %v741 = vld [vmem:[%s237 + $0xa8c] sm:$0xff]
      %v742 = vld [vmem:[%s237 + $0xa94] sm:$0xf]
      %v743 = vld [vmem:[%s237 + $0xa98] sm:$0xff]
      %v744 = vld [vmem:[%s237 + $0xaa0] sm:$0xf]
      %v745 = vld [vmem:[%s237 + $0xaa4] sm:$0xff]
      %v746 = vld [vmem:[%s237 + $0xaac] sm:$0xf]
      %v747 = vld [vmem:[%s237 + $0xab0] sm:$0xff]
      %v748 = vld [vmem:[%s237 + $0xab8] sm:$0xf]
      %v749 = vld [vmem:[%s237 + $0xabc] sm:$0xff]
      %v750 = vld [vmem:[%s237 + $0xac4] sm:$0xf]
      %v751 = vld [vmem:[%s237 + $0xac8] sm:$0xff]
      %v752 = vld [vmem:[%s237 + $0xad0] sm:$0xf]
      %v753 = vld [vmem:[%s237 + $0xad4] sm:$0xff]
      %v754 = vld [vmem:[%s237 + $0xadc] sm:$0xf]
      %v755 = vld [vmem:[%s237 + $0xae0] sm:$0xff]
      %v756 = vld [vmem:[%s237 + $0xae8] sm:$0xf]
      %v757 = vld [vmem:[%s237 + $0xaec] sm:$0xff]
      %v758 = vld [vmem:[%s237 + $0xaf4] sm:$0xf]
      %v759 = vld [vmem:[%s237 + $0xaf8] sm:$0xff]
      %v760 = vld [vmem:[%s237 + $0xb00] sm:$0xf]
      %v761 = vld [vmem:[%s237 + $0xb04] sm:$0xff]
      %v762 = vld [vmem:[%s237 + $0xb0c] sm:$0xf]
      %v763 = vld [vmem:[%s237 + $0xb10] sm:$0xff]
      %v764 = vld [vmem:[%s237 + $0xb18] sm:$0xf]
      %v765 = vld [vmem:[%s237 + $0xb1c] sm:$0xff]
      %v766 = vld [vmem:[%s237 + $0xb24] sm:$0xf]
      %v767 = vld [vmem:[%s237 + $0xb28] sm:$0xff]
      %v768 = vld [vmem:[%s237 + $0xb30] sm:$0xf]
      %v769 = vld [vmem:[%s237 + $0xb34] sm:$0xff]
      %v770 = vld [vmem:[%s237 + $0xb3c] sm:$0xf]
      %v771 = vld [vmem:[%s237 + $0xb40] sm:$0xff]
      %v772 = vld [vmem:[%s237 + $0xb48] sm:$0xf]
      %v773 = vld [vmem:[%s237 + $0xb4c] sm:$0xff]
      %v774 = vld [vmem:[%s237 + $0xb54] sm:$0xf]
      %v775 = vld [vmem:[%s237 + $0xb58] sm:$0xff]
      %v776 = vld [vmem:[%s237 + $0xb60] sm:$0xf]
      %v777 = vld [vmem:[%s237 + $0xb64] sm:$0xff]
      %v778 = vld [vmem:[%s237 + $0xb6c] sm:$0xf]
      %v779 = vld [vmem:[%s237 + $0xb70] sm:$0xff]
      %v780 = vld [vmem:[%s237 + $0xb78] sm:$0xf]
      %v781 = vld [vmem:[%s237 + $0xb7c] sm:$0xff]
      %v782 = vld [vmem:[%s237 + $0xb84] sm:$0xf]
      %v783 = vld [vmem:[%s237 + $0xb88] sm:$0xff]
      %v784 = vld [vmem:[%s237 + $0xb90] sm:$0xf]
      %v785 = vld [vmem:[%s237 + $0xb94] sm:$0xff]
      %v786 = vld [vmem:[%s237 + $0xb9c] sm:$0xf]
      %v787 = vld [vmem:[%s237 + $0xba0] sm:$0xff]
      %v788 = vld [vmem:[%s237 + $0xba8] sm:$0xf]
      %v789 = vld [vmem:[%s237 + $0xbac] sm:$0xff]
      %v790 = vld [vmem:[%s237 + $0xbb4] sm:$0xf]
      %v791 = vld [vmem:[%s237 + $0xbb8] sm:$0xff]
      %v792 = vld [vmem:[%s237 + $0xbc0] sm:$0xf]
      %v793 = vld [vmem:[%s237 + $0xbc4] sm:$0xff]
      %v794 = vld [vmem:[%s237 + $0xbcc] sm:$0xf]
      %v795 = vld [vmem:[%s237 + $0xbd0] sm:$0xff]
      %v796 = vld [vmem:[%s237 + $0xbd8] sm:$0xf]
      %v797 = vld [vmem:[%s237 + $0xbdc] sm:$0xff]
      %v798 = vld [vmem:[%s237 + $0xbe4] sm:$0xf]
      %v799 = vld [vmem:[%s237 + $0xbe8] sm:$0xff]
      %v800 = vld [vmem:[%s237 + $0xbf0] sm:$0xf]
      %v801 = vld [vmem:[%s237 + $0xbf4] sm:$0xff]
      %v802 = vld [vmem:[%s237 + $0xbfc] sm:$0xf]
      %v803 = vld [vmem:[%s237 + $0xc00] sm:$0xff]
      %v804 = vld [vmem:[%s237 + $0xc08] sm:$0xf]
      %v805 = vld [vmem:[%s237 + $0xc0c] sm:$0xff]
      %v806 = vld [vmem:[%s237 + $0xc14] sm:$0xf]
      %v807 = vld [vmem:[%s237 + $0xc18] sm:$0xff]
      %v808 = vld [vmem:[%s237 + $0xc20] sm:$0xf]
      %v809 = vld [vmem:[%s237 + $0xc24] sm:$0xff]
      %v810 = vld [vmem:[%s237 + $0xc2c] sm:$0xf]
      %v811 = vld [vmem:[%s237 + $0xc30] sm:$0xff]
      %v812 = vld [vmem:[%s237 + $0xc38] sm:$0xf]
      %v813 = vld [vmem:[%s237 + $0xc3c] sm:$0xff]
      %v814 = vld [vmem:[%s237 + $0xc44] sm:$0xf]
      %v815 = vld [vmem:[%s237 + $0xc48] sm:$0xff]
      %v816 = vld [vmem:[%s237 + $0xc50] sm:$0xf]
      %v817 = vld [vmem:[%s237 + $0xc54] sm:$0xff]
      %v818 = vld [vmem:[%s237 + $0xc5c] sm:$0xf]
      %v819 = vld [vmem:[%s237 + $0xc60] sm:$0xff]
      %v820 = vld [vmem:[%s237 + $0xc68] sm:$0xf]
      %v821 = vld [vmem:[%s237 + $0xc6c] sm:$0xff]
      %v822 = vld [vmem:[%s237 + $0xc74] sm:$0xf]
      %v823 = vld [vmem:[%s237 + $0xc78] sm:$0xff]
      %v824 = vld [vmem:[%s237 + $0xc80] sm:$0xf]
      %v825 = vld [vmem:[%s237 + $0xc84] sm:$0xff]
      %v826 = vld [vmem:[%s237 + $0xc8c] sm:$0xf]
      %v827 = vld [vmem:[%s237 + $0xc90] sm:$0xff]
      %v828 = vld [vmem:[%s237 + $0xc98] sm:$0xf]
      %v829 = vld [vmem:[%s237 + $0xc9c] sm:$0xff]
      %v830 = vld [vmem:[%s237 + $0xca4] sm:$0xf]
      %v831 = vld [vmem:[%s237 + $0xca8] sm:$0xff]
      %v832 = vld [vmem:[%s237 + $0xcb0] sm:$0xf]
      %v833 = vld [vmem:[%s237 + $0xcb4] sm:$0xff]
      %v834 = vld [vmem:[%s237 + $0xcbc] sm:$0xf]
      %v835 = vld [vmem:[%s237 + $0xcc0] sm:$0xff]
      %v836 = vld [vmem:[%s237 + $0xcc8] sm:$0xf]
      %v837 = vld [vmem:[%s237 + $0xccc] sm:$0xff]
      %v838 = vld [vmem:[%s237 + $0xcd4] sm:$0xf]
      %v839 = vld [vmem:[%s237 + $0xcd8] sm:$0xff]
      %v840 = vld [vmem:[%s237 + $0xce0] sm:$0xf]
      %v841 = vld [vmem:[%s237 + $0xce4] sm:$0xff]
      %v842 = vld [vmem:[%s237 + $0xcec] sm:$0xf]
      %v843 = vld [vmem:[%s237 + $0xcf0] sm:$0xff]
      %v844 = vld [vmem:[%s237 + $0xcf8] sm:$0xf]
      %v845 = vld [vmem:[%s237 + $0xcfc] sm:$0xff]
      %v846 = vld [vmem:[%s237 + $0xd04] sm:$0xf]
      %v847 = vld [vmem:[%s237 + $0xd08] sm:$0xff]
      %v848 = vld [vmem:[%s237 + $0xd10] sm:$0xf]
      %v849 = vld [vmem:[%s237 + $0xd14] sm:$0xff]
      %v850 = vld [vmem:[%s237 + $0xd1c] sm:$0xf]
      %v851 = vld [vmem:[%s237 + $0xd20] sm:$0xff]
      %v852 = vld [vmem:[%s237 + $0xd28] sm:$0xf]
      %v853 = vld [vmem:[%s237 + $0xd2c] sm:$0xff]
      %v854 = vld [vmem:[%s237 + $0xd34] sm:$0xf]
      %v855 = vld [vmem:[%s237 + $0xd38] sm:$0xff]
      %v856 = vld [vmem:[%s237 + $0xd40] sm:$0xf]
      %v857 = vld [vmem:[%s237 + $0xd44] sm:$0xff]
      %v858 = vld [vmem:[%s237 + $0xd4c] sm:$0xf]
      %v859 = vld [vmem:[%s237 + $0xd50] sm:$0xff]
      %v860 = vld [vmem:[%s237 + $0xd58] sm:$0xf]
      %v861 = vld [vmem:[%s237 + $0xd5c] sm:$0xff]
      %v862 = vld [vmem:[%s237 + $0xd64] sm:$0xf]
      %v863 = vld [vmem:[%s237 + $0xd68] sm:$0xff]
      %v864 = vld [vmem:[%s237 + $0xd70] sm:$0xf]
      %v865 = vld [vmem:[%s237 + $0xd74] sm:$0xff]
      %v866 = vld [vmem:[%s237 + $0xd7c] sm:$0xf]
      %v867 = vld [vmem:[%s237 + $0xd80] sm:$0xff]
      %v868 = vld [vmem:[%s237 + $0xd88] sm:$0xf]
      %v869 = vld [vmem:[%s237 + $0xd8c] sm:$0xff]
      %v870 = vld [vmem:[%s237 + $0xd94] sm:$0xf]
      %v871 = vld [vmem:[%s237 + $0xd98] sm:$0xff]
      %v872 = vld [vmem:[%s237 + $0xda0] sm:$0xf]
      %v873 = vld [vmem:[%s237 + $0xda4] sm:$0xff]
      %v874 = vld [vmem:[%s237 + $0xdac] sm:$0xf]
      %v875 = vld [vmem:[%s237 + $0xdb0] sm:$0xff]
      %v876 = vld [vmem:[%s237 + $0xdb8] sm:$0xf]
      %v877 = vld [vmem:[%s237 + $0xdbc] sm:$0xff]
      %v878 = vld [vmem:[%s237 + $0xdc4] sm:$0xf]
      %v879 = vld [vmem:[%s237 + $0xdc8] sm:$0xff]
      %v880 = vld [vmem:[%s237 + $0xdd0] sm:$0xf]
      %v881 = vld [vmem:[%s237 + $0xdd4] sm:$0xff]
      %v882 = vld [vmem:[%s237 + $0xddc] sm:$0xf]
      %v883 = vld [vmem:[%s237 + $0xde0] sm:$0xff]
      %v884 = vld [vmem:[%s237 + $0xde8] sm:$0xf]
      %v885 = vld [vmem:[%s237 + $0xdec] sm:$0xff]
      %v886 = vld [vmem:[%s237 + $0xdf4] sm:$0xf]
      %v887 = vld [vmem:[%s237 + $0xdf8] sm:$0xff]
      %v888 = vld [vmem:[%s237 + $0xe00] sm:$0xf]
      %v889 = vld [vmem:[%s237 + $0xe04] sm:$0xff]
      %v890 = vld [vmem:[%s237 + $0xe0c] sm:$0xf]
      %v891 = vld [vmem:[%s237 + $0xe10] sm:$0xff]
      %v892 = vld [vmem:[%s237 + $0xe18] sm:$0xf]
      %v893 = vld [vmem:[%s237 + $0xe1c] sm:$0xff]
      %v894 = vld [vmem:[%s237 + $0xe24] sm:$0xf]
      %v895 = vld [vmem:[%s237 + $0xe28] sm:$0xff]
      %v896 = vld [vmem:[%s237 + $0xe30] sm:$0xf]
      %v897 = vld [vmem:[%s237 + $0xe34] sm:$0xff]
      %v898 = vld [vmem:[%s237 + $0xe3c] sm:$0xf]
      %v939 = vunpack.c.l.b16 %v251
      %v940 = vunpack.c.h.b16 %v251
      %v941 = vunpack.c.l.b16 %v252
      %v942 = vunpack.c.h.b16 %v252
      %v943 = vunpack.c.l.b16 %v253
      %v944 = vunpack.c.h.b16 %v253
      %v945 = vunpack.c.l.b16 %v254
      %v946 = vunpack.c.h.b16 %v254
      %v947 = vunpack.c.l.b16 %v255
      %v948 = vunpack.c.h.b16 %v255
      %v949 = vunpack.c.l.b16 %v256
      %v950 = vunpack.c.h.b16 %v256
      %v951 = vunpack.c.l.b16 %v257
      %v952 = vunpack.c.h.b16 %v257
      %v953 = vunpack.c.l.b16 %v258
      %v954 = vunpack.c.h.b16 %v258
      %v955 = vunpack.c.l.b16 %v259
      %v956 = vunpack.c.h.b16 %v259
      %v957 = vunpack.c.l.b16 %v260
      %v958 = vunpack.c.l.b16 %v261
      %v959 = vunpack.c.h.b16 %v261
      %v960 = vunpack.c.l.b16 %v262
      %v961 = vunpack.c.h.b16 %v262
      %v962 = vunpack.c.l.b16 %v263
      %v963 = vunpack.c.h.b16 %v263
      %v964 = vunpack.c.l.b16 %v264
      %v965 = vunpack.c.h.b16 %v264
      %v966 = vunpack.c.l.b16 %v265
      %v967 = vunpack.c.h.b16 %v265
      %v968 = vunpack.c.l.b16 %v266
      %v969 = vunpack.c.h.b16 %v266
      %v970 = vunpack.c.l.b16 %v267
      %v971 = vunpack.c.h.b16 %v267
      %v972 = vunpack.c.l.b16 %v268
      %v973 = vunpack.c.h.b16 %v268
      %v974 = vunpack.c.l.b16 %v269
      %v975 = vunpack.c.h.b16 %v269
      %v976 = vunpack.c.l.b16 %v270
      %v977 = vunpack.c.l.b16 %v271
      %v978 = vunpack.c.h.b16 %v271
      %v979 = vunpack.c.l.b16 %v272
      %v980 = vunpack.c.h.b16 %v272
      %v981 = vunpack.c.l.b16 %v273
      %v982 = vunpack.c.h.b16 %v273
      %v983 = vunpack.c.l.b16 %v274
      %v984 = vunpack.c.h.b16 %v274
      %v985 = vunpack.c.l.b16 %v275
      %v986 = vunpack.c.h.b16 %v275
      %v987 = vunpack.c.l.b16 %v276
      %v988 = vunpack.c.h.b16 %v276
      %v989 = vunpack.c.l.b16 %v277
      %v990 = vunpack.c.h.b16 %v277
      %v991 = vunpack.c.l.b16 %v278
      %v992 = vunpack.c.h.b16 %v278
      %v993 = vunpack.c.l.b16 %v279
      %v994 = vunpack.c.h.b16 %v279
      %v995 = vunpack.c.l.b16 %v280
      %v996 = vunpack.c.l.b16 %v281
      %v997 = vunpack.c.h.b16 %v281
      %v998 = vunpack.c.l.b16 %v282
      %v999 = vunpack.c.h.b16 %v282
      %v1000 = vunpack.c.l.b16 %v283
      %v1001 = vunpack.c.h.b16 %v283
      %v1002 = vunpack.c.l.b16 %v284
      %v1003 = vunpack.c.h.b16 %v284
      %v1004 = vunpack.c.l.b16 %v285
      %v1005 = vunpack.c.h.b16 %v285
      %v1006 = vunpack.c.l.b16 %v286
      %v1007 = vunpack.c.h.b16 %v286
      %v1008 = vunpack.c.l.b16 %v287
      %v1009 = vunpack.c.h.b16 %v287
      %v1010 = vunpack.c.l.b16 %v288
      %v1011 = vunpack.c.h.b16 %v288
      %v1012 = vunpack.c.l.b16 %v289
      %v1013 = vunpack.c.h.b16 %v289
      %v1014 = vunpack.c.l.b16 %v290
      %v1015 = vpack.c.b16 %v958, %v939
      %v1016 = vpack.c.b16 %v959, %v940
      %v1017 = vpack.c.b16 %v960, %v941
      %v1018 = vpack.c.b16 %v961, %v942
      %v1019 = vpack.c.b16 %v962, %v943
      %v1020 = vpack.c.b16 %v963, %v944
      %v1021 = vpack.c.b16 %v964, %v945
      %v1022 = vpack.c.b16 %v965, %v946
      %v1023 = vpack.c.b16 %v966, %v947
      %v1024 = vpack.c.b16 %v967, %v948
      %v1025 = vpack.c.b16 %v968, %v949
      %v1026 = vpack.c.b16 %v969, %v950
      %v1027 = vpack.c.b16 %v970, %v951
      %v1028 = vpack.c.b16 %v971, %v952
      %v1029 = vpack.c.b16 %v972, %v953
      %v1030 = vpack.c.b16 %v973, %v954
      %v1031 = vpack.c.b16 %v974, %v955
      %v1032 = vpack.c.b16 %v975, %v956
      %v1033 = vpack.c.b16 %v976, %v957
      %v1034 = vpack.c.b16 %v996, %v977
      %v1035 = vpack.c.b16 %v997, %v978
      %v1036 = vpack.c.b16 %v998, %v979
      %v1037 = vpack.c.b16 %v999, %v980
      %v1038 = vpack.c.b16 %v1000, %v981
      %v1039 = vpack.c.b16 %v1001, %v982
      %v1040 = vpack.c.b16 %v1002, %v983
      %v1041 = vpack.c.b16 %v1003, %v984
      %v1042 = vpack.c.b16 %v1004, %v985
      %v1043 = vpack.c.b16 %v1005, %v986
      %v1044 = vpack.c.b16 %v1006, %v987
      %v1045 = vpack.c.b16 %v1007, %v988
      %v1046 = vpack.c.b16 %v1008, %v989
      %v1047 = vpack.c.b16 %v1009, %v990
      %v1048 = vpack.c.b16 %v1010, %v991
      %v1049 = vpack.c.b16 %v1011, %v992
      %v1050 = vpack.c.b16 %v1012, %v993
      %v1051 = vpack.c.b16 %v1013, %v994
      %v1052 = vpack.c.b16 %v1014, %v995
      %v1699 = vunpack.c.l.b16 %v291
      %v1700 = vunpack.c.h.b16 %v291
      %v1701 = vunpack.c.l.b16 %v292
      %v1702 = vunpack.c.l.b16 %v293
      %v1703 = vunpack.c.h.b16 %v293
      %v1704 = vunpack.c.l.b16 %v294
      %v1705 = vunpack.c.l.b16 %v295
      %v1706 = vunpack.c.h.b16 %v295
      %v1707 = vunpack.c.l.b16 %v296
      %v1708 = vunpack.c.l.b16 %v297
      %v1709 = vunpack.c.h.b16 %v297
      %v1710 = vunpack.c.l.b16 %v298
      %v1711 = vunpack.c.l.b16 %v299
      %v1712 = vunpack.c.h.b16 %v299
      %v1713 = vunpack.c.l.b16 %v300
      %v1714 = vunpack.c.l.b16 %v301
      %v1715 = vunpack.c.h.b16 %v301
      %v1716 = vunpack.c.l.b16 %v302
      %v1717 = vunpack.c.l.b16 %v303
      %v1718 = vunpack.c.h.b16 %v303
      %v1719 = vunpack.c.l.b16 %v304
      %v1720 = vunpack.c.l.b16 %v305
      %v1721 = vunpack.c.h.b16 %v305
      %v1722 = vunpack.c.l.b16 %v306
      %v1723 = vunpack.c.l.b16 %v307
      %v1724 = vunpack.c.h.b16 %v307
      %v1725 = vunpack.c.l.b16 %v308
      %v1726 = vunpack.c.l.b16 %v309
      %v1727 = vunpack.c.h.b16 %v309
      %v1728 = vunpack.c.l.b16 %v310
      %v1729 = vunpack.c.l.b16 %v311
      %v1730 = vunpack.c.h.b16 %v311
      %v1731 = vunpack.c.l.b16 %v312
      %v1732 = vunpack.c.l.b16 %v313
      %v1733 = vunpack.c.h.b16 %v313
      %v1734 = vunpack.c.l.b16 %v314
      %v1735 = vunpack.c.l.b16 %v315
      %v1736 = vunpack.c.h.b16 %v315
      %v1737 = vunpack.c.l.b16 %v316
      %v1738 = vunpack.c.l.b16 %v317
      %v1739 = vunpack.c.h.b16 %v317
      %v1740 = vunpack.c.l.b16 %v318
      %v1741 = vunpack.c.l.b16 %v319
      %v1742 = vunpack.c.h.b16 %v319
      %v1743 = vunpack.c.l.b16 %v320
      %v1744 = vunpack.c.l.b16 %v321
      %v1745 = vunpack.c.h.b16 %v321
      %v1746 = vunpack.c.l.b16 %v322
      %v1747 = vunpack.c.l.b16 %v323
      %v1748 = vunpack.c.h.b16 %v323
      %v1749 = vunpack.c.l.b16 %v324
      %v1750 = vunpack.c.l.b16 %v325
      %v1751 = vunpack.c.h.b16 %v325
      %v1752 = vunpack.c.l.b16 %v326
      %v1753 = vunpack.c.l.b16 %v327
      %v1754 = vunpack.c.h.b16 %v327
      %v1755 = vunpack.c.l.b16 %v328
      %v1756 = vunpack.c.l.b16 %v329
      %v1757 = vunpack.c.h.b16 %v329
      %v1758 = vunpack.c.l.b16 %v330
      %v1759 = vunpack.c.l.b16 %v331
      %v1760 = vunpack.c.h.b16 %v331
      %v1761 = vunpack.c.l.b16 %v332
      %v1762 = vunpack.c.l.b16 %v333
      %v1763 = vunpack.c.h.b16 %v333
      %v1764 = vunpack.c.l.b16 %v334
      %v1765 = vunpack.c.l.b16 %v335
      %v1766 = vunpack.c.h.b16 %v335
      %v1767 = vunpack.c.l.b16 %v336
      %v1768 = vunpack.c.l.b16 %v337
      %v1769 = vunpack.c.h.b16 %v337
      %v1770 = vunpack.c.l.b16 %v338
      %v1771 = vunpack.c.l.b16 %v339
      %v1772 = vunpack.c.h.b16 %v339
      %v1773 = vunpack.c.l.b16 %v340
      %v1774 = vunpack.c.l.b16 %v341
      %v1775 = vunpack.c.h.b16 %v341
      %v1776 = vunpack.c.l.b16 %v342
      %v1777 = vunpack.c.l.b16 %v343
      %v1778 = vunpack.c.h.b16 %v343
      %v1779 = vunpack.c.l.b16 %v344
      %v1780 = vunpack.c.l.b16 %v345
      %v1781 = vunpack.c.h.b16 %v345
      %v1782 = vunpack.c.l.b16 %v346
      %v1783 = vunpack.c.l.b16 %v347
      %v1784 = vunpack.c.h.b16 %v347
      %v1785 = vunpack.c.l.b16 %v348
      %v1786 = vunpack.c.l.b16 %v349
      %v1787 = vunpack.c.h.b16 %v349
      %v1788 = vunpack.c.l.b16 %v350
      %v1789 = vunpack.c.l.b16 %v351
      %v1790 = vunpack.c.h.b16 %v351
      %v1791 = vunpack.c.l.b16 %v352
      %v1792 = vunpack.c.l.b16 %v353
      %v1793 = vunpack.c.h.b16 %v353
      %v1794 = vunpack.c.l.b16 %v354
      %v1795 = vunpack.c.l.b16 %v355
      %v1796 = vunpack.c.h.b16 %v355
      %v1797 = vunpack.c.l.b16 %v356
      %v1798 = vunpack.c.l.b16 %v357
      %v1799 = vunpack.c.h.b16 %v357
      %v1800 = vunpack.c.l.b16 %v358
      %v1801 = vunpack.c.l.b16 %v359
      %v1802 = vunpack.c.h.b16 %v359
      %v1803 = vunpack.c.l.b16 %v360
      %v1804 = vunpack.c.l.b16 %v361
      %v1805 = vunpack.c.h.b16 %v361
      %v1806 = vunpack.c.l.b16 %v362
      %v1807 = vunpack.c.l.b16 %v363
      %v1808 = vunpack.c.h.b16 %v363
      %v1809 = vunpack.c.l.b16 %v364
      %v1810 = vunpack.c.l.b16 %v365
      %v1811 = vunpack.c.h.b16 %v365
      %v1812 = vunpack.c.l.b16 %v366
      %v1813 = vunpack.c.l.b16 %v367
      %v1814 = vunpack.c.h.b16 %v367
      %v1815 = vunpack.c.l.b16 %v368
      %v1816 = vunpack.c.l.b16 %v369
      %v1817 = vunpack.c.h.b16 %v369
      %v1818 = vunpack.c.l.b16 %v370
      %v1819 = vunpack.c.l.b16 %v371
      %v1820 = vunpack.c.h.b16 %v371
      %v1821 = vunpack.c.l.b16 %v372
      %v1822 = vunpack.c.l.b16 %v373
      %v1823 = vunpack.c.h.b16 %v373
      %v1824 = vunpack.c.l.b16 %v374
      %v1825 = vunpack.c.l.b16 %v375
      %v1826 = vunpack.c.h.b16 %v375
      %v1827 = vunpack.c.l.b16 %v376
      %v1828 = vunpack.c.l.b16 %v377
      %v1829 = vunpack.c.h.b16 %v377
      %v1830 = vunpack.c.l.b16 %v378
      %v1831 = vunpack.c.l.b16 %v379
      %v1832 = vunpack.c.h.b16 %v379
      %v1833 = vunpack.c.l.b16 %v380
      %v1834 = vunpack.c.l.b16 %v381
      %v1835 = vunpack.c.h.b16 %v381
      %v1836 = vunpack.c.l.b16 %v382
      %v1837 = vunpack.c.l.b16 %v383
      %v1838 = vunpack.c.h.b16 %v383
      %v1839 = vunpack.c.l.b16 %v384
      %v1840 = vunpack.c.l.b16 %v385
      %v1841 = vunpack.c.h.b16 %v385
      %v1842 = vunpack.c.l.b16 %v386
      %v1843 = vunpack.c.l.b16 %v387
      %v1844 = vunpack.c.h.b16 %v387
      %v1845 = vunpack.c.l.b16 %v388
      %v1846 = vunpack.c.l.b16 %v389
      %v1847 = vunpack.c.h.b16 %v389
      %v1848 = vunpack.c.l.b16 %v390
      %v1849 = vunpack.c.l.b16 %v391
      %v1850 = vunpack.c.h.b16 %v391
      %v1851 = vunpack.c.l.b16 %v392
      %v1852 = vunpack.c.l.b16 %v393
      %v1853 = vunpack.c.h.b16 %v393
      %v1854 = vunpack.c.l.b16 %v394
      %v1855 = vunpack.c.l.b16 %v395
      %v1856 = vunpack.c.h.b16 %v395
      %v1857 = vunpack.c.l.b16 %v396
      %v1858 = vunpack.c.l.b16 %v397
      %v1859 = vunpack.c.h.b16 %v397
      %v1860 = vunpack.c.l.b16 %v398
      %v1861 = vunpack.c.l.b16 %v399
      %v1862 = vunpack.c.h.b16 %v399
      %v1863 = vunpack.c.l.b16 %v400
      %v1864 = vunpack.c.l.b16 %v401
      %v1865 = vunpack.c.h.b16 %v401
      %v1866 = vunpack.c.l.b16 %v402
      %v1867 = vunpack.c.l.b16 %v403
      %v1868 = vunpack.c.h.b16 %v403
      %v1869 = vunpack.c.l.b16 %v404
      %v1870 = vunpack.c.l.b16 %v405
      %v1871 = vunpack.c.h.b16 %v405
      %v1872 = vunpack.c.l.b16 %v406
      %v1873 = vunpack.c.l.b16 %v407
      %v1874 = vunpack.c.h.b16 %v407
      %v1875 = vunpack.c.l.b16 %v408
      %v1876 = vunpack.c.l.b16 %v409
      %v1877 = vunpack.c.h.b16 %v409
      %v1878 = vunpack.c.l.b16 %v410
      %v1879 = vunpack.c.l.b16 %v411
      %v1880 = vunpack.c.h.b16 %v411
      %v1881 = vunpack.c.l.b16 %v412
      %v1882 = vunpack.c.l.b16 %v413
      %v1883 = vunpack.c.h.b16 %v413
      %v1884 = vunpack.c.l.b16 %v414
      %v1885 = vunpack.c.l.b16 %v415
      %v1886 = vunpack.c.h.b16 %v415
      %v1887 = vunpack.c.l.b16 %v416
      %v1888 = vunpack.c.l.b16 %v417
      %v1889 = vunpack.c.h.b16 %v417
      %v1890 = vunpack.c.l.b16 %v418
      %v1891 = vunpack.c.l.b16 %v419
      %v1892 = vunpack.c.h.b16 %v419
      %v1893 = vunpack.c.l.b16 %v420
      %v1894 = vunpack.c.l.b16 %v421
      %v1895 = vunpack.c.h.b16 %v421
      %v1896 = vunpack.c.l.b16 %v422
      %v1897 = vunpack.c.l.b16 %v423
      %v1898 = vunpack.c.h.b16 %v423
      %v1899 = vunpack.c.l.b16 %v424
      %v1900 = vunpack.c.l.b16 %v425
      %v1901 = vunpack.c.h.b16 %v425
      %v1902 = vunpack.c.l.b16 %v426
      %v1903 = vunpack.c.l.b16 %v427
      %v1904 = vunpack.c.h.b16 %v427
      %v1905 = vunpack.c.l.b16 %v428
      %v1906 = vunpack.c.l.b16 %v429
      %v1907 = vunpack.c.h.b16 %v429
      %v1908 = vunpack.c.l.b16 %v430
      %v1909 = vunpack.c.l.b16 %v431
      %v1910 = vunpack.c.h.b16 %v431
      %v1911 = vunpack.c.l.b16 %v432
      %v1912 = vunpack.c.l.b16 %v433
      %v1913 = vunpack.c.h.b16 %v433
      %v1914 = vunpack.c.l.b16 %v434
      %v1915 = vunpack.c.l.b16 %v435
      %v1916 = vunpack.c.h.b16 %v435
      %v1917 = vunpack.c.l.b16 %v436
      %v1918 = vunpack.c.l.b16 %v437
      %v1919 = vunpack.c.h.b16 %v437
      %v1920 = vunpack.c.l.b16 %v438
      %v1921 = vunpack.c.l.b16 %v439
      %v1922 = vunpack.c.h.b16 %v439
      %v1923 = vunpack.c.l.b16 %v440
      %v1924 = vunpack.c.l.b16 %v441
      %v1925 = vunpack.c.h.b16 %v441
      %v1926 = vunpack.c.l.b16 %v442
      %v1927 = vunpack.c.l.b16 %v443
      %v1928 = vunpack.c.h.b16 %v443
      %v1929 = vunpack.c.l.b16 %v444
      %v1930 = vunpack.c.l.b16 %v445
      %v1931 = vunpack.c.h.b16 %v445
      %v1932 = vunpack.c.l.b16 %v446
      %v1933 = vunpack.c.l.b16 %v447
      %v1934 = vunpack.c.h.b16 %v447
      %v1935 = vunpack.c.l.b16 %v448
      %v1936 = vunpack.c.l.b16 %v449
      %v1937 = vunpack.c.h.b16 %v449
      %v1938 = vunpack.c.l.b16 %v450
      %v1939 = vunpack.c.l.b16 %v451
      %v1940 = vunpack.c.h.b16 %v451
      %v1941 = vunpack.c.l.b16 %v452
      %v1942 = vunpack.c.l.b16 %v453
      %v1943 = vunpack.c.h.b16 %v453
      %v1944 = vunpack.c.l.b16 %v454
      %v1945 = vunpack.c.l.b16 %v455
      %v1946 = vunpack.c.h.b16 %v455
      %v1947 = vunpack.c.l.b16 %v456
      %v1948 = vunpack.c.l.b16 %v457
      %v1949 = vunpack.c.h.b16 %v457
      %v1950 = vunpack.c.l.b16 %v458
      %v1951 = vunpack.c.l.b16 %v459
      %v1952 = vunpack.c.h.b16 %v459
      %v1953 = vunpack.c.l.b16 %v460
      %v1954 = vunpack.c.l.b16 %v461
      %v1955 = vunpack.c.h.b16 %v461
      %v1956 = vunpack.c.l.b16 %v462
      %v1957 = vunpack.c.l.b16 %v463
      %v1958 = vunpack.c.h.b16 %v463
      %v1959 = vunpack.c.l.b16 %v464
      %v1960 = vunpack.c.l.b16 %v465
      %v1961 = vunpack.c.h.b16 %v465
      %v1962 = vunpack.c.l.b16 %v466
      %v1963 = vunpack.c.l.b16 %v467
      %v1964 = vunpack.c.h.b16 %v467
      %v1965 = vunpack.c.l.b16 %v468
      %v1966 = vunpack.c.l.b16 %v469
      %v1967 = vunpack.c.h.b16 %v469
      %v1968 = vunpack.c.l.b16 %v470
      %v1969 = vunpack.c.l.b16 %v471
      %v1970 = vunpack.c.h.b16 %v471
      %v1971 = vunpack.c.l.b16 %v472
      %v1972 = vunpack.c.l.b16 %v473
      %v1973 = vunpack.c.h.b16 %v473
      %v1974 = vunpack.c.l.b16 %v474
      %v1975 = vunpack.c.l.b16 %v475
      %v1976 = vunpack.c.h.b16 %v475
      %v1977 = vunpack.c.l.b16 %v476
      %v1978 = vunpack.c.l.b16 %v477
      %v1979 = vunpack.c.h.b16 %v477
      %v1980 = vunpack.c.l.b16 %v478
      %v1981 = vunpack.c.l.b16 %v479
      %v1982 = vunpack.c.h.b16 %v479
      %v1983 = vunpack.c.l.b16 %v480
      %v1984 = vunpack.c.l.b16 %v481
      %v1985 = vunpack.c.h.b16 %v481
      %v1986 = vunpack.c.l.b16 %v482
      %v1987 = vunpack.c.l.b16 %v483
      %v1988 = vunpack.c.h.b16 %v483
      %v1989 = vunpack.c.l.b16 %v484
      %v1990 = vunpack.c.l.b16 %v485
      %v1991 = vunpack.c.h.b16 %v485
      %v1992 = vunpack.c.l.b16 %v486
      %v1993 = vunpack.c.l.b16 %v487
      %v1994 = vunpack.c.h.b16 %v487
      %v1995 = vunpack.c.l.b16 %v488
      %v1996 = vunpack.c.l.b16 %v489
      %v1997 = vunpack.c.h.b16 %v489
      %v1998 = vunpack.c.l.b16 %v490
      %v1999 = vunpack.c.l.b16 %v491
      %v2000 = vunpack.c.h.b16 %v491
      %v2001 = vunpack.c.l.b16 %v492
      %v2002 = vunpack.c.l.b16 %v493
      %v2003 = vunpack.c.h.b16 %v493
      %v2004 = vunpack.c.l.b16 %v494
      %v2005 = vunpack.c.l.b16 %v495
      %v2006 = vunpack.c.h.b16 %v495
      %v2007 = vunpack.c.l.b16 %v496
      %v2008 = vunpack.c.l.b16 %v497
      %v2009 = vunpack.c.h.b16 %v497
      %v2010 = vunpack.c.l.b16 %v498
      %v2011 = vunpack.c.l.b16 %v499
      %v2012 = vunpack.c.h.b16 %v499
      %v2013 = vunpack.c.l.b16 %v500
      %v2014 = vunpack.c.l.b16 %v501
      %v2015 = vunpack.c.h.b16 %v501
      %v2016 = vunpack.c.l.b16 %v502
      %v2017 = vunpack.c.l.b16 %v503
      %v2018 = vunpack.c.h.b16 %v503
      %v2019 = vunpack.c.l.b16 %v504
      %v2020 = vunpack.c.l.b16 %v505
      %v2021 = vunpack.c.h.b16 %v505
      %v2022 = vunpack.c.l.b16 %v506
      %v2023 = vunpack.c.l.b16 %v507
      %v2024 = vunpack.c.h.b16 %v507
      %v2025 = vunpack.c.l.b16 %v508
      %v2026 = vunpack.c.l.b16 %v509
      %v2027 = vunpack.c.h.b16 %v509
      %v2028 = vunpack.c.l.b16 %v510
      %v2029 = vunpack.c.l.b16 %v511
      %v2030 = vunpack.c.h.b16 %v511
      %v2031 = vunpack.c.l.b16 %v512
      %v2032 = vunpack.c.l.b16 %v513
      %v2033 = vunpack.c.h.b16 %v513
      %v2034 = vunpack.c.l.b16 %v514
      %v2035 = vunpack.c.l.b16 %v515
      %v2036 = vunpack.c.h.b16 %v515
      %v2037 = vunpack.c.l.b16 %v516
      %v2038 = vunpack.c.l.b16 %v517
      %v2039 = vunpack.c.h.b16 %v517
      %v2040 = vunpack.c.l.b16 %v518
      %v2041 = vunpack.c.l.b16 %v519
      %v2042 = vunpack.c.h.b16 %v519
      %v2043 = vunpack.c.l.b16 %v520
      %v2044 = vunpack.c.l.b16 %v521
      %v2045 = vunpack.c.h.b16 %v521
      %v2046 = vunpack.c.l.b16 %v522
      %v2047 = vunpack.c.l.b16 %v523
      %v2048 = vunpack.c.h.b16 %v523
      %v2049 = vunpack.c.l.b16 %v524
      %v2050 = vunpack.c.l.b16 %v525
      %v2051 = vunpack.c.h.b16 %v525
      %v2052 = vunpack.c.l.b16 %v526
      %v2053 = vunpack.c.l.b16 %v527
      %v2054 = vunpack.c.h.b16 %v527
      %v2055 = vunpack.c.l.b16 %v528
      %v2056 = vunpack.c.l.b16 %v529
      %v2057 = vunpack.c.h.b16 %v529
      %v2058 = vunpack.c.l.b16 %v530
      %v2059 = vunpack.c.l.b16 %v531
      %v2060 = vunpack.c.h.b16 %v531
      %v2061 = vunpack.c.l.b16 %v532
      %v2062 = vunpack.c.l.b16 %v533
      %v2063 = vunpack.c.h.b16 %v533
      %v2064 = vunpack.c.l.b16 %v534
      %v2065 = vunpack.c.l.b16 %v535
      %v2066 = vunpack.c.h.b16 %v535
      %v2067 = vunpack.c.l.b16 %v536
      %v2068 = vunpack.c.l.b16 %v537
      %v2069 = vunpack.c.h.b16 %v537
      %v2070 = vunpack.c.l.b16 %v538
      %v2071 = vunpack.c.l.b16 %v539
      %v2072 = vunpack.c.h.b16 %v539
      %v2073 = vunpack.c.l.b16 %v540
      %v2074 = vunpack.c.l.b16 %v541
      %v2075 = vunpack.c.h.b16 %v541
      %v2076 = vunpack.c.l.b16 %v542
      %v2077 = vunpack.c.l.b16 %v543
      %v2078 = vunpack.c.h.b16 %v543
      %v2079 = vunpack.c.l.b16 %v544
      %v2080 = vunpack.c.l.b16 %v545
      %v2081 = vunpack.c.h.b16 %v545
      %v2082 = vunpack.c.l.b16 %v546
      %v2083 = vunpack.c.l.b16 %v547
      %v2084 = vunpack.c.h.b16 %v547
      %v2085 = vunpack.c.l.b16 %v548
      %v2086 = vunpack.c.l.b16 %v549
      %v2087 = vunpack.c.h.b16 %v549
      %v2088 = vunpack.c.l.b16 %v550
      %v2089 = vunpack.c.l.b16 %v551
      %v2090 = vunpack.c.h.b16 %v551
      %v2091 = vunpack.c.l.b16 %v552
      %v2092 = vunpack.c.l.b16 %v553
      %v2093 = vunpack.c.h.b16 %v553
      %v2094 = vunpack.c.l.b16 %v554
      %v2095 = vunpack.c.l.b16 %v555
      %v2096 = vunpack.c.h.b16 %v555
      %v2097 = vunpack.c.l.b16 %v556
      %v2098 = vunpack.c.l.b16 %v557
      %v2099 = vunpack.c.h.b16 %v557
      %v2100 = vunpack.c.l.b16 %v558
      %v2101 = vunpack.c.l.b16 %v559
      %v2102 = vunpack.c.h.b16 %v559
      %v2103 = vunpack.c.l.b16 %v560
      %v2104 = vunpack.c.l.b16 %v561
      %v2105 = vunpack.c.h.b16 %v561
      %v2106 = vunpack.c.l.b16 %v562
      %v2107 = vunpack.c.l.b16 %v563
      %v2108 = vunpack.c.h.b16 %v563
      %v2109 = vunpack.c.l.b16 %v564
      %v2110 = vunpack.c.l.b16 %v565
      %v2111 = vunpack.c.h.b16 %v565
      %v2112 = vunpack.c.l.b16 %v566
      %v2113 = vunpack.c.l.b16 %v567
      %v2114 = vunpack.c.h.b16 %v567
      %v2115 = vunpack.c.l.b16 %v568
      %v2116 = vunpack.c.l.b16 %v569
      %v2117 = vunpack.c.h.b16 %v569
      %v2118 = vunpack.c.l.b16 %v570
      %v2119 = vunpack.c.l.b16 %v571
      %v2120 = vunpack.c.h.b16 %v571
      %v2121 = vunpack.c.l.b16 %v572
      %v2122 = vunpack.c.l.b16 %v573
      %v2123 = vunpack.c.h.b16 %v573
      %v2124 = vunpack.c.l.b16 %v574
      %v2125 = vunpack.c.l.b16 %v575
      %v2126 = vunpack.c.h.b16 %v575
      %v2127 = vunpack.c.l.b16 %v576
      %v2128 = vunpack.c.l.b16 %v577
      %v2129 = vunpack.c.h.b16 %v577
      %v2130 = vunpack.c.l.b16 %v578
      %v2131 = vunpack.c.l.b16 %v579
      %v2132 = vunpack.c.h.b16 %v579
      %v2133 = vunpack.c.l.b16 %v580
      %v2134 = vunpack.c.l.b16 %v581
      %v2135 = vunpack.c.h.b16 %v581
      %v2136 = vunpack.c.l.b16 %v582
      %v2137 = vunpack.c.l.b16 %v583
      %v2138 = vunpack.c.h.b16 %v583
      %v2139 = vunpack.c.l.b16 %v584
      %v2140 = vunpack.c.l.b16 %v585
      %v2141 = vunpack.c.h.b16 %v585
      %v2142 = vunpack.c.l.b16 %v586
      %v2143 = vunpack.c.l.b16 %v587
      %v2144 = vunpack.c.h.b16 %v587
      %v2145 = vunpack.c.l.b16 %v588
      %v2146 = vunpack.c.l.b16 %v589
      %v2147 = vunpack.c.h.b16 %v589
      %v2148 = vunpack.c.l.b16 %v590
      %v2149 = vunpack.c.l.b16 %v591
      %v2150 = vunpack.c.h.b16 %v591
      %v2151 = vunpack.c.l.b16 %v592
      %v2152 = vunpack.c.l.b16 %v593
      %v2153 = vunpack.c.h.b16 %v593
      %v2154 = vunpack.c.l.b16 %v594
      %v2155 = vunpack.c.l.b16 %v595
      %v2156 = vunpack.c.h.b16 %v595
      %v2157 = vunpack.c.l.b16 %v596
      %v2158 = vunpack.c.l.b16 %v597
      %v2159 = vunpack.c.h.b16 %v597
      %v2160 = vunpack.c.l.b16 %v598
      %v2161 = vunpack.c.l.b16 %v599
      %v2162 = vunpack.c.h.b16 %v599
      %v2163 = vunpack.c.l.b16 %v600
      %v2164 = vunpack.c.l.b16 %v601
      %v2165 = vunpack.c.h.b16 %v601
      %v2166 = vunpack.c.l.b16 %v602
      %v2167 = vunpack.c.l.b16 %v603
      %v2168 = vunpack.c.h.b16 %v603
      %v2169 = vunpack.c.l.b16 %v604
      %v2170 = vunpack.c.l.b16 %v605
      %v2171 = vunpack.c.h.b16 %v605
      %v2172 = vunpack.c.l.b16 %v606
      %v2173 = vunpack.c.l.b16 %v607
      %v2174 = vunpack.c.h.b16 %v607
      %v2175 = vunpack.c.l.b16 %v608
      %v2176 = vunpack.c.l.b16 %v609
      %v2177 = vunpack.c.h.b16 %v609
      %v2178 = vunpack.c.l.b16 %v610
      %v2179 = vunpack.c.l.b16 %v611
      %v2180 = vunpack.c.h.b16 %v611
      %v2181 = vunpack.c.l.b16 %v612
      %v2182 = vunpack.c.l.b16 %v613
      %v2183 = vunpack.c.h.b16 %v613
      %v2184 = vunpack.c.l.b16 %v614
      %v2185 = vunpack.c.l.b16 %v615
      %v2186 = vunpack.c.h.b16 %v615
      %v2187 = vunpack.c.l.b16 %v616
      %v2188 = vunpack.c.l.b16 %v617
      %v2189 = vunpack.c.h.b16 %v617
      %v2190 = vunpack.c.l.b16 %v618
      %v2191 = vunpack.c.l.b16 %v619
      %v2192 = vunpack.c.h.b16 %v619
      %v2193 = vunpack.c.l.b16 %v620
      %v2194 = vunpack.c.l.b16 %v621
      %v2195 = vunpack.c.h.b16 %v621
      %v2196 = vunpack.c.l.b16 %v622
      %v2197 = vunpack.c.l.b16 %v623
      %v2198 = vunpack.c.h.b16 %v623
      %v2199 = vunpack.c.l.b16 %v624
      %v2200 = vunpack.c.l.b16 %v625
      %v2201 = vunpack.c.h.b16 %v625
      %v2202 = vunpack.c.l.b16 %v626
      %v2203 = vunpack.c.l.b16 %v627
      %v2204 = vunpack.c.h.b16 %v627
      %v2205 = vunpack.c.l.b16 %v628
      %v2206 = vunpack.c.l.b16 %v629
      %v2207 = vunpack.c.h.b16 %v629
      %v2208 = vunpack.c.l.b16 %v630
      %v2209 = vunpack.c.l.b16 %v631
      %v2210 = vunpack.c.h.b16 %v631
      %v2211 = vunpack.c.l.b16 %v632
      %v2212 = vunpack.c.l.b16 %v633
      %v2213 = vunpack.c.h.b16 %v633
      %v2214 = vunpack.c.l.b16 %v634
      %v2215 = vunpack.c.l.b16 %v635
      %v2216 = vunpack.c.h.b16 %v635
      %v2217 = vunpack.c.l.b16 %v636
      %v2218 = vunpack.c.l.b16 %v637
      %v2219 = vunpack.c.h.b16 %v637
      %v2220 = vunpack.c.l.b16 %v638
      %v2221 = vunpack.c.l.b16 %v639
      %v2222 = vunpack.c.h.b16 %v639
      %v2223 = vunpack.c.l.b16 %v640
      %v2224 = vunpack.c.l.b16 %v641
      %v2225 = vunpack.c.h.b16 %v641
      %v2226 = vunpack.c.l.b16 %v642
      %v2227 = vunpack.c.l.b16 %v643
      %v2228 = vunpack.c.h.b16 %v643
      %v2229 = vunpack.c.l.b16 %v644
      %v2230 = vunpack.c.l.b16 %v645
      %v2231 = vunpack.c.h.b16 %v645
      %v2232 = vunpack.c.l.b16 %v646
      %v2233 = vunpack.c.l.b16 %v647
      %v2234 = vunpack.c.h.b16 %v647
      %v2235 = vunpack.c.l.b16 %v648
      %v2236 = vunpack.c.l.b16 %v649
      %v2237 = vunpack.c.h.b16 %v649
      %v2238 = vunpack.c.l.b16 %v650
      %v2239 = vunpack.c.l.b16 %v651
      %v2240 = vunpack.c.h.b16 %v651
      %v2241 = vunpack.c.l.b16 %v652
      %v2242 = vunpack.c.l.b16 %v653
      %v2243 = vunpack.c.h.b16 %v653
      %v2244 = vunpack.c.l.b16 %v654
      %v2245 = vunpack.c.l.b16 %v655
      %v2246 = vunpack.c.h.b16 %v655
      %v2247 = vunpack.c.l.b16 %v656
      %v2248 = vunpack.c.l.b16 %v657
      %v2249 = vunpack.c.h.b16 %v657
      %v2250 = vunpack.c.l.b16 %v658
      %v2251 = vunpack.c.l.b16 %v659
      %v2252 = vunpack.c.h.b16 %v659
      %v2253 = vunpack.c.l.b16 %v660
      %v2254 = vunpack.c.l.b16 %v661
      %v2255 = vunpack.c.h.b16 %v661
      %v2256 = vunpack.c.l.b16 %v662
      %v2257 = vunpack.c.l.b16 %v663
      %v2258 = vunpack.c.h.b16 %v663
      %v2259 = vunpack.c.l.b16 %v664
      %v2260 = vunpack.c.l.b16 %v665
      %v2261 = vunpack.c.h.b16 %v665
      %v2262 = vunpack.c.l.b16 %v666
      %v2263 = vunpack.c.l.b16 %v667
      %v2264 = vunpack.c.h.b16 %v667
      %v2265 = vunpack.c.l.b16 %v668
      %v2266 = vunpack.c.l.b16 %v669
      %v2267 = vunpack.c.h.b16 %v669
      %v2268 = vunpack.c.l.b16 %v670
      %v2269 = vunpack.c.l.b16 %v671
      %v2270 = vunpack.c.h.b16 %v671
      %v2271 = vunpack.c.l.b16 %v672
      %v2272 = vunpack.c.l.b16 %v673
      %v2273 = vunpack.c.h.b16 %v673
      %v2274 = vunpack.c.l.b16 %v674
      %v2275 = vunpack.c.l.b16 %v675
      %v2276 = vunpack.c.h.b16 %v675
      %v2277 = vunpack.c.l.b16 %v676
      %v2278 = vunpack.c.l.b16 %v677
      %v2279 = vunpack.c.h.b16 %v677
      %v2280 = vunpack.c.l.b16 %v678
      %v2281 = vunpack.c.l.b16 %v679
      %v2282 = vunpack.c.h.b16 %v679
      %v2283 = vunpack.c.l.b16 %v680
      %v2284 = vunpack.c.l.b16 %v681
      %v2285 = vunpack.c.h.b16 %v681
      %v2286 = vunpack.c.l.b16 %v682
      %v2287 = vunpack.c.l.b16 %v683
      %v2288 = vunpack.c.h.b16 %v683
      %v2289 = vunpack.c.l.b16 %v684
      %v2290 = vunpack.c.l.b16 %v685
      %v2291 = vunpack.c.h.b16 %v685
      %v2292 = vunpack.c.l.b16 %v686
      %v2293 = vunpack.c.l.b16 %v687
      %v2294 = vunpack.c.h.b16 %v687
      %v2295 = vunpack.c.l.b16 %v688
      %v2296 = vunpack.c.l.b16 %v689
      %v2297 = vunpack.c.h.b16 %v689
      %v2298 = vunpack.c.l.b16 %v690
      %v2299 = vunpack.c.l.b16 %v691
      %v2300 = vunpack.c.h.b16 %v691
      %v2301 = vunpack.c.l.b16 %v692
      %v2302 = vunpack.c.l.b16 %v693
      %v2303 = vunpack.c.h.b16 %v693
      %v2304 = vunpack.c.l.b16 %v694
      %v2305 = vunpack.c.l.b16 %v695
      %v2306 = vunpack.c.h.b16 %v695
      %v2307 = vunpack.c.l.b16 %v696
      %v2308 = vunpack.c.l.b16 %v697
      %v2309 = vunpack.c.h.b16 %v697
      %v2310 = vunpack.c.l.b16 %v698
      %v2311 = vunpack.c.l.b16 %v699
      %v2312 = vunpack.c.h.b16 %v699
      %v2313 = vunpack.c.l.b16 %v700
      %v2314 = vunpack.c.l.b16 %v701
      %v2315 = vunpack.c.h.b16 %v701
      %v2316 = vunpack.c.l.b16 %v702
      %v2317 = vunpack.c.l.b16 %v703
      %v2318 = vunpack.c.h.b16 %v703
      %v2319 = vunpack.c.l.b16 %v704
      %v2320 = vunpack.c.l.b16 %v705
      %v2321 = vunpack.c.h.b16 %v705
      %v2322 = vunpack.c.l.b16 %v706
      %v2323 = vunpack.c.l.b16 %v707
      %v2324 = vunpack.c.h.b16 %v707
      %v2325 = vunpack.c.l.b16 %v708
      %v2326 = vunpack.c.l.b16 %v709
      %v2327 = vunpack.c.h.b16 %v709
      %v2328 = vunpack.c.l.b16 %v710
      %v2329 = vunpack.c.l.b16 %v711
      %v2330 = vunpack.c.h.b16 %v711
      %v2331 = vunpack.c.l.b16 %v712
      %v2332 = vunpack.c.l.b16 %v713
      %v2333 = vunpack.c.h.b16 %v713
      %v2334 = vunpack.c.l.b16 %v714
      %v2335 = vunpack.c.l.b16 %v715
      %v2336 = vunpack.c.h.b16 %v715
      %v2337 = vunpack.c.l.b16 %v716
      %v2338 = vunpack.c.l.b16 %v717
      %v2339 = vunpack.c.h.b16 %v717
      %v2340 = vunpack.c.l.b16 %v718
      %v2341 = vunpack.c.l.b16 %v719
      %v2342 = vunpack.c.h.b16 %v719
      %v2343 = vunpack.c.l.b16 %v720
      %v2344 = vunpack.c.l.b16 %v721
      %v2345 = vunpack.c.h.b16 %v721
      %v2346 = vunpack.c.l.b16 %v722
      %v2347 = vunpack.c.l.b16 %v723
      %v2348 = vunpack.c.h.b16 %v723
      %v2349 = vunpack.c.l.b16 %v724
      %v2350 = vunpack.c.l.b16 %v725
      %v2351 = vunpack.c.h.b16 %v725
      %v2352 = vunpack.c.l.b16 %v726
      %v2353 = vunpack.c.l.b16 %v727
      %v2354 = vunpack.c.h.b16 %v727
      %v2355 = vunpack.c.l.b16 %v728
      %v2356 = vunpack.c.l.b16 %v729
      %v2357 = vunpack.c.h.b16 %v729
      %v2358 = vunpack.c.l.b16 %v730
      %v2359 = vunpack.c.l.b16 %v731
      %v2360 = vunpack.c.h.b16 %v731
      %v2361 = vunpack.c.l.b16 %v732
      %v2362 = vunpack.c.l.b16 %v733
      %v2363 = vunpack.c.h.b16 %v733
      %v2364 = vunpack.c.l.b16 %v734
      %v2365 = vunpack.c.l.b16 %v735
      %v2366 = vunpack.c.h.b16 %v735
      %v2367 = vunpack.c.l.b16 %v736
      %v2368 = vunpack.c.l.b16 %v737
      %v2369 = vunpack.c.h.b16 %v737
      %v2370 = vunpack.c.l.b16 %v738
      %v2371 = vunpack.c.l.b16 %v739
      %v2372 = vunpack.c.h.b16 %v739
      %v2373 = vunpack.c.l.b16 %v740
      %v2374 = vunpack.c.l.b16 %v741
      %v2375 = vunpack.c.h.b16 %v741
      %v2376 = vunpack.c.l.b16 %v742
      %v2377 = vunpack.c.l.b16 %v743
      %v2378 = vunpack.c.h.b16 %v743
      %v2379 = vunpack.c.l.b16 %v744
      %v2380 = vunpack.c.l.b16 %v745
      %v2381 = vunpack.c.h.b16 %v745
      %v2382 = vunpack.c.l.b16 %v746
      %v2383 = vunpack.c.l.b16 %v747
      %v2384 = vunpack.c.h.b16 %v747
      %v2385 = vunpack.c.l.b16 %v748
      %v2386 = vunpack.c.l.b16 %v749
      %v2387 = vunpack.c.h.b16 %v749
      %v2388 = vunpack.c.l.b16 %v750
      %v2389 = vunpack.c.l.b16 %v751
      %v2390 = vunpack.c.h.b16 %v751
      %v2391 = vunpack.c.l.b16 %v752
      %v2392 = vunpack.c.l.b16 %v753
      %v2393 = vunpack.c.h.b16 %v753
      %v2394 = vunpack.c.l.b16 %v754
      %v2395 = vunpack.c.l.b16 %v755
      %v2396 = vunpack.c.h.b16 %v755
      %v2397 = vunpack.c.l.b16 %v756
      %v2398 = vunpack.c.l.b16 %v757
      %v2399 = vunpack.c.h.b16 %v757
      %v2400 = vunpack.c.l.b16 %v758
      %v2401 = vunpack.c.l.b16 %v759
      %v2402 = vunpack.c.h.b16 %v759
      %v2403 = vunpack.c.l.b16 %v760
      %v2404 = vunpack.c.l.b16 %v761
      %v2405 = vunpack.c.h.b16 %v761
      %v2406 = vunpack.c.l.b16 %v762
      %v2407 = vunpack.c.l.b16 %v763
      %v2408 = vunpack.c.h.b16 %v763
      %v2409 = vunpack.c.l.b16 %v764
      %v2410 = vunpack.c.l.b16 %v765
      %v2411 = vunpack.c.h.b16 %v765
      %v2412 = vunpack.c.l.b16 %v766
      %v2413 = vunpack.c.l.b16 %v767
      %v2414 = vunpack.c.h.b16 %v767
      %v2415 = vunpack.c.l.b16 %v768
      %v2416 = vunpack.c.l.b16 %v769
      %v2417 = vunpack.c.h.b16 %v769
      %v2418 = vunpack.c.l.b16 %v770
      %v2419 = vunpack.c.l.b16 %v771
      %v2420 = vunpack.c.h.b16 %v771
      %v2421 = vunpack.c.l.b16 %v772
      %v2422 = vunpack.c.l.b16 %v773
      %v2423 = vunpack.c.h.b16 %v773
      %v2424 = vunpack.c.l.b16 %v774
      %v2425 = vunpack.c.l.b16 %v775
      %v2426 = vunpack.c.h.b16 %v775
      %v2427 = vunpack.c.l.b16 %v776
      %v2428 = vunpack.c.l.b16 %v777
      %v2429 = vunpack.c.h.b16 %v777
      %v2430 = vunpack.c.l.b16 %v778
      %v2431 = vunpack.c.l.b16 %v779
      %v2432 = vunpack.c.h.b16 %v779
      %v2433 = vunpack.c.l.b16 %v780
      %v2434 = vunpack.c.l.b16 %v781
      %v2435 = vunpack.c.h.b16 %v781
      %v2436 = vunpack.c.l.b16 %v782
      %v2437 = vunpack.c.l.b16 %v783
      %v2438 = vunpack.c.h.b16 %v783
      %v2439 = vunpack.c.l.b16 %v784
      %v2440 = vunpack.c.l.b16 %v785
      %v2441 = vunpack.c.h.b16 %v785
      %v2442 = vunpack.c.l.b16 %v786
      %v2443 = vunpack.c.l.b16 %v787
      %v2444 = vunpack.c.h.b16 %v787
      %v2445 = vunpack.c.l.b16 %v788
      %v2446 = vunpack.c.l.b16 %v789
      %v2447 = vunpack.c.h.b16 %v789
      %v2448 = vunpack.c.l.b16 %v790
      %v2449 = vunpack.c.l.b16 %v791
      %v2450 = vunpack.c.h.b16 %v791
      %v2451 = vunpack.c.l.b16 %v792
      %v2452 = vunpack.c.l.b16 %v793
      %v2453 = vunpack.c.h.b16 %v793
      %v2454 = vunpack.c.l.b16 %v794
      %v2455 = vunpack.c.l.b16 %v795
      %v2456 = vunpack.c.h.b16 %v795
      %v2457 = vunpack.c.l.b16 %v796
      %v2458 = vunpack.c.l.b16 %v797
      %v2459 = vunpack.c.h.b16 %v797
      %v2460 = vunpack.c.l.b16 %v798
      %v2461 = vunpack.c.l.b16 %v799
      %v2462 = vunpack.c.h.b16 %v799
      %v2463 = vunpack.c.l.b16 %v800
      %v2464 = vunpack.c.l.b16 %v801
      %v2465 = vunpack.c.h.b16 %v801
      %v2466 = vunpack.c.l.b16 %v802
      %v2467 = vunpack.c.l.b16 %v803
      %v2468 = vunpack.c.h.b16 %v803
      %v2469 = vunpack.c.l.b16 %v804
      %v2470 = vunpack.c.l.b16 %v805
      %v2471 = vunpack.c.h.b16 %v805
      %v2472 = vunpack.c.l.b16 %v806
      %v2473 = vunpack.c.l.b16 %v807
      %v2474 = vunpack.c.h.b16 %v807
      %v2475 = vunpack.c.l.b16 %v808
      %v2476 = vunpack.c.l.b16 %v809
      %v2477 = vunpack.c.h.b16 %v809
      %v2478 = vunpack.c.l.b16 %v810
      %v2479 = vunpack.c.l.b16 %v811
      %v2480 = vunpack.c.h.b16 %v811
      %v2481 = vunpack.c.l.b16 %v812
      %v2482 = vunpack.c.l.b16 %v813
      %v2483 = vunpack.c.h.b16 %v813
      %v2484 = vunpack.c.l.b16 %v814
      %v2485 = vunpack.c.l.b16 %v815
      %v2486 = vunpack.c.h.b16 %v815
      %v2487 = vunpack.c.l.b16 %v816
      %v2488 = vunpack.c.l.b16 %v817
      %v2489 = vunpack.c.h.b16 %v817
      %v2490 = vunpack.c.l.b16 %v818
      %v2491 = vunpack.c.l.b16 %v819
      %v2492 = vunpack.c.h.b16 %v819
      %v2493 = vunpack.c.l.b16 %v820
      %v2494 = vunpack.c.l.b16 %v821
      %v2495 = vunpack.c.h.b16 %v821
      %v2496 = vunpack.c.l.b16 %v822
      %v2497 = vunpack.c.l.b16 %v823
      %v2498 = vunpack.c.h.b16 %v823
      %v2499 = vunpack.c.l.b16 %v824
      %v2500 = vunpack.c.l.b16 %v825
      %v2501 = vunpack.c.h.b16 %v825
      %v2502 = vunpack.c.l.b16 %v826
      %v2503 = vunpack.c.l.b16 %v827
      %v2504 = vunpack.c.h.b16 %v827
      %v2505 = vunpack.c.l.b16 %v828
      %v2506 = vunpack.c.l.b16 %v829
      %v2507 = vunpack.c.h.b16 %v829
      %v2508 = vunpack.c.l.b16 %v830
      %v2509 = vunpack.c.l.b16 %v831
      %v2510 = vunpack.c.h.b16 %v831
      %v2511 = vunpack.c.l.b16 %v832
      %v2512 = vunpack.c.l.b16 %v833
      %v2513 = vunpack.c.h.b16 %v833
      %v2514 = vunpack.c.l.b16 %v834
      %v2515 = vunpack.c.l.b16 %v835
      %v2516 = vunpack.c.h.b16 %v835
      %v2517 = vunpack.c.l.b16 %v836
      %v2518 = vunpack.c.l.b16 %v837
      %v2519 = vunpack.c.h.b16 %v837
      %v2520 = vunpack.c.l.b16 %v838
      %v2521 = vunpack.c.l.b16 %v839
      %v2522 = vunpack.c.h.b16 %v839
      %v2523 = vunpack.c.l.b16 %v840
      %v2524 = vunpack.c.l.b16 %v841
      %v2525 = vunpack.c.h.b16 %v841
      %v2526 = vunpack.c.l.b16 %v842
      %v2527 = vunpack.c.l.b16 %v843
      %v2528 = vunpack.c.h.b16 %v843
      %v2529 = vunpack.c.l.b16 %v844
      %v2530 = vunpack.c.l.b16 %v845
      %v2531 = vunpack.c.h.b16 %v845
      %v2532 = vunpack.c.l.b16 %v846
      %v2533 = vunpack.c.l.b16 %v847
      %v2534 = vunpack.c.h.b16 %v847
      %v2535 = vunpack.c.l.b16 %v848
      %v2536 = vunpack.c.l.b16 %v849
      %v2537 = vunpack.c.h.b16 %v849
      %v2538 = vunpack.c.l.b16 %v850
      %v2539 = vunpack.c.l.b16 %v851
      %v2540 = vunpack.c.h.b16 %v851
      %v2541 = vunpack.c.l.b16 %v852
      %v2542 = vunpack.c.l.b16 %v853
      %v2543 = vunpack.c.h.b16 %v853
      %v2544 = vunpack.c.l.b16 %v854
      %v2545 = vunpack.c.l.b16 %v855
      %v2546 = vunpack.c.h.b16 %v855
      %v2547 = vunpack.c.l.b16 %v856
      %v2548 = vunpack.c.l.b16 %v857
      %v2549 = vunpack.c.h.b16 %v857
      %v2550 = vunpack.c.l.b16 %v858
      %v2551 = vunpack.c.l.b16 %v859
      %v2552 = vunpack.c.h.b16 %v859
      %v2553 = vunpack.c.l.b16 %v860
      %v2554 = vunpack.c.l.b16 %v861
      %v2555 = vunpack.c.h.b16 %v861
      %v2556 = vunpack.c.l.b16 %v862
      %v2557 = vunpack.c.l.b16 %v863
      %v2558 = vunpack.c.h.b16 %v863
      %v2559 = vunpack.c.l.b16 %v864
      %v2560 = vunpack.c.l.b16 %v865
      %v2561 = vunpack.c.h.b16 %v865
      %v2562 = vunpack.c.l.b16 %v866
      %v2563 = vunpack.c.l.b16 %v867
      %v2564 = vunpack.c.h.b16 %v867
      %v2565 = vunpack.c.l.b16 %v868
      %v2566 = vunpack.c.l.b16 %v869
      %v2567 = vunpack.c.h.b16 %v869
      %v2568 = vunpack.c.l.b16 %v870
      %v2569 = vunpack.c.l.b16 %v871
      %v2570 = vunpack.c.h.b16 %v871
      %v2571 = vunpack.c.l.b16 %v872
      %v2572 = vunpack.c.l.b16 %v873
      %v2573 = vunpack.c.h.b16 %v873
      %v2574 = vunpack.c.l.b16 %v874
      %v2575 = vunpack.c.l.b16 %v875
      %v2576 = vunpack.c.h.b16 %v875
      %v2577 = vunpack.c.l.b16 %v876
      %v2578 = vunpack.c.l.b16 %v877
      %v2579 = vunpack.c.h.b16 %v877
      %v2580 = vunpack.c.l.b16 %v878
      %v2581 = vunpack.c.l.b16 %v879
      %v2582 = vunpack.c.h.b16 %v879
      %v2583 = vunpack.c.l.b16 %v880
      %v2584 = vunpack.c.l.b16 %v881
      %v2585 = vunpack.c.h.b16 %v881
      %v2586 = vunpack.c.l.b16 %v882
      %v2587 = vunpack.c.l.b16 %v883
      %v2588 = vunpack.c.h.b16 %v883
      %v2589 = vunpack.c.l.b16 %v884
      %v2590 = vunpack.c.l.b16 %v885
      %v2591 = vunpack.c.h.b16 %v885
      %v2592 = vunpack.c.l.b16 %v886
      %v2593 = vunpack.c.l.b16 %v887
      %v2594 = vunpack.c.h.b16 %v887
      %v2595 = vunpack.c.l.b16 %v888
      %v2596 = vunpack.c.l.b16 %v889
      %v2597 = vunpack.c.h.b16 %v889
      %v2598 = vunpack.c.l.b16 %v890
      %v2599 = vunpack.c.l.b16 %v891
      %v2600 = vunpack.c.h.b16 %v891
      %v2601 = vunpack.c.l.b16 %v892
      %v2602 = vunpack.c.l.b16 %v893
      %v2603 = vunpack.c.h.b16 %v893
      %v2604 = vunpack.c.l.b16 %v894
      %v2605 = vunpack.c.l.b16 %v895
      %v2606 = vunpack.c.h.b16 %v895
      %v2607 = vunpack.c.l.b16 %v896
      %v2608 = vunpack.c.l.b16 %v897
      %v2609 = vunpack.c.h.b16 %v897
      %v2610 = vunpack.c.l.b16 %v898
      %v2611 = vpack.c.b16 %v1702, %v1699
      %v2612 = vpack.c.b16 %v1703, %v1700
      %v2613 = vpack.c.b16 %v1704, %v1701
      %v2614 = vpack.c.b16 %v1708, %v1705
      %v2615 = vpack.c.b16 %v1709, %v1706
      %v2616 = vpack.c.b16 %v1710, %v1707
      %v2617 = vpack.c.b16 %v1714, %v1711
      %v2618 = vpack.c.b16 %v1715, %v1712
      %v2619 = vpack.c.b16 %v1716, %v1713
      %v2620 = vpack.c.b16 %v1720, %v1717
      %v2621 = vpack.c.b16 %v1721, %v1718
      %v2622 = vpack.c.b16 %v1722, %v1719
      %v2623 = vpack.c.b16 %v1726, %v1723
      %v2624 = vpack.c.b16 %v1727, %v1724
      %v2625 = vpack.c.b16 %v1728, %v1725
      %v2626 = vpack.c.b16 %v1732, %v1729
      %v2627 = vpack.c.b16 %v1733, %v1730
      %v2628 = vpack.c.b16 %v1734, %v1731
      %v2629 = vpack.c.b16 %v1738, %v1735
      %v2630 = vpack.c.b16 %v1739, %v1736
      %v2631 = vpack.c.b16 %v1740, %v1737
      %v2632 = vpack.c.b16 %v1744, %v1741
      %v2633 = vpack.c.b16 %v1745, %v1742
      %v2634 = vpack.c.b16 %v1746, %v1743
      %v2635 = vpack.c.b16 %v1750, %v1747
      %v2636 = vpack.c.b16 %v1751, %v1748
      %v2637 = vpack.c.b16 %v1752, %v1749
      %v2638 = vpack.c.b16 %v1756, %v1753
      %v2639 = vpack.c.b16 %v1757, %v1754
      %v2640 = vpack.c.b16 %v1758, %v1755
      %v2641 = vpack.c.b16 %v1762, %v1759
      %v2642 = vpack.c.b16 %v1763, %v1760
      %v2643 = vpack.c.b16 %v1764, %v1761
      %v2644 = vpack.c.b16 %v1768, %v1765
      %v2645 = vpack.c.b16 %v1769, %v1766
      %v2646 = vpack.c.b16 %v1770, %v1767
      %v2647 = vpack.c.b16 %v1774, %v1771
      %v2648 = vpack.c.b16 %v1775, %v1772
      %v2649 = vpack.c.b16 %v1776, %v1773
      %v2650 = vpack.c.b16 %v1780, %v1777
      %v2651 = vpack.c.b16 %v1781, %v1778
      %v2652 = vpack.c.b16 %v1782, %v1779
      %v2653 = vpack.c.b16 %v1786, %v1783
      %v2654 = vpack.c.b16 %v1787, %v1784
      %v2655 = vpack.c.b16 %v1788, %v1785
      %v2656 = vpack.c.b16 %v1792, %v1789
      %v2657 = vpack.c.b16 %v1793, %v1790
      %v2658 = vpack.c.b16 %v1794, %v1791
      %v2659 = vpack.c.b16 %v1798, %v1795
      %v2660 = vpack.c.b16 %v1799, %v1796
      %v2661 = vpack.c.b16 %v1800, %v1797
      %v2662 = vpack.c.b16 %v1804, %v1801
      %v2663 = vpack.c.b16 %v1805, %v1802
      %v2664 = vpack.c.b16 %v1806, %v1803
      %v2665 = vpack.c.b16 %v1810, %v1807
      %v2666 = vpack.c.b16 %v1811, %v1808
      %v2667 = vpack.c.b16 %v1812, %v1809
      %v2668 = vpack.c.b16 %v1816, %v1813
      %v2669 = vpack.c.b16 %v1817, %v1814
      %v2670 = vpack.c.b16 %v1818, %v1815
      %v2671 = vpack.c.b16 %v1822, %v1819
      %v2672 = vpack.c.b16 %v1823, %v1820
      %v2673 = vpack.c.b16 %v1824, %v1821
      %v2674 = vpack.c.b16 %v1828, %v1825
      %v2675 = vpack.c.b16 %v1829, %v1826
      %v2676 = vpack.c.b16 %v1830, %v1827
      %v2677 = vpack.c.b16 %v1834, %v1831
      %v2678 = vpack.c.b16 %v1835, %v1832
      %v2679 = vpack.c.b16 %v1836, %v1833
      %v2680 = vpack.c.b16 %v1840, %v1837
      %v2681 = vpack.c.b16 %v1841, %v1838
      %v2682 = vpack.c.b16 %v1842, %v1839
      %v2683 = vpack.c.b16 %v1846, %v1843
      %v2684 = vpack.c.b16 %v1847, %v1844
      %v2685 = vpack.c.b16 %v1848, %v1845
      %v2686 = vpack.c.b16 %v1852, %v1849
      %v2687 = vpack.c.b16 %v1853, %v1850
      %v2688 = vpack.c.b16 %v1854, %v1851
      %v2689 = vpack.c.b16 %v1858, %v1855
      %v2690 = vpack.c.b16 %v1859, %v1856
      %v2691 = vpack.c.b16 %v1860, %v1857
      %v2692 = vpack.c.b16 %v1864, %v1861
      %v2693 = vpack.c.b16 %v1865, %v1862
      %v2694 = vpack.c.b16 %v1866, %v1863
      %v2695 = vpack.c.b16 %v1870, %v1867
      %v2696 = vpack.c.b16 %v1871, %v1868
      %v2697 = vpack.c.b16 %v1872, %v1869
      %v2698 = vpack.c.b16 %v1876, %v1873
      %v2699 = vpack.c.b16 %v1877, %v1874
      %v2700 = vpack.c.b16 %v1878, %v1875
      %v2701 = vpack.c.b16 %v1882, %v1879
      %v2702 = vpack.c.b16 %v1883, %v1880
      %v2703 = vpack.c.b16 %v1884, %v1881
      %v2704 = vpack.c.b16 %v1888, %v1885
      %v2705 = vpack.c.b16 %v1889, %v1886
      %v2706 = vpack.c.b16 %v1890, %v1887
      %v2707 = vpack.c.b16 %v1894, %v1891
      %v2708 = vpack.c.b16 %v1895, %v1892
      %v2709 = vpack.c.b16 %v1896, %v1893
      %v2710 = vpack.c.b16 %v1900, %v1897
      %v2711 = vpack.c.b16 %v1901, %v1898
      %v2712 = vpack.c.b16 %v1902, %v1899
      %v2713 = vpack.c.b16 %v1906, %v1903
      %v2714 = vpack.c.b16 %v1907, %v1904
      %v2715 = vpack.c.b16 %v1908, %v1905
      %v2716 = vpack.c.b16 %v1912, %v1909
      %v2717 = vpack.c.b16 %v1913, %v1910
      %v2718 = vpack.c.b16 %v1914, %v1911
      %v2719 = vpack.c.b16 %v1918, %v1915
      %v2720 = vpack.c.b16 %v1919, %v1916
      %v2721 = vpack.c.b16 %v1920, %v1917
      %v2722 = vpack.c.b16 %v1924, %v1921
      %v2723 = vpack.c.b16 %v1925, %v1922
      %v2724 = vpack.c.b16 %v1926, %v1923
      %v2725 = vpack.c.b16 %v1930, %v1927
      %v2726 = vpack.c.b16 %v1931, %v1928
      %v2727 = vpack.c.b16 %v1932, %v1929
      %v2728 = vpack.c.b16 %v1936, %v1933
      %v2729 = vpack.c.b16 %v1937, %v1934
      %v2730 = vpack.c.b16 %v1938, %v1935
      %v2731 = vpack.c.b16 %v1942, %v1939
      %v2732 = vpack.c.b16 %v1943, %v1940
      %v2733 = vpack.c.b16 %v1944, %v1941
      %v2734 = vpack.c.b16 %v1948, %v1945
      %v2735 = vpack.c.b16 %v1949, %v1946
      %v2736 = vpack.c.b16 %v1950, %v1947
      %v2737 = vpack.c.b16 %v1954, %v1951
      %v2738 = vpack.c.b16 %v1955, %v1952
      %v2739 = vpack.c.b16 %v1956, %v1953
      %v2740 = vpack.c.b16 %v1960, %v1957
      %v2741 = vpack.c.b16 %v1961, %v1958
      %v2742 = vpack.c.b16 %v1962, %v1959
      %v2743 = vpack.c.b16 %v1966, %v1963
      %v2744 = vpack.c.b16 %v1967, %v1964
      %v2745 = vpack.c.b16 %v1968, %v1965
      %v2746 = vpack.c.b16 %v1972, %v1969
      %v2747 = vpack.c.b16 %v1973, %v1970
      %v2748 = vpack.c.b16 %v1974, %v1971
      %v2749 = vpack.c.b16 %v1978, %v1975
      %v2750 = vpack.c.b16 %v1979, %v1976
      %v2751 = vpack.c.b16 %v1980, %v1977
      %v2752 = vpack.c.b16 %v1984, %v1981
      %v2753 = vpack.c.b16 %v1985, %v1982
      %v2754 = vpack.c.b16 %v1986, %v1983
      %v2755 = vpack.c.b16 %v1990, %v1987
      %v2756 = vpack.c.b16 %v1991, %v1988
      %v2757 = vpack.c.b16 %v1992, %v1989
      %v2758 = vpack.c.b16 %v1996, %v1993
      %v2759 = vpack.c.b16 %v1997, %v1994
      %v2760 = vpack.c.b16 %v1998, %v1995
      %v2761 = vpack.c.b16 %v2002, %v1999
      %v2762 = vpack.c.b16 %v2003, %v2000
      %v2763 = vpack.c.b16 %v2004, %v2001
      %v2764 = vpack.c.b16 %v2008, %v2005
      %v2765 = vpack.c.b16 %v2009, %v2006
      %v2766 = vpack.c.b16 %v2010, %v2007
      %v2767 = vpack.c.b16 %v2014, %v2011
      %v2768 = vpack.c.b16 %v2015, %v2012
      %v2769 = vpack.c.b16 %v2016, %v2013
      %v2770 = vpack.c.b16 %v2020, %v2017
      %v2771 = vpack.c.b16 %v2021, %v2018
      %v2772 = vpack.c.b16 %v2022, %v2019
      %v2773 = vpack.c.b16 %v2026, %v2023
      %v2774 = vpack.c.b16 %v2027, %v2024
      %v2775 = vpack.c.b16 %v2028, %v2025
      %v2776 = vpack.c.b16 %v2032, %v2029
      %v2777 = vpack.c.b16 %v2033, %v2030
      %v2778 = vpack.c.b16 %v2034, %v2031
      %v2779 = vpack.c.b16 %v2038, %v2035
      %v2780 = vpack.c.b16 %v2039, %v2036
      %v2781 = vpack.c.b16 %v2040, %v2037
      %v2782 = vpack.c.b16 %v2044, %v2041
      %v2783 = vpack.c.b16 %v2045, %v2042
      %v2784 = vpack.c.b16 %v2046, %v2043
      %v2785 = vpack.c.b16 %v2050, %v2047
      %v2786 = vpack.c.b16 %v2051, %v2048
      %v2787 = vpack.c.b16 %v2052, %v2049
      %v2788 = vpack.c.b16 %v2056, %v2053
      %v2789 = vpack.c.b16 %v2057, %v2054
      %v2790 = vpack.c.b16 %v2058, %v2055
      %v2791 = vpack.c.b16 %v2062, %v2059
      %v2792 = vpack.c.b16 %v2063, %v2060
      %v2793 = vpack.c.b16 %v2064, %v2061
      %v2794 = vpack.c.b16 %v2068, %v2065
      %v2795 = vpack.c.b16 %v2069, %v2066
      %v2796 = vpack.c.b16 %v2070, %v2067
      %v2797 = vpack.c.b16 %v2074, %v2071
      %v2798 = vpack.c.b16 %v2075, %v2072
      %v2799 = vpack.c.b16 %v2076, %v2073
      %v2800 = vpack.c.b16 %v2080, %v2077
      %v2801 = vpack.c.b16 %v2081, %v2078
      %v2802 = vpack.c.b16 %v2082, %v2079
      %v2803 = vpack.c.b16 %v2086, %v2083
      %v2804 = vpack.c.b16 %v2087, %v2084
      %v2805 = vpack.c.b16 %v2088, %v2085
      %v2806 = vpack.c.b16 %v2092, %v2089
      %v2807 = vpack.c.b16 %v2093, %v2090
      %v2808 = vpack.c.b16 %v2094, %v2091
      %v2809 = vpack.c.b16 %v2098, %v2095
      %v2810 = vpack.c.b16 %v2099, %v2096
      %v2811 = vpack.c.b16 %v2100, %v2097
      %v2812 = vpack.c.b16 %v2104, %v2101
      %v2813 = vpack.c.b16 %v2105, %v2102
      %v2814 = vpack.c.b16 %v2106, %v2103
      %v2815 = vpack.c.b16 %v2110, %v2107
      %v2816 = vpack.c.b16 %v2111, %v2108
      %v2817 = vpack.c.b16 %v2112, %v2109
      %v2818 = vpack.c.b16 %v2116, %v2113
      %v2819 = vpack.c.b16 %v2117, %v2114
      %v2820 = vpack.c.b16 %v2118, %v2115
      %v2821 = vpack.c.b16 %v2122, %v2119
      %v2822 = vpack.c.b16 %v2123, %v2120
      %v2823 = vpack.c.b16 %v2124, %v2121
      %v2824 = vpack.c.b16 %v2128, %v2125
      %v2825 = vpack.c.b16 %v2129, %v2126
      %v2826 = vpack.c.b16 %v2130, %v2127
      %v2827 = vpack.c.b16 %v2134, %v2131
      %v2828 = vpack.c.b16 %v2135, %v2132
      %v2829 = vpack.c.b16 %v2136, %v2133
      %v2830 = vpack.c.b16 %v2140, %v2137
      %v2831 = vpack.c.b16 %v2141, %v2138
      %v2832 = vpack.c.b16 %v2142, %v2139
      %v2833 = vpack.c.b16 %v2146, %v2143
      %v2834 = vpack.c.b16 %v2147, %v2144
      %v2835 = vpack.c.b16 %v2148, %v2145
      %v2836 = vpack.c.b16 %v2152, %v2149
      %v2837 = vpack.c.b16 %v2153, %v2150
      %v2838 = vpack.c.b16 %v2154, %v2151
      %v2839 = vpack.c.b16 %v2158, %v2155
      %v2840 = vpack.c.b16 %v2159, %v2156
      %v2841 = vpack.c.b16 %v2160, %v2157
      %v2842 = vpack.c.b16 %v2164, %v2161
      %v2843 = vpack.c.b16 %v2165, %v2162
      %v2844 = vpack.c.b16 %v2166, %v2163
      %v2845 = vpack.c.b16 %v2170, %v2167
      %v2846 = vpack.c.b16 %v2171, %v2168
      %v2847 = vpack.c.b16 %v2172, %v2169
      %v2848 = vpack.c.b16 %v2176, %v2173
      %v2849 = vpack.c.b16 %v2177, %v2174
      %v2850 = vpack.c.b16 %v2178, %v2175
      %v2851 = vpack.c.b16 %v2182, %v2179
      %v2852 = vpack.c.b16 %v2183, %v2180
      %v2853 = vpack.c.b16 %v2184, %v2181
      %v2854 = vpack.c.b16 %v2188, %v2185
      %v2855 = vpack.c.b16 %v2189, %v2186
      %v2856 = vpack.c.b16 %v2190, %v2187
      %v2857 = vpack.c.b16 %v2194, %v2191
      %v2858 = vpack.c.b16 %v2195, %v2192
      %v2859 = vpack.c.b16 %v2196, %v2193
      %v2860 = vpack.c.b16 %v2200, %v2197
      %v2861 = vpack.c.b16 %v2201, %v2198
      %v2862 = vpack.c.b16 %v2202, %v2199
      %v2863 = vpack.c.b16 %v2206, %v2203
      %v2864 = vpack.c.b16 %v2207, %v2204
      %v2865 = vpack.c.b16 %v2208, %v2205
      %v2866 = vpack.c.b16 %v2212, %v2209
      %v2867 = vpack.c.b16 %v2213, %v2210
      %v2868 = vpack.c.b16 %v2214, %v2211
      %v2869 = vpack.c.b16 %v2218, %v2215
      %v2870 = vpack.c.b16 %v2219, %v2216
      %v2871 = vpack.c.b16 %v2220, %v2217
      %v2872 = vpack.c.b16 %v2224, %v2221
      %v2873 = vpack.c.b16 %v2225, %v2222
      %v2874 = vpack.c.b16 %v2226, %v2223
      %v2875 = vpack.c.b16 %v2230, %v2227
      %v2876 = vpack.c.b16 %v2231, %v2228
      %v2877 = vpack.c.b16 %v2232, %v2229
      %v2878 = vpack.c.b16 %v2236, %v2233
      %v2879 = vpack.c.b16 %v2237, %v2234
      %v2880 = vpack.c.b16 %v2238, %v2235
      %v2881 = vpack.c.b16 %v2242, %v2239
      %v2882 = vpack.c.b16 %v2243, %v2240
      %v2883 = vpack.c.b16 %v2244, %v2241
      %v2884 = vpack.c.b16 %v2248, %v2245
      %v2885 = vpack.c.b16 %v2249, %v2246
      %v2886 = vpack.c.b16 %v2250, %v2247
      %v2887 = vpack.c.b16 %v2254, %v2251
      %v2888 = vpack.c.b16 %v2255, %v2252
      %v2889 = vpack.c.b16 %v2256, %v2253
      %v2890 = vpack.c.b16 %v2260, %v2257
      %v2891 = vpack.c.b16 %v2261, %v2258
      %v2892 = vpack.c.b16 %v2262, %v2259
      %v2893 = vpack.c.b16 %v2266, %v2263
      %v2894 = vpack.c.b16 %v2267, %v2264
      %v2895 = vpack.c.b16 %v2268, %v2265
      %v2896 = vpack.c.b16 %v2272, %v2269
      %v2897 = vpack.c.b16 %v2273, %v2270
      %v2898 = vpack.c.b16 %v2274, %v2271
      %v2899 = vpack.c.b16 %v2278, %v2275
      %v2900 = vpack.c.b16 %v2279, %v2276
      %v2901 = vpack.c.b16 %v2280, %v2277
      %v2902 = vpack.c.b16 %v2284, %v2281
      %v2903 = vpack.c.b16 %v2285, %v2282
      %v2904 = vpack.c.b16 %v2286, %v2283
      %v2905 = vpack.c.b16 %v2290, %v2287
      %v2906 = vpack.c.b16 %v2291, %v2288
      %v2907 = vpack.c.b16 %v2292, %v2289
      %v2908 = vpack.c.b16 %v2296, %v2293
      %v2909 = vpack.c.b16 %v2297, %v2294
      %v2910 = vpack.c.b16 %v2298, %v2295
      %v2911 = vpack.c.b16 %v2302, %v2299
      %v2912 = vpack.c.b16 %v2303, %v2300
      %v2913 = vpack.c.b16 %v2304, %v2301
      %v2914 = vpack.c.b16 %v2308, %v2305
      %v2915 = vpack.c.b16 %v2309, %v2306
      %v2916 = vpack.c.b16 %v2310, %v2307
      %v2917 = vpack.c.b16 %v2314, %v2311
      %v2918 = vpack.c.b16 %v2315, %v2312
      %v2919 = vpack.c.b16 %v2316, %v2313
      %v2920 = vpack.c.b16 %v2320, %v2317
      %v2921 = vpack.c.b16 %v2321, %v2318
      %v2922 = vpack.c.b16 %v2322, %v2319
      %v2923 = vpack.c.b16 %v2326, %v2323
      %v2924 = vpack.c.b16 %v2327, %v2324
      %v2925 = vpack.c.b16 %v2328, %v2325
      %v2926 = vpack.c.b16 %v2332, %v2329
      %v2927 = vpack.c.b16 %v2333, %v2330
      %v2928 = vpack.c.b16 %v2334, %v2331
      %v2929 = vpack.c.b16 %v2338, %v2335
      %v2930 = vpack.c.b16 %v2339, %v2336
      %v2931 = vpack.c.b16 %v2340, %v2337
      %v2932 = vpack.c.b16 %v2344, %v2341
      %v2933 = vpack.c.b16 %v2345, %v2342
      %v2934 = vpack.c.b16 %v2346, %v2343
      %v2935 = vpack.c.b16 %v2350, %v2347
      %v2936 = vpack.c.b16 %v2351, %v2348
      %v2937 = vpack.c.b16 %v2352, %v2349
      %v2938 = vpack.c.b16 %v2356, %v2353
      %v2939 = vpack.c.b16 %v2357, %v2354
      %v2940 = vpack.c.b16 %v2358, %v2355
      %v2941 = vpack.c.b16 %v2362, %v2359
      %v2942 = vpack.c.b16 %v2363, %v2360
      %v2943 = vpack.c.b16 %v2364, %v2361
      %v2944 = vpack.c.b16 %v2368, %v2365
      %v2945 = vpack.c.b16 %v2369, %v2366
      %v2946 = vpack.c.b16 %v2370, %v2367
      %v2947 = vpack.c.b16 %v2374, %v2371
      %v2948 = vpack.c.b16 %v2375, %v2372
      %v2949 = vpack.c.b16 %v2376, %v2373
      %v2950 = vpack.c.b16 %v2380, %v2377
      %v2951 = vpack.c.b16 %v2381, %v2378
      %v2952 = vpack.c.b16 %v2382, %v2379
      %v2953 = vpack.c.b16 %v2386, %v2383
      %v2954 = vpack.c.b16 %v2387, %v2384
      %v2955 = vpack.c.b16 %v2388, %v2385
      %v2956 = vpack.c.b16 %v2392, %v2389
      %v2957 = vpack.c.b16 %v2393, %v2390
      %v2958 = vpack.c.b16 %v2394, %v2391
      %v2959 = vpack.c.b16 %v2398, %v2395
      %v2960 = vpack.c.b16 %v2399, %v2396
      %v2961 = vpack.c.b16 %v2400, %v2397
      %v2962 = vpack.c.b16 %v2404, %v2401
      %v2963 = vpack.c.b16 %v2405, %v2402
      %v2964 = vpack.c.b16 %v2406, %v2403
      %v2965 = vpack.c.b16 %v2410, %v2407
      %v2966 = vpack.c.b16 %v2411, %v2408
      %v2967 = vpack.c.b16 %v2412, %v2409
      %v2968 = vpack.c.b16 %v2416, %v2413
      %v2969 = vpack.c.b16 %v2417, %v2414
      %v2970 = vpack.c.b16 %v2418, %v2415
      %v2971 = vpack.c.b16 %v2422, %v2419
      %v2972 = vpack.c.b16 %v2423, %v2420
      %v2973 = vpack.c.b16 %v2424, %v2421
      %v2974 = vpack.c.b16 %v2428, %v2425
      %v2975 = vpack.c.b16 %v2429, %v2426
      %v2976 = vpack.c.b16 %v2430, %v2427
      %v2977 = vpack.c.b16 %v2434, %v2431
      %v2978 = vpack.c.b16 %v2435, %v2432
      %v2979 = vpack.c.b16 %v2436, %v2433
      %v2980 = vpack.c.b16 %v2440, %v2437
      %v2981 = vpack.c.b16 %v2441, %v2438
      %v2982 = vpack.c.b16 %v2442, %v2439
      %v2983 = vpack.c.b16 %v2446, %v2443
      %v2984 = vpack.c.b16 %v2447, %v2444
      %v2985 = vpack.c.b16 %v2448, %v2445
      %v2986 = vpack.c.b16 %v2452, %v2449
      %v2987 = vpack.c.b16 %v2453, %v2450
      %v2988 = vpack.c.b16 %v2454, %v2451
      %v2989 = vpack.c.b16 %v2458, %v2455
      %v2990 = vpack.c.b16 %v2459, %v2456
      %v2991 = vpack.c.b16 %v2460, %v2457
      %v2992 = vpack.c.b16 %v2464, %v2461
      %v2993 = vpack.c.b16 %v2465, %v2462
      %v2994 = vpack.c.b16 %v2466, %v2463
      %v2995 = vpack.c.b16 %v2470, %v2467
      %v2996 = vpack.c.b16 %v2471, %v2468
      %v2997 = vpack.c.b16 %v2472, %v2469
      %v2998 = vpack.c.b16 %v2476, %v2473
      %v2999 = vpack.c.b16 %v2477, %v2474
      %v3000 = vpack.c.b16 %v2478, %v2475
      %v3001 = vpack.c.b16 %v2482, %v2479
      %v3002 = vpack.c.b16 %v2483, %v2480
      %v3003 = vpack.c.b16 %v2484, %v2481
      %v3004 = vpack.c.b16 %v2488, %v2485
      %v3005 = vpack.c.b16 %v2489, %v2486
      %v3006 = vpack.c.b16 %v2490, %v2487
      %v3007 = vpack.c.b16 %v2494, %v2491
      %v3008 = vpack.c.b16 %v2495, %v2492
      %v3009 = vpack.c.b16 %v2496, %v2493
      %v3010 = vpack.c.b16 %v2500, %v2497
      %v3011 = vpack.c.b16 %v2501, %v2498
      %v3012 = vpack.c.b16 %v2502, %v2499
      %v3013 = vpack.c.b16 %v2506, %v2503
      %v3014 = vpack.c.b16 %v2507, %v2504
      %v3015 = vpack.c.b16 %v2508, %v2505
      %v3016 = vpack.c.b16 %v2512, %v2509
      %v3017 = vpack.c.b16 %v2513, %v2510
      %v3018 = vpack.c.b16 %v2514, %v2511
      %v3019 = vpack.c.b16 %v2518, %v2515
      %v3020 = vpack.c.b16 %v2519, %v2516
      %v3021 = vpack.c.b16 %v2520, %v2517
      %v3022 = vpack.c.b16 %v2524, %v2521
      %v3023 = vpack.c.b16 %v2525, %v2522
      %v3024 = vpack.c.b16 %v2526, %v2523
      %v3025 = vpack.c.b16 %v2530, %v2527
      %v3026 = vpack.c.b16 %v2531, %v2528
      %v3027 = vpack.c.b16 %v2532, %v2529
      %v3028 = vpack.c.b16 %v2536, %v2533
      %v3029 = vpack.c.b16 %v2537, %v2534
      %v3030 = vpack.c.b16 %v2538, %v2535
      %v3031 = vpack.c.b16 %v2542, %v2539
      %v3032 = vpack.c.b16 %v2543, %v2540
      %v3033 = vpack.c.b16 %v2544, %v2541
      %v3034 = vpack.c.b16 %v2548, %v2545
      %v3035 = vpack.c.b16 %v2549, %v2546
      %v3036 = vpack.c.b16 %v2550, %v2547
      %v3037 = vpack.c.b16 %v2554, %v2551
      %v3038 = vpack.c.b16 %v2555, %v2552
      %v3039 = vpack.c.b16 %v2556, %v2553
      %v3040 = vpack.c.b16 %v2560, %v2557
      %v3041 = vpack.c.b16 %v2561, %v2558
      %v3042 = vpack.c.b16 %v2562, %v2559
      %v3043 = vpack.c.b16 %v2566, %v2563
      %v3044 = vpack.c.b16 %v2567, %v2564
      %v3045 = vpack.c.b16 %v2568, %v2565
      %v3046 = vpack.c.b16 %v2572, %v2569
      %v3047 = vpack.c.b16 %v2573, %v2570
      %v3048 = vpack.c.b16 %v2574, %v2571
      %v3049 = vpack.c.b16 %v2578, %v2575
      %v3050 = vpack.c.b16 %v2579, %v2576
      %v3051 = vpack.c.b16 %v2580, %v2577
      %v3052 = vpack.c.b16 %v2584, %v2581
      %v3053 = vpack.c.b16 %v2585, %v2582
      %v3054 = vpack.c.b16 %v2586, %v2583
      %v3055 = vpack.c.b16 %v2590, %v2587
      %v3056 = vpack.c.b16 %v2591, %v2588
      %v3057 = vpack.c.b16 %v2592, %v2589
      %v3058 = vpack.c.b16 %v2596, %v2593
      %v3059 = vpack.c.b16 %v2597, %v2594
      %v3060 = vpack.c.b16 %v2598, %v2595
      %v3061 = vpack.c.b16 %v2602, %v2599
      %v3062 = vpack.c.b16 %v2603, %v2600
      %v3063 = vpack.c.b16 %v2604, %v2601
      %v3064 = vpack.c.b16 %v2608, %v2605
      %v3065 = vpack.c.b16 %v2609, %v2606
      %v3066 = vpack.c.b16 %v2610, %v2607
      %3523 = vmatprep.subr.bf16.mxu0 %v2612
      %3524 = vmatpush1.bf16.msra.mxu0 %v2611
      %3525 = vmatprep.subr.bf16.mxu0 %v2615
      %3526 = vmatpush1.bf16.msra.mxu0 %v2614
      %3527 = vmatprep.subr.bf16.mxu0 %v2618
      %3528 = vmatpush1.bf16.msra.mxu0 %v2617
      %3529 = vmatprep.subr.bf16.mxu0 %v2621
      %3530 = vmatpush1.bf16.msra.mxu0 %v2620
      %3531 = vmatprep.subr.bf16.mxu0 %v2624
      %3532 = vmatpush1.bf16.msra.mxu0 %v2623
      %3533 = vmatprep.subr.bf16.mxu0 %v2627
      %3534 = vmatpush1.bf16.msra.mxu0 %v2626
      %3535 = vmatprep.subr.bf16.mxu0 %v2630
      %3536 = vmatpush1.bf16.msra.mxu0 %v2629
      %3537 = vmatprep.subr.bf16.mxu0 %v2633
      %3538 = vmatpush1.bf16.msra.mxu0 %v2632
      %3539 = vmatprep.subr.bf16.mxu0 %v2636
      %3540 = vmatpush1.bf16.msra.mxu0 %v2635
      %3541 = vmatprep.subr.bf16.mxu0 %v2639
      %3542 = vmatpush1.bf16.msra.mxu0 %v2638
      %3543 = vmatprep.subr.bf16.mxu0 %v2642
      %3544 = vmatpush1.bf16.msra.mxu0 %v2641
      %3545 = vmatprep.subr.bf16.mxu0 %v2645
      %3546 = vmatpush1.bf16.msra.mxu0 %v2644
      %3547 = vmatprep.subr.bf16.mxu0 %v2648
      %3548 = vmatpush1.bf16.msra.mxu0 %v2647
      %3549 = vmatprep.subr.bf16.mxu0 %v2651
      %3550 = vmatpush1.bf16.msra.mxu0 %v2650
      %3551 = vmatprep.subr.bf16.mxu0 %v2654
      %3552 = vmatpush1.bf16.msra.mxu0 %v2653
      %3553 = vmatprep.subr.bf16.mxu0 %v2657
      %3554 = vmatpush1.bf16.msra.mxu0 %v2656
      %3555 = vmatprep.mubr.bf16.mxu0 %v1016
      %3556 = vmatmul.mubr.bf16.gmra.mrb[0].mxu0 %v1015
      %v3557 = vpop.f32.mrb[0].mxu0
      %v3558 = vadd.f32 0.0, %v3557
      %v3559 = vpop.f32.mrb[0].mxu0
      %v3560 = vadd.f32 0.0, %v3559
      %v3561 = vpop.f32.mrb[0].mxu0
      %v3562 = vadd.f32 0.0, %v3561
      %v3563 = vpop.f32.mrb[0].mxu0
      %v3564 = vadd.f32 0.0, %v3563
      %3565 = vmatprep.mubr.bf16.mxu0 %v1035
      %3566 = vmatmul.mubr.bf16.gmra.mrb[0].mxu0 %v1034
      %v3567 = vpop.f32.mrb[0].mxu0
      %v3568 = vadd.f32 0.0, %v3567
      %v3569 = vpop.f32.mrb[0].mxu0
      %v3570 = vadd.f32 0.0, %v3569
      %v3571 = vpop.f32.mrb[0].mxu0
      %v3572 = vadd.f32 0.0, %v3571
      %v3573 = vpop.f32.mrb[0].mxu0
      %v3574 = vadd.f32 0.0, %v3573
      %3575 = vdwg.mxu0
      %3576 = vmatprep.subr.bf16.mxu0 %v2660
      %3577 = vmatpush1.bf16.msra.mxu0 %v2659
      %3578 = vmatprep.subr.bf16.mxu0 %v2663
      %3579 = vmatpush1.bf16.msra.mxu0 %v2662
      %3580 = vmatprep.subr.bf16.mxu0 %v2666
      %3581 = vmatpush1.bf16.msra.mxu0 %v2665
      %3582 = vmatprep.subr.bf16.mxu0 %v2669
      %3583 = vmatpush1.bf16.msra.mxu0 %v2668
      %3584 = vmatprep.subr.bf16.mxu0 %v2672
      %3585 = vmatpush1.bf16.msra.mxu0 %v2671
      %3586 = vmatprep.subr.bf16.mxu0 %v2675
      %3587 = vmatpush1.bf16.msra.mxu0 %v2674
      %3588 = vmatprep.subr.bf16.mxu0 %v2678
      %3589 = vmatpush1.bf16.msra.mxu0 %v2677
      %3590 = vmatprep.subr.bf16.mxu0 %v2681
      %3591 = vmatpush1.bf16.msra.mxu0 %v2680
      %3592 = vmatprep.subr.bf16.mxu0 %v2684
      %3593 = vmatpush1.bf16.msra.mxu0 %v2683
      %3594 = vmatprep.subr.bf16.mxu0 %v2687
      %3595 = vmatpush1.bf16.msra.mxu0 %v2686
      %3596 = vmatprep.subr.bf16.mxu0 %v2690
      %3597 = vmatpush1.bf16.msra.mxu0 %v2689
      %3598 = vmatprep.subr.bf16.mxu0 %v2693
      %3599 = vmatpush1.bf16.msra.mxu0 %v2692
      %3600 = vmatprep.subr.bf16.mxu0 %v2696
      %3601 = vmatpush1.bf16.msra.mxu0 %v2695
      %3602 = vmatprep.subr.bf16.mxu0 %v2699
      %3603 = vmatpush1.bf16.msra.mxu0 %v2698
      %3604 = vmatprep.subr.bf16.mxu0 %v2702
      %3605 = vmatpush1.bf16.msra.mxu0 %v2701
      %3606 = vmatprep.subr.bf16.mxu0 %v2705
      %3607 = vmatpush1.bf16.msra.mxu0 %v2704
      %3608 = vmatprep.mubr.bf16.mxu0 %v1018
      %3609 = vmatmul.mubr.bf16.gmra.mrb[0].mxu0 %v1017
      %v3610 = vpop.f32.mrb[0].mxu0
      %v3611 = vadd.f32 %v3558, %v3610
      %v3612 = vpop.f32.mrb[0].mxu0
      %v3613 = vadd.f32 %v3560, %v3612
      %v3614 = vpop.f32.mrb[0].mxu0
      %v3615 = vadd.f32 %v3562, %v3614
      %v3616 = vpop.f32.mrb[0].mxu0
      %v3617 = vadd.f32 %v3564, %v3616
      %3618 = vmatprep.mubr.bf16.mxu0 %v1037
      %3619 = vmatmul.mubr.bf16.gmra.mrb[0].mxu0 %v1036
      %v3620 = vpop.f32.mrb[0].mxu0
      %v3621 = vadd.f32 %v3568, %v3620
      %v3622 = vpop.f32.mrb[0].mxu0
      %v3623 = vadd.f32 %v3570, %v3622
      %v3624 = vpop.f32.mrb[0].mxu0
      %v3625 = vadd.f32 %v3572, %v3624
      %v3626 = vpop.f32.mrb[0].mxu0
      %v3627 = vadd.f32 %v3574, %v3626
      %3628 = vdwg.mxu0
      %3629 = vmatprep.subr.bf16.mxu0 %v2708
      %3630 = vmatpush1.bf16.msra.mxu0 %v2707
      %3631 = vmatprep.subr.bf16.mxu0 %v2711
      %3632 = vmatpush1.bf16.msra.mxu0 %v2710
      %3633 = vmatprep.subr.bf16.mxu0 %v2714
      %3634 = vmatpush1.bf16.msra.mxu0 %v2713
      %3635 = vmatprep.subr.bf16.mxu0 %v2717
      %3636 = vmatpush1.bf16.msra.mxu0 %v2716
      %3637 = vmatprep.subr.bf16.mxu0 %v2720
      %3638 = vmatpush1.bf16.msra.mxu0 %v2719
      %3639 = vmatprep.subr.bf16.mxu0 %v2723
      %3640 = vmatpush1.bf16.msra.mxu0 %v2722
      %3641 = vmatprep.subr.bf16.mxu0 %v2726
      %3642 = vmatpush1.bf16.msra.mxu0 %v2725
      %3643 = vmatprep.subr.bf16.mxu0 %v2729
      %3644 = vmatpush1.bf16.msra.mxu0 %v2728
      %3645 = vmatprep.subr.bf16.mxu0 %v2732
      %3646 = vmatpush1.bf16.msra.mxu0 %v2731
      %3647 = vmatprep.subr.bf16.mxu0 %v2735
      %3648 = vmatpush1.bf16.msra.mxu0 %v2734
      %3649 = vmatprep.subr.bf16.mxu0 %v2738
      %3650 = vmatpush1.bf16.msra.mxu0 %v2737
      %3651 = vmatprep.subr.bf16.mxu0 %v2741
      %3652 = vmatpush1.bf16.msra.mxu0 %v2740
      %3653 = vmatprep.subr.bf16.mxu0 %v2744
      %3654 = vmatpush1.bf16.msra.mxu0 %v2743
      %3655 = vmatprep.subr.bf16.mxu0 %v2747
      %3656 = vmatpush1.bf16.msra.mxu0 %v2746
      %3657 = vmatprep.subr.bf16.mxu0 %v2750
      %3658 = vmatpush1.bf16.msra.mxu0 %v2749
      %3659 = vmatprep.subr.bf16.mxu0 %v2753
      %3660 = vmatpush1.bf16.msra.mxu0 %v2752
      %3661 = vmatprep.mubr.bf16.mxu0 %v1020
      %3662 = vmatmul.mubr.bf16.gmra.mrb[0].mxu0 %v1019
      %v3663 = vpop.f32.mrb[0].mxu0
      %v3664 = vadd.f32 %v3611, %v3663
      %v3665 = vpop.f32.mrb[0].mxu0
      %v3666 = vadd.f32 %v3613, %v3665
      %v3667 = vpop.f32.mrb[0].mxu0
      %v3668 = vadd.f32 %v3615, %v3667
      %v3669 = vpop.f32.mrb[0].mxu0
      %v3670 = vadd.f32 %v3617, %v3669
      %3671 = vmatprep.mubr.bf16.mxu0 %v1039
      %3672 = vmatmul.mubr.bf16.gmra.mrb[0].mxu0 %v1038
      %v3673 = vpop.f32.mrb[0].mxu0
      %v3674 = vadd.f32 %v3621, %v3673
      %v3675 = vpop.f32.mrb[0].mxu0
      %v3676 = vadd.f32 %v3623, %v3675
      %v3677 = vpop.f32.mrb[0].mxu0
      %v3678 = vadd.f32 %v3625, %v3677
      %v3679 = vpop.f32.mrb[0].mxu0
      %v3680 = vadd.f32 %v3627, %v3679
      %3681 = vdwg.mxu0
      %3682 = vmatprep.subr.bf16.mxu0 %v2756
      %3683 = vmatpush1.bf16.msra.mxu0 %v2755
      %3684 = vmatprep.subr.bf16.mxu0 %v2759
      %3685 = vmatpush1.bf16.msra.mxu0 %v2758
      %3686 = vmatprep.subr.bf16.mxu0 %v2762
      %3687 = vmatpush1.bf16.msra.mxu0 %v2761
      %3688 = vmatprep.subr.bf16.mxu0 %v2765
      %3689 = vmatpush1.bf16.msra.mxu0 %v2764
      %3690 = vmatprep.subr.bf16.mxu0 %v2768
      %3691 = vmatpush1.bf16.msra.mxu0 %v2767
      %3692 = vmatprep.subr.bf16.mxu0 %v2771
      %3693 = vmatpush1.bf16.msra.mxu0 %v2770
      %3694 = vmatprep.subr.bf16.mxu0 %v2774
      %3695 = vmatpush1.bf16.msra.mxu0 %v2773
      %3696 = vmatprep.subr.bf16.mxu0 %v2777
      %3697 = vmatpush1.bf16.msra.mxu0 %v2776
      %3698 = vmatprep.subr.bf16.mxu0 %v2780
      %3699 = vmatpush1.bf16.msra.mxu0 %v2779
      %3700 = vmatprep.subr.bf16.mxu0 %v2783
      %3701 = vmatpush1.bf16.msra.mxu0 %v2782
      %3702 = vmatprep.subr.bf16.mxu0 %v2786
      %3703 = vmatpush1.bf16.msra.mxu0 %v2785
      %3704 = vmatprep.subr.bf16.mxu0 %v2789
      %3705 = vmatpush1.bf16.msra.mxu0 %v2788
      %3706 = vmatprep.subr.bf16.mxu0 %v2792
      %3707 = vmatpush1.bf16.msra.mxu0 %v2791
      %3708 = vmatprep.subr.bf16.mxu0 %v2795
      %3709 = vmatpush1.bf16.msra.mxu0 %v2794
      %3710 = vmatprep.subr.bf16.mxu0 %v2798
      %3711 = vmatpush1.bf16.msra.mxu0 %v2797
      %3712 = vmatprep.subr.bf16.mxu0 %v2801
      %3713 = vmatpush1.bf16.msra.mxu0 %v2800
      %3714 = vmatprep.mubr.bf16.mxu0 %v1022
      %3715 = vmatmul.mubr.bf16.gmra.mrb[0].mxu0 %v1021
      %v3716 = vpop.f32.mrb[0].mxu0
      %v3717 = vadd.f32 %v3664, %v3716
      %v3718 = vpop.f32.mrb[0].mxu0
      %v3719 = vadd.f32 %v3666, %v3718
      %v3720 = vpop.f32.mrb[0].mxu0
      %v3721 = vadd.f32 %v3668, %v3720
      %v3722 = vpop.f32.mrb[0].mxu0
      %v3723 = vadd.f32 %v3670, %v3722
      %3724 = vmatprep.mubr.bf16.mxu0 %v1041
      %3725 = vmatmul.mubr.bf16.gmra.mrb[0].mxu0 %v1040
      %v3726 = vpop.f32.mrb[0].mxu0
      %v3727 = vadd.f32 %v3674, %v3726
      %v3728 = vpop.f32.mrb[0].mxu0
      %v3729 = vadd.f32 %v3676, %v3728
      %v3730 = vpop.f32.mrb[0].mxu0
      %v3731 = vadd.f32 %v3678, %v3730
      %v3732 = vpop.f32.mrb[0].mxu0
      %v3733 = vadd.f32 %v3680, %v3732
      %3734 = vdwg.mxu0
      %3735 = vmatprep.subr.bf16.mxu0 %v2804
      %3736 = vmatpush1.bf16.msra.mxu0 %v2803
      %3737 = vmatprep.subr.bf16.mxu0 %v2807
      %3738 = vmatpush1.bf16.msra.mxu0 %v2806
      %3739 = vmatprep.subr.bf16.mxu0 %v2810
      %3740 = vmatpush1.bf16.msra.mxu0 %v2809
      %3741 = vmatprep.subr.bf16.mxu0 %v2813
      %3742 = vmatpush1.bf16.msra.mxu0 %v2812
      %3743 = vmatprep.subr.bf16.mxu0 %v2816
      %3744 = vmatpush1.bf16.msra.mxu0 %v2815
      %3745 = vmatprep.subr.bf16.mxu0 %v2819
      %3746 = vmatpush1.bf16.msra.mxu0 %v2818
      %3747 = vmatprep.subr.bf16.mxu0 %v2822
      %3748 = vmatpush1.bf16.msra.mxu0 %v2821
      %3749 = vmatprep.subr.bf16.mxu0 %v2825
      %3750 = vmatpush1.bf16.msra.mxu0 %v2824
      %3751 = vmatprep.subr.bf16.mxu0 %v2828
      %3752 = vmatpush1.bf16.msra.mxu0 %v2827
      %3753 = vmatprep.subr.bf16.mxu0 %v2831
      %3754 = vmatpush1.bf16.msra.mxu0 %v2830
      %3755 = vmatprep.subr.bf16.mxu0 %v2834
      %3756 = vmatpush1.bf16.msra.mxu0 %v2833
      %3757 = vmatprep.subr.bf16.mxu0 %v2837
      %3758 = vmatpush1.bf16.msra.mxu0 %v2836
      %3759 = vmatprep.subr.bf16.mxu0 %v2840
      %3760 = vmatpush1.bf16.msra.mxu0 %v2839
      %3761 = vmatprep.subr.bf16.mxu0 %v2843
      %3762 = vmatpush1.bf16.msra.mxu0 %v2842
      %3763 = vmatprep.subr.bf16.mxu0 %v2846
      %3764 = vmatpush1.bf16.msra.mxu0 %v2845
      %3765 = vmatprep.subr.bf16.mxu0 %v2849
      %3766 = vmatpush1.bf16.msra.mxu0 %v2848
      %3767 = vmatprep.mubr.bf16.mxu0 %v1024
      %3768 = vmatmul.mubr.bf16.gmra.mrb[0].mxu0 %v1023
      %v3769 = vpop.f32.mrb[0].mxu0
      %v3770 = vadd.f32 %v3717, %v3769
      %v3771 = vpop.f32.mrb[0].mxu0
      %v3772 = vadd.f32 %v3719, %v3771
      %v3773 = vpop.f32.mrb[0].mxu0
      %v3774 = vadd.f32 %v3721, %v3773
      %v3775 = vpop.f32.mrb[0].mxu0
      %v3776 = vadd.f32 %v3723, %v3775
      %3777 = vmatprep.mubr.bf16.mxu0 %v1043
      %3778 = vmatmul.mubr.bf16.gmra.mrb[0].mxu0 %v1042
      %v3779 = vpop.f32.mrb[0].mxu0
      %v3780 = vadd.f32 %v3727, %v3779
      %v3781 = vpop.f32.mrb[0].mxu0
      %v3782 = vadd.f32 %v3729, %v3781
      %v3783 = vpop.f32.mrb[0].mxu0
      %v3784 = vadd.f32 %v3731, %v3783
      %v3785 = vpop.f32.mrb[0].mxu0
      %v3786 = vadd.f32 %v3733, %v3785
      %3787 = vdwg.mxu0
      %3788 = vmatprep.subr.bf16.mxu0 %v2852
      %3789 = vmatpush1.bf16.msra.mxu0 %v2851
      %3790 = vmatprep.subr.bf16.mxu0 %v2855
      %3791 = vmatpush1.bf16.msra.mxu0 %v2854
      %3792 = vmatprep.subr.bf16.mxu0 %v2858
      %3793 = vmatpush1.bf16.msra.mxu0 %v2857
      %3794 = vmatprep.subr.bf16.mxu0 %v2861
      %3795 = vmatpush1.bf16.msra.mxu0 %v2860
      %3796 = vmatprep.subr.bf16.mxu0 %v2864
      %3797 = vmatpush1.bf16.msra.mxu0 %v2863
      %3798 = vmatprep.subr.bf16.mxu0 %v2867
      %3799 = vmatpush1.bf16.msra.mxu0 %v2866
      %3800 = vmatprep.subr.bf16.mxu0 %v2870
      %3801 = vmatpush1.bf16.msra.mxu0 %v2869
      %3802 = vmatprep.subr.bf16.mxu0 %v2873
      %3803 = vmatpush1.bf16.msra.mxu0 %v2872
      %3804 = vmatprep.subr.bf16.mxu0 %v2876
      %3805 = vmatpush1.bf16.msra.mxu0 %v2875
      %3806 = vmatprep.subr.bf16.mxu0 %v2879
      %3807 = vmatpush1.bf16.msra.mxu0 %v2878
      %3808 = vmatprep.subr.bf16.mxu0 %v2882
      %3809 = vmatpush1.bf16.msra.mxu0 %v2881
      %3810 = vmatprep.subr.bf16.mxu0 %v2885
      %3811 = vmatpush1.bf16.msra.mxu0 %v2884
      %3812 = vmatprep.subr.bf16.mxu0 %v2888
      %3813 = vmatpush1.bf16.msra.mxu0 %v2887
      %3814 = vmatprep.subr.bf16.mxu0 %v2891
      %3815 = vmatpush1.bf16.msra.mxu0 %v2890
      %3816 = vmatprep.subr.bf16.mxu0 %v2894
      %3817 = vmatpush1.bf16.msra.mxu0 %v2893
      %3818 = vmatprep.subr.bf16.mxu0 %v2897
      %3819 = vmatpush1.bf16.msra.mxu0 %v2896
      %3820 = vmatprep.mubr.bf16.mxu0 %v1026
      %3821 = vmatmul.mubr.bf16.gmra.mrb[0].mxu0 %v1025
      %v3822 = vpop.f32.mrb[0].mxu0
      %v3823 = vadd.f32 %v3770, %v3822
      %v3824 = vpop.f32.mrb[0].mxu0
      %v3825 = vadd.f32 %v3772, %v3824
      %v3826 = vpop.f32.mrb[0].mxu0
      %v3827 = vadd.f32 %v3774, %v3826
      %v3828 = vpop.f32.mrb[0].mxu0
      %v3829 = vadd.f32 %v3776, %v3828
      %3830 = vmatprep.mubr.bf16.mxu0 %v1045
      %3831 = vmatmul.mubr.bf16.gmra.mrb[0].mxu0 %v1044
      %v3832 = vpop.f32.mrb[0].mxu0
      %v3833 = vadd.f32 %v3780, %v3832
      %v3834 = vpop.f32.mrb[0].mxu0
      %v3835 = vadd.f32 %v3782, %v3834
      %v3836 = vpop.f32.mrb[0].mxu0
      %v3837 = vadd.f32 %v3784, %v3836
      %v3838 = vpop.f32.mrb[0].mxu0
      %v3839 = vadd.f32 %v3786, %v3838
      %3840 = vdwg.mxu0
      %3841 = vmatprep.subr.bf16.mxu0 %v2900
      %3842 = vmatpush1.bf16.msra.mxu0 %v2899
      %3843 = vmatprep.subr.bf16.mxu0 %v2903
      %3844 = vmatpush1.bf16.msra.mxu0 %v2902
      %3845 = vmatprep.subr.bf16.mxu0 %v2906
      %3846 = vmatpush1.bf16.msra.mxu0 %v2905
      %3847 = vmatprep.subr.bf16.mxu0 %v2909
      %3848 = vmatpush1.bf16.msra.mxu0 %v2908
      %3849 = vmatprep.subr.bf16.mxu0 %v2912
      %3850 = vmatpush1.bf16.msra.mxu0 %v2911
      %3851 = vmatprep.subr.bf16.mxu0 %v2915
      %3852 = vmatpush1.bf16.msra.mxu0 %v2914
      %3853 = vmatprep.subr.bf16.mxu0 %v2918
      %3854 = vmatpush1.bf16.msra.mxu0 %v2917
      %3855 = vmatprep.subr.bf16.mxu0 %v2921
      %3856 = vmatpush1.bf16.msra.mxu0 %v2920
      %3857 = vmatprep.subr.bf16.mxu0 %v2924
      %3858 = vmatpush1.bf16.msra.mxu0 %v2923
      %3859 = vmatprep.subr.bf16.mxu0 %v2927
      %3860 = vmatpush1.bf16.msra.mxu0 %v2926
      %3861 = vmatprep.subr.bf16.mxu0 %v2930
      %3862 = vmatpush1.bf16.msra.mxu0 %v2929
      %3863 = vmatprep.subr.bf16.mxu0 %v2933
      %3864 = vmatpush1.bf16.msra.mxu0 %v2932
      %3865 = vmatprep.subr.bf16.mxu0 %v2936
      %3866 = vmatpush1.bf16.msra.mxu0 %v2935
      %3867 = vmatprep.subr.bf16.mxu0 %v2939
      %3868 = vmatpush1.bf16.msra.mxu0 %v2938
      %3869 = vmatprep.subr.bf16.mxu0 %v2942
      %3870 = vmatpush1.bf16.msra.mxu0 %v2941
      %3871 = vmatprep.subr.bf16.mxu0 %v2945
      %3872 = vmatpush1.bf16.msra.mxu0 %v2944
      %3873 = vmatprep.mubr.bf16.mxu0 %v1028
      %3874 = vmatmul.mubr.bf16.gmra.mrb[0].mxu0 %v1027
      %v3875 = vpop.f32.mrb[0].mxu0
      %v3876 = vadd.f32 %v3823, %v3875
      %v3877 = vpop.f32.mrb[0].mxu0
      %v3878 = vadd.f32 %v3825, %v3877
      %v3879 = vpop.f32.mrb[0].mxu0
      %v3880 = vadd.f32 %v3827, %v3879
      %v3881 = vpop.f32.mrb[0].mxu0
      %v3882 = vadd.f32 %v3829, %v3881
      %3883 = vmatprep.mubr.bf16.mxu0 %v1047
      %3884 = vmatmul.mubr.bf16.gmra.mrb[0].mxu0 %v1046
      %v3885 = vpop.f32.mrb[0].mxu0
      %v3886 = vadd.f32 %v3833, %v3885
      %v3887 = vpop.f32.mrb[0].mxu0
      %v3888 = vadd.f32 %v3835, %v3887
      %v3889 = vpop.f32.mrb[0].mxu0
      %v3890 = vadd.f32 %v3837, %v3889
      %v3891 = vpop.f32.mrb[0].mxu0
      %v3892 = vadd.f32 %v3839, %v3891
      %3893 = vdwg.mxu0
      %3894 = vmatprep.subr.bf16.mxu0 %v2948
      %3895 = vmatpush1.bf16.msra.mxu0 %v2947
      %3896 = vmatprep.subr.bf16.mxu0 %v2951
      %3897 = vmatpush1.bf16.msra.mxu0 %v2950
      %3898 = vmatprep.subr.bf16.mxu0 %v2954
      %3899 = vmatpush1.bf16.msra.mxu0 %v2953
      %3900 = vmatprep.subr.bf16.mxu0 %v2957
      %3901 = vmatpush1.bf16.msra.mxu0 %v2956
      %3902 = vmatprep.subr.bf16.mxu0 %v2960
      %3903 = vmatpush1.bf16.msra.mxu0 %v2959
      %3904 = vmatprep.subr.bf16.mxu0 %v2963
      %3905 = vmatpush1.bf16.msra.mxu0 %v2962
      %3906 = vmatprep.subr.bf16.mxu0 %v2966
      %3907 = vmatpush1.bf16.msra.mxu0 %v2965
      %3908 = vmatprep.subr.bf16.mxu0 %v2969
      %3909 = vmatpush1.bf16.msra.mxu0 %v2968
      %3910 = vmatprep.subr.bf16.mxu0 %v2972
      %3911 = vmatpush1.bf16.msra.mxu0 %v2971
      %3912 = vmatprep.subr.bf16.mxu0 %v2975
      %3913 = vmatpush1.bf16.msra.mxu0 %v2974
      %3914 = vmatprep.subr.bf16.mxu0 %v2978
      %3915 = vmatpush1.bf16.msra.mxu0 %v2977
      %3916 = vmatprep.subr.bf16.mxu0 %v2981
      %3917 = vmatpush1.bf16.msra.mxu0 %v2980
      %3918 = vmatprep.subr.bf16.mxu0 %v2984
      %3919 = vmatpush1.bf16.msra.mxu0 %v2983
      %3920 = vmatprep.subr.bf16.mxu0 %v2987
      %3921 = vmatpush1.bf16.msra.mxu0 %v2986
      %3922 = vmatprep.subr.bf16.mxu0 %v2990
      %3923 = vmatpush1.bf16.msra.mxu0 %v2989
      %3924 = vmatprep.subr.bf16.mxu0 %v2993
      %3925 = vmatpush1.bf16.msra.mxu0 %v2992
      %3926 = vmatprep.mubr.bf16.mxu0 %v1030
      %3927 = vmatmul.mubr.bf16.gmra.mrb[0].mxu0 %v1029
      %v3928 = vpop.f32.mrb[0].mxu0
      %v3929 = vadd.f32 %v3876, %v3928
      %v3930 = vpop.f32.mrb[0].mxu0
      %v3931 = vadd.f32 %v3878, %v3930
      %v3932 = vpop.f32.mrb[0].mxu0
      %v3933 = vadd.f32 %v3880, %v3932
      %v3934 = vpop.f32.mrb[0].mxu0
      %v3935 = vadd.f32 %v3882, %v3934
      %3936 = vmatprep.mubr.bf16.mxu0 %v1049
      %3937 = vmatmul.mubr.bf16.gmra.mrb[0].mxu0 %v1048
      %v3938 = vpop.f32.mrb[0].mxu0
      %v3939 = vadd.f32 %v3886, %v3938
      %v3940 = vpop.f32.mrb[0].mxu0
      %v3941 = vadd.f32 %v3888, %v3940
      %v3942 = vpop.f32.mrb[0].mxu0
      %v3943 = vadd.f32 %v3890, %v3942
      %v3944 = vpop.f32.mrb[0].mxu0
      %v3945 = vadd.f32 %v3892, %v3944
      %3946 = vdwg.mxu0
      %3947 = vmatprep.subr.bf16.mxu0 %v2996
      %3948 = vmatpush1.bf16.msra.mxu0 %v2995
      %3949 = vmatprep.subr.bf16.mxu0 %v2999
      %3950 = vmatpush1.bf16.msra.mxu0 %v2998
      %3951 = vmatprep.subr.bf16.mxu0 %v3002
      %3952 = vmatpush1.bf16.msra.mxu0 %v3001
      %3953 = vmatprep.subr.bf16.mxu0 %v3005
      %3954 = vmatpush1.bf16.msra.mxu0 %v3004
      %3955 = vmatprep.subr.bf16.mxu0 %v3008
      %3956 = vmatpush1.bf16.msra.mxu0 %v3007
      %3957 = vmatprep.subr.bf16.mxu0 %v3011
      %3958 = vmatpush1.bf16.msra.mxu0 %v3010
      %3959 = vmatprep.subr.bf16.mxu0 %v3014
      %3960 = vmatpush1.bf16.msra.mxu0 %v3013
      %3961 = vmatprep.subr.bf16.mxu0 %v3017
      %3962 = vmatpush1.bf16.msra.mxu0 %v3016
      %3963 = vmatprep.subr.bf16.mxu0 %v3020
      %3964 = vmatpush1.bf16.msra.mxu0 %v3019
      %3965 = vmatprep.subr.bf16.mxu0 %v3023
      %3966 = vmatpush1.bf16.msra.mxu0 %v3022
      %3967 = vmatprep.subr.bf16.mxu0 %v3026
      %3968 = vmatpush1.bf16.msra.mxu0 %v3025
      %3969 = vmatprep.subr.bf16.mxu0 %v3029
      %3970 = vmatpush1.bf16.msra.mxu0 %v3028
      %3971 = vmatprep.subr.bf16.mxu0 %v3032
      %3972 = vmatpush1.bf16.msra.mxu0 %v3031
      %3973 = vmatprep.subr.bf16.mxu0 %v3035
      %3974 = vmatpush1.bf16.msra.mxu0 %v3034
      %3975 = vmatprep.subr.bf16.mxu0 %v3038
      %3976 = vmatpush1.bf16.msra.mxu0 %v3037
      %3977 = vmatprep.subr.bf16.mxu0 %v3041
      %3978 = vmatpush1.bf16.msra.mxu0 %v3040
      %3979 = vmatprep.mubr.bf16.mxu0 %v1032
      %3980 = vmatmul.mubr.bf16.gmra.mrb[0].mxu0 %v1031
      %v3981 = vpop.f32.mrb[0].mxu0
      %v3982 = vadd.f32 %v3929, %v3981
      %v3983 = vpop.f32.mrb[0].mxu0
      %v3984 = vadd.f32 %v3931, %v3983
      %v3985 = vpop.f32.mrb[0].mxu0
      %v3986 = vadd.f32 %v3933, %v3985
      %v3987 = vpop.f32.mrb[0].mxu0
      %v3988 = vadd.f32 %v3935, %v3987
      %3989 = vmatprep.mubr.bf16.mxu0 %v1051
      %3990 = vmatmul.mubr.bf16.gmra.mrb[0].mxu0 %v1050
      %v3991 = vpop.f32.mrb[0].mxu0
      %v3992 = vadd.f32 %v3939, %v3991
      %v3993 = vpop.f32.mrb[0].mxu0
      %v3994 = vadd.f32 %v3941, %v3993
      %v3995 = vpop.f32.mrb[0].mxu0
      %v3996 = vadd.f32 %v3943, %v3995
      %v3997 = vpop.f32.mrb[0].mxu0
      %v3998 = vadd.f32 %v3945, %v3997
      %3999 = vdwg.mxu0
      %4000 = vmatprep.subr.bf16.mxu0 %v3044
      %4001 = vmatpush1.bf16.msra.mxu0 %v3043
      %4002 = vmatprep.subr.bf16.mxu0 %v3047
      %4003 = vmatpush1.bf16.msra.mxu0 %v3046
      %4004 = vmatprep.subr.bf16.mxu0 %v3050
      %4005 = vmatpush1.bf16.msra.mxu0 %v3049
      %4006 = vmatprep.subr.bf16.mxu0 %v3053
      %4007 = vmatpush1.bf16.msra.mxu0 %v3052
      %4008 = vmatprep.subr.bf16.mxu0 %v3056
      %4009 = vmatpush1.bf16.msra.mxu0 %v3055
      %4010 = vmatprep.subr.bf16.mxu0 %v3059
      %4011 = vmatpush1.bf16.msra.mxu0 %v3058
      %4012 = vmatprep.subr.bf16.mxu0 %v3062
      %4013 = vmatpush1.bf16.msra.mxu0 %v3061
      %4014 = vmatprep.subr.bf16.mxu0 %v3065
      %4015 = vmatpush1.bf16.msra.mxu0 %v3064
      %4016 = vmatprep.subr.bf16.mxu0 0
      %4017 = vmatpush1.bf16.msra.mxu0 0
      %4018 = vmatprep.subr.bf16.mxu0 0
      %4019 = vmatpush1.bf16.msra.mxu0 0
      %4020 = vmatprep.subr.bf16.mxu0 0
      %4021 = vmatpush1.bf16.msra.mxu0 0
      %4022 = vmatprep.subr.bf16.mxu0 0
      %4023 = vmatpush1.bf16.msra.mxu0 0
      %4024 = vmatprep.subr.bf16.mxu0 0
      %4025 = vmatpush1.bf16.msra.mxu0 0
      %4026 = vmatprep.subr.bf16.mxu0 0
      %4027 = vmatpush1.bf16.msra.mxu0 0
      %4028 = vmatprep.subr.bf16.mxu0 0
      %4029 = vmatpush1.bf16.msra.mxu0 0
      %4030 = vmatprep.subr.bf16.mxu0 0
      %4031 = vmatpush1.bf16.msra.mxu0 0
      %4032 = vmatprep.mubr.bf16.mxu0 0
      %4033 = vmatmul.mubr.bf16.gmra.mrb[0].mxu0 %v1033
      %v4034 = vpop.f32.mrb[0].mxu0
      %v4035 = vadd.f32 %v3982, %v4034
      %v4036 = vpop.f32.mrb[0].mxu0
      %v4037 = vadd.f32 %v3984, %v4036
      %v4038 = vpop.f32.mrb[0].mxu0
      %v4039 = vadd.f32 %v3986, %v4038
      %v4040 = vpop.f32.mrb[0].mxu0
      %v4041 = vadd.f32 %v3988, %v4040
      %4042 = vmatprep.mubr.bf16.mxu0 0
      %4043 = vmatmul.mubr.bf16.gmra.mrb[0].mxu0 %v1052
      %v4044 = vpop.f32.mrb[0].mxu0
      %v4045 = vadd.f32 %v3992, %v4044
      %v4046 = vpop.f32.mrb[0].mxu0
      %v4047 = vadd.f32 %v3994, %v4046
      %v4048 = vpop.f32.mrb[0].mxu0
      %v4049 = vadd.f32 %v3996, %v4048
      %v4050 = vpop.f32.mrb[0].mxu0
      %v4051 = vadd.f32 %v3998, %v4050
      %4052 = vdwg.mxu0
      %4053 = vmatprep.subr.bf16.mxu0 0
      %4054 = vmatpush1.bf16.msra.mxu0 %v2613
      %4055 = vmatprep.subr.bf16.mxu0 0
      %4056 = vmatpush1.bf16.msra.mxu0 %v2616
      %4057 = vmatprep.subr.bf16.mxu0 0
      %4058 = vmatpush1.bf16.msra.mxu0 %v2619
      %4059 = vmatprep.subr.bf16.mxu0 0
      %4060 = vmatpush1.bf16.msra.mxu0 %v2622
      %4061 = vmatprep.subr.bf16.mxu0 0
      %4062 = vmatpush1.bf16.msra.mxu0 %v2625
      %4063 = vmatprep.subr.bf16.mxu0 0
      %4064 = vmatpush1.bf16.msra.mxu0 %v2628
      %4065 = vmatprep.subr.bf16.mxu0 0
      %4066 = vmatpush1.bf16.msra.mxu0 %v2631
      %4067 = vmatprep.subr.bf16.mxu0 0
      %4068 = vmatpush1.bf16.msra.mxu0 %v2634
      %4069 = vmatprep.subr.bf16.mxu0 0
      %4070 = vmatpush1.bf16.msra.mxu0 %v2637
      %4071 = vmatprep.subr.bf16.mxu0 0
      %4072 = vmatpush1.bf16.msra.mxu0 %v2640
      %4073 = vmatprep.subr.bf16.mxu0 0
      %4074 = vmatpush1.bf16.msra.mxu0 %v2643
      %4075 = vmatprep.subr.bf16.mxu0 0
      %4076 = vmatpush1.bf16.msra.mxu0 %v2646
      %4077 = vmatprep.subr.bf16.mxu0 0
      %4078 = vmatpush1.bf16.msra.mxu0 %v2649
      %4079 = vmatprep.subr.bf16.mxu0 0
      %4080 = vmatpush1.bf16.msra.mxu0 %v2652
      %4081 = vmatprep.subr.bf16.mxu0 0
      %4082 = vmatpush1.bf16.msra.mxu0 %v2655
      %4083 = vmatprep.subr.bf16.mxu0 0
      %4084 = vmatpush1.bf16.msra.mxu0 %v2658
      %4085 = vmatprep.mubr.bf16.mxu0 %v1016
      %4086 = vmatmul.mubr.bf16.gmra.mrb[0].mxu0 %v1015
      %v4087 = vpop.f32.mrb[0].mxu0
      %v4088 = vadd.f32 0.0, %v4087
      %v4089 = vpop.f32.mrb[0].mxu0
      %v4090 = vpop.f32.mrb[0].mxu0
      %v4091 = vadd.f32 0.0, %v4090
      %v4092 = vpop.f32.mrb[0].mxu0
      %4093 = vmatprep.mubr.bf16.mxu0 %v1035
      %4094 = vmatmul.mubr.bf16.gmra.mrb[0].mxu0 %v1034
      %v4095 = vpop.f32.mrb[0].mxu0
      %v4096 = vadd.f32 0.0, %v4095
      %v4097 = vpop.f32.mrb[0].mxu0
      %v4098 = vpop.f32.mrb[0].mxu0
      %v4099 = vadd.f32 0.0, %v4098
      %v4100 = vpop.f32.mrb[0].mxu0
      %4101 = vdwg.mxu0
      %4102 = vmatprep.subr.bf16.mxu0 0
      %4103 = vmatpush1.bf16.msra.mxu0 %v2661
      %4104 = vmatprep.subr.bf16.mxu0 0
      %4105 = vmatpush1.bf16.msra.mxu0 %v2664
      %4106 = vmatprep.subr.bf16.mxu0 0
      %4107 = vmatpush1.bf16.msra.mxu0 %v2667
      %4108 = vmatprep.subr.bf16.mxu0 0
      %4109 = vmatpush1.bf16.msra.mxu0 %v2670
      %4110 = vmatprep.subr.bf16.mxu0 0
      %4111 = vmatpush1.bf16.msra.mxu0 %v2673
      %4112 = vmatprep.subr.bf16.mxu0 0
      %4113 = vmatpush1.bf16.msra.mxu0 %v2676
      %4114 = vmatprep.subr.bf16.mxu0 0
      %4115 = vmatpush1.bf16.msra.mxu0 %v2679
      %4116 = vmatprep.subr.bf16.mxu0 0
      %4117 = vmatpush1.bf16.msra.mxu0 %v2682
      %4118 = vmatprep.subr.bf16.mxu0 0
      %4119 = vmatpush1.bf16.msra.mxu0 %v2685
      %4120 = vmatprep.subr.bf16.mxu0 0
      %4121 = vmatpush1.bf16.msra.mxu0 %v2688
      %4122 = vmatprep.subr.bf16.mxu0 0
      %4123 = vmatpush1.bf16.msra.mxu0 %v2691
      %4124 = vmatprep.subr.bf16.mxu0 0
      %4125 = vmatpush1.bf16.msra.mxu0 %v2694
      %4126 = vmatprep.subr.bf16.mxu0 0
      %4127 = vmatpush1.bf16.msra.mxu0 %v2697
      %4128 = vmatprep.subr.bf16.mxu0 0
      %4129 = vmatpush1.bf16.msra.mxu0 %v2700
      %4130 = vmatprep.subr.bf16.mxu0 0
      %4131 = vmatpush1.bf16.msra.mxu0 %v2703
      %4132 = vmatprep.subr.bf16.mxu0 0
      %4133 = vmatpush1.bf16.msra.mxu0 %v2706
      %4134 = vmatprep.mubr.bf16.mxu0 %v1018
      %4135 = vmatmul.mubr.bf16.gmra.mrb[0].mxu0 %v1017
      %v4136 = vpop.f32.mrb[0].mxu0
      %v4137 = vadd.f32 %v4088, %v4136
      %v4138 = vpop.f32.mrb[0].mxu0
      %v4139 = vpop.f32.mrb[0].mxu0
      %v4140 = vadd.f32 %v4091, %v4139
      %v4141 = vpop.f32.mrb[0].mxu0
      %4142 = vmatprep.mubr.bf16.mxu0 %v1037
      %4143 = vmatmul.mubr.bf16.gmra.mrb[0].mxu0 %v1036
      %v4144 = vpop.f32.mrb[0].mxu0
      %v4145 = vadd.f32 %v4096, %v4144
      %v4146 = vpop.f32.mrb[0].mxu0
      %v4147 = vpop.f32.mrb[0].mxu0
      %v4148 = vadd.f32 %v4099, %v4147
      %v4149 = vpop.f32.mrb[0].mxu0
      %4150 = vdwg.mxu0
      %4151 = vmatprep.subr.bf16.mxu0 0
      %4152 = vmatpush1.bf16.msra.mxu0 %v2709
      %4153 = vmatprep.subr.bf16.mxu0 0
      %4154 = vmatpush1.bf16.msra.mxu0 %v2712
      %4155 = vmatprep.subr.bf16.mxu0 0
      %4156 = vmatpush1.bf16.msra.mxu0 %v2715
      %4157 = vmatprep.subr.bf16.mxu0 0
      %4158 = vmatpush1.bf16.msra.mxu0 %v2718
      %4159 = vmatprep.subr.bf16.mxu0 0
      %4160 = vmatpush1.bf16.msra.mxu0 %v2721
      %4161 = vmatprep.subr.bf16.mxu0 0
      %4162 = vmatpush1.bf16.msra.mxu0 %v2724
      %4163 = vmatprep.subr.bf16.mxu0 0
      %4164 = vmatpush1.bf16.msra.mxu0 %v2727
      %4165 = vmatprep.subr.bf16.mxu0 0
      %4166 = vmatpush1.bf16.msra.mxu0 %v2730
      %4167 = vmatprep.subr.bf16.mxu0 0
      %4168 = vmatpush1.bf16.msra.mxu0 %v2733
      %4169 = vmatprep.subr.bf16.mxu0 0
      %4170 = vmatpush1.bf16.msra.mxu0 %v2736
      %4171 = vmatprep.subr.bf16.mxu0 0
      %4172 = vmatpush1.bf16.msra.mxu0 %v2739
      %4173 = vmatprep.subr.bf16.mxu0 0
      %4174 = vmatpush1.bf16.msra.mxu0 %v2742
      %4175 = vmatprep.subr.bf16.mxu0 0
      %4176 = vmatpush1.bf16.msra.mxu0 %v2745
      %4177 = vmatprep.subr.bf16.mxu0 0
      %4178 = vmatpush1.bf16.msra.mxu0 %v2748
      %4179 = vmatprep.subr.bf16.mxu0 0
      %4180 = vmatpush1.bf16.msra.mxu0 %v2751
      %4181 = vmatprep.subr.bf16.mxu0 0
      %4182 = vmatpush1.bf16.msra.mxu0 %v2754
      %4183 = vmatprep.mubr.bf16.mxu0 %v1020
      %4184 = vmatmul.mubr.bf16.gmra.mrb[0].mxu0 %v1019
      %v4185 = vpop.f32.mrb[0].mxu0
      %v4186 = vadd.f32 %v4137, %v4185
      %v4187 = vpop.f32.mrb[0].mxu0
      %v4188 = vpop.f32.mrb[0].mxu0
      %v4189 = vadd.f32 %v4140, %v4188
      %v4190 = vpop.f32.mrb[0].mxu0
      %4191 = vmatprep.mubr.bf16.mxu0 %v1039
      %4192 = vmatmul.mubr.bf16.gmra.mrb[0].mxu0 %v1038
      %v4193 = vpop.f32.mrb[0].mxu0
      %v4194 = vadd.f32 %v4145, %v4193
      %v4195 = vpop.f32.mrb[0].mxu0
      %v4196 = vpop.f32.mrb[0].mxu0
      %v4197 = vadd.f32 %v4148, %v4196
      %v4198 = vpop.f32.mrb[0].mxu0
      %4199 = vdwg.mxu0
      %4200 = vmatprep.subr.bf16.mxu0 0
      %4201 = vmatpush1.bf16.msra.mxu0 %v2757
      %4202 = vmatprep.subr.bf16.mxu0 0
      %4203 = vmatpush1.bf16.msra.mxu0 %v2760
      %4204 = vmatprep.subr.bf16.mxu0 0
      %4205 = vmatpush1.bf16.msra.mxu0 %v2763
      %4206 = vmatprep.subr.bf16.mxu0 0
      %4207 = vmatpush1.bf16.msra.mxu0 %v2766
      %4208 = vmatprep.subr.bf16.mxu0 0
      %4209 = vmatpush1.bf16.msra.mxu0 %v2769
      %4210 = vmatprep.subr.bf16.mxu0 0
      %4211 = vmatpush1.bf16.msra.mxu0 %v2772
      %4212 = vmatprep.subr.bf16.mxu0 0
      %4213 = vmatpush1.bf16.msra.mxu0 %v2775
      %4214 = vmatprep.subr.bf16.mxu0 0
      %4215 = vmatpush1.bf16.msra.mxu0 %v2778
      %4216 = vmatprep.subr.bf16.mxu0 0
      %4217 = vmatpush1.bf16.msra.mxu0 %v2781
      %4218 = vmatprep.subr.bf16.mxu0 0
      %4219 = vmatpush1.bf16.msra.mxu0 %v2784
      %4220 = vmatprep.subr.bf16.mxu0 0
      %4221 = vmatpush1.bf16.msra.mxu0 %v2787
      %4222 = vmatprep.subr.bf16.mxu0 0
      %4223 = vmatpush1.bf16.msra.mxu0 %v2790
      %4224 = vmatprep.subr.bf16.mxu0 0
      %4225 = vmatpush1.bf16.msra.mxu0 %v2793
      %4226 = vmatprep.subr.bf16.mxu0 0
      %4227 = vmatpush1.bf16.msra.mxu0 %v2796
      %4228 = vmatprep.subr.bf16.mxu0 0
      %4229 = vmatpush1.bf16.msra.mxu0 %v2799
      %4230 = vmatprep.subr.bf16.mxu0 0
      %4231 = vmatpush1.bf16.msra.mxu0 %v2802
      %4232 = vmatprep.mubr.bf16.mxu0 %v1022
      %4233 = vmatmul.mubr.bf16.gmra.mrb[0].mxu0 %v1021
      %v4234 = vpop.f32.mrb[0].mxu0
      %v4235 = vadd.f32 %v4186, %v4234
      %v4236 = vpop.f32.mrb[0].mxu0
      %v4237 = vpop.f32.mrb[0].mxu0
      %v4238 = vadd.f32 %v4189, %v4237
      %v4239 = vpop.f32.mrb[0].mxu0
      %4240 = vmatprep.mubr.bf16.mxu0 %v1041
      %4241 = vmatmul.mubr.bf16.gmra.mrb[0].mxu0 %v1040
      %v4242 = vpop.f32.mrb[0].mxu0
      %v4243 = vadd.f32 %v4194, %v4242
      %v4244 = vpop.f32.mrb[0].mxu0
      %v4245 = vpop.f32.mrb[0].mxu0
      %v4246 = vadd.f32 %v4197, %v4245
      %v4247 = vpop.f32.mrb[0].mxu0
      %4248 = vdwg.mxu0
      %4249 = vmatprep.subr.bf16.mxu0 0
      %4250 = vmatpush1.bf16.msra.mxu0 %v2805
      %4251 = vmatprep.subr.bf16.mxu0 0
      %4252 = vmatpush1.bf16.msra.mxu0 %v2808
      %4253 = vmatprep.subr.bf16.mxu0 0
      %4254 = vmatpush1.bf16.msra.mxu0 %v2811
      %4255 = vmatprep.subr.bf16.mxu0 0
      %4256 = vmatpush1.bf16.msra.mxu0 %v2814
      %4257 = vmatprep.subr.bf16.mxu0 0
      %4258 = vmatpush1.bf16.msra.mxu0 %v2817
      %4259 = vmatprep.subr.bf16.mxu0 0
      %4260 = vmatpush1.bf16.msra.mxu0 %v2820
      %4261 = vmatprep.subr.bf16.mxu0 0
      %4262 = vmatpush1.bf16.msra.mxu0 %v2823
      %4263 = vmatprep.subr.bf16.mxu0 0
      %4264 = vmatpush1.bf16.msra.mxu0 %v2826
      %4265 = vmatprep.subr.bf16.mxu0 0
      %4266 = vmatpush1.bf16.msra.mxu0 %v2829
      %4267 = vmatprep.subr.bf16.mxu0 0
      %4268 = vmatpush1.bf16.msra.mxu0 %v2832
      %4269 = vmatprep.subr.bf16.mxu0 0
      %4270 = vmatpush1.bf16.msra.mxu0 %v2835
      %4271 = vmatprep.subr.bf16.mxu0 0
      %4272 = vmatpush1.bf16.msra.mxu0 %v2838
      %4273 = vmatprep.subr.bf16.mxu0 0
      %4274 = vmatpush1.bf16.msra.mxu0 %v2841
      %4275 = vmatprep.subr.bf16.mxu0 0
      %4276 = vmatpush1.bf16.msra.mxu0 %v2844
      %4277 = vmatprep.subr.bf16.mxu0 0
      %4278 = vmatpush1.bf16.msra.mxu0 %v2847
      %4279 = vmatprep.subr.bf16.mxu0 0
      %4280 = vmatpush1.bf16.msra.mxu0 %v2850
      %4281 = vmatprep.mubr.bf16.mxu0 %v1024
      %4282 = vmatmul.mubr.bf16.gmra.mrb[0].mxu0 %v1023
      %v4283 = vpop.f32.mrb[0].mxu0
      %v4284 = vadd.f32 %v4235, %v4283
      %v4285 = vpop.f32.mrb[0].mxu0
      %v4286 = vpop.f32.mrb[0].mxu0
      %v4287 = vadd.f32 %v4238, %v4286
      %v4288 = vpop.f32.mrb[0].mxu0
      %4289 = vmatprep.mubr.bf16.mxu0 %v1043
      %4290 = vmatmul.mubr.bf16.gmra.mrb[0].mxu0 %v1042
      %v4291 = vpop.f32.mrb[0].mxu0
      %v4292 = vadd.f32 %v4243, %v4291
      %v4293 = vpop.f32.mrb[0].mxu0
      %v4294 = vpop.f32.mrb[0].mxu0
      %v4295 = vadd.f32 %v4246, %v4294
      %v4296 = vpop.f32.mrb[0].mxu0
      %4297 = vdwg.mxu0
      %4298 = vmatprep.subr.bf16.mxu0 0
      %4299 = vmatpush1.bf16.msra.mxu0 %v2853
      %4300 = vmatprep.subr.bf16.mxu0 0
      %4301 = vmatpush1.bf16.msra.mxu0 %v2856
      %4302 = vmatprep.subr.bf16.mxu0 0
      %4303 = vmatpush1.bf16.msra.mxu0 %v2859
      %4304 = vmatprep.subr.bf16.mxu0 0
      %4305 = vmatpush1.bf16.msra.mxu0 %v2862
      %4306 = vmatprep.subr.bf16.mxu0 0
      %4307 = vmatpush1.bf16.msra.mxu0 %v2865
      %4308 = vmatprep.subr.bf16.mxu0 0
      %4309 = vmatpush1.bf16.msra.mxu0 %v2868
      %4310 = vmatprep.subr.bf16.mxu0 0
      %4311 = vmatpush1.bf16.msra.mxu0 %v2871
      %4312 = vmatprep.subr.bf16.mxu0 0
      %4313 = vmatpush1.bf16.msra.mxu0 %v2874
      %4314 = vmatprep.subr.bf16.mxu0 0
      %4315 = vmatpush1.bf16.msra.mxu0 %v2877
      %4316 = vmatprep.subr.bf16.mxu0 0
      %4317 = vmatpush1.bf16.msra.mxu0 %v2880
      %4318 = vmatprep.subr.bf16.mxu0 0
      %4319 = vmatpush1.bf16.msra.mxu0 %v2883
      %4320 = vmatprep.subr.bf16.mxu0 0
      %4321 = vmatpush1.bf16.msra.mxu0 %v2886
      %4322 = vmatprep.subr.bf16.mxu0 0
      %4323 = vmatpush1.bf16.msra.mxu0 %v2889
      %4324 = vmatprep.subr.bf16.mxu0 0
      %4325 = vmatpush1.bf16.msra.mxu0 %v2892
      %4326 = vmatprep.subr.bf16.mxu0 0
      %4327 = vmatpush1.bf16.msra.mxu0 %v2895
      %4328 = vmatprep.subr.bf16.mxu0 0
      %4329 = vmatpush1.bf16.msra.mxu0 %v2898
      %4330 = vmatprep.mubr.bf16.mxu0 %v1026
      %4331 = vmatmul.mubr.bf16.gmra.mrb[0].mxu0 %v1025
      %v4332 = vpop.f32.mrb[0].mxu0
      %v4333 = vadd.f32 %v4284, %v4332
      %v4334 = vpop.f32.mrb[0].mxu0
      %v4335 = vpop.f32.mrb[0].mxu0
      %v4336 = vadd.f32 %v4287, %v4335
      %v4337 = vpop.f32.mrb[0].mxu0
      %4338 = vmatprep.mubr.bf16.mxu0 %v1045
      %4339 = vmatmul.mubr.bf16.gmra.mrb[0].mxu0 %v1044
      %v4340 = vpop.f32.mrb[0].mxu0
      %v4341 = vadd.f32 %v4292, %v4340
      %v4342 = vpop.f32.mrb[0].mxu0
      %v4343 = vpop.f32.mrb[0].mxu0
      %v4344 = vadd.f32 %v4295, %v4343
      %v4345 = vpop.f32.mrb[0].mxu0
      %4346 = vdwg.mxu0
      %4347 = vmatprep.subr.bf16.mxu0 0
      %4348 = vmatpush1.bf16.msra.mxu0 %v2901
      %4349 = vmatprep.subr.bf16.mxu0 0
      %4350 = vmatpush1.bf16.msra.mxu0 %v2904
      %4351 = vmatprep.subr.bf16.mxu0 0
      %4352 = vmatpush1.bf16.msra.mxu0 %v2907
      %4353 = vmatprep.subr.bf16.mxu0 0
      %4354 = vmatpush1.bf16.msra.mxu0 %v2910
      %4355 = vmatprep.subr.bf16.mxu0 0
      %4356 = vmatpush1.bf16.msra.mxu0 %v2913
      %4357 = vmatprep.subr.bf16.mxu0 0
      %4358 = vmatpush1.bf16.msra.mxu0 %v2916
      %4359 = vmatprep.subr.bf16.mxu0 0
      %4360 = vmatpush1.bf16.msra.mxu0 %v2919
      %4361 = vmatprep.subr.bf16.mxu0 0
      %4362 = vmatpush1.bf16.msra.mxu0 %v2922
      %4363 = vmatprep.subr.bf16.mxu0 0
      %4364 = vmatpush1.bf16.msra.mxu0 %v2925
      %4365 = vmatprep.subr.bf16.mxu0 0
      %4366 = vmatpush1.bf16.msra.mxu0 %v2928
      %4367 = vmatprep.subr.bf16.mxu0 0
      %4368 = vmatpush1.bf16.msra.mxu0 %v2931
      %4369 = vmatprep.subr.bf16.mxu0 0
      %4370 = vmatpush1.bf16.msra.mxu0 %v2934
      %4371 = vmatprep.subr.bf16.mxu0 0
      %4372 = vmatpush1.bf16.msra.mxu0 %v2937
      %4373 = vmatprep.subr.bf16.mxu0 0
      %4374 = vmatpush1.bf16.msra.mxu0 %v2940
      %4375 = vmatprep.subr.bf16.mxu0 0
      %4376 = vmatpush1.bf16.msra.mxu0 %v2943
      %4377 = vmatprep.subr.bf16.mxu0 0
      %4378 = vmatpush1.bf16.msra.mxu0 %v2946
      %4379 = vmatprep.mubr.bf16.mxu0 %v1028
      %4380 = vmatmul.mubr.bf16.gmra.mrb[0].mxu0 %v1027
      %v4381 = vpop.f32.mrb[0].mxu0
      %v4382 = vadd.f32 %v4333, %v4381
      %v4383 = vpop.f32.mrb[0].mxu0
      %v4384 = vpop.f32.mrb[0].mxu0
      %v4385 = vadd.f32 %v4336, %v4384
      %v4386 = vpop.f32.mrb[0].mxu0
      %4387 = vmatprep.mubr.bf16.mxu0 %v1047
      %4388 = vmatmul.mubr.bf16.gmra.mrb[0].mxu0 %v1046
      %v4389 = vpop.f32.mrb[0].mxu0
      %v4390 = vadd.f32 %v4341, %v4389
      %v4391 = vpop.f32.mrb[0].mxu0
      %v4392 = vpop.f32.mrb[0].mxu0
      %v4393 = vadd.f32 %v4344, %v4392
      %v4394 = vpop.f32.mrb[0].mxu0
      %4395 = vdwg.mxu0
      %4396 = vmatprep.subr.bf16.mxu0 0
      %4397 = vmatpush1.bf16.msra.mxu0 %v2949
      %4398 = vmatprep.subr.bf16.mxu0 0
      %4399 = vmatpush1.bf16.msra.mxu0 %v2952
      %4400 = vmatprep.subr.bf16.mxu0 0
      %4401 = vmatpush1.bf16.msra.mxu0 %v2955
      %4402 = vmatprep.subr.bf16.mxu0 0
      %4403 = vmatpush1.bf16.msra.mxu0 %v2958
      %4404 = vmatprep.subr.bf16.mxu0 0
      %4405 = vmatpush1.bf16.msra.mxu0 %v2961
      %4406 = vmatprep.subr.bf16.mxu0 0
      %4407 = vmatpush1.bf16.msra.mxu0 %v2964
      %4408 = vmatprep.subr.bf16.mxu0 0
      %4409 = vmatpush1.bf16.msra.mxu0 %v2967
      %4410 = vmatprep.subr.bf16.mxu0 0
      %4411 = vmatpush1.bf16.msra.mxu0 %v2970
      %4412 = vmatprep.subr.bf16.mxu0 0
      %4413 = vmatpush1.bf16.msra.mxu0 %v2973
      %4414 = vmatprep.subr.bf16.mxu0 0
      %4415 = vmatpush1.bf16.msra.mxu0 %v2976
      %4416 = vmatprep.subr.bf16.mxu0 0
      %4417 = vmatpush1.bf16.msra.mxu0 %v2979
      %4418 = vmatprep.subr.bf16.mxu0 0
      %4419 = vmatpush1.bf16.msra.mxu0 %v2982
      %4420 = vmatprep.subr.bf16.mxu0 0
      %4421 = vmatpush1.bf16.msra.mxu0 %v2985
      %4422 = vmatprep.subr.bf16.mxu0 0
      %4423 = vmatpush1.bf16.msra.mxu0 %v2988
      %4424 = vmatprep.subr.bf16.mxu0 0
      %4425 = vmatpush1.bf16.msra.mxu0 %v2991
      %4426 = vmatprep.subr.bf16.mxu0 0
      %4427 = vmatpush1.bf16.msra.mxu0 %v2994
      %4428 = vmatprep.mubr.bf16.mxu0 %v1030
      %4429 = vmatmul.mubr.bf16.gmra.mrb[0].mxu0 %v1029
      %v4430 = vpop.f32.mrb[0].mxu0
      %v4431 = vadd.f32 %v4382, %v4430
      %v4432 = vpop.f32.mrb[0].mxu0
      %v4433 = vpop.f32.mrb[0].mxu0
      %v4434 = vadd.f32 %v4385, %v4433
      %v4435 = vpop.f32.mrb[0].mxu0
      %4436 = vmatprep.mubr.bf16.mxu0 %v1049
      %4437 = vmatmul.mubr.bf16.gmra.mrb[0].mxu0 %v1048
      %v4438 = vpop.f32.mrb[0].mxu0
      %v4439 = vadd.f32 %v4390, %v4438
      %v4440 = vpop.f32.mrb[0].mxu0
      %v4441 = vpop.f32.mrb[0].mxu0
      %v4442 = vadd.f32 %v4393, %v4441
      %v4443 = vpop.f32.mrb[0].mxu0
      %4444 = vdwg.mxu0
      %4445 = vmatprep.subr.bf16.mxu0 0
      %4446 = vmatpush1.bf16.msra.mxu0 %v2997
      %4447 = vmatprep.subr.bf16.mxu0 0
      %4448 = vmatpush1.bf16.msra.mxu0 %v3000
      %4449 = vmatprep.subr.bf16.mxu0 0
      %4450 = vmatpush1.bf16.msra.mxu0 %v3003
      %4451 = vmatprep.subr.bf16.mxu0 0
      %4452 = vmatpush1.bf16.msra.mxu0 %v3006
      %4453 = vmatprep.subr.bf16.mxu0 0
      %4454 = vmatpush1.bf16.msra.mxu0 %v3009
      %4455 = vmatprep.subr.bf16.mxu0 0
      %4456 = vmatpush1.bf16.msra.mxu0 %v3012
      %4457 = vmatprep.subr.bf16.mxu0 0
      %4458 = vmatpush1.bf16.msra.mxu0 %v3015
      %4459 = vmatprep.subr.bf16.mxu0 0
      %4460 = vmatpush1.bf16.msra.mxu0 %v3018
      %4461 = vmatprep.subr.bf16.mxu0 0
      %4462 = vmatpush1.bf16.msra.mxu0 %v3021
      %4463 = vmatprep.subr.bf16.mxu0 0
      %4464 = vmatpush1.bf16.msra.mxu0 %v3024
      %4465 = vmatprep.subr.bf16.mxu0 0
      %4466 = vmatpush1.bf16.msra.mxu0 %v3027
      %4467 = vmatprep.subr.bf16.mxu0 0
      %4468 = vmatpush1.bf16.msra.mxu0 %v3030
      %4469 = vmatprep.subr.bf16.mxu0 0
      %4470 = vmatpush1.bf16.msra.mxu0 %v3033
      %4471 = vmatprep.subr.bf16.mxu0 0
      %4472 = vmatpush1.bf16.msra.mxu0 %v3036
      %4473 = vmatprep.subr.bf16.mxu0 0
      %4474 = vmatpush1.bf16.msra.mxu0 %v3039
      %4475 = vmatprep.subr.bf16.mxu0 0
      %4476 = vmatpush1.bf16.msra.mxu0 %v3042
      %4477 = vmatprep.mubr.bf16.mxu0 %v1032
      %4478 = vmatmul.mubr.bf16.gmra.mrb[0].mxu0 %v1031
      %v4479 = vpop.f32.mrb[0].mxu0
      %v4480 = vadd.f32 %v4431, %v4479
      %v4481 = vpop.f32.mrb[0].mxu0
      %v4482 = vpop.f32.mrb[0].mxu0
      %v4483 = vadd.f32 %v4434, %v4482
      %v4484 = vpop.f32.mrb[0].mxu0
      %4485 = vmatprep.mubr.bf16.mxu0 %v1051
      %4486 = vmatmul.mubr.bf16.gmra.mrb[0].mxu0 %v1050
      %v4487 = vpop.f32.mrb[0].mxu0
      %v4488 = vadd.f32 %v4439, %v4487
      %v4489 = vpop.f32.mrb[0].mxu0
      %v4490 = vpop.f32.mrb[0].mxu0
      %v4491 = vadd.f32 %v4442, %v4490
      %v4492 = vpop.f32.mrb[0].mxu0
      %4493 = vdwg.mxu0
      %4494 = vmatprep.subr.bf16.mxu0 0
      %4495 = vmatpush1.bf16.msra.mxu0 %v3045
      %4496 = vmatprep.subr.bf16.mxu0 0
      %4497 = vmatpush1.bf16.msra.mxu0 %v3048
      %4498 = vmatprep.subr.bf16.mxu0 0
      %4499 = vmatpush1.bf16.msra.mxu0 %v3051
      %4500 = vmatprep.subr.bf16.mxu0 0
      %4501 = vmatpush1.bf16.msra.mxu0 %v3054
      %4502 = vmatprep.subr.bf16.mxu0 0
      %4503 = vmatpush1.bf16.msra.mxu0 %v3057
      %4504 = vmatprep.subr.bf16.mxu0 0
      %4505 = vmatpush1.bf16.msra.mxu0 %v3060
      %4506 = vmatprep.subr.bf16.mxu0 0
      %4507 = vmatpush1.bf16.msra.mxu0 %v3063
      %4508 = vmatprep.subr.bf16.mxu0 0
      %4509 = vmatpush1.bf16.msra.mxu0 %v3066
      %4510 = vmatprep.subr.bf16.mxu0 0
      %4511 = vmatpush1.bf16.msra.mxu0 0
      %4512 = vmatprep.subr.bf16.mxu0 0
      %4513 = vmatpush1.bf16.msra.mxu0 0
      %4514 = vmatprep.subr.bf16.mxu0 0
      %4515 = vmatpush1.bf16.msra.mxu0 0
      %4516 = vmatprep.subr.bf16.mxu0 0
      %4517 = vmatpush1.bf16.msra.mxu0 0
      %4518 = vmatprep.subr.bf16.mxu0 0
      %4519 = vmatpush1.bf16.msra.mxu0 0
      %4520 = vmatprep.subr.bf16.mxu0 0
      %4521 = vmatpush1.bf16.msra.mxu0 0
      %4522 = vmatprep.subr.bf16.mxu0 0
      %4523 = vmatpush1.bf16.msra.mxu0 0
      %4524 = vmatprep.subr.bf16.mxu0 0
      %4525 = vmatpush1.bf16.msra.mxu0 0
      %4526 = vmatprep.mubr.bf16.mxu0 0
      %4527 = vmatmul.mubr.bf16.gmra.mrb[0].mxu0 %v1033
      %v4528 = vpop.f32.mrb[0].mxu0
      %v4529 = vadd.f32 %v4480, %v4528
      %v4530 = vpop.f32.mrb[0].mxu0
      %v4531 = vpop.f32.mrb[0].mxu0
      %v4532 = vadd.f32 %v4483, %v4531
      %v4533 = vpop.f32.mrb[0].mxu0
      %4534 = vmatprep.mubr.bf16.mxu0 0
      %4535 = vmatmul.mubr.bf16.gmra.mrb[0].mxu0 %v1052
      %v4536 = vpop.f32.mrb[0].mxu0
      %v4537 = vadd.f32 %v4488, %v4536
      %v4538 = vpop.f32.mrb[0].mxu0
      %v4539 = vpop.f32.mrb[0].mxu0
      %v4540 = vadd.f32 %v4491, %v4539
      %v4541 = vpop.f32.mrb[0].mxu0
      %4542 = vdwg.mxu0
      %v4543 = vmax.f32 %v4035, %v4039
      %v4544 = vmax.f32 %v4037, %v4041
      %v4545 = vmax.f32 %v4529, %v4532
      %v4546 = vmax.f32 %v4543, %v4045
      %v4547 = vmax.f32 %v4544, %v4047
      %v4548 = vmax.f32 %v4545, %v4537
      %v4549 = vmax.f32 %v4546, %v4049
      %v4550 = vmax.f32 %v4547, %v4051
      %v4551 = vmax.f32 %v4548, %v4540
      %v4552 = vld [vmem:[%s241] sm:$0x7]
      %v4554 = vlaneseq
      %v4555 = vshrl.u32 %v4554, 7
      %v4556 = vsub.s32 0, %v4555
      %v4557 = vrot.slane %v4552, %v4556
      %v4558 = vlaneseq
      %v4559 = vshrl.u32 %v4558, 7
      %v4560 = vsub.s32 1, %v4559
      %v4561 = vrot.slane %v4552, %v4560
      %v4562 = vlaneseq
      %v4563 = vshrl.u32 %v4562, 7
      %v4564 = vsub.s32 2, %v4563
      %v4565 = vrot.slane %v4552, %v4564
      %v4569 = vadd.f32 %v4549, %v4557
      %v4570 = vadd.f32 %v4550, %v4561
      %v4571 = vadd.f32 %v4551, %v4565
      %v4572 = vmax.f32 %v4569, 0.0
      %v4573 = vmax.f32 %v4570, 0.0
      %v4574 = vmax.f32 %v4571, 0.0
      %v4575 = vld [vmem:[%s245] sm:$0x7]
      %v4577 = vlaneseq
      %v4578 = vshrl.u32 %v4577, 7
      %v4579 = vsub.s32 0, %v4578
      %v4580 = vrot.slane %v4575, %v4579
      %v4581 = vlaneseq
      %v4582 = vshrl.u32 %v4581, 7
      %v4583 = vsub.s32 1, %v4582
      %v4584 = vrot.slane %v4575, %v4583
      %v4585 = vlaneseq
      %v4586 = vshrl.u32 %v4585, 7
      %v4587 = vsub.s32 2, %v4586
      %v4588 = vrot.slane %v4575, %v4587
      %v4592 = vmul.f32 %v4572, %v4580
      %v4593 = vmul.f32 %v4573, %v4584
      %v4594 = vmul.f32 %v4574, %v4588
      %v4595 = vadd.f32 %v4592, %v4593
      %vm4596 = vcmask 48128
      %v4597 = vsel %vm4596, %v4594, 0.0
      %v4598 = vadd.f32 %v4595, %v4597
      %4599 = vadd.xlane.f32.xlu0 %v4598
      %v4600 = vpop.xlane.xlu0 %4599
      %4601 = vst [vmem:[%s249] sm:$0xff] %v4600
      %p4602 = scmp.lt.s32.totalorder %s15, 2
      %s4603 = scalar_select %p4602, %s15, 2
      %s4604 = smul.addr %s4603, 8
      %s4605 = scalar_lea.vmem %s4, %s4604
      // Predicated region
      $region37: #{model_forward.5} parent=35 // pred_check
        %p4606 = pneg %p137
      $region38: #{model_forward.5} parent=35 // pred_check_branch
        %4608 = sbr.rel (%p4606) target = $region40
      $region39: #{model_forward.5} parent=35 // pred_region
        _
      $region40: #{model_forward.5} parent=35 // pred_fallthru
        _
    $region36: #{model_forward.5} parent=5 // pred_fallthru
      _
    %p4609 = scmp.le.s32.totalorder 2, %s10
    // Predicated region
    $region41: #{model_forward.5} parent=5 // pred_check
      %p4610 = pneg %p4609
    $region42: #{model_forward.5} parent=5 // pred_check_branch
      %4612 = sbr.rel (%p4610) target = $region44
    $region43: #{model_forward.5} parent=5 // pred_region
      %s4613 = ssub.s32 %s10, 2
      // Predicated region
      $region45: #{model_forward.5} parent=43 // pred_check
        %p4614 = pneg %p143
      $region46: #{model_forward.5} parent=43 // pred_check_branch
        %4616 = sbr.rel (%p4614) target = $region48
      $region47: #{model_forward.5} parent=43 // pred_region
        %p4617 = scmp.lt.s32.totalorder %s16, 2
        %s4618 = scalar_select %p4617, %s16, 2
        %s4619 = smul.addr %s4618, 8
        %s4620 = scalar_lea.vmem %s4, %s4619
      $region48: #{model_forward.5} parent=43 // pred_fallthru
        _
    $region44: #{model_forward.5} parent=5 // pred_fallthru
      _
  $region6: #{model_forward.5} parent=0 // loop_footer
    %s14 = sadd.s32 1, %s10
  $region7: #{model_forward.5} parent=0 // loop_footer_branch
    %9 = sbr.rel target = $region3
  $region8: #{model_forward.5} parent=0 // loop_exit
    _

</llo_original>
